<compile_context>
chip_gen: v6e
topology: v6e:2x2x1
jax: 0.10.0
libtpu: 0.0.40
codegen_flags: <defaults>
</compile_context>

<pallas_src>
import functools

import jax
import jax.numpy as jnp
import numpy as np
from jax.experimental import pallas as pl
from jax.experimental.pallas import tpu as pltpu


def window_attention_kernel(xy_ref, wq_ref, bq_ref, wk_ref, bk_ref, wv_ref, bv_ref,
                            wp_ref, bp_ref, rpb_ref, hmask_ref, o_ref,
                            *, block_b, seq, heads):
    N = seq
    H = heads
    G = 2 * H                        # (stream, head) pairs: x->y and y->x per head
    M, C2 = xy_ref.shape             # (block_b * N, 2 * C)
    Z = block_b * G

    xy = xy_ref[...]                 # bf16, columns = [x | y]

    def proj(w_ref, b_ref):
        r = jnp.dot(xy, w_ref[...], preferred_element_type=jnp.float32) + b_ref[...]
        return r.astype(jnp.bfloat16).reshape(block_b, 1, N, C2)

    q = proj(wq_ref, bq_ref)         # cols: [qx | qy]   (scale pre-folded into wq/bq)
    k = proj(wk_ref, bk_ref)         # cols: [ky | kx]
    v = proj(wv_ref, bv_ref)         # cols: [vy | vx]

    # 0/1 mask selecting one (stream, head) channel block; since the mask is
    # exactly 0/1, masking both Q and K keeps the per-head score exact while
    # the contraction stays a single dense 2C-deep MXU matmul.
    hmask = hmask_ref[...]           # (G, 1, C2), bf16
    qm = (q * hmask).reshape(Z, N, C2)
    km = (k * hmask).reshape(Z, N, C2)
    vm = (v * hmask).reshape(Z, N, C2)

    # Batched scores for all windows / streams / heads at once (MXU, f32 acc).
    scores = jnp.einsum('znc,zmc->znm', qm, km,
                        preferred_element_type=jnp.float32)        # (Z, N, N)
    scores = scores.reshape(block_b, G, N, N) + rpb_ref[...]       # + rel-pos bias
    # TODO(synk): shifted-window additive masks (maskx/masky) not implemented;
    # this matches the mask=None forward path only.

    smax = jnp.max(scores, axis=-1, keepdims=True)
    e = jnp.exp(scores - smax)
    probs = e * pl.reciprocal(jnp.sum(e, axis=-1, keepdims=True), approx=True)
    # attn_drop / proj_drop are identity (p = 0.0 / eval mode).
    probs = probs.astype(jnp.bfloat16).reshape(Z, N, N)

    ctx = jnp.einsum('znm,zmc->znc', probs, vm,
                     preferred_element_type=jnp.float32)           # (Z, N, 2C)
    # V was masked per (stream, head), so summing over G re-assembles the
    # head-concatenated activations: cols [0:C] = x-branch, [C:2C] = y-branch.
    merged = jnp.sum(ctx.reshape(block_b, G, N, C2), axis=1).reshape(M, C2)
    merged = merged.astype(jnp.bfloat16)

    out = jnp.dot(merged, wp_ref[...], preferred_element_type=jnp.float32) + bp_ref[...]
    o_ref[...] = out.astype(o_ref.dtype)


def _prepare_params(params, *, num_heads, scale, dtype=jnp.bfloat16):
    """Build cross-stream block-diagonal weights (done once, outside the kernel)."""
    C = params["wpx"].shape[0]
    hd = C // num_heads
    f32 = jnp.float32
    zero = jnp.zeros((C, C), f32)

    def split3(w, b):
        return ((w[:, :C], w[:, C:2 * C], w[:, 2 * C:]),
                (b[:, :C], b[:, C:2 * C], b[:, 2 * C:]))

    (wq_x, wk_x, wv_x), (bq_x, bk_x, bv_x) = split3(params["wqkvx"], params["bqkvx"])
    (wq_y, wk_y, wv_y), (bq_y, bk_y, bv_y) = split3(params["wqkvy"], params["bqkvy"])

    def blk(a, b_, c_, d):   # [[a, b_], [c_, d]]
        return jnp.concatenate([jnp.concatenate([a, b_], axis=1),
                                jnp.concatenate([c_, d], axis=1)], axis=0)

    prep = {
        # [x|y] @ w -> stream-0 columns (0:C) and stream-1 columns (C:2C)
        "wq": blk(wq_x * scale, zero, zero, wq_y * scale).astype(dtype),   # [qx|qy]
        "wk": blk(zero, wk_x, wk_y, zero).astype(dtype),                   # [ky|kx]
        "wv": blk(zero, wv_x, wv_y, zero).astype(dtype),                   # [vy|vx]
        "wp": blk(params["wpx"], zero, zero, params["wpy"]).astype(dtype), # [ox|oy]
        "bq": (jnp.concatenate([bq_x, bq_y], axis=1) * scale).astype(f32),
        "bk": jnp.concatenate([bk_y, bk_x], axis=1).astype(f32),
        "bv": jnp.concatenate([bv_y, bv_x], axis=1).astype(f32),
        "bp": jnp.concatenate([params["bpx"], params["bpy"]], axis=1).astype(f32),
    }

    # (stream, head) channel-selection mask over the 2C fused columns.
    hmask = np.zeros((2 * num_heads, 1, 2 * C), np.float32)
    for s in range(2):
        for h in range(num_heads):
            lo = s * C + h * hd
            hmask[s * num_heads + h, 0, lo:lo + hd] = 1.0
    prep["hmask"] = jnp.asarray(hmask, dtype)
    return prep


def window_attention(x, y, params, rpb, *, num_heads, scale, block_b=None):
    """x, y: (B_, N, C); params: dict of f32 weights; rpb: (num_heads, N, N)."""
    B_, N, C = x.shape
    C2 = 2 * C
    H = num_heads
    if block_b is None:
        block_b = B_
    assert B_ % block_b == 0, "block_b must divide B_"
    grid = (B_ // block_b,)
    Mb = block_b * N

    p = _prepare_params(params, num_heads=num_heads, scale=scale)

    # Lane-dense fused input slab: (B_*N, 2C) bf16, columns = [x | y].
    xy = jnp.concatenate([x.reshape(B_ * N, C), y.reshape(B_ * N, C)],
                         axis=1).astype(jnp.bfloat16)
    # Relative-position bias tiled over both streams -> (2H, N, N), f32.
    rpb2 = jnp.concatenate([rpb, rpb], axis=0).astype(jnp.float32)

    kernel = functools.partial(window_attention_kernel,
                               block_b=block_b, seq=N, heads=H)

    def fixed(ndim):
        return lambda b: (0,) * ndim

    in_specs = [
        pl.BlockSpec((Mb, C2), lambda b: (b, 0)),
        pl.BlockSpec(p["wq"].shape, fixed(2)),
        pl.BlockSpec(p["bq"].shape, fixed(2)),
        pl.BlockSpec(p["wk"].shape, fixed(2)),
        pl.BlockSpec(p["bk"].shape, fixed(2)),
        pl.BlockSpec(p["wv"].shape, fixed(2)),
        pl.BlockSpec(p["bv"].shape, fixed(2)),
        pl.BlockSpec(p["wp"].shape, fixed(2)),
        pl.BlockSpec(p["bp"].shape, fixed(2)),
        pl.BlockSpec(rpb2.shape, fixed(3)),
        pl.BlockSpec(p["hmask"].shape, fixed(3)),
    ]
    out_spec = pl.BlockSpec((Mb, C2), lambda b: (b, 0))

    o = pl.pallas_call(
        kernel,
        out_shape=jax.ShapeDtypeStruct((B_ * N, C2), x.dtype),
        grid_spec=pltpu.PrefetchScalarGridSpec(
            num_scalar_prefetch=0,
            grid=grid,
            in_specs=in_specs,
            out_specs=out_spec),
        compiler_params=pltpu.CompilerParams(
            dimension_semantics=("parallel",)),
    )(xy, p["wq"], p["bq"], p["wk"], p["bk"], p["wv"], p["bv"],
      p["wp"], p["bp"], rpb2, p["hmask"])

    ox = o[:, :C].reshape(B_, N, C)
    oy = o[:, C:].reshape(B_, N, C)
    return ox, oy


def make_relative_position_index(window_size):
    """Mirrors the PyTorch buffer construction (torch.meshgrid default = 'ij')."""
    Wh, Ww, Wt = window_size
    coords = np.stack(np.meshgrid(np.arange(Wh), np.arange(Ww), np.arange(Wt),
                                  indexing="ij"))
    coords_flatten = coords.reshape(3, -1)                         # (3, N)
    rel = coords_flatten[:, :, None] - coords_flatten[:, None, :]  # (3, N, N)
    rel = rel.transpose(1, 2, 0).astype(np.int64)                  # (N, N, 3)
    rel[:, :, 0] += Wh - 1
    rel[:, :, 1] += Ww - 1
    rel[:, :, 2] += Wt - 1
    rel[:, :, 0] *= (2 * Ww - 1) * (2 * Wt - 1)
    rel[:, :, 1] *= (2 * Wt - 1)
    return rel.sum(-1)                                             # (N, N)


def reference(x, y, params, rpb, num_heads, scale):
    """Pure-JAX f32 reference mirroring the PyTorch forward (masks=None, eval)."""
    B_, N, C = x.shape
    hd = C // num_heads

    def qkv_split(inp, w, b):
        qkv = (inp @ w + b).reshape(B_, N, 3, num_heads, hd)
        qkv = jnp.transpose(qkv, (2, 0, 3, 1, 4))
        return qkv[0], qkv[1], qkv[2]

    qx, kx, vx = qkv_split(x, params["wqkvx"], params["bqkvx"])
    qy, ky, vy = qkv_split(y, params["wqkvy"], params["bqkvy"])
    qx = qx * scale
    qy = qy * scale
    attnx = qx @ jnp.swapaxes(ky, -2, -1) + rpb[None]
    attny = qy @ jnp.swapaxes(kx, -2, -1) + rpb[None]
    attnx = jax.nn.softmax(attnx, axis=-1)
    attny = jax.nn.softmax(attny, axis=-1)
    ox = jnp.transpose(attnx @ vy, (0, 2, 1, 3)).reshape(B_, N, C)
    oy = jnp.transpose(attny @ vx, (0, 2, 1, 3)).reshape(B_, N, C)
    ox = ox @ params["wpx"] + params["bpx"]
    oy = oy @ params["wpy"] + params["bpy"]
    return ox, oy


if __name__ == "__main__":
    key = jax.random.PRNGKey(0)
    keys = jax.random.split(key, 16)

    # Small shapes consistent with the module: (num_windows*B, N, C)
    window_size = (4, 4, 4)
    N = window_size[0] * window_size[1] * window_size[2]   # 64
    dim = 32
    num_heads = 4
    head_dim = dim // num_heads
    scale = head_dim ** (-0.5)
    B_ = 8                                                  # num_windows * batch

    x = jax.random.normal(keys[0], (B_, N, dim), jnp.float32)
    y = jax.random.normal(keys[1], (B_, N, dim), jnp.float32)

    params = {
        "wqkvx": jax.random.normal(keys[2], (dim, 3 * dim), jnp.float32) * 0.1,
        "bqkvx": jax.random.normal(keys[3], (1, 3 * dim), jnp.float32) * 0.1,
        "wqkvy": jax.random.normal(keys[4], (dim, 3 * dim), jnp.float32) * 0.1,
        "bqkvy": jax.random.normal(keys[5], (1, 3 * dim), jnp.float32) * 0.1,
        "wpx": jax.random.normal(keys[6], (dim, dim), jnp.float32) * 0.1,
        "bpx": jax.random.normal(keys[7], (1, dim), jnp.float32) * 0.1,
        "wpy": jax.random.normal(keys[8], (dim, dim), jnp.float32) * 0.1,
        "bpy": jax.random.normal(keys[9], (1, dim), jnp.float32) * 0.1,
    }

    # Relative position bias: table gather done once in the wrapper (tiny);
    # the resulting (num_heads, N, N) bias is an input to the kernel.
    table_size = ((2 * window_size[0] - 1) * (2 * window_size[1] - 1)
                  * (2 * window_size[2] - 1))
    rpb_table = jax.random.normal(keys[10], (table_size, num_heads),
                                  jnp.float32) * 0.02
    rel_index = make_relative_position_index(window_size)          # (N, N)
    rpb = jnp.take(rpb_table, jnp.asarray(rel_index.reshape(-1), jnp.int32),
                   axis=0).reshape(N, N, num_heads)
    rpb = jnp.transpose(rpb, (2, 0, 1))                            # (H, N, N)

    # block_b=4 -> grid of 2 (even, so both v7x TensorCores get work).
    ox, oy = window_attention(x, y, params, rpb,
                              num_heads=num_heads, scale=scale, block_b=4)
    (ox, oy) = jax.block_until_ready((ox, oy))

    rx, ry = reference(x, y, params, rpb, num_heads, scale)
    # bf16-operand / f32-accumulate MXU path vs f32 reference -> looser tolerance.
    np.testing.assert_allclose(np.asarray(ox), np.asarray(rx), rtol=3e-2, atol=3e-2)
    np.testing.assert_allclose(np.asarray(oy), np.asarray(ry), rtol=3e-2, atol=3e-2)
    print("KERNEL_OK")
</pallas_src>

<mosaic_0001>
module attributes {stable_mosaic.version = 11 : i64} {
  func.func @window_attention_kernel(%arg0: i32, %arg1: memref<256x64xbf16, #tpu.memory_space<vmem>>, %arg2: memref<64x64xbf16, #tpu.memory_space<vmem>>, %arg3: memref<1x64xf32, #tpu.memory_space<vmem>>, %arg4: memref<64x64xbf16, #tpu.memory_space<vmem>>, %arg5: memref<1x64xf32, #tpu.memory_space<vmem>>, %arg6: memref<64x64xbf16, #tpu.memory_space<vmem>>, %arg7: memref<1x64xf32, #tpu.memory_space<vmem>>, %arg8: memref<64x64xbf16, #tpu.memory_space<vmem>>, %arg9: memref<1x64xf32, #tpu.memory_space<vmem>>, %arg10: memref<8x64x64xf32, #tpu.memory_space<vmem>>, %arg11: memref<8x1x64xbf16, #tpu.memory_space<vmem>>, %arg12: memref<256x64xf32, #tpu.memory_space<vmem>>) attributes {dimension_semantics = [#tpu.dimension_semantics<parallel>], iteration_bounds = array<i64: 2>, scalar_prefetch = 0 : i64, scratch_operands = 0 : i64, tpu.core_type = #tpu.core_type<tc>, window_params = [{transform_indices = @transform_0, window_bounds = array<i64: 256, 64>}, {pipeline_mode = #tpu.pipeline_mode<synchronous>, transform_indices = @transform_1, window_bounds = array<i64: 64, 64>}, {pipeline_mode = #tpu.pipeline_mode<synchronous>, transform_indices = @transform_2, window_bounds = array<i64: 1, 64>}, {pipeline_mode = #tpu.pipeline_mode<synchronous>, transform_indices = @transform_3, window_bounds = array<i64: 64, 64>}, {pipeline_mode = #tpu.pipeline_mode<synchronous>, transform_indices = @transform_4, window_bounds = array<i64: 1, 64>}, {pipeline_mode = #tpu.pipeline_mode<synchronous>, transform_indices = @transform_5, window_bounds = array<i64: 64, 64>}, {pipeline_mode = #tpu.pipeline_mode<synchronous>, transform_indices = @transform_6, window_bounds = array<i64: 1, 64>}, {pipeline_mode = #tpu.pipeline_mode<synchronous>, transform_indices = @transform_7, window_bounds = array<i64: 64, 64>}, {pipeline_mode = #tpu.pipeline_mode<synchronous>, transform_indices = @transform_8, window_bounds = array<i64: 1, 64>}, {pipeline_mode = #tpu.pipeline_mode<synchronous>, transform_indices = @transform_9, window_bounds = array<i64: 8, 64, 64>}, {pipeline_mode = #tpu.pipeline_mode<synchronous>, transform_indices = @transform_10, window_bounds = array<i64: 8, 1, 64>}, {transform_indices = @transform_11, window_bounds = array<i64: 256, 64>}]} {
    %c0 = arith.constant 0 : index
    %c0_0 = arith.constant 0 : index
    %0 = vector.load %arg1[%c0, %c0_0] : memref<256x64xbf16, #tpu.memory_space<vmem>>, vector<256x64xbf16>
    %c0_1 = arith.constant 0 : index
    %c0_2 = arith.constant 0 : index
    %1 = vector.load %arg2[%c0_1, %c0_2] : memref<64x64xbf16, #tpu.memory_space<vmem>>, vector<64x64xbf16>
    %cst = arith.constant dense<0.000000e+00> : vector<256x64xf32>
    %2 = tpu.matmul %0, %1, %cst {dimension_numbers = #tpu.dot_dimension_numbers<[1], [0], [0], [1], [0, 0, 1, 1], [], []>} : vector<256x64xbf16>, vector<64x64xbf16>, vector<256x64xf32> -> vector<256x64xf32>
    %c0_3 = arith.constant 0 : index
    %c0_4 = arith.constant 0 : index
    %3 = vector.load %arg3[%c0_3, %c0_4] : memref<1x64xf32, #tpu.memory_space<vmem>>, vector<1x64xf32>
    %4 = vector.broadcast %3 : vector<1x64xf32> to vector<256x64xf32>
    %5 = arith.addf %2, %4 : vector<256x64xf32>
    %6 = arith.truncf %5 : vector<256x64xf32> to vector<256x64xbf16>
    %7 = vector.shape_cast %6 : vector<256x64xbf16> to vector<4x1x64x64xbf16>
    %c0_5 = arith.constant 0 : index
    %c0_6 = arith.constant 0 : index
    %8 = vector.load %arg4[%c0_5, %c0_6] : memref<64x64xbf16, #tpu.memory_space<vmem>>, vector<64x64xbf16>
    %cst_7 = arith.constant dense<0.000000e+00> : vector<256x64xf32>
    %9 = tpu.matmul %0, %8, %cst_7 {dimension_numbers = #tpu.dot_dimension_numbers<[1], [0], [0], [1], [0, 0, 1, 1], [], []>} : vector<256x64xbf16>, vector<64x64xbf16>, vector<256x64xf32> -> vector<256x64xf32>
    %c0_8 = arith.constant 0 : index
    %c0_9 = arith.constant 0 : index
    %10 = vector.load %arg5[%c0_8, %c0_9] : memref<1x64xf32, #tpu.memory_space<vmem>>, vector<1x64xf32>
    %11 = vector.broadcast %10 : vector<1x64xf32> to vector<256x64xf32>
    %12 = arith.addf %9, %11 : vector<256x64xf32>
    %13 = arith.truncf %12 : vector<256x64xf32> to vector<256x64xbf16>
    %14 = vector.shape_cast %13 : vector<256x64xbf16> to vector<4x1x64x64xbf16>
    %c0_10 = arith.constant 0 : index
    %c0_11 = arith.constant 0 : index
    %15 = vector.load %arg6[%c0_10, %c0_11] : memref<64x64xbf16, #tpu.memory_space<vmem>>, vector<64x64xbf16>
    %cst_12 = arith.constant dense<0.000000e+00> : vector<256x64xf32>
    %16 = tpu.matmul %0, %15, %cst_12 {dimension_numbers = #tpu.dot_dimension_numbers<[1], [0], [0], [1], [0, 0, 1, 1], [], []>} : vector<256x64xbf16>, vector<64x64xbf16>, vector<256x64xf32> -> vector<256x64xf32>
    %c0_13 = arith.constant 0 : index
    %c0_14 = arith.constant 0 : index
    %17 = vector.load %arg7[%c0_13, %c0_14] : memref<1x64xf32, #tpu.memory_space<vmem>>, vector<1x64xf32>
    %18 = vector.broadcast %17 : vector<1x64xf32> to vector<256x64xf32>
    %19 = arith.addf %16, %18 : vector<256x64xf32>
    %20 = arith.truncf %19 : vector<256x64xf32> to vector<256x64xbf16>
    %21 = vector.shape_cast %20 : vector<256x64xbf16> to vector<4x1x64x64xbf16>
    %c0_15 = arith.constant 0 : index
    %c0_16 = arith.constant 0 : index
    %c0_17 = arith.constant 0 : index
    %22 = vector.load %arg11[%c0_15, %c0_16, %c0_17] : memref<8x1x64xbf16, #tpu.memory_space<vmem>>, vector<8x1x64xbf16>
    %23 = vector.shape_cast %22 : vector<8x1x64xbf16> to vector<1x8x1x64xbf16>
    %24 = vector.broadcast %7 : vector<4x1x64x64xbf16> to vector<4x8x64x64xbf16>
    %25 = vector.broadcast %23 : vector<1x8x1x64xbf16> to vector<4x8x64x64xbf16>
    %26 = arith.mulf %24, %25 : vector<4x8x64x64xbf16>
    %27 = vector.shape_cast %26 : vector<4x8x64x64xbf16> to vector<32x64x64xbf16>
    %28 = vector.shape_cast %22 : vector<8x1x64xbf16> to vector<1x8x1x64xbf16>
    %29 = vector.broadcast %14 : vector<4x1x64x64xbf16> to vector<4x8x64x64xbf16>
    %30 = vector.broadcast %28 : vector<1x8x1x64xbf16> to vector<4x8x64x64xbf16>
    %31 = arith.mulf %29, %30 : vector<4x8x64x64xbf16>
    %32 = vector.shape_cast %31 : vector<4x8x64x64xbf16> to vector<32x64x64xbf16>
    %33 = vector.shape_cast %22 : vector<8x1x64xbf16> to vector<1x8x1x64xbf16>
    %34 = vector.broadcast %21 : vector<4x1x64x64xbf16> to vector<4x8x64x64xbf16>
    %35 = vector.broadcast %33 : vector<1x8x1x64xbf16> to vector<4x8x64x64xbf16>
    %36 = arith.mulf %34, %35 : vector<4x8x64x64xbf16>
    %37 = vector.shape_cast %36 : vector<4x8x64x64xbf16> to vector<32x64x64xbf16>
    "tpu.trace_start"() <{level = 10 : i32, message = "znc,zmc->znm"}> : () -> ()
    %cst_18 = arith.constant dense<0.000000e+00> : vector<32x64x64xf32>
    %38 = tpu.matmul %27, %32, %cst_18 {dimension_numbers = #tpu.dot_dimension_numbers<[2], [2], [1], [1], [0, 0, 0, 1, 1, 1], [0], [0]>} : vector<32x64x64xbf16>, vector<32x64x64xbf16>, vector<32x64x64xf32> -> vector<32x64x64xf32>
    "tpu.trace_stop"() : () -> ()
    %39 = vector.shape_cast %38 : vector<32x64x64xf32> to vector<4x8x64x64xf32>
    %c0_19 = arith.constant 0 : index
    %c0_20 = arith.constant 0 : index
    %c0_21 = arith.constant 0 : index
    %40 = vector.load %arg10[%c0_19, %c0_20, %c0_21] : memref<8x64x64xf32, #tpu.memory_space<vmem>>, vector<8x64x64xf32>
    %41 = vector.shape_cast %40 : vector<8x64x64xf32> to vector<1x8x64x64xf32>
    %42 = vector.broadcast %41 : vector<1x8x64x64xf32> to vector<4x8x64x64xf32>
    %43 = arith.addf %39, %42 : vector<4x8x64x64xf32>
    %cst_22 = arith.constant dense<0xFF800000> : vector<4x8x64xf32>
    %44 = vector.multi_reduction <maximumf>, %43, %cst_22 [3] : vector<4x8x64x64xf32> to vector<4x8x64xf32>
    %45 = vector.shape_cast %44 : vector<4x8x64xf32> to vector<4x8x64x1xf32>
    %46 = vector.broadcast %45 : vector<4x8x64x1xf32> to vector<4x8x64x64xf32>
    %47 = arith.subf %43, %46 : vector<4x8x64x64xf32>
    %48 = math.exp %47 : vector<4x8x64x64xf32>
    %cst_23 = arith.constant dense<0.000000e+00> : vector<4x8x64xf32>
    %49 = vector.multi_reduction <add>, %48, %cst_23 [3] : vector<4x8x64x64xf32> to vector<4x8x64xf32>
    %50 = vector.shape_cast %49 : vector<4x8x64xf32> to vector<4x8x64x1xf32>
    %51 = tpu.reciprocal %50 {approx = true} : vector<4x8x64x1xf32> -> vector<4x8x64x1xf32>
    %52 = vector.broadcast %51 : vector<4x8x64x1xf32> to vector<4x8x64x64xf32>
    %53 = arith.mulf %48, %52 : vector<4x8x64x64xf32>
    %54 = arith.truncf %53 : vector<4x8x64x64xf32> to vector<4x8x64x64xbf16>
    %55 = vector.shape_cast %54 : vector<4x8x64x64xbf16> to vector<32x64x64xbf16>
    "tpu.trace_start"() <{level = 10 : i32, message = "znm,zmc->znc"}> : () -> ()
    %cst_24 = arith.constant dense<0.000000e+00> : vector<32x64x64xf32>
    %56 = tpu.matmul %55, %37, %cst_24 {dimension_numbers = #tpu.dot_dimension_numbers<[2], [1], [1], [2], [0, 0, 0, 1, 1, 2], [0], [0]>} : vector<32x64x64xbf16>, vector<32x64x64xbf16>, vector<32x64x64xf32> -> vector<32x64x64xf32>
    "tpu.trace_stop"() : () -> ()
    %57 = vector.shape_cast %56 : vector<32x64x64xf32> to vector<4x8x64x64xf32>
    %cst_25 = arith.constant dense<0.000000e+00> : vector<4x64x64xf32>
    %58 = vector.multi_reduction <add>, %57, %cst_25 [1] : vector<4x8x64x64xf32> to vector<4x64x64xf32>
    %59 = vector.shape_cast %58 : vector<4x64x64xf32> to vector<256x64xf32>
    %60 = arith.truncf %59 : vector<256x64xf32> to vector<256x64xbf16>
    %c0_26 = arith.constant 0 : index
    %c0_27 = arith.constant 0 : index
    %61 = vector.load %arg8[%c0_26, %c0_27] : memref<64x64xbf16, #tpu.memory_space<vmem>>, vector<64x64xbf16>
    %cst_28 = arith.constant dense<0.000000e+00> : vector<256x64xf32>
    %62 = tpu.matmul %60, %61, %cst_28 {dimension_numbers = #tpu.dot_dimension_numbers<[1], [0], [0], [1], [0, 0, 1, 1], [], []>} : vector<256x64xbf16>, vector<64x64xbf16>, vector<256x64xf32> -> vector<256x64xf32>
    %c0_29 = arith.constant 0 : index
    %c0_30 = arith.constant 0 : index
    %63 = vector.load %arg9[%c0_29, %c0_30] : memref<1x64xf32, #tpu.memory_space<vmem>>, vector<1x64xf32>
    %64 = vector.broadcast %63 : vector<1x64xf32> to vector<256x64xf32>
    %65 = arith.addf %62, %64 : vector<256x64xf32>
    %c0_31 = arith.constant 0 : index
    %c0_32 = arith.constant 0 : index
    %66 = vector.load %arg12[%c0_31, %c0_32] : memref<256x64xf32, #tpu.memory_space<vmem>>, vector<256x64xf32>
    tpu.vector_store %arg12[%c0_31, %c0_32], %65 {strides = array<i32>} : memref<256x64xf32, #tpu.memory_space<vmem>>, vector<256x64xf32>,
    return
  }
  func.func @transform_0(%arg0: i32) -> (i32, i32) {
    %c0_i32 = arith.constant 0 : i32
    %c0_i32_0 = arith.constant 0 : i32
    return %arg0, %c0_i32 : i32, i32
  }
  func.func @transform_1(%arg0: i32) -> (i32, i32) {
    %c0_i32 = arith.constant 0 : i32
    %c0_i32_0 = arith.constant 0 : i32
    %c0_i32_1 = arith.constant 0 : i32
    return %c0_i32, %c0_i32_0 : i32, i32
  }
  func.func @transform_2(%arg0: i32) -> (i32, i32) {
    %c0_i32 = arith.constant 0 : i32
    %c0_i32_0 = arith.constant 0 : i32
    %c0_i32_1 = arith.constant 0 : i32
    return %c0_i32, %c0_i32_0 : i32, i32
  }
  func.func @transform_3(%arg0: i32) -> (i32, i32) {
    %c0_i32 = arith.constant 0 : i32
    %c0_i32_0 = arith.constant 0 : i32
    %c0_i32_1 = arith.constant 0 : i32
    return %c0_i32, %c0_i32_0 : i32, i32
  }
  func.func @transform_4(%arg0: i32) -> (i32, i32) {
    %c0_i32 = arith.constant 0 : i32
    %c0_i32_0 = arith.constant 0 : i32
    %c0_i32_1 = arith.constant 0 : i32
    return %c0_i32, %c0_i32_0 : i32, i32
  }
  func.func @transform_5(%arg0: i32) -> (i32, i32) {
    %c0_i32 = arith.constant 0 : i32
    %c0_i32_0 = arith.constant 0 : i32
    %c0_i32_1 = arith.constant 0 : i32
    return %c0_i32, %c0_i32_0 : i32, i32
  }
  func.func @transform_6(%arg0: i32) -> (i32, i32) {
    %c0_i32 = arith.constant 0 : i32
    %c0_i32_0 = arith.constant 0 : i32
    %c0_i32_1 = arith.constant 0 : i32
    return %c0_i32, %c0_i32_0 : i32, i32
  }
  func.func @transform_7(%arg0: i32) -> (i32, i32) {
    %c0_i32 = arith.constant 0 : i32
    %c0_i32_0 = arith.constant 0 : i32
    %c0_i32_1 = arith.constant 0 : i32
    return %c0_i32, %c0_i32_0 : i32, i32
  }
  func.func @transform_8(%arg0: i32) -> (i32, i32) {
    %c0_i32 = arith.constant 0 : i32
    %c0_i32_0 = arith.constant 0 : i32
    %c0_i32_1 = arith.constant 0 : i32
    return %c0_i32, %c0_i32_0 : i32, i32
  }
  func.func @transform_9(%arg0: i32) -> (i32, i32, i32) {
    %c0_i32 = arith.constant 0 : i32
    %c0_i32_0 = arith.constant 0 : i32
    %c0_i32_1 = arith.constant 0 : i32
    %c0_i32_2 = arith.constant 0 : i32
    return %c0_i32, %c0_i32_0, %c0_i32_1 : i32, i32, i32
  }
  func.func @transform_10(%arg0: i32) -> (i32, i32, i32) {
    %c0_i32 = arith.constant 0 : i32
    %c0_i32_0 = arith.constant 0 : i32
    %c0_i32_1 = arith.constant 0 : i32
    %c0_i32_2 = arith.constant 0 : i32
    return %c0_i32, %c0_i32_0, %c0_i32_1 : i32, i32, i32
  }
  func.func @transform_11(%arg0: i32) -> (i32, i32) {
    %c0_i32 = arith.constant 0 : i32
    %c0_i32_0 = arith.constant 0 : i32
    return %arg0, %c0_i32 : i32, i32
  }
}

</mosaic_0001>

<llo_original>
// kernel: tpu_custom_call.1
$region0: #{tpu_custom_call.1}
  #allocation0 [shape = 'u32[]', space=smem, size = 0x4, offset = 0x4, fixed_abs, tag = 'smem constant byte address 0x4 - core index']
  #allocation1 [shape = 'u32[144,128]{1,0:T(1,128)}', space=vmem, size = 0x12000, scoped, tag = 'internal scratch']
  %s0 = inlined_call_operand.vmem [shape: bf16[512,64], index: 0, kind: input, shape index: {}]
  %s1 = inlined_call_operand.vmem [shape: bf16[64,64], index: 1, kind: input, shape index: {}]
  %s2 = inlined_call_operand.vmem [shape: f32[1,64], index: 2, kind: input, shape index: {}]
  %s3 = inlined_call_operand.vmem [shape: bf16[64,64], index: 3, kind: input, shape index: {}]
  %s4 = inlined_call_operand.vmem [shape: f32[1,64], index: 4, kind: input, shape index: {}]
  %s5 = inlined_call_operand.vmem [shape: bf16[64,64], index: 5, kind: input, shape index: {}]
  %s6 = inlined_call_operand.vmem [shape: f32[1,64], index: 6, kind: input, shape index: {}]
  %s7 = inlined_call_operand.vmem [shape: bf16[64,64], index: 7, kind: input, shape index: {}]
  %s8 = inlined_call_operand.vmem [shape: f32[1,64], index: 8, kind: input, shape index: {}]
  %s9 = inlined_call_operand.hbm [shape: f32[8,64,64], index: 9, kind: input, shape index: {}]
  %s10 = inlined_call_operand.vmem [shape: bf16[8,1,64], index: 10, kind: input, shape index: {}]
  %s11 = inlined_call_operand.vmem [shape: f32[512,64], index: 11, kind: output, shape index: {}]
  %s12 = sld [smem:[#allocation0]]
  $region81: #{tpu_custom_call.1} parent=0
    _
  %s14 = ssub.s32 1, %s12
  %s15 = scalar_select 0, %s14, %s12
  $region1: #{tpu_custom_call.1} parent=0
    #allocation2 [shape = 'u8[262144]{0}', space=vmem, size = 0x40000, scoped, tag = 'input window, operand 9, single buffered']
    #allocation3 [shape = 's32[2]{0}', space=sflag, size = 0x8, scoped, tag = 'scoped memory for tpu_custom_call.1']
    %16 = vsyncpa [#allocation3], 0
    loop: start=0, step=1, limit=4
    $region2: #{tpu_custom_call.1} parent=1 // loop_pre_header
      _
    $region3: #{tpu_custom_call.1} parent=1 // loop_header
      %s18 = sphi 0, %s22
      %p19 = scmp.ge.s32.totalorder %s18, 4
      %s28 = sphi 0, %s30
      %s31 = sphi 0, %s28
      %s32 = sphi 0, %s31
      %s48 = sphi 0, %s32
      %s52 = sphi 0, %s52
      %s54 = sphi 0, %s52
      %s55 = sphi 0, %s54
      %s69 = sphi 0, %s55
      %s73 = sphi 0, %s73
      %s75 = sphi 0, %s73
      %s76 = sphi 0, %s75
      %s90 = sphi 0, %s76
      %s94 = sphi 0, %s94
      %s96 = sphi 0, %s94
      %s97 = sphi 0, %s96
      %s111 = sphi 0, %s97
      %s115 = sphi 0, %s115
      %s117 = sphi 0, %s115
      %s118 = sphi 0, %s117
      %s132 = sphi 0, %s118
      %s136 = sphi 0, %s136
      %s138 = sphi 0, %s136
      %s139 = sphi 0, %s138
      %s153 = sphi 0, %s139
      %s157 = sphi 0, %s157
      %s159 = sphi 0, %s157
      %s160 = sphi 0, %s159
      %s174 = sphi 0, %s160
      %s178 = sphi 0, %s178
      %s180 = sphi 0, %s178
      %s181 = sphi 0, %s180
      %s195 = sphi 0, %s181
      %s199 = sphi 0, %s199
      %s201 = sphi 0, %s199
      %s202 = sphi 0, %s201
      %s216 = sphi 0, %s202
      %s220 = sphi 0, %s220
      %s222 = sphi 0, %s220
      %s223 = sphi 0, %s222
      %s237 = sphi 0, %s223
      %s241 = sphi 0, %s241
      %s243 = sphi 0, %s241
      %s244 = sphi 0, %s243
      %s258 = sphi 0, %s244
      %s264 = sphi 0, %s266
      %s267 = sphi 0, %s264
      %s268 = sphi 0, %s267
      %s284 = sphi 0, %s268
    $region4: #{tpu_custom_call.1} parent=1 // loop_header_branch
      %21 = sbr.rel (%p19) target = $region8
    $region5: #{tpu_custom_call.1} parent=1 // loop_body
      %s23 = ssub.s32 %s18, 1
      %s24 = ssub.s32 %s18, 2
      %s25 = sadd.s32 %s18, 1
      %s26 = ssub.s32 %s18, %s25
      %p27 = scmp.eq.s32.totalorder %s26, 0
      %s29 = sadd.s32 %s28, 1
      %s30 = scalar_select %p27, %s28, %s29
      %p33 = pneg %p27
      %p34 = scmp.eq.s32.totalorder %s18, 1
      %p35 = por %p33, %p34
      %p36 = scmp.ne.s32.totalorder %s28, %s31
      %p37 = scmp.eq.s32.totalorder %s18, 0
      %p38 = por %p36, %p37
      %p39 = scmp.ne.s32.totalorder %s28, %s31
      %p40 = scmp.eq.s32.totalorder %s23, 1
      %p41 = por %p39, %p40
      %p42 = scmp.ne.s32.totalorder %s31, %s32
      %p43 = scmp.eq.s32.totalorder %s23, 0
      %p44 = por %p42, %p43
      %p45 = scmp.ne.s32.totalorder %s31, %s32
      %p46 = scmp.eq.s32.totalorder %s24, 1
      %p47 = por %p45, %p46
      %p49 = scmp.ne.s32.totalorder %s32, %s48
      %p50 = scmp.eq.s32.totalorder %s24, 0
      %p51 = por %p49, %p50
      %s53 = sadd.s32 %s52, 1
      %p56 = scmp.eq.s32.totalorder %s18, 1
      %p57 = scmp.ne.s32.totalorder %s52, %s54
      %p58 = scmp.eq.s32.totalorder %s18, 0
      %p59 = por %p57, %p58
      %p60 = scmp.ne.s32.totalorder %s52, %s54
      %p61 = scmp.eq.s32.totalorder %s23, 1
      %p62 = por %p60, %p61
      %p63 = scmp.ne.s32.totalorder %s54, %s55
      %p64 = scmp.eq.s32.totalorder %s23, 0
      %p65 = por %p63, %p64
      %p66 = scmp.ne.s32.totalorder %s54, %s55
      %p67 = scmp.eq.s32.totalorder %s24, 1
      %p68 = por %p66, %p67
      %p70 = scmp.ne.s32.totalorder %s55, %s69
      %p71 = scmp.eq.s32.totalorder %s24, 0
      %p72 = por %p70, %p71
      %s74 = sadd.s32 %s73, 1
      %p77 = scmp.eq.s32.totalorder %s18, 1
      %p78 = scmp.ne.s32.totalorder %s73, %s75
      %p79 = scmp.eq.s32.totalorder %s18, 0
      %p80 = por %p78, %p79
      %p81 = scmp.ne.s32.totalorder %s73, %s75
      %p82 = scmp.eq.s32.totalorder %s23, 1
      %p83 = por %p81, %p82
      %p84 = scmp.ne.s32.totalorder %s75, %s76
      %p85 = scmp.eq.s32.totalorder %s23, 0
      %p86 = por %p84, %p85
      %p87 = scmp.ne.s32.totalorder %s75, %s76
      %p88 = scmp.eq.s32.totalorder %s24, 1
      %p89 = por %p87, %p88
      %p91 = scmp.ne.s32.totalorder %s76, %s90
      %p92 = scmp.eq.s32.totalorder %s24, 0
      %p93 = por %p91, %p92
      %s95 = sadd.s32 %s94, 1
      %p98 = scmp.eq.s32.totalorder %s18, 1
      %p99 = scmp.ne.s32.totalorder %s94, %s96
      %p100 = scmp.eq.s32.totalorder %s18, 0
      %p101 = por %p99, %p100
      %p102 = scmp.ne.s32.totalorder %s94, %s96
      %p103 = scmp.eq.s32.totalorder %s23, 1
      %p104 = por %p102, %p103
      %p105 = scmp.ne.s32.totalorder %s96, %s97
      %p106 = scmp.eq.s32.totalorder %s23, 0
      %p107 = por %p105, %p106
      %p108 = scmp.ne.s32.totalorder %s96, %s97
      %p109 = scmp.eq.s32.totalorder %s24, 1
      %p110 = por %p108, %p109
      %p112 = scmp.ne.s32.totalorder %s97, %s111
      %p113 = scmp.eq.s32.totalorder %s24, 0
      %p114 = por %p112, %p113
      %s116 = sadd.s32 %s115, 1
      %p119 = scmp.eq.s32.totalorder %s18, 1
      %p120 = scmp.ne.s32.totalorder %s115, %s117
      %p121 = scmp.eq.s32.totalorder %s18, 0
      %p122 = por %p120, %p121
      %p123 = scmp.ne.s32.totalorder %s115, %s117
      %p124 = scmp.eq.s32.totalorder %s23, 1
      %p125 = por %p123, %p124
      %p126 = scmp.ne.s32.totalorder %s117, %s118
      %p127 = scmp.eq.s32.totalorder %s23, 0
      %p128 = por %p126, %p127
      %p129 = scmp.ne.s32.totalorder %s117, %s118
      %p130 = scmp.eq.s32.totalorder %s24, 1
      %p131 = por %p129, %p130
      %p133 = scmp.ne.s32.totalorder %s118, %s132
      %p134 = scmp.eq.s32.totalorder %s24, 0
      %p135 = por %p133, %p134
      %s137 = sadd.s32 %s136, 1
      %p140 = scmp.eq.s32.totalorder %s18, 1
      %p141 = scmp.ne.s32.totalorder %s136, %s138
      %p142 = scmp.eq.s32.totalorder %s18, 0
      %p143 = por %p141, %p142
      %p144 = scmp.ne.s32.totalorder %s136, %s138
      %p145 = scmp.eq.s32.totalorder %s23, 1
      %p146 = por %p144, %p145
      %p147 = scmp.ne.s32.totalorder %s138, %s139
      %p148 = scmp.eq.s32.totalorder %s23, 0
      %p149 = por %p147, %p148
      %p150 = scmp.ne.s32.totalorder %s138, %s139
      %p151 = scmp.eq.s32.totalorder %s24, 1
      %p152 = por %p150, %p151
      %p154 = scmp.ne.s32.totalorder %s139, %s153
      %p155 = scmp.eq.s32.totalorder %s24, 0
      %p156 = por %p154, %p155
      %s158 = sadd.s32 %s157, 1
      %p161 = scmp.eq.s32.totalorder %s18, 1
      %p162 = scmp.ne.s32.totalorder %s157, %s159
      %p163 = scmp.eq.s32.totalorder %s18, 0
      %p164 = por %p162, %p163
      %p165 = scmp.ne.s32.totalorder %s157, %s159
      %p166 = scmp.eq.s32.totalorder %s23, 1
      %p167 = por %p165, %p166
      %p168 = scmp.ne.s32.totalorder %s159, %s160
      %p169 = scmp.eq.s32.totalorder %s23, 0
      %p170 = por %p168, %p169
      %p171 = scmp.ne.s32.totalorder %s159, %s160
      %p172 = scmp.eq.s32.totalorder %s24, 1
      %p173 = por %p171, %p172
      %p175 = scmp.ne.s32.totalorder %s160, %s174
      %p176 = scmp.eq.s32.totalorder %s24, 0
      %p177 = por %p175, %p176
      %s179 = sadd.s32 %s178, 1
      %p182 = scmp.eq.s32.totalorder %s18, 1
      %p183 = scmp.ne.s32.totalorder %s178, %s180
      %p184 = scmp.eq.s32.totalorder %s18, 0
      %p185 = por %p183, %p184
      %p186 = scmp.ne.s32.totalorder %s178, %s180
      %p187 = scmp.eq.s32.totalorder %s23, 1
      %p188 = por %p186, %p187
      %p189 = scmp.ne.s32.totalorder %s180, %s181
      %p190 = scmp.eq.s32.totalorder %s23, 0
      %p191 = por %p189, %p190
      %p192 = scmp.ne.s32.totalorder %s180, %s181
      %p193 = scmp.eq.s32.totalorder %s24, 1
      %p194 = por %p192, %p193
      %p196 = scmp.ne.s32.totalorder %s181, %s195
      %p197 = scmp.eq.s32.totalorder %s24, 0
      %p198 = por %p196, %p197
      %s200 = sadd.s32 %s199, 1
      %p203 = scmp.eq.s32.totalorder %s18, 1
      %p204 = scmp.ne.s32.totalorder %s199, %s201
      %p205 = scmp.eq.s32.totalorder %s18, 0
      %p206 = por %p204, %p205
      %p207 = scmp.ne.s32.totalorder %s199, %s201
      %p208 = scmp.eq.s32.totalorder %s23, 1
      %p209 = por %p207, %p208
      %p210 = scmp.ne.s32.totalorder %s201, %s202
      %p211 = scmp.eq.s32.totalorder %s23, 0
      %p212 = por %p210, %p211
      %p213 = scmp.ne.s32.totalorder %s201, %s202
      %p214 = scmp.eq.s32.totalorder %s24, 1
      %p215 = por %p213, %p214
      %p217 = scmp.ne.s32.totalorder %s202, %s216
      %p218 = scmp.eq.s32.totalorder %s24, 0
      %p219 = por %p217, %p218
      %s221 = sadd.s32 %s220, 1
      %p224 = scmp.eq.s32.totalorder %s18, 1
      %p225 = scmp.ne.s32.totalorder %s220, %s222
      %p226 = scmp.eq.s32.totalorder %s18, 0
      %p227 = por %p225, %p226
      %p228 = scmp.ne.s32.totalorder %s220, %s222
      %p229 = scmp.eq.s32.totalorder %s23, 1
      %p230 = por %p228, %p229
      %p231 = scmp.ne.s32.totalorder %s222, %s223
      %p232 = scmp.eq.s32.totalorder %s23, 0
      %p233 = por %p231, %p232
      %p234 = scmp.ne.s32.totalorder %s222, %s223
      %p235 = scmp.eq.s32.totalorder %s24, 1
      %p236 = por %p234, %p235
      %p238 = scmp.ne.s32.totalorder %s223, %s237
      %p239 = scmp.eq.s32.totalorder %s24, 0
      %p240 = por %p238, %p239
      %s242 = sadd.s32 %s241, 1
      %p245 = scmp.eq.s32.totalorder %s18, 1
      %p246 = scmp.ne.s32.totalorder %s241, %s243
      %p247 = scmp.eq.s32.totalorder %s18, 0
      %p248 = por %p246, %p247
      %p249 = scmp.ne.s32.totalorder %s241, %s243
      %p250 = scmp.eq.s32.totalorder %s23, 1
      %p251 = por %p249, %p250
      %p252 = scmp.ne.s32.totalorder %s243, %s244
      %p253 = scmp.eq.s32.totalorder %s23, 0
      %p254 = por %p252, %p253
      %p255 = scmp.ne.s32.totalorder %s243, %s244
      %p256 = scmp.eq.s32.totalorder %s24, 1
      %p257 = por %p255, %p256
      %p259 = scmp.ne.s32.totalorder %s244, %s258
      %p260 = scmp.eq.s32.totalorder %s24, 0
      %p261 = por %p259, %p260
      %s262 = ssub.s32 %s18, %s25
      %p263 = scmp.eq.s32.totalorder %s262, 0
      %s265 = sadd.s32 %s264, 1
      %s266 = scalar_select %p263, %s264, %s265
      %p269 = pneg %p263
      %p270 = scmp.eq.s32.totalorder %s18, 1
      %p271 = por %p269, %p270
      %p272 = scmp.ne.s32.totalorder %s264, %s267
      %p273 = scmp.eq.s32.totalorder %s18, 0
      %p274 = por %p272, %p273
      %p275 = scmp.ne.s32.totalorder %s264, %s267
      %p276 = scmp.eq.s32.totalorder %s23, 1
      %p277 = por %p275, %p276
      %p278 = scmp.ne.s32.totalorder %s267, %s268
      %p279 = scmp.eq.s32.totalorder %s23, 0
      %p280 = por %p278, %p279
      %p281 = scmp.ne.s32.totalorder %s267, %s268
      %p282 = scmp.eq.s32.totalorder %s24, 1
      %p283 = por %p281, %p282
      %p285 = scmp.ne.s32.totalorder %s268, %s284
      %p286 = scmp.eq.s32.totalorder %s24, 0
      %p287 = por %p285, %p286
      %p288 = scmp.le.s32.totalorder 1, %s18
      %p289 = scmp.lt.s32.totalorder %s18, 3
      %p290 = pnand %p288, %p289
      %p291 = pneg %p290
      // Predicated region
      $region9: #{tpu_custom_call.1} parent=5 // pred_check
        _
      $region10: #{tpu_custom_call.1} parent=5 // pred_check_branch
        %293 = sbr.rel (%p290) target = $region12
      $region11: #{tpu_custom_call.1} parent=5 // pred_region
        %s294 = ssub.s32 %s18, 1
        // Predicated region
        $region13: #{tpu_custom_call.1} parent=11 // pred_check
          %p295 = pneg %p65
        $region14: #{tpu_custom_call.1} parent=11 // pred_check_branch
          %297 = sbr.rel (%p295) target = $region16
        $region15: #{tpu_custom_call.1} parent=11 // pred_region
          _
        $region16: #{tpu_custom_call.1} parent=11 // pred_fallthru
          _
        // Predicated region
        $region17: #{tpu_custom_call.1} parent=11 // pred_check
          %p298 = pneg %p86
        $region18: #{tpu_custom_call.1} parent=11 // pred_check_branch
          %300 = sbr.rel (%p298) target = $region20
        $region19: #{tpu_custom_call.1} parent=11 // pred_region
          _
        $region20: #{tpu_custom_call.1} parent=11 // pred_fallthru
          _
        // Predicated region
        $region21: #{tpu_custom_call.1} parent=11 // pred_check
          %p301 = pneg %p107
        $region22: #{tpu_custom_call.1} parent=11 // pred_check_branch
          %303 = sbr.rel (%p301) target = $region24
        $region23: #{tpu_custom_call.1} parent=11 // pred_region
          _
        $region24: #{tpu_custom_call.1} parent=11 // pred_fallthru
          _
        // Predicated region
        $region25: #{tpu_custom_call.1} parent=11 // pred_check
          %p304 = pneg %p128
        $region26: #{tpu_custom_call.1} parent=11 // pred_check_branch
          %306 = sbr.rel (%p304) target = $region28
        $region27: #{tpu_custom_call.1} parent=11 // pred_region
          _
        $region28: #{tpu_custom_call.1} parent=11 // pred_fallthru
          _
        // Predicated region
        $region29: #{tpu_custom_call.1} parent=11 // pred_check
          %p307 = pneg %p149
        $region30: #{tpu_custom_call.1} parent=11 // pred_check_branch
          %309 = sbr.rel (%p307) target = $region32
        $region31: #{tpu_custom_call.1} parent=11 // pred_region
          _
        $region32: #{tpu_custom_call.1} parent=11 // pred_fallthru
          _
        // Predicated region
        $region33: #{tpu_custom_call.1} parent=11 // pred_check
          %p310 = pneg %p170
        $region34: #{tpu_custom_call.1} parent=11 // pred_check_branch
          %312 = sbr.rel (%p310) target = $region36
        $region35: #{tpu_custom_call.1} parent=11 // pred_region
          _
        $region36: #{tpu_custom_call.1} parent=11 // pred_fallthru
          _
        // Predicated region
        $region37: #{tpu_custom_call.1} parent=11 // pred_check
          %p313 = pneg %p191
        $region38: #{tpu_custom_call.1} parent=11 // pred_check_branch
          %315 = sbr.rel (%p313) target = $region40
        $region39: #{tpu_custom_call.1} parent=11 // pred_region
          _
        $region40: #{tpu_custom_call.1} parent=11 // pred_fallthru
          _
        // Predicated region
        $region41: #{tpu_custom_call.1} parent=11 // pred_check
          %p316 = pneg %p212
        $region42: #{tpu_custom_call.1} parent=11 // pred_check_branch
          %318 = sbr.rel (%p316) target = $region44
        $region43: #{tpu_custom_call.1} parent=11 // pred_region
          _
        $region44: #{tpu_custom_call.1} parent=11 // pred_fallthru
          _
        // Predicated region
        $region45: #{tpu_custom_call.1} parent=11 // pred_check
          %p319 = pneg %p233
        $region46: #{tpu_custom_call.1} parent=11 // pred_check_branch
          %321 = sbr.rel (%p319) target = $region48
        $region47: #{tpu_custom_call.1} parent=11 // pred_region
          %s323 = ssub.s32 8192, 8192
          %324 = vsyncadd [#allocation3], %s323
          %s325 = sshll.u32 [#allocation2], 4
          %s326 = int_to_ptr.vmem [resolvable:$true] %s325
          %331 = dma.hbm_to_vmem [thread:$0]  %s9, 8192, %s326, [#allocation3], 128, 128, 8
        $region48: #{tpu_custom_call.1} parent=11 // pred_fallthru
          _
        // Predicated region
        $region49: #{tpu_custom_call.1} parent=11 // pred_check
          %p332 = pneg %p254
        $region50: #{tpu_custom_call.1} parent=11 // pred_check_branch
          %334 = sbr.rel (%p332) target = $region52
        $region51: #{tpu_custom_call.1} parent=11 // pred_region
          _
        $region52: #{tpu_custom_call.1} parent=11 // pred_fallthru
          _
      $region12: #{tpu_custom_call.1} parent=5 // pred_fallthru
        _
      %p335 = scmp.lt.s32.totalorder %s18, 2
      // Predicated region
      $region53: #{tpu_custom_call.1} parent=5 // pred_check
        %p336 = pneg %p335
      $region54: #{tpu_custom_call.1} parent=5 // pred_check_branch
        %338 = sbr.rel (%p336) target = $region56
      $region55: #{tpu_custom_call.1} parent=5 // pred_region
        // Predicated region
        $region57: #{tpu_custom_call.1} parent=55 // pred_check
          %p339 = pneg %p38
        $region58: #{tpu_custom_call.1} parent=55 // pred_check_branch
          %341 = sbr.rel (%p339) target = $region60
        $region59: #{tpu_custom_call.1} parent=55 // pred_region
          %s342 = smul.u32 32, %s18
          %p343 = scmp.lt.s32.totalorder %s342, 63
          %s344 = scalar_select %p343, %s342, 63
          %s345 = smul.addr %s344, 4
          %s346 = scalar_lea.vmem %s0, %s345
          %s347 = smul.u32 32, %s18
        $region60: #{tpu_custom_call.1} parent=55 // pred_fallthru
          _
      $region56: #{tpu_custom_call.1} parent=5 // pred_fallthru
        _
      %p348 = scmp.le.s32.totalorder 1, %s18
      %p349 = scmp.lt.s32.totalorder %s18, 3
      %p350 = pnand %p348, %p349
      %p351 = pneg %p350
      // Predicated region
      $region61: #{tpu_custom_call.1} parent=5 // pred_check
        _
      $region62: #{tpu_custom_call.1} parent=5 // pred_check_branch
        %353 = sbr.rel (%p350) target = $region64
      $region63: #{tpu_custom_call.1} parent=5 // pred_region
        %s354 = ssub.s32 %s18, 1
        // Predicated region
        $region65: #{tpu_custom_call.1} parent=63 // pred_check
          %p355 = pneg %p233
        $region66: #{tpu_custom_call.1} parent=63 // pred_check_branch
          %357 = sbr.rel (%p355) target = $region68
        $region67: #{tpu_custom_call.1} parent=63 // pred_region
          %358 = dma.done [#allocation3], 8192
        $region68: #{tpu_custom_call.1} parent=63 // pred_fallthru
          _
        %s359 = smul.u32 32, %s23
        %p360 = scmp.lt.s32.totalorder %s359, 63
        %s361 = scalar_select %p360, %s359, 63
        %s362 = smul.addr %s361, 4
        %s363 = scalar_lea.vmem %s0, %s362
        %p364 = pneg %p44
        %p365 = pneg %p41
        %p366 = pneg %p65
        %p367 = pneg %p62
        %p368 = pneg %p86
        %p369 = pneg %p83
        %p370 = pneg %p107
        %p371 = pneg %p104
        %p372 = pneg %p128
        %p373 = pneg %p125
        %p374 = pneg %p149
        %p375 = pneg %p146
        %p376 = pneg %p170
        %p377 = pneg %p167
        %p378 = pneg %p191
        %p379 = pneg %p188
        %p380 = pneg %p212
        %p381 = pneg %p209
        %p382 = pneg %p233
        %p383 = pneg %p230
        %p384 = pneg %p254
        %p385 = pneg %p251
        %p386 = pneg %p280
        %p387 = pneg %p277
        %s388 = smul.u32 32, %s23
        %p389 = scmp.lt.s32.totalorder %s388, 63
        %s390 = scalar_select %p389, %s388, 63
        %s391 = smul.addr %s390, 8
        %s392 = scalar_lea.vmem %s11, %s391
        %s393 = smul.u32 32, %s23
        %p394 = scmp.lt.s32.totalorder %s393, 63
        %s395 = scalar_select %p394, %s393, 63
        %s396 = smul.addr %s395, 4
        %s397 = scalar_lea.vmem %s0, %s396
        %s398 = smul.u32 32, %s23
        %s399 = smul.u32 32, %s23
        %p400 = scmp.lt.s32.totalorder %s399, 63
        %s401 = scalar_select %p400, %s399, 63
        %s402 = smul.addr %s401, 8
        %s403 = scalar_lea.vmem %s11, %s402
        %s404 = smul.u32 32, %s23
        %v406 = vld [vmem:[%s397] sm:$0xf]
        %v407 = vld [vmem:[%s397 + $0x4] sm:$0xf]
        %v408 = vld [vmem:[%s397 + $0x8] sm:$0xf]
        %v409 = vld [vmem:[%s397 + $0xc] sm:$0xf]
        %v410 = vld [vmem:[%s397 + $0x10] sm:$0xf]
        %v411 = vld [vmem:[%s397 + $0x14] sm:$0xf]
        %v412 = vld [vmem:[%s397 + $0x18] sm:$0xf]
        %v413 = vld [vmem:[%s397 + $0x1c] sm:$0xf]
        %v414 = vld [vmem:[%s397 + $0x20] sm:$0xf]
        %v415 = vld [vmem:[%s397 + $0x24] sm:$0xf]
        %v416 = vld [vmem:[%s397 + $0x28] sm:$0xf]
        %v417 = vld [vmem:[%s397 + $0x2c] sm:$0xf]
        %v418 = vld [vmem:[%s397 + $0x30] sm:$0xf]
        %v419 = vld [vmem:[%s397 + $0x34] sm:$0xf]
        %v420 = vld [vmem:[%s397 + $0x38] sm:$0xf]
        %v421 = vld [vmem:[%s397 + $0x3c] sm:$0xf]
        %v422 = vld [vmem:[%s397 + $0x40] sm:$0xf]
        %v423 = vld [vmem:[%s397 + $0x44] sm:$0xf]
        %v424 = vld [vmem:[%s397 + $0x48] sm:$0xf]
        %v425 = vld [vmem:[%s397 + $0x4c] sm:$0xf]
        %v426 = vld [vmem:[%s397 + $0x50] sm:$0xf]
        %v427 = vld [vmem:[%s397 + $0x54] sm:$0xf]
        %v428 = vld [vmem:[%s397 + $0x58] sm:$0xf]
        %v429 = vld [vmem:[%s397 + $0x5c] sm:$0xf]
        %v430 = vld [vmem:[%s397 + $0x60] sm:$0xf]
        %v431 = vld [vmem:[%s397 + $0x64] sm:$0xf]
        %v432 = vld [vmem:[%s397 + $0x68] sm:$0xf]
        %v433 = vld [vmem:[%s397 + $0x6c] sm:$0xf]
        %v434 = vld [vmem:[%s397 + $0x70] sm:$0xf]
        %v435 = vld [vmem:[%s397 + $0x74] sm:$0xf]
        %v436 = vld [vmem:[%s397 + $0x78] sm:$0xf]
        %v437 = vld [vmem:[%s397 + $0x7c] sm:$0xf]
        %v438 = vld [vmem:[%s1] sm:$0xf]
        %v439 = vld [vmem:[%s1 + $0x4] sm:$0xf]
        %v440 = vld [vmem:[%s1 + $0x8] sm:$0xf]
        %v441 = vld [vmem:[%s1 + $0xc] sm:$0xf]
        %v442 = vld [vmem:[%s1 + $0x10] sm:$0xf]
        %v443 = vld [vmem:[%s1 + $0x14] sm:$0xf]
        %v444 = vld [vmem:[%s1 + $0x18] sm:$0xf]
        %v445 = vld [vmem:[%s1 + $0x1c] sm:$0xf]
        %v446 = vld [vmem:[%s2] sm:$0x1]
        %v448 = vlaneseq
        %v449 = vshrl.u32 %v448, 7
        %v450 = vsub.s32 0, %v449
        %v451 = vrot.slane %v446, %v450
        %v485 = vunpack.c.l.b16 %v406
        %v486 = vunpack.c.l.b16 %v407
        %v487 = vunpack.c.l.b16 %v408
        %v488 = vunpack.c.l.b16 %v409
        %v489 = vunpack.c.l.b16 %v410
        %v490 = vunpack.c.l.b16 %v411
        %v491 = vunpack.c.l.b16 %v412
        %v492 = vunpack.c.l.b16 %v413
        %v493 = vunpack.c.l.b16 %v414
        %v494 = vunpack.c.l.b16 %v415
        %v495 = vunpack.c.l.b16 %v416
        %v496 = vunpack.c.l.b16 %v417
        %v497 = vunpack.c.l.b16 %v418
        %v498 = vunpack.c.l.b16 %v419
        %v499 = vunpack.c.l.b16 %v420
        %v500 = vunpack.c.l.b16 %v421
        %v501 = vunpack.c.l.b16 %v422
        %v502 = vunpack.c.l.b16 %v423
        %v503 = vunpack.c.l.b16 %v424
        %v504 = vunpack.c.l.b16 %v425
        %v505 = vunpack.c.l.b16 %v426
        %v506 = vunpack.c.l.b16 %v427
        %v507 = vunpack.c.l.b16 %v428
        %v508 = vunpack.c.l.b16 %v429
        %v509 = vunpack.c.l.b16 %v430
        %v510 = vunpack.c.l.b16 %v431
        %v511 = vunpack.c.l.b16 %v432
        %v512 = vunpack.c.l.b16 %v433
        %v513 = vunpack.c.l.b16 %v434
        %v514 = vunpack.c.l.b16 %v435
        %v515 = vunpack.c.l.b16 %v436
        %v516 = vunpack.c.l.b16 %v437
        %v517 = vpack.c.b16 %v486, %v485
        %v518 = vpack.c.b16 %v488, %v487
        %v519 = vpack.c.b16 %v490, %v489
        %v520 = vpack.c.b16 %v492, %v491
        %v521 = vpack.c.b16 %v494, %v493
        %v522 = vpack.c.b16 %v496, %v495
        %v523 = vpack.c.b16 %v498, %v497
        %v524 = vpack.c.b16 %v500, %v499
        %v525 = vpack.c.b16 %v502, %v501
        %v526 = vpack.c.b16 %v504, %v503
        %v527 = vpack.c.b16 %v506, %v505
        %v528 = vpack.c.b16 %v508, %v507
        %v529 = vpack.c.b16 %v510, %v509
        %v530 = vpack.c.b16 %v512, %v511
        %v531 = vpack.c.b16 %v514, %v513
        %v532 = vpack.c.b16 %v516, %v515
        %v541 = vunpack.c.l.b16 %v438
        %v542 = vunpack.c.l.b16 %v439
        %v543 = vunpack.c.l.b16 %v440
        %v544 = vunpack.c.l.b16 %v441
        %v545 = vunpack.c.l.b16 %v442
        %v546 = vunpack.c.l.b16 %v443
        %v547 = vunpack.c.l.b16 %v444
        %v548 = vunpack.c.l.b16 %v445
        %v549 = vpack.c.b16 %v542, %v541
        %v550 = vpack.c.b16 %v544, %v543
        %v551 = vpack.c.b16 %v546, %v545
        %v552 = vpack.c.b16 %v548, %v547
        %vm557 = vcmask 523264
        %v559 = vsel %vm557, %v517, 0
        %v562 = vsel %vm557, %v518, 0
        %v565 = vsel %vm557, %v519, 0
        %v568 = vsel %vm557, %v520, 0
        %v571 = vsel %vm557, %v521, 0
        %v574 = vsel %vm557, %v522, 0
        %v577 = vsel %vm557, %v523, 0
        %v580 = vsel %vm557, %v524, 0
        %v583 = vsel %vm557, %v525, 0
        %v586 = vsel %vm557, %v526, 0
        %v589 = vsel %vm557, %v527, 0
        %v592 = vsel %vm557, %v528, 0
        %v595 = vsel %vm557, %v529, 0
        %v598 = vsel %vm557, %v530, 0
        %v601 = vsel %vm557, %v531, 0
        %v604 = vsel %vm557, %v532, 0
        %606 = vmatprep.subr.bf16.mxu0 0
        %607 = vmatpush1.bf16.msra.mxu0 0
        %608 = vmatprep.subr.bf16.mxu0 0
        %609 = vmatpush1.bf16.msra.mxu0 0
        %610 = vmatprep.subr.bf16.mxu0 0
        %611 = vmatpush1.bf16.msra.mxu0 0
        %612 = vmatprep.subr.bf16.mxu0 0
        %613 = vmatpush1.bf16.msra.mxu0 0
        %614 = vmatprep.subr.bf16.mxu0 0
        %615 = vmatpush1.bf16.msra.mxu0 %v552
        %616 = vmatprep.subr.bf16.mxu0 0
        %617 = vmatpush1.bf16.msra.mxu0 %v551
        %618 = vmatprep.subr.bf16.mxu0 0
        %619 = vmatpush1.bf16.msra.mxu0 %v550
        %620 = vmatprep.subr.bf16.mxu0 0
        %621 = vmatpush1.bf16.msra.mxu0 %v549
        %622 = vmatprep.subr.bf16.mxu0 0
        %623 = vmatpush2.bf16.msra.mxu0 0
        %624 = vmatprep.subr.bf16.mxu0 0
        %625 = vmatpush2.bf16.msra.mxu0 0
        %626 = vmatprep.subr.bf16.mxu0 0
        %627 = vmatpush2.bf16.msra.mxu0 0
        %628 = vmatprep.subr.bf16.mxu0 0
        %629 = vmatpush2.bf16.msra.mxu0 0
        %630 = vmatprep.subr.bf16.mxu0 0
        %631 = vmatpush2.bf16.msra.mxu0 0
        %632 = vmatprep.subr.bf16.mxu0 0
        %633 = vmatpush2.bf16.msra.mxu0 0
        %634 = vmatprep.subr.bf16.mxu0 0
        %635 = vmatpush2.bf16.msra.mxu0 0
        %636 = vmatprep.subr.bf16.mxu0 0
        %637 = vmatpush2.bf16.msra.mxu0 0
        %638 = vmatprep.mubr.bf16.mxu0 0
        %639 = vmatmul.mubr.bf16.gmra.mxu0 %v559
        %v640 = vpop.f32.mrf.mxu0
        %v641 = vadd.f32 %v451, %v640
        %v642 = vpop.f32.mrf.mxu0
        %v643 = vpop.f32.mrf.mxu0
        %v644 = vadd.f32 %v451, %v643
        %v645 = vpop.f32.mrf.mxu0
        %646 = vmatprep.mubr.bf16.mxu0 0
        %647 = vmatmul.mubr.bf16.gmra.mxu0 %v562
        %v648 = vpop.f32.mrf.mxu0
        %v649 = vadd.f32 %v451, %v648
        %v650 = vpop.f32.mrf.mxu0
        %v651 = vpop.f32.mrf.mxu0
        %v652 = vadd.f32 %v451, %v651
        %v653 = vpop.f32.mrf.mxu0
        %654 = vmatprep.mubr.bf16.mxu0 0
        %655 = vmatmul.mubr.bf16.gmra.mxu0 %v565
        %v656 = vpop.f32.mrf.mxu0
        %v657 = vadd.f32 %v451, %v656
        %v658 = vpop.f32.mrf.mxu0
        %v659 = vpop.f32.mrf.mxu0
        %v660 = vadd.f32 %v451, %v659
        %v661 = vpop.f32.mrf.mxu0
        %662 = vmatprep.mubr.bf16.mxu0 0
        %663 = vmatmul.mubr.bf16.gmra.mxu0 %v568
        %v664 = vpop.f32.mrf.mxu0
        %v665 = vadd.f32 %v451, %v664
        %v666 = vpop.f32.mrf.mxu0
        %v667 = vpop.f32.mrf.mxu0
        %v668 = vadd.f32 %v451, %v667
        %v669 = vpop.f32.mrf.mxu0
        %670 = vmatprep.mubr.bf16.mxu0 0
        %671 = vmatmul.mubr.bf16.gmra.mxu0 %v571
        %v672 = vpop.f32.mrf.mxu0
        %v673 = vadd.f32 %v451, %v672
        %v674 = vpop.f32.mrf.mxu0
        %v675 = vpop.f32.mrf.mxu0
        %v676 = vadd.f32 %v451, %v675
        %v677 = vpop.f32.mrf.mxu0
        %678 = vmatprep.mubr.bf16.mxu0 0
        %679 = vmatmul.mubr.bf16.gmra.mxu0 %v574
        %v680 = vpop.f32.mrf.mxu0
        %v681 = vadd.f32 %v451, %v680
        %v682 = vpop.f32.mrf.mxu0
        %v683 = vpop.f32.mrf.mxu0
        %v684 = vadd.f32 %v451, %v683
        %v685 = vpop.f32.mrf.mxu0
        %686 = vmatprep.mubr.bf16.mxu0 0
        %687 = vmatmul.mubr.bf16.gmra.mxu0 %v577
        %v688 = vpop.f32.mrf.mxu0
        %v689 = vadd.f32 %v451, %v688
        %v690 = vpop.f32.mrf.mxu0
        %v691 = vpop.f32.mrf.mxu0
        %v692 = vadd.f32 %v451, %v691
        %v693 = vpop.f32.mrf.mxu0
        %694 = vmatprep.mubr.bf16.mxu0 0
        %695 = vmatmul.mubr.bf16.gmra.mxu0 %v580
        %v696 = vpop.f32.mrf.mxu0
        %v697 = vadd.f32 %v451, %v696
        %v698 = vpop.f32.mrf.mxu0
        %v699 = vpop.f32.mrf.mxu0
        %v700 = vadd.f32 %v451, %v699
        %v701 = vpop.f32.mrf.mxu0
        %702 = vmatprep.mubr.bf16.mxu0 0
        %703 = vmatmul.mubr.bf16.gmra.mxu0 %v583
        %v704 = vpop.f32.mrf.mxu0
        %v705 = vadd.f32 %v451, %v704
        %v706 = vpop.f32.mrf.mxu0
        %v707 = vpop.f32.mrf.mxu0
        %v708 = vadd.f32 %v451, %v707
        %v709 = vpop.f32.mrf.mxu0
        %710 = vmatprep.mubr.bf16.mxu0 0
        %711 = vmatmul.mubr.bf16.gmra.mxu0 %v586
        %v712 = vpop.f32.mrf.mxu0
        %v713 = vadd.f32 %v451, %v712
        %v714 = vpop.f32.mrf.mxu0
        %v715 = vpop.f32.mrf.mxu0
        %v716 = vadd.f32 %v451, %v715
        %v717 = vpop.f32.mrf.mxu0
        %718 = vmatprep.mubr.bf16.mxu0 0
        %719 = vmatmul.mubr.bf16.gmra.mxu0 %v589
        %v720 = vpop.f32.mrf.mxu0
        %v721 = vadd.f32 %v451, %v720
        %v722 = vpop.f32.mrf.mxu0
        %v723 = vpop.f32.mrf.mxu0
        %v724 = vadd.f32 %v451, %v723
        %v725 = vpop.f32.mrf.mxu0
        %726 = vmatprep.mubr.bf16.mxu0 0
        %727 = vmatmul.mubr.bf16.gmra.mxu0 %v592
        %v728 = vpop.f32.mrf.mxu0
        %v729 = vadd.f32 %v451, %v728
        %v730 = vpop.f32.mrf.mxu0
        %v731 = vpop.f32.mrf.mxu0
        %v732 = vadd.f32 %v451, %v731
        %v733 = vpop.f32.mrf.mxu0
        %734 = vmatprep.mubr.bf16.mxu0 0
        %735 = vmatmul.mubr.bf16.gmra.mxu0 %v595
        %v736 = vpop.f32.mrf.mxu0
        %v737 = vadd.f32 %v451, %v736
        %v738 = vpop.f32.mrf.mxu0
        %v739 = vpop.f32.mrf.mxu0
        %v740 = vadd.f32 %v451, %v739
        %v741 = vpop.f32.mrf.mxu0
        %742 = vmatprep.mubr.bf16.mxu0 0
        %743 = vmatmul.mubr.bf16.gmra.mxu0 %v598
        %v744 = vpop.f32.mrf.mxu0
        %v745 = vadd.f32 %v451, %v744
        %v746 = vpop.f32.mrf.mxu0
        %v747 = vpop.f32.mrf.mxu0
        %v748 = vadd.f32 %v451, %v747
        %v749 = vpop.f32.mrf.mxu0
        %750 = vmatprep.mubr.bf16.mxu0 0
        %751 = vmatmul.mubr.bf16.gmra.mxu0 %v601
        %v752 = vpop.f32.mrf.mxu0
        %v753 = vadd.f32 %v451, %v752
        %v754 = vpop.f32.mrf.mxu0
        %v755 = vpop.f32.mrf.mxu0
        %v756 = vadd.f32 %v451, %v755
        %v757 = vpop.f32.mrf.mxu0
        %758 = vmatprep.mubr.bf16.mxu0 0
        %759 = vmatmul.mubr.bf16.gmra.mxu0 %v604
        %v760 = vpop.f32.mrf.mxu0
        %v761 = vadd.f32 %v451, %v760
        %v762 = vpop.f32.mrf.mxu0
        %v763 = vpop.f32.mrf.mxu0
        %v764 = vadd.f32 %v451, %v763
        %v765 = vpop.f32.mrf.mxu0
        %766 = vdwg.mxu0
        %v767 = vpack.c.bf16 %v644, %v641
        %v768 = vpack.c.bf16 %v652, %v649
        %v769 = vpack.c.bf16 %v660, %v657
        %v770 = vpack.c.bf16 %v668, %v665
        %v771 = vpack.c.bf16 %v676, %v673
        %v772 = vpack.c.bf16 %v684, %v681
        %v773 = vpack.c.bf16 %v692, %v689
        %v774 = vpack.c.bf16 %v700, %v697
        %v775 = vpack.c.bf16 %v708, %v705
        %v776 = vpack.c.bf16 %v716, %v713
        %v777 = vpack.c.bf16 %v724, %v721
        %v778 = vpack.c.bf16 %v732, %v729
        %v779 = vpack.c.bf16 %v740, %v737
        %v780 = vpack.c.bf16 %v748, %v745
        %v781 = vpack.c.bf16 %v756, %v753
        %v782 = vpack.c.bf16 %v764, %v761
        %v783 = vld [vmem:[%s3] sm:$0xf]
        %v784 = vld [vmem:[%s3 + $0x4] sm:$0xf]
        %v785 = vld [vmem:[%s3 + $0x8] sm:$0xf]
        %v786 = vld [vmem:[%s3 + $0xc] sm:$0xf]
        %v787 = vld [vmem:[%s3 + $0x10] sm:$0xf]
        %v788 = vld [vmem:[%s3 + $0x14] sm:$0xf]
        %v789 = vld [vmem:[%s3 + $0x18] sm:$0xf]
        %v790 = vld [vmem:[%s3 + $0x1c] sm:$0xf]
        %v791 = vld [vmem:[%s4] sm:$0x1]
        %v793 = vlaneseq
        %v794 = vshrl.u32 %v793, 7
        %v795 = vsub.s32 0, %v794
        %v796 = vrot.slane %v791, %v795
        %v806 = vunpack.c.l.b16 %v783
        %v807 = vunpack.c.l.b16 %v784
        %v808 = vunpack.c.l.b16 %v785
        %v809 = vunpack.c.l.b16 %v786
        %v810 = vunpack.c.l.b16 %v787
        %v811 = vunpack.c.l.b16 %v788
        %v812 = vunpack.c.l.b16 %v789
        %v813 = vunpack.c.l.b16 %v790
        %v814 = vpack.c.b16 %v807, %v806
        %v815 = vpack.c.b16 %v809, %v808
        %v816 = vpack.c.b16 %v811, %v810
        %v817 = vpack.c.b16 %v813, %v812
        %822 = vmatprep.subr.bf16.mxu0 0
        %823 = vmatpush1.bf16.msra.mxu0 0
        %824 = vmatprep.subr.bf16.mxu0 0
        %825 = vmatpush1.bf16.msra.mxu0 0
        %826 = vmatprep.subr.bf16.mxu0 0
        %827 = vmatpush1.bf16.msra.mxu0 0
        %828 = vmatprep.subr.bf16.mxu0 0
        %829 = vmatpush1.bf16.msra.mxu0 0
        %830 = vmatprep.subr.bf16.mxu0 0
        %831 = vmatpush1.bf16.msra.mxu0 %v817
        %832 = vmatprep.subr.bf16.mxu0 0
        %833 = vmatpush1.bf16.msra.mxu0 %v816
        %834 = vmatprep.subr.bf16.mxu0 0
        %835 = vmatpush1.bf16.msra.mxu0 %v815
        %836 = vmatprep.subr.bf16.mxu0 0
        %837 = vmatpush1.bf16.msra.mxu0 %v814
        %838 = vmatprep.subr.bf16.mxu0 0
        %839 = vmatpush2.bf16.msra.mxu0 0
        %840 = vmatprep.subr.bf16.mxu0 0
        %841 = vmatpush2.bf16.msra.mxu0 0
        %842 = vmatprep.subr.bf16.mxu0 0
        %843 = vmatpush2.bf16.msra.mxu0 0
        %844 = vmatprep.subr.bf16.mxu0 0
        %845 = vmatpush2.bf16.msra.mxu0 0
        %846 = vmatprep.subr.bf16.mxu0 0
        %847 = vmatpush2.bf16.msra.mxu0 0
        %848 = vmatprep.subr.bf16.mxu0 0
        %849 = vmatpush2.bf16.msra.mxu0 0
        %850 = vmatprep.subr.bf16.mxu0 0
        %851 = vmatpush2.bf16.msra.mxu0 0
        %852 = vmatprep.subr.bf16.mxu0 0
        %853 = vmatpush2.bf16.msra.mxu0 0
        %854 = vmatprep.mubr.bf16.mxu0 0
        %855 = vmatmul.mubr.bf16.gmra.mxu0 %v559
        %v856 = vpop.f32.mrf.mxu0
        %v857 = vadd.f32 %v796, %v856
        %v858 = vpop.f32.mrf.mxu0
        %v859 = vpop.f32.mrf.mxu0
        %v860 = vadd.f32 %v796, %v859
        %v861 = vpop.f32.mrf.mxu0
        %862 = vmatprep.mubr.bf16.mxu0 0
        %863 = vmatmul.mubr.bf16.gmra.mxu0 %v562
        %v864 = vpop.f32.mrf.mxu0
        %v865 = vadd.f32 %v796, %v864
        %v866 = vpop.f32.mrf.mxu0
        %v867 = vpop.f32.mrf.mxu0
        %v868 = vadd.f32 %v796, %v867
        %v869 = vpop.f32.mrf.mxu0
        %870 = vmatprep.mubr.bf16.mxu0 0
        %871 = vmatmul.mubr.bf16.gmra.mxu0 %v565
        %v872 = vpop.f32.mrf.mxu0
        %v873 = vadd.f32 %v796, %v872
        %v874 = vpop.f32.mrf.mxu0
        %v875 = vpop.f32.mrf.mxu0
        %v876 = vadd.f32 %v796, %v875
        %v877 = vpop.f32.mrf.mxu0
        %878 = vmatprep.mubr.bf16.mxu0 0
        %879 = vmatmul.mubr.bf16.gmra.mxu0 %v568
        %v880 = vpop.f32.mrf.mxu0
        %v881 = vadd.f32 %v796, %v880
        %v882 = vpop.f32.mrf.mxu0
        %v883 = vpop.f32.mrf.mxu0
        %v884 = vadd.f32 %v796, %v883
        %v885 = vpop.f32.mrf.mxu0
        %886 = vmatprep.mubr.bf16.mxu0 0
        %887 = vmatmul.mubr.bf16.gmra.mxu0 %v571
        %v888 = vpop.f32.mrf.mxu0
        %v889 = vadd.f32 %v796, %v888
        %v890 = vpop.f32.mrf.mxu0
        %v891 = vpop.f32.mrf.mxu0
        %v892 = vadd.f32 %v796, %v891
        %v893 = vpop.f32.mrf.mxu0
        %894 = vmatprep.mubr.bf16.mxu0 0
        %895 = vmatmul.mubr.bf16.gmra.mxu0 %v574
        %v896 = vpop.f32.mrf.mxu0
        %v897 = vadd.f32 %v796, %v896
        %v898 = vpop.f32.mrf.mxu0
        %v899 = vpop.f32.mrf.mxu0
        %v900 = vadd.f32 %v796, %v899
        %v901 = vpop.f32.mrf.mxu0
        %902 = vmatprep.mubr.bf16.mxu0 0
        %903 = vmatmul.mubr.bf16.gmra.mxu0 %v577
        %v904 = vpop.f32.mrf.mxu0
        %v905 = vadd.f32 %v796, %v904
        %v906 = vpop.f32.mrf.mxu0
        %v907 = vpop.f32.mrf.mxu0
        %v908 = vadd.f32 %v796, %v907
        %v909 = vpop.f32.mrf.mxu0
        %910 = vmatprep.mubr.bf16.mxu0 0
        %911 = vmatmul.mubr.bf16.gmra.mxu0 %v580
        %v912 = vpop.f32.mrf.mxu0
        %v913 = vadd.f32 %v796, %v912
        %v914 = vpop.f32.mrf.mxu0
        %v915 = vpop.f32.mrf.mxu0
        %v916 = vadd.f32 %v796, %v915
        %v917 = vpop.f32.mrf.mxu0
        %918 = vmatprep.mubr.bf16.mxu0 0
        %919 = vmatmul.mubr.bf16.gmra.mxu0 %v583
        %v920 = vpop.f32.mrf.mxu0
        %v921 = vadd.f32 %v796, %v920
        %v922 = vpop.f32.mrf.mxu0
        %v923 = vpop.f32.mrf.mxu0
        %v924 = vadd.f32 %v796, %v923
        %v925 = vpop.f32.mrf.mxu0
        %926 = vmatprep.mubr.bf16.mxu0 0
        %927 = vmatmul.mubr.bf16.gmra.mxu0 %v586
        %v928 = vpop.f32.mrf.mxu0
        %v929 = vadd.f32 %v796, %v928
        %v930 = vpop.f32.mrf.mxu0
        %v931 = vpop.f32.mrf.mxu0
        %v932 = vadd.f32 %v796, %v931
        %v933 = vpop.f32.mrf.mxu0
        %934 = vmatprep.mubr.bf16.mxu0 0
        %935 = vmatmul.mubr.bf16.gmra.mxu0 %v589
        %v936 = vpop.f32.mrf.mxu0
        %v937 = vadd.f32 %v796, %v936
        %v938 = vpop.f32.mrf.mxu0
        %v939 = vpop.f32.mrf.mxu0
        %v940 = vadd.f32 %v796, %v939
        %v941 = vpop.f32.mrf.mxu0
        %942 = vmatprep.mubr.bf16.mxu0 0
        %943 = vmatmul.mubr.bf16.gmra.mxu0 %v592
        %v944 = vpop.f32.mrf.mxu0
        %v945 = vadd.f32 %v796, %v944
        %v946 = vpop.f32.mrf.mxu0
        %v947 = vpop.f32.mrf.mxu0
        %v948 = vadd.f32 %v796, %v947
        %v949 = vpop.f32.mrf.mxu0
        %950 = vmatprep.mubr.bf16.mxu0 0
        %951 = vmatmul.mubr.bf16.gmra.mxu0 %v595
        %v952 = vpop.f32.mrf.mxu0
        %v953 = vadd.f32 %v796, %v952
        %v954 = vpop.f32.mrf.mxu0
        %v955 = vpop.f32.mrf.mxu0
        %v956 = vadd.f32 %v796, %v955
        %v957 = vpop.f32.mrf.mxu0
        %958 = vmatprep.mubr.bf16.mxu0 0
        %959 = vmatmul.mubr.bf16.gmra.mxu0 %v598
        %v960 = vpop.f32.mrf.mxu0
        %v961 = vadd.f32 %v796, %v960
        %v962 = vpop.f32.mrf.mxu0
        %v963 = vpop.f32.mrf.mxu0
        %v964 = vadd.f32 %v796, %v963
        %v965 = vpop.f32.mrf.mxu0
        %966 = vmatprep.mubr.bf16.mxu0 0
        %967 = vmatmul.mubr.bf16.gmra.mxu0 %v601
        %v968 = vpop.f32.mrf.mxu0
        %v969 = vadd.f32 %v796, %v968
        %v970 = vpop.f32.mrf.mxu0
        %v971 = vpop.f32.mrf.mxu0
        %v972 = vadd.f32 %v796, %v971
        %v973 = vpop.f32.mrf.mxu0
        %974 = vmatprep.mubr.bf16.mxu0 0
        %975 = vmatmul.mubr.bf16.gmra.mxu0 %v604
        %v976 = vpop.f32.mrf.mxu0
        %v977 = vadd.f32 %v796, %v976
        %v978 = vpop.f32.mrf.mxu0
        %v979 = vpop.f32.mrf.mxu0
        %v980 = vadd.f32 %v796, %v979
        %v981 = vpop.f32.mrf.mxu0
        %982 = vdwg.mxu0
        %v983 = vpack.c.bf16 %v860, %v857
        %v984 = vpack.c.bf16 %v868, %v865
        %v985 = vpack.c.bf16 %v876, %v873
        %v986 = vpack.c.bf16 %v884, %v881
        %v987 = vpack.c.bf16 %v892, %v889
        %v988 = vpack.c.bf16 %v900, %v897
        %v989 = vpack.c.bf16 %v908, %v905
        %v990 = vpack.c.bf16 %v916, %v913
        %v991 = vpack.c.bf16 %v924, %v921
        %v992 = vpack.c.bf16 %v932, %v929
        %v993 = vpack.c.bf16 %v940, %v937
        %v994 = vpack.c.bf16 %v948, %v945
        %v995 = vpack.c.bf16 %v956, %v953
        %v996 = vpack.c.bf16 %v964, %v961
        %v997 = vpack.c.bf16 %v972, %v969
        %v998 = vpack.c.bf16 %v980, %v977
        %v999 = vld [vmem:[%s5] sm:$0xf]
        %v1000 = vld [vmem:[%s5 + $0x4] sm:$0xf]
        %v1001 = vld [vmem:[%s5 + $0x8] sm:$0xf]
        %v1002 = vld [vmem:[%s5 + $0xc] sm:$0xf]
        %v1003 = vld [vmem:[%s5 + $0x10] sm:$0xf]
        %v1004 = vld [vmem:[%s5 + $0x14] sm:$0xf]
        %v1005 = vld [vmem:[%s5 + $0x18] sm:$0xf]
        %v1006 = vld [vmem:[%s5 + $0x1c] sm:$0xf]
        %v1007 = vld [vmem:[%s6] sm:$0x1]
        %v1009 = vlaneseq
        %v1010 = vshrl.u32 %v1009, 7
        %v1011 = vsub.s32 0, %v1010
        %v1012 = vrot.slane %v1007, %v1011
        %v1022 = vunpack.c.l.b16 %v999
        %v1023 = vunpack.c.l.b16 %v1000
        %v1024 = vunpack.c.l.b16 %v1001
        %v1025 = vunpack.c.l.b16 %v1002
        %v1026 = vunpack.c.l.b16 %v1003
        %v1027 = vunpack.c.l.b16 %v1004
        %v1028 = vunpack.c.l.b16 %v1005
        %v1029 = vunpack.c.l.b16 %v1006
        %v1030 = vpack.c.b16 %v1023, %v1022
        %v1031 = vpack.c.b16 %v1025, %v1024
        %v1032 = vpack.c.b16 %v1027, %v1026
        %v1033 = vpack.c.b16 %v1029, %v1028
        %1038 = vmatprep.subr.bf16.mxu0 0
        %1039 = vmatpush1.bf16.msra.mxu0 0
        %1040 = vmatprep.subr.bf16.mxu0 0
        %1041 = vmatpush1.bf16.msra.mxu0 0
        %1042 = vmatprep.subr.bf16.mxu0 0
        %1043 = vmatpush1.bf16.msra.mxu0 0
        %1044 = vmatprep.subr.bf16.mxu0 0
        %1045 = vmatpush1.bf16.msra.mxu0 0
        %1046 = vmatprep.subr.bf16.mxu0 0
        %1047 = vmatpush1.bf16.msra.mxu0 %v1033
        %1048 = vmatprep.subr.bf16.mxu0 0
        %1049 = vmatpush1.bf16.msra.mxu0 %v1032
        %1050 = vmatprep.subr.bf16.mxu0 0
        %1051 = vmatpush1.bf16.msra.mxu0 %v1031
        %1052 = vmatprep.subr.bf16.mxu0 0
        %1053 = vmatpush1.bf16.msra.mxu0 %v1030
        %1054 = vmatprep.subr.bf16.mxu0 0
        %1055 = vmatpush2.bf16.msra.mxu0 0
        %1056 = vmatprep.subr.bf16.mxu0 0
        %1057 = vmatpush2.bf16.msra.mxu0 0
        %1058 = vmatprep.subr.bf16.mxu0 0
        %1059 = vmatpush2.bf16.msra.mxu0 0
        %1060 = vmatprep.subr.bf16.mxu0 0
        %1061 = vmatpush2.bf16.msra.mxu0 0
        %1062 = vmatprep.subr.bf16.mxu0 0
        %1063 = vmatpush2.bf16.msra.mxu0 0
        %1064 = vmatprep.subr.bf16.mxu0 0
        %1065 = vmatpush2.bf16.msra.mxu0 0
        %1066 = vmatprep.subr.bf16.mxu0 0
        %1067 = vmatpush2.bf16.msra.mxu0 0
        %1068 = vmatprep.subr.bf16.mxu0 0
        %1069 = vmatpush2.bf16.msra.mxu0 0
        %1070 = vmatprep.mubr.bf16.mxu0 0
        %1071 = vmatmul.mubr.bf16.gmra.mxu0 %v559
        %v1072 = vpop.f32.mrf.mxu0
        %v1073 = vadd.f32 %v1012, %v1072
        %v1074 = vpop.f32.mrf.mxu0
        %v1075 = vpop.f32.mrf.mxu0
        %v1076 = vadd.f32 %v1012, %v1075
        %v1077 = vpop.f32.mrf.mxu0
        %1078 = vmatprep.mubr.bf16.mxu0 0
        %1079 = vmatmul.mubr.bf16.gmra.mxu0 %v562
        %v1080 = vpop.f32.mrf.mxu0
        %v1081 = vadd.f32 %v1012, %v1080
        %v1082 = vpop.f32.mrf.mxu0
        %v1083 = vpop.f32.mrf.mxu0
        %v1084 = vadd.f32 %v1012, %v1083
        %v1085 = vpop.f32.mrf.mxu0
        %1086 = vmatprep.mubr.bf16.mxu0 0
        %1087 = vmatmul.mubr.bf16.gmra.mxu0 %v565
        %v1088 = vpop.f32.mrf.mxu0
        %v1089 = vadd.f32 %v1012, %v1088
        %v1090 = vpop.f32.mrf.mxu0
        %v1091 = vpop.f32.mrf.mxu0
        %v1092 = vadd.f32 %v1012, %v1091
        %v1093 = vpop.f32.mrf.mxu0
        %1094 = vmatprep.mubr.bf16.mxu0 0
        %1095 = vmatmul.mubr.bf16.gmra.mxu0 %v568
        %v1096 = vpop.f32.mrf.mxu0
        %v1097 = vadd.f32 %v1012, %v1096
        %v1098 = vpop.f32.mrf.mxu0
        %v1099 = vpop.f32.mrf.mxu0
        %v1100 = vadd.f32 %v1012, %v1099
        %v1101 = vpop.f32.mrf.mxu0
        %1102 = vmatprep.mubr.bf16.mxu0 0
        %1103 = vmatmul.mubr.bf16.gmra.mxu0 %v571
        %v1104 = vpop.f32.mrf.mxu0
        %v1105 = vadd.f32 %v1012, %v1104
        %v1106 = vpop.f32.mrf.mxu0
        %v1107 = vpop.f32.mrf.mxu0
        %v1108 = vadd.f32 %v1012, %v1107
        %v1109 = vpop.f32.mrf.mxu0
        %1110 = vmatprep.mubr.bf16.mxu0 0
        %1111 = vmatmul.mubr.bf16.gmra.mxu0 %v574
        %v1112 = vpop.f32.mrf.mxu0
        %v1113 = vadd.f32 %v1012, %v1112
        %v1114 = vpop.f32.mrf.mxu0
        %v1115 = vpop.f32.mrf.mxu0
        %v1116 = vadd.f32 %v1012, %v1115
        %v1117 = vpop.f32.mrf.mxu0
        %1118 = vmatprep.mubr.bf16.mxu0 0
        %1119 = vmatmul.mubr.bf16.gmra.mxu0 %v577
        %v1120 = vpop.f32.mrf.mxu0
        %v1121 = vadd.f32 %v1012, %v1120
        %v1122 = vpop.f32.mrf.mxu0
        %v1123 = vpop.f32.mrf.mxu0
        %v1124 = vadd.f32 %v1012, %v1123
        %v1125 = vpop.f32.mrf.mxu0
        %1126 = vmatprep.mubr.bf16.mxu0 0
        %1127 = vmatmul.mubr.bf16.gmra.mxu0 %v580
        %v1128 = vpop.f32.mrf.mxu0
        %v1129 = vadd.f32 %v1012, %v1128
        %v1130 = vpop.f32.mrf.mxu0
        %v1131 = vpop.f32.mrf.mxu0
        %v1132 = vadd.f32 %v1012, %v1131
        %v1133 = vpop.f32.mrf.mxu0
        %1134 = vmatprep.mubr.bf16.mxu0 0
        %1135 = vmatmul.mubr.bf16.gmra.mxu0 %v583
        %v1136 = vpop.f32.mrf.mxu0
        %v1137 = vadd.f32 %v1012, %v1136
        %v1138 = vpop.f32.mrf.mxu0
        %v1139 = vpop.f32.mrf.mxu0
        %v1140 = vadd.f32 %v1012, %v1139
        %v1141 = vpop.f32.mrf.mxu0
        %1142 = vmatprep.mubr.bf16.mxu0 0
        %1143 = vmatmul.mubr.bf16.gmra.mxu0 %v586
        %v1144 = vpop.f32.mrf.mxu0
        %v1145 = vadd.f32 %v1012, %v1144
        %v1146 = vpop.f32.mrf.mxu0
        %v1147 = vpop.f32.mrf.mxu0
        %v1148 = vadd.f32 %v1012, %v1147
        %v1149 = vpop.f32.mrf.mxu0
        %1150 = vmatprep.mubr.bf16.mxu0 0
        %1151 = vmatmul.mubr.bf16.gmra.mxu0 %v589
        %v1152 = vpop.f32.mrf.mxu0
        %v1153 = vadd.f32 %v1012, %v1152
        %v1154 = vpop.f32.mrf.mxu0
        %v1155 = vpop.f32.mrf.mxu0
        %v1156 = vadd.f32 %v1012, %v1155
        %v1157 = vpop.f32.mrf.mxu0
        %1158 = vmatprep.mubr.bf16.mxu0 0
        %1159 = vmatmul.mubr.bf16.gmra.mxu0 %v592
        %v1160 = vpop.f32.mrf.mxu0
        %v1161 = vadd.f32 %v1012, %v1160
        %v1162 = vpop.f32.mrf.mxu0
        %v1163 = vpop.f32.mrf.mxu0
        %v1164 = vadd.f32 %v1012, %v1163
        %v1165 = vpop.f32.mrf.mxu0
        %1166 = vmatprep.mubr.bf16.mxu0 0
        %1167 = vmatmul.mubr.bf16.gmra.mxu0 %v595
        %v1168 = vpop.f32.mrf.mxu0
        %v1169 = vadd.f32 %v1012, %v1168
        %v1170 = vpop.f32.mrf.mxu0
        %v1171 = vpop.f32.mrf.mxu0
        %v1172 = vadd.f32 %v1012, %v1171
        %v1173 = vpop.f32.mrf.mxu0
        %1174 = vmatprep.mubr.bf16.mxu0 0
        %1175 = vmatmul.mubr.bf16.gmra.mxu0 %v598
        %v1176 = vpop.f32.mrf.mxu0
        %v1177 = vadd.f32 %v1012, %v1176
        %v1178 = vpop.f32.mrf.mxu0
        %v1179 = vpop.f32.mrf.mxu0
        %v1180 = vadd.f32 %v1012, %v1179
        %v1181 = vpop.f32.mrf.mxu0
        %1182 = vmatprep.mubr.bf16.mxu0 0
        %1183 = vmatmul.mubr.bf16.gmra.mxu0 %v601
        %v1184 = vpop.f32.mrf.mxu0
        %v1185 = vadd.f32 %v1012, %v1184
        %v1186 = vpop.f32.mrf.mxu0
        %v1187 = vpop.f32.mrf.mxu0
        %v1188 = vadd.f32 %v1012, %v1187
        %v1189 = vpop.f32.mrf.mxu0
        %1190 = vmatprep.mubr.bf16.mxu0 0
        %1191 = vmatmul.mubr.bf16.gmra.mxu0 %v604
        %v1192 = vpop.f32.mrf.mxu0
        %v1193 = vadd.f32 %v1012, %v1192
        %v1194 = vpop.f32.mrf.mxu0
        %v1195 = vpop.f32.mrf.mxu0
        %v1196 = vadd.f32 %v1012, %v1195
        %v1197 = vpop.f32.mrf.mxu0
        %1198 = vdwg.mxu0
        %v1199 = vpack.c.bf16 %v1076, %v1073
        %v1200 = vpack.c.bf16 %v1084, %v1081
        %v1201 = vpack.c.bf16 %v1092, %v1089
        %v1202 = vpack.c.bf16 %v1100, %v1097
        %v1203 = vpack.c.bf16 %v1108, %v1105
        %v1204 = vpack.c.bf16 %v1116, %v1113
        %v1205 = vpack.c.bf16 %v1124, %v1121
        %v1206 = vpack.c.bf16 %v1132, %v1129
        %v1207 = vpack.c.bf16 %v1140, %v1137
        %v1208 = vpack.c.bf16 %v1148, %v1145
        %v1209 = vpack.c.bf16 %v1156, %v1153
        %v1210 = vpack.c.bf16 %v1164, %v1161
        %v1211 = vpack.c.bf16 %v1172, %v1169
        %v1212 = vpack.c.bf16 %v1180, %v1177
        %v1213 = vpack.c.bf16 %v1188, %v1185
        %v1214 = vpack.c.bf16 %v1196, %v1193
        %v1215 = vld [vmem:[%s10] sm:$0x1]
        %v1216 = vld [vmem:[%s10 + $0x1] sm:$0x1]
        %v1217 = vld [vmem:[%s10 + $0x2] sm:$0x1]
        %v1218 = vld [vmem:[%s10 + $0x3] sm:$0x1]
        %v1219 = vld [vmem:[%s10 + $0x4] sm:$0x1]
        %v1220 = vld [vmem:[%s10 + $0x5] sm:$0x1]
        %v1221 = vld [vmem:[%s10 + $0x6] sm:$0x1]
        %v1222 = vld [vmem:[%s10 + $0x7] sm:$0x1]
        %v1224 = vpack.i.b16 %v1215, %v1215
        %v1226 = vlaneseq
        %v1227 = vshrl.u32 %v1226, 7
        %v1228 = vsub.s32 0, %v1227
        %v1229 = vrot.slane %v1224, %v1228
        %v1231 = vpack.i.b16 %v1216, %v1216
        %v1233 = vlaneseq
        %v1234 = vshrl.u32 %v1233, 7
        %v1235 = vsub.s32 0, %v1234
        %v1236 = vrot.slane %v1231, %v1235
        %v1238 = vpack.i.b16 %v1217, %v1217
        %v1240 = vlaneseq
        %v1241 = vshrl.u32 %v1240, 7
        %v1242 = vsub.s32 0, %v1241
        %v1243 = vrot.slane %v1238, %v1242
        %v1245 = vpack.i.b16 %v1218, %v1218
        %v1247 = vlaneseq
        %v1248 = vshrl.u32 %v1247, 7
        %v1249 = vsub.s32 0, %v1248
        %v1250 = vrot.slane %v1245, %v1249
        %v1252 = vpack.i.b16 %v1219, %v1219
        %v1254 = vlaneseq
        %v1255 = vshrl.u32 %v1254, 7
        %v1256 = vsub.s32 0, %v1255
        %v1257 = vrot.slane %v1252, %v1256
        %v1259 = vpack.i.b16 %v1220, %v1220
        %v1261 = vlaneseq
        %v1262 = vshrl.u32 %v1261, 7
        %v1263 = vsub.s32 0, %v1262
        %v1264 = vrot.slane %v1259, %v1263
        %v1266 = vpack.i.b16 %v1221, %v1221
        %v1268 = vlaneseq
        %v1269 = vshrl.u32 %v1268, 7
        %v1270 = vsub.s32 0, %v1269
        %v1271 = vrot.slane %v1266, %v1270
        %v1273 = vpack.i.b16 %v1222, %v1222
        %v1275 = vlaneseq
        %v1276 = vshrl.u32 %v1275, 7
        %v1277 = vsub.s32 0, %v1276
        %v1278 = vrot.slane %v1273, %v1277
        %v1279 = vmul.bf16 %v767, %v1229
        %v1280 = vmul.bf16 %v768, %v1229
        %v1281 = vmul.bf16 %v769, %v1229
        %v1282 = vmul.bf16 %v770, %v1229
        %v1283 = vmul.bf16 %v767, %v1236
        %v1284 = vmul.bf16 %v768, %v1236
        %v1285 = vmul.bf16 %v769, %v1236
        %v1286 = vmul.bf16 %v770, %v1236
        %v1287 = vmul.bf16 %v767, %v1243
        %v1288 = vmul.bf16 %v768, %v1243
        %v1289 = vmul.bf16 %v769, %v1243
        %v1290 = vmul.bf16 %v770, %v1243
        %v1291 = vmul.bf16 %v767, %v1250
        %v1292 = vmul.bf16 %v768, %v1250
        %v1293 = vmul.bf16 %v769, %v1250
        %v1294 = vmul.bf16 %v770, %v1250
        %v1295 = vmul.bf16 %v767, %v1257
        %v1296 = vmul.bf16 %v768, %v1257
        %v1297 = vmul.bf16 %v769, %v1257
        %v1298 = vmul.bf16 %v770, %v1257
        %v1299 = vmul.bf16 %v767, %v1264
        %v1300 = vmul.bf16 %v768, %v1264
        %v1301 = vmul.bf16 %v769, %v1264
        %v1302 = vmul.bf16 %v770, %v1264
        %v1303 = vmul.bf16 %v767, %v1271
        %v1304 = vmul.bf16 %v768, %v1271
        %v1305 = vmul.bf16 %v769, %v1271
        %v1306 = vmul.bf16 %v770, %v1271
        %v1307 = vmul.bf16 %v767, %v1278
        %v1308 = vmul.bf16 %v768, %v1278
        %v1309 = vmul.bf16 %v769, %v1278
        %v1310 = vmul.bf16 %v770, %v1278
        %v1311 = vmul.bf16 %v771, %v1229
        %v1312 = vmul.bf16 %v772, %v1229
        %v1313 = vmul.bf16 %v773, %v1229
        %v1314 = vmul.bf16 %v774, %v1229
        %v1315 = vmul.bf16 %v771, %v1236
        %v1316 = vmul.bf16 %v772, %v1236
        %v1317 = vmul.bf16 %v773, %v1236
        %v1318 = vmul.bf16 %v774, %v1236
        %v1319 = vmul.bf16 %v771, %v1243
        %v1320 = vmul.bf16 %v772, %v1243
        %v1321 = vmul.bf16 %v773, %v1243
        %v1322 = vmul.bf16 %v774, %v1243
        %v1323 = vmul.bf16 %v771, %v1250
        %v1324 = vmul.bf16 %v772, %v1250
        %v1325 = vmul.bf16 %v773, %v1250
        %v1326 = vmul.bf16 %v774, %v1250
        %v1327 = vmul.bf16 %v771, %v1257
        %v1328 = vmul.bf16 %v772, %v1257
        %v1329 = vmul.bf16 %v773, %v1257
        %v1330 = vmul.bf16 %v774, %v1257
        %v1331 = vmul.bf16 %v771, %v1264
        %v1332 = vmul.bf16 %v772, %v1264
        %v1333 = vmul.bf16 %v773, %v1264
        %v1334 = vmul.bf16 %v774, %v1264
        %v1335 = vmul.bf16 %v771, %v1271
        %v1336 = vmul.bf16 %v772, %v1271
        %v1337 = vmul.bf16 %v773, %v1271
        %v1338 = vmul.bf16 %v774, %v1271
        %v1339 = vmul.bf16 %v771, %v1278
        %v1340 = vmul.bf16 %v772, %v1278
        %v1341 = vmul.bf16 %v773, %v1278
        %v1342 = vmul.bf16 %v774, %v1278
        %v1343 = vmul.bf16 %v775, %v1229
        %v1344 = vmul.bf16 %v776, %v1229
        %v1345 = vmul.bf16 %v777, %v1229
        %v1346 = vmul.bf16 %v778, %v1229
        %v1347 = vmul.bf16 %v775, %v1236
        %v1348 = vmul.bf16 %v776, %v1236
        %v1349 = vmul.bf16 %v777, %v1236
        %v1350 = vmul.bf16 %v778, %v1236
        %v1351 = vmul.bf16 %v775, %v1243
        %v1352 = vmul.bf16 %v776, %v1243
        %v1353 = vmul.bf16 %v777, %v1243
        %v1354 = vmul.bf16 %v778, %v1243
        %v1355 = vmul.bf16 %v775, %v1250
        %v1356 = vmul.bf16 %v776, %v1250
        %v1357 = vmul.bf16 %v777, %v1250
        %v1358 = vmul.bf16 %v778, %v1250
        %v1359 = vmul.bf16 %v775, %v1257
        %v1360 = vmul.bf16 %v776, %v1257
        %v1361 = vmul.bf16 %v777, %v1257
        %v1362 = vmul.bf16 %v778, %v1257
        %v1363 = vmul.bf16 %v775, %v1264
        %v1364 = vmul.bf16 %v776, %v1264
        %v1365 = vmul.bf16 %v777, %v1264
        %v1366 = vmul.bf16 %v778, %v1264
        %v1367 = vmul.bf16 %v775, %v1271
        %v1368 = vmul.bf16 %v776, %v1271
        %v1369 = vmul.bf16 %v777, %v1271
        %v1370 = vmul.bf16 %v778, %v1271
        %v1371 = vmul.bf16 %v775, %v1278
        %v1372 = vmul.bf16 %v776, %v1278
        %v1373 = vmul.bf16 %v777, %v1278
        %v1374 = vmul.bf16 %v778, %v1278
        %v1375 = vmul.bf16 %v779, %v1229
        %v1376 = vmul.bf16 %v780, %v1229
        %v1377 = vmul.bf16 %v781, %v1229
        %v1378 = vmul.bf16 %v782, %v1229
        %v1379 = vmul.bf16 %v779, %v1236
        %v1380 = vmul.bf16 %v780, %v1236
        %v1381 = vmul.bf16 %v781, %v1236
        %v1382 = vmul.bf16 %v782, %v1236
        %v1383 = vmul.bf16 %v779, %v1243
        %v1384 = vmul.bf16 %v780, %v1243
        %v1385 = vmul.bf16 %v781, %v1243
        %v1386 = vmul.bf16 %v782, %v1243
        %v1387 = vmul.bf16 %v779, %v1250
        %v1388 = vmul.bf16 %v780, %v1250
        %v1389 = vmul.bf16 %v781, %v1250
        %v1390 = vmul.bf16 %v782, %v1250
        %v1391 = vmul.bf16 %v779, %v1257
        %v1392 = vmul.bf16 %v780, %v1257
        %v1393 = vmul.bf16 %v781, %v1257
        %v1394 = vmul.bf16 %v782, %v1257
        %v1395 = vmul.bf16 %v779, %v1264
        %v1396 = vmul.bf16 %v780, %v1264
        %v1397 = vmul.bf16 %v781, %v1264
        %v1398 = vmul.bf16 %v782, %v1264
        %v1399 = vmul.bf16 %v779, %v1271
        %v1400 = vmul.bf16 %v780, %v1271
        %v1401 = vmul.bf16 %v781, %v1271
        %v1402 = vmul.bf16 %v782, %v1271
        %v1403 = vmul.bf16 %v779, %v1278
        %v1404 = vmul.bf16 %v780, %v1278
        %v1405 = vmul.bf16 %v781, %v1278
        %v1406 = vmul.bf16 %v782, %v1278
        %v1407 = vmul.bf16 %v983, %v1229
        %v1408 = vmul.bf16 %v984, %v1229
        %v1409 = vmul.bf16 %v985, %v1229
        %v1410 = vmul.bf16 %v986, %v1229
        %v1411 = vmul.bf16 %v983, %v1236
        %v1412 = vmul.bf16 %v984, %v1236
        %v1413 = vmul.bf16 %v985, %v1236
        %v1414 = vmul.bf16 %v986, %v1236
        %v1415 = vmul.bf16 %v983, %v1243
        %v1416 = vmul.bf16 %v984, %v1243
        %v1417 = vmul.bf16 %v985, %v1243
        %v1418 = vmul.bf16 %v986, %v1243
        %v1419 = vmul.bf16 %v983, %v1250
        %v1420 = vmul.bf16 %v984, %v1250
        %v1421 = vmul.bf16 %v985, %v1250
        %v1422 = vmul.bf16 %v986, %v1250
        %v1423 = vmul.bf16 %v983, %v1257
        %v1424 = vmul.bf16 %v984, %v1257
        %v1425 = vmul.bf16 %v985, %v1257
        %v1426 = vmul.bf16 %v986, %v1257
        %v1427 = vmul.bf16 %v983, %v1264
        %v1428 = vmul.bf16 %v984, %v1264
        %v1429 = vmul.bf16 %v985, %v1264
        %v1430 = vmul.bf16 %v986, %v1264
        %v1431 = vmul.bf16 %v983, %v1271
        %v1432 = vmul.bf16 %v984, %v1271
        %v1433 = vmul.bf16 %v985, %v1271
        %v1434 = vmul.bf16 %v986, %v1271
        %v1435 = vmul.bf16 %v983, %v1278
        %v1436 = vmul.bf16 %v984, %v1278
        %v1437 = vmul.bf16 %v985, %v1278
        %v1438 = vmul.bf16 %v986, %v1278
        %v1439 = vmul.bf16 %v987, %v1229
        %v1440 = vmul.bf16 %v988, %v1229
        %v1441 = vmul.bf16 %v989, %v1229
        %v1442 = vmul.bf16 %v990, %v1229
        %v1443 = vmul.bf16 %v987, %v1236
        %v1444 = vmul.bf16 %v988, %v1236
        %v1445 = vmul.bf16 %v989, %v1236
        %v1446 = vmul.bf16 %v990, %v1236
        %v1447 = vmul.bf16 %v987, %v1243
        %v1448 = vmul.bf16 %v988, %v1243
        %v1449 = vmul.bf16 %v989, %v1243
        %v1450 = vmul.bf16 %v990, %v1243
        %v1451 = vmul.bf16 %v987, %v1250
        %v1452 = vmul.bf16 %v988, %v1250
        %v1453 = vmul.bf16 %v989, %v1250
        %v1454 = vmul.bf16 %v990, %v1250
        %v1455 = vmul.bf16 %v987, %v1257
        %v1456 = vmul.bf16 %v988, %v1257
        %v1457 = vmul.bf16 %v989, %v1257
        %v1458 = vmul.bf16 %v990, %v1257
        %v1459 = vmul.bf16 %v987, %v1264
        %v1460 = vmul.bf16 %v988, %v1264
        %v1461 = vmul.bf16 %v989, %v1264
        %v1462 = vmul.bf16 %v990, %v1264
        %v1463 = vmul.bf16 %v987, %v1271
        %v1464 = vmul.bf16 %v988, %v1271
        %v1465 = vmul.bf16 %v989, %v1271
        %v1466 = vmul.bf16 %v990, %v1271
        %v1467 = vmul.bf16 %v987, %v1278
        %v1468 = vmul.bf16 %v988, %v1278
        %v1469 = vmul.bf16 %v989, %v1278
        %v1470 = vmul.bf16 %v990, %v1278
        %v1471 = vmul.bf16 %v991, %v1229
        %v1472 = vmul.bf16 %v992, %v1229
        %v1473 = vmul.bf16 %v993, %v1229
        %v1474 = vmul.bf16 %v994, %v1229
        %v1475 = vmul.bf16 %v991, %v1236
        %v1476 = vmul.bf16 %v992, %v1236
        %v1477 = vmul.bf16 %v993, %v1236
        %v1478 = vmul.bf16 %v994, %v1236
        %v1479 = vmul.bf16 %v991, %v1243
        %v1480 = vmul.bf16 %v992, %v1243
        %v1481 = vmul.bf16 %v993, %v1243
        %v1482 = vmul.bf16 %v994, %v1243
        %v1483 = vmul.bf16 %v991, %v1250
        %v1484 = vmul.bf16 %v992, %v1250
        %v1485 = vmul.bf16 %v993, %v1250
        %v1486 = vmul.bf16 %v994, %v1250
        %v1487 = vmul.bf16 %v991, %v1257
        %v1488 = vmul.bf16 %v992, %v1257
        %v1489 = vmul.bf16 %v993, %v1257
        %v1490 = vmul.bf16 %v994, %v1257
        %v1491 = vmul.bf16 %v991, %v1264
        %v1492 = vmul.bf16 %v992, %v1264
        %v1493 = vmul.bf16 %v993, %v1264
        %v1494 = vmul.bf16 %v994, %v1264
        %v1495 = vmul.bf16 %v991, %v1271
        %v1496 = vmul.bf16 %v992, %v1271
        %v1497 = vmul.bf16 %v993, %v1271
        %v1498 = vmul.bf16 %v994, %v1271
        %v1499 = vmul.bf16 %v991, %v1278
        %v1500 = vmul.bf16 %v992, %v1278
        %v1501 = vmul.bf16 %v993, %v1278
        %v1502 = vmul.bf16 %v994, %v1278
        %v1503 = vmul.bf16 %v995, %v1229
        %v1504 = vmul.bf16 %v996, %v1229
        %v1505 = vmul.bf16 %v997, %v1229
        %v1506 = vmul.bf16 %v998, %v1229
        %v1507 = vmul.bf16 %v995, %v1236
        %v1508 = vmul.bf16 %v996, %v1236
        %v1509 = vmul.bf16 %v997, %v1236
        %v1510 = vmul.bf16 %v998, %v1236
        %v1511 = vmul.bf16 %v995, %v1243
        %v1512 = vmul.bf16 %v996, %v1243
        %v1513 = vmul.bf16 %v997, %v1243
        %v1514 = vmul.bf16 %v998, %v1243
        %v1515 = vmul.bf16 %v995, %v1250
        %v1516 = vmul.bf16 %v996, %v1250
        %v1517 = vmul.bf16 %v997, %v1250
        %v1518 = vmul.bf16 %v998, %v1250
        %v1519 = vmul.bf16 %v995, %v1257
        %v1520 = vmul.bf16 %v996, %v1257
        %v1521 = vmul.bf16 %v997, %v1257
        %v1522 = vmul.bf16 %v998, %v1257
        %v1523 = vmul.bf16 %v995, %v1264
        %v1524 = vmul.bf16 %v996, %v1264
        %v1525 = vmul.bf16 %v997, %v1264
        %v1526 = vmul.bf16 %v998, %v1264
        %v1527 = vmul.bf16 %v995, %v1271
        %v1528 = vmul.bf16 %v996, %v1271
        %v1529 = vmul.bf16 %v997, %v1271
        %v1530 = vmul.bf16 %v998, %v1271
        %v1531 = vmul.bf16 %v995, %v1278
        %v1532 = vmul.bf16 %v996, %v1278
        %v1533 = vmul.bf16 %v997, %v1278
        %v1534 = vmul.bf16 %v998, %v1278
        %v1535 = vmul.bf16 %v1199, %v1229
        %v1536 = vmul.bf16 %v1200, %v1229
        %v1537 = vmul.bf16 %v1201, %v1229
        %v1538 = vmul.bf16 %v1202, %v1229
        %v1539 = vmul.bf16 %v1199, %v1236
        %v1540 = vmul.bf16 %v1200, %v1236
        %v1541 = vmul.bf16 %v1201, %v1236
        %v1542 = vmul.bf16 %v1202, %v1236
        %v1543 = vmul.bf16 %v1199, %v1243
        %v1544 = vmul.bf16 %v1200, %v1243
        %v1545 = vmul.bf16 %v1201, %v1243
        %v1546 = vmul.bf16 %v1202, %v1243
        %v1547 = vmul.bf16 %v1199, %v1250
        %v1548 = vmul.bf16 %v1200, %v1250
        %v1549 = vmul.bf16 %v1201, %v1250
        %v1550 = vmul.bf16 %v1202, %v1250
        %v1551 = vmul.bf16 %v1199, %v1257
        %v1552 = vmul.bf16 %v1200, %v1257
        %v1553 = vmul.bf16 %v1201, %v1257
        %v1554 = vmul.bf16 %v1202, %v1257
        %v1555 = vmul.bf16 %v1199, %v1264
        %v1556 = vmul.bf16 %v1200, %v1264
        %v1557 = vmul.bf16 %v1201, %v1264
        %v1558 = vmul.bf16 %v1202, %v1264
        %v1559 = vmul.bf16 %v1199, %v1271
        %v1560 = vmul.bf16 %v1200, %v1271
        %v1561 = vmul.bf16 %v1201, %v1271
        %v1562 = vmul.bf16 %v1202, %v1271
        %v1563 = vmul.bf16 %v1199, %v1278
        %v1564 = vmul.bf16 %v1200, %v1278
        %v1565 = vmul.bf16 %v1201, %v1278
        %v1566 = vmul.bf16 %v1202, %v1278
        %v1567 = vmul.bf16 %v1203, %v1229
        %v1568 = vmul.bf16 %v1204, %v1229
        %v1569 = vmul.bf16 %v1205, %v1229
        %v1570 = vmul.bf16 %v1206, %v1229
        %v1571 = vmul.bf16 %v1203, %v1236
        %v1572 = vmul.bf16 %v1204, %v1236
        %v1573 = vmul.bf16 %v1205, %v1236
        %v1574 = vmul.bf16 %v1206, %v1236
        %v1575 = vmul.bf16 %v1203, %v1243
        %v1576 = vmul.bf16 %v1204, %v1243
        %v1577 = vmul.bf16 %v1205, %v1243
        %v1578 = vmul.bf16 %v1206, %v1243
        %v1579 = vmul.bf16 %v1203, %v1250
        %v1580 = vmul.bf16 %v1204, %v1250
        %v1581 = vmul.bf16 %v1205, %v1250
        %v1582 = vmul.bf16 %v1206, %v1250
        %v1583 = vmul.bf16 %v1203, %v1257
        %v1584 = vmul.bf16 %v1204, %v1257
        %v1585 = vmul.bf16 %v1205, %v1257
        %v1586 = vmul.bf16 %v1206, %v1257
        %v1587 = vmul.bf16 %v1203, %v1264
        %v1588 = vmul.bf16 %v1204, %v1264
        %v1589 = vmul.bf16 %v1205, %v1264
        %v1590 = vmul.bf16 %v1206, %v1264
        %v1591 = vmul.bf16 %v1203, %v1271
        %v1592 = vmul.bf16 %v1204, %v1271
        %v1593 = vmul.bf16 %v1205, %v1271
        %v1594 = vmul.bf16 %v1206, %v1271
        %v1595 = vmul.bf16 %v1203, %v1278
        %v1596 = vmul.bf16 %v1204, %v1278
        %v1597 = vmul.bf16 %v1205, %v1278
        %v1598 = vmul.bf16 %v1206, %v1278
        %v1599 = vmul.bf16 %v1207, %v1229
        %v1600 = vmul.bf16 %v1208, %v1229
        %v1601 = vmul.bf16 %v1209, %v1229
        %v1602 = vmul.bf16 %v1210, %v1229
        %v1603 = vmul.bf16 %v1207, %v1236
        %v1604 = vmul.bf16 %v1208, %v1236
        %v1605 = vmul.bf16 %v1209, %v1236
        %v1606 = vmul.bf16 %v1210, %v1236
        %v1607 = vmul.bf16 %v1207, %v1243
        %v1608 = vmul.bf16 %v1208, %v1243
        %v1609 = vmul.bf16 %v1209, %v1243
        %v1610 = vmul.bf16 %v1210, %v1243
        %v1611 = vmul.bf16 %v1207, %v1250
        %v1612 = vmul.bf16 %v1208, %v1250
        %v1613 = vmul.bf16 %v1209, %v1250
        %v1614 = vmul.bf16 %v1210, %v1250
        %v1615 = vmul.bf16 %v1207, %v1257
        %v1616 = vmul.bf16 %v1208, %v1257
        %v1617 = vmul.bf16 %v1209, %v1257
        %v1618 = vmul.bf16 %v1210, %v1257
        %v1619 = vmul.bf16 %v1207, %v1264
        %v1620 = vmul.bf16 %v1208, %v1264
        %v1621 = vmul.bf16 %v1209, %v1264
        %v1622 = vmul.bf16 %v1210, %v1264
        %v1623 = vmul.bf16 %v1207, %v1271
        %v1624 = vmul.bf16 %v1208, %v1271
        %v1625 = vmul.bf16 %v1209, %v1271
        %v1626 = vmul.bf16 %v1210, %v1271
        %v1627 = vmul.bf16 %v1207, %v1278
        %v1628 = vmul.bf16 %v1208, %v1278
        %v1629 = vmul.bf16 %v1209, %v1278
        %v1630 = vmul.bf16 %v1210, %v1278
        %v1631 = vmul.bf16 %v1211, %v1229
        %v1632 = vmul.bf16 %v1212, %v1229
        %v1633 = vmul.bf16 %v1213, %v1229
        %v1634 = vmul.bf16 %v1214, %v1229
        %v1635 = vmul.bf16 %v1211, %v1236
        %v1636 = vmul.bf16 %v1212, %v1236
        %v1637 = vmul.bf16 %v1213, %v1236
        %v1638 = vmul.bf16 %v1214, %v1236
        %v1639 = vmul.bf16 %v1211, %v1243
        %v1640 = vmul.bf16 %v1212, %v1243
        %v1641 = vmul.bf16 %v1213, %v1243
        %v1642 = vmul.bf16 %v1214, %v1243
        %v1643 = vmul.bf16 %v1211, %v1250
        %v1644 = vmul.bf16 %v1212, %v1250
        %v1645 = vmul.bf16 %v1213, %v1250
        %v1646 = vmul.bf16 %v1214, %v1250
        %v1647 = vmul.bf16 %v1211, %v1257
        %v1648 = vmul.bf16 %v1212, %v1257
        %v1649 = vmul.bf16 %v1213, %v1257
        %v1650 = vmul.bf16 %v1214, %v1257
        %v1651 = vmul.bf16 %v1211, %v1264
        %v1652 = vmul.bf16 %v1212, %v1264
        %v1653 = vmul.bf16 %v1213, %v1264
        %v1654 = vmul.bf16 %v1214, %v1264
        %v1655 = vmul.bf16 %v1211, %v1271
        %v1656 = vmul.bf16 %v1212, %v1271
        %v1657 = vmul.bf16 %v1213, %v1271
        %v1658 = vmul.bf16 %v1214, %v1271
        %v1659 = vmul.bf16 %v1211, %v1278
        %v1660 = vmul.bf16 %v1212, %v1278
        %v1661 = vmul.bf16 %v1213, %v1278
        %v1662 = vmul.bf16 %v1214, %v1278
        %v1664 = vsel %vm557, %v1279, 0
        %v1667 = vsel %vm557, %v1280, 0
        %v1670 = vsel %vm557, %v1281, 0
        %v1673 = vsel %vm557, %v1282, 0
        %v1676 = vsel %vm557, %v1407, 0
        %v1679 = vsel %vm557, %v1408, 0
        %v1682 = vsel %vm557, %v1409, 0
        %v1685 = vsel %vm557, %v1410, 0
        %1687 = vmatprep.subr.bf16.mxu0 0
        %1688 = vmatpush1.bf16.xpose.msra.mxu0 0
        %1689 = vmatprep.subr.bf16.mxu0 0
        %1690 = vmatpush1.bf16.xpose.msra.mxu0 0
        %1691 = vmatprep.subr.bf16.mxu0 0
        %1692 = vmatpush1.bf16.xpose.msra.mxu0 0
        %1693 = vmatprep.subr.bf16.mxu0 0
        %1694 = vmatpush1.bf16.xpose.msra.mxu0 0
        %1695 = vmatprep.subr.bf16.mxu0 0
        %1696 = vmatpush1.bf16.xpose.msra.mxu0 %v1685
        %1697 = vmatprep.subr.bf16.mxu0 0
        %1698 = vmatpush1.bf16.xpose.msra.mxu0 %v1682
        %1699 = vmatprep.subr.bf16.mxu0 0
        %1700 = vmatpush1.bf16.xpose.msra.mxu0 %v1679
        %1701 = vmatprep.subr.bf16.mxu0 0
        %1702 = vmatpush1.bf16.xpose.msra.mxu0 %v1676
        %1703 = vmatprep.subr.bf16.mxu0 0
        %1704 = vmatpush2.bf16.xpose.msra.mxu0 0
        %1705 = vmatprep.subr.bf16.mxu0 0
        %1706 = vmatpush2.bf16.xpose.msra.mxu0 0
        %1707 = vmatprep.subr.bf16.mxu0 0
        %1708 = vmatpush2.bf16.xpose.msra.mxu0 0
        %1709 = vmatprep.subr.bf16.mxu0 0
        %1710 = vmatpush2.bf16.xpose.msra.mxu0 0
        %1711 = vmatprep.subr.bf16.mxu0 0
        %1712 = vmatpush2.bf16.xpose.msra.mxu0 0
        %1713 = vmatprep.subr.bf16.mxu0 0
        %1714 = vmatpush2.bf16.xpose.msra.mxu0 0
        %1715 = vmatprep.subr.bf16.mxu0 0
        %1716 = vmatpush2.bf16.xpose.msra.mxu0 0
        %1717 = vmatprep.subr.bf16.mxu0 0
        %1718 = vmatpush2.bf16.xpose.msra.mxu0 0
        %1719 = vmatprep.mubr.bf16.mxu0 0
        %1720 = vmatmul.mubr.bf16.gmra.mxu0 %v1664
        %v1721 = vpop.f32.mrf.mxu0
        %v1722 = vadd.f32 0.0, %v1721
        %v1723 = vpop.f32.mrf.mxu0
        %v1724 = vpop.f32.mrf.mxu0
        %v1725 = vadd.f32 0.0, %v1724
        %v1726 = vpop.f32.mrf.mxu0
        %1727 = vmatprep.mubr.bf16.mxu0 0
        %1728 = vmatmul.mubr.bf16.gmra.mxu0 %v1667
        %v1729 = vpop.f32.mrf.mxu0
        %v1730 = vadd.f32 0.0, %v1729
        %v1731 = vpop.f32.mrf.mxu0
        %v1732 = vpop.f32.mrf.mxu0
        %v1733 = vadd.f32 0.0, %v1732
        %v1734 = vpop.f32.mrf.mxu0
        %1735 = vmatprep.mubr.bf16.mxu0 0
        %1736 = vmatmul.mubr.bf16.gmra.mxu0 %v1670
        %v1737 = vpop.f32.mrf.mxu0
        %v1738 = vadd.f32 0.0, %v1737
        %v1739 = vpop.f32.mrf.mxu0
        %v1740 = vpop.f32.mrf.mxu0
        %v1741 = vadd.f32 0.0, %v1740
        %v1742 = vpop.f32.mrf.mxu0
        %1743 = vmatprep.mubr.bf16.mxu0 0
        %1744 = vmatmul.mubr.bf16.gmra.mxu0 %v1673
        %v1745 = vpop.f32.mrf.mxu0
        %v1746 = vadd.f32 0.0, %v1745
        %v1747 = vpop.f32.mrf.mxu0
        %v1748 = vpop.f32.mrf.mxu0
        %v1749 = vadd.f32 0.0, %v1748
        %v1750 = vpop.f32.mrf.mxu0
        %1751 = vdwg.mxu0
        %v1753 = vsel %vm557, %v1283, 0
        %v1756 = vsel %vm557, %v1284, 0
        %v1759 = vsel %vm557, %v1285, 0
        %v1762 = vsel %vm557, %v1286, 0
        %v1765 = vsel %vm557, %v1411, 0
        %v1768 = vsel %vm557, %v1412, 0
        %v1771 = vsel %vm557, %v1413, 0
        %v1774 = vsel %vm557, %v1414, 0
        %1776 = vmatprep.subr.bf16.mxu0 0
        %1777 = vmatpush1.bf16.xpose.msra.mxu0 0
        %1778 = vmatprep.subr.bf16.mxu0 0
        %1779 = vmatpush1.bf16.xpose.msra.mxu0 0
        %1780 = vmatprep.subr.bf16.mxu0 0
        %1781 = vmatpush1.bf16.xpose.msra.mxu0 0
        %1782 = vmatprep.subr.bf16.mxu0 0
        %1783 = vmatpush1.bf16.xpose.msra.mxu0 0
        %1784 = vmatprep.subr.bf16.mxu0 0
        %1785 = vmatpush1.bf16.xpose.msra.mxu0 %v1774
        %1786 = vmatprep.subr.bf16.mxu0 0
        %1787 = vmatpush1.bf16.xpose.msra.mxu0 %v1771
        %1788 = vmatprep.subr.bf16.mxu0 0
        %1789 = vmatpush1.bf16.xpose.msra.mxu0 %v1768
        %1790 = vmatprep.subr.bf16.mxu0 0
        %1791 = vmatpush1.bf16.xpose.msra.mxu0 %v1765
        %1792 = vmatprep.subr.bf16.mxu0 0
        %1793 = vmatpush2.bf16.xpose.msra.mxu0 0
        %1794 = vmatprep.subr.bf16.mxu0 0
        %1795 = vmatpush2.bf16.xpose.msra.mxu0 0
        %1796 = vmatprep.subr.bf16.mxu0 0
        %1797 = vmatpush2.bf16.xpose.msra.mxu0 0
        %1798 = vmatprep.subr.bf16.mxu0 0
        %1799 = vmatpush2.bf16.xpose.msra.mxu0 0
        %1800 = vmatprep.subr.bf16.mxu0 0
        %1801 = vmatpush2.bf16.xpose.msra.mxu0 0
        %1802 = vmatprep.subr.bf16.mxu0 0
        %1803 = vmatpush2.bf16.xpose.msra.mxu0 0
        %1804 = vmatprep.subr.bf16.mxu0 0
        %1805 = vmatpush2.bf16.xpose.msra.mxu0 0
        %1806 = vmatprep.subr.bf16.mxu0 0
        %1807 = vmatpush2.bf16.xpose.msra.mxu0 0
        %1808 = vmatprep.mubr.bf16.mxu0 0
        %1809 = vmatmul.mubr.bf16.gmra.mxu0 %v1753
        %v1810 = vpop.f32.mrf.mxu0
        %v1811 = vadd.f32 0.0, %v1810
        %v1812 = vpop.f32.mrf.mxu0
        %v1813 = vpop.f32.mrf.mxu0
        %v1814 = vadd.f32 0.0, %v1813
        %v1815 = vpop.f32.mrf.mxu0
        %1816 = vmatprep.mubr.bf16.mxu0 0
        %1817 = vmatmul.mubr.bf16.gmra.mxu0 %v1756
        %v1818 = vpop.f32.mrf.mxu0
        %v1819 = vadd.f32 0.0, %v1818
        %v1820 = vpop.f32.mrf.mxu0
        %v1821 = vpop.f32.mrf.mxu0
        %v1822 = vadd.f32 0.0, %v1821
        %v1823 = vpop.f32.mrf.mxu0
        %1824 = vmatprep.mubr.bf16.mxu0 0
        %1825 = vmatmul.mubr.bf16.gmra.mxu0 %v1759
        %v1826 = vpop.f32.mrf.mxu0
        %v1827 = vadd.f32 0.0, %v1826
        %v1828 = vpop.f32.mrf.mxu0
        %v1829 = vpop.f32.mrf.mxu0
        %v1830 = vadd.f32 0.0, %v1829
        %v1831 = vpop.f32.mrf.mxu0
        %1832 = vmatprep.mubr.bf16.mxu0 0
        %1833 = vmatmul.mubr.bf16.gmra.mxu0 %v1762
        %v1834 = vpop.f32.mrf.mxu0
        %v1835 = vadd.f32 0.0, %v1834
        %v1836 = vpop.f32.mrf.mxu0
        %v1837 = vpop.f32.mrf.mxu0
        %v1838 = vadd.f32 0.0, %v1837
        %v1839 = vpop.f32.mrf.mxu0
        %1840 = vdwg.mxu0
        %v1842 = vsel %vm557, %v1287, 0
        %v1845 = vsel %vm557, %v1288, 0
        %v1848 = vsel %vm557, %v1289, 0
        %v1851 = vsel %vm557, %v1290, 0
        %v1854 = vsel %vm557, %v1415, 0
        %v1857 = vsel %vm557, %v1416, 0
        %v1860 = vsel %vm557, %v1417, 0
        %v1863 = vsel %vm557, %v1418, 0
        %1865 = vmatprep.subr.bf16.mxu0 0
        %1866 = vmatpush1.bf16.xpose.msra.mxu0 0
        %1867 = vmatprep.subr.bf16.mxu0 0
        %1868 = vmatpush1.bf16.xpose.msra.mxu0 0
        %1869 = vmatprep.subr.bf16.mxu0 0
        %1870 = vmatpush1.bf16.xpose.msra.mxu0 0
        %1871 = vmatprep.subr.bf16.mxu0 0
        %1872 = vmatpush1.bf16.xpose.msra.mxu0 0
        %1873 = vmatprep.subr.bf16.mxu0 0
        %1874 = vmatpush1.bf16.xpose.msra.mxu0 %v1863
        %1875 = vmatprep.subr.bf16.mxu0 0
        %1876 = vmatpush1.bf16.xpose.msra.mxu0 %v1860
        %1877 = vmatprep.subr.bf16.mxu0 0
        %1878 = vmatpush1.bf16.xpose.msra.mxu0 %v1857
        %1879 = vmatprep.subr.bf16.mxu0 0
        %1880 = vmatpush1.bf16.xpose.msra.mxu0 %v1854
        %1881 = vmatprep.subr.bf16.mxu0 0
        %1882 = vmatpush2.bf16.xpose.msra.mxu0 0
        %1883 = vmatprep.subr.bf16.mxu0 0
        %1884 = vmatpush2.bf16.xpose.msra.mxu0 0
        %1885 = vmatprep.subr.bf16.mxu0 0
        %1886 = vmatpush2.bf16.xpose.msra.mxu0 0
        %1887 = vmatprep.subr.bf16.mxu0 0
        %1888 = vmatpush2.bf16.xpose.msra.mxu0 0
        %1889 = vmatprep.subr.bf16.mxu0 0
        %1890 = vmatpush2.bf16.xpose.msra.mxu0 0
        %1891 = vmatprep.subr.bf16.mxu0 0
        %1892 = vmatpush2.bf16.xpose.msra.mxu0 0
        %1893 = vmatprep.subr.bf16.mxu0 0
        %1894 = vmatpush2.bf16.xpose.msra.mxu0 0
        %1895 = vmatprep.subr.bf16.mxu0 0
        %1896 = vmatpush2.bf16.xpose.msra.mxu0 0
        %1897 = vmatprep.mubr.bf16.mxu0 0
        %1898 = vmatmul.mubr.bf16.gmra.mxu0 %v1842
        %v1899 = vpop.f32.mrf.mxu0
        %v1900 = vadd.f32 0.0, %v1899
        %v1901 = vpop.f32.mrf.mxu0
        %v1902 = vpop.f32.mrf.mxu0
        %v1903 = vadd.f32 0.0, %v1902
        %v1904 = vpop.f32.mrf.mxu0
        %1905 = vmatprep.mubr.bf16.mxu0 0
        %1906 = vmatmul.mubr.bf16.gmra.mxu0 %v1845
        %v1907 = vpop.f32.mrf.mxu0
        %v1908 = vadd.f32 0.0, %v1907
        %v1909 = vpop.f32.mrf.mxu0
        %v1910 = vpop.f32.mrf.mxu0
        %v1911 = vadd.f32 0.0, %v1910
        %v1912 = vpop.f32.mrf.mxu0
        %1913 = vmatprep.mubr.bf16.mxu0 0
        %1914 = vmatmul.mubr.bf16.gmra.mxu0 %v1848
        %v1915 = vpop.f32.mrf.mxu0
        %v1916 = vadd.f32 0.0, %v1915
        %v1917 = vpop.f32.mrf.mxu0
        %v1918 = vpop.f32.mrf.mxu0
        %v1919 = vadd.f32 0.0, %v1918
        %v1920 = vpop.f32.mrf.mxu0
        %1921 = vmatprep.mubr.bf16.mxu0 0
        %1922 = vmatmul.mubr.bf16.gmra.mxu0 %v1851
        %v1923 = vpop.f32.mrf.mxu0
        %v1924 = vadd.f32 0.0, %v1923
        %v1925 = vpop.f32.mrf.mxu0
        %v1926 = vpop.f32.mrf.mxu0
        %v1927 = vadd.f32 0.0, %v1926
        %v1928 = vpop.f32.mrf.mxu0
        %1929 = vdwg.mxu0
        %v1931 = vsel %vm557, %v1291, 0
        %v1934 = vsel %vm557, %v1292, 0
        %v1937 = vsel %vm557, %v1293, 0
        %v1940 = vsel %vm557, %v1294, 0
        %v1943 = vsel %vm557, %v1419, 0
        %v1946 = vsel %vm557, %v1420, 0
        %v1949 = vsel %vm557, %v1421, 0
        %v1952 = vsel %vm557, %v1422, 0
        %1954 = vmatprep.subr.bf16.mxu0 0
        %1955 = vmatpush1.bf16.xpose.msra.mxu0 0
        %1956 = vmatprep.subr.bf16.mxu0 0
        %1957 = vmatpush1.bf16.xpose.msra.mxu0 0
        %1958 = vmatprep.subr.bf16.mxu0 0
        %1959 = vmatpush1.bf16.xpose.msra.mxu0 0
        %1960 = vmatprep.subr.bf16.mxu0 0
        %1961 = vmatpush1.bf16.xpose.msra.mxu0 0
        %1962 = vmatprep.subr.bf16.mxu0 0
        %1963 = vmatpush1.bf16.xpose.msra.mxu0 %v1952
        %1964 = vmatprep.subr.bf16.mxu0 0
        %1965 = vmatpush1.bf16.xpose.msra.mxu0 %v1949
        %1966 = vmatprep.subr.bf16.mxu0 0
        %1967 = vmatpush1.bf16.xpose.msra.mxu0 %v1946
        %1968 = vmatprep.subr.bf16.mxu0 0
        %1969 = vmatpush1.bf16.xpose.msra.mxu0 %v1943
        %1970 = vmatprep.subr.bf16.mxu0 0
        %1971 = vmatpush2.bf16.xpose.msra.mxu0 0
        %1972 = vmatprep.subr.bf16.mxu0 0
        %1973 = vmatpush2.bf16.xpose.msra.mxu0 0
        %1974 = vmatprep.subr.bf16.mxu0 0
        %1975 = vmatpush2.bf16.xpose.msra.mxu0 0
        %1976 = vmatprep.subr.bf16.mxu0 0
        %1977 = vmatpush2.bf16.xpose.msra.mxu0 0
        %1978 = vmatprep.subr.bf16.mxu0 0
        %1979 = vmatpush2.bf16.xpose.msra.mxu0 0
        %1980 = vmatprep.subr.bf16.mxu0 0
        %1981 = vmatpush2.bf16.xpose.msra.mxu0 0
        %1982 = vmatprep.subr.bf16.mxu0 0
        %1983 = vmatpush2.bf16.xpose.msra.mxu0 0
        %1984 = vmatprep.subr.bf16.mxu0 0
        %1985 = vmatpush2.bf16.xpose.msra.mxu0 0
        %1986 = vmatprep.mubr.bf16.mxu0 0
        %1987 = vmatmul.mubr.bf16.gmra.mxu0 %v1931
        %v1988 = vpop.f32.mrf.mxu0
        %v1989 = vadd.f32 0.0, %v1988
        %v1990 = vpop.f32.mrf.mxu0
        %v1991 = vpop.f32.mrf.mxu0
        %v1992 = vadd.f32 0.0, %v1991
        %v1993 = vpop.f32.mrf.mxu0
        %1994 = vmatprep.mubr.bf16.mxu0 0
        %1995 = vmatmul.mubr.bf16.gmra.mxu0 %v1934
        %v1996 = vpop.f32.mrf.mxu0
        %v1997 = vadd.f32 0.0, %v1996
        %v1998 = vpop.f32.mrf.mxu0
        %v1999 = vpop.f32.mrf.mxu0
        %v2000 = vadd.f32 0.0, %v1999
        %v2001 = vpop.f32.mrf.mxu0
        %2002 = vmatprep.mubr.bf16.mxu0 0
        %2003 = vmatmul.mubr.bf16.gmra.mxu0 %v1937
        %v2004 = vpop.f32.mrf.mxu0
        %v2005 = vadd.f32 0.0, %v2004
        %v2006 = vpop.f32.mrf.mxu0
        %v2007 = vpop.f32.mrf.mxu0
        %v2008 = vadd.f32 0.0, %v2007
        %v2009 = vpop.f32.mrf.mxu0
        %2010 = vmatprep.mubr.bf16.mxu0 0
        %2011 = vmatmul.mubr.bf16.gmra.mxu0 %v1940
        %v2012 = vpop.f32.mrf.mxu0
        %v2013 = vadd.f32 0.0, %v2012
        %v2014 = vpop.f32.mrf.mxu0
        %v2015 = vpop.f32.mrf.mxu0
        %v2016 = vadd.f32 0.0, %v2015
        %v2017 = vpop.f32.mrf.mxu0
        %2018 = vdwg.mxu0
        %v2020 = vsel %vm557, %v1295, 0
        %v2023 = vsel %vm557, %v1296, 0
        %v2026 = vsel %vm557, %v1297, 0
        %v2029 = vsel %vm557, %v1298, 0
        %v2032 = vsel %vm557, %v1423, 0
        %v2035 = vsel %vm557, %v1424, 0
        %v2038 = vsel %vm557, %v1425, 0
        %v2041 = vsel %vm557, %v1426, 0
        %2043 = vmatprep.subr.bf16.mxu0 0
        %2044 = vmatpush1.bf16.xpose.msra.mxu0 0
        %2045 = vmatprep.subr.bf16.mxu0 0
        %2046 = vmatpush1.bf16.xpose.msra.mxu0 0
        %2047 = vmatprep.subr.bf16.mxu0 0
        %2048 = vmatpush1.bf16.xpose.msra.mxu0 0
        %2049 = vmatprep.subr.bf16.mxu0 0
        %2050 = vmatpush1.bf16.xpose.msra.mxu0 0
        %2051 = vmatprep.subr.bf16.mxu0 0
        %2052 = vmatpush1.bf16.xpose.msra.mxu0 %v2041
        %2053 = vmatprep.subr.bf16.mxu0 0
        %2054 = vmatpush1.bf16.xpose.msra.mxu0 %v2038
        %2055 = vmatprep.subr.bf16.mxu0 0
        %2056 = vmatpush1.bf16.xpose.msra.mxu0 %v2035
        %2057 = vmatprep.subr.bf16.mxu0 0
        %2058 = vmatpush1.bf16.xpose.msra.mxu0 %v2032
        %2059 = vmatprep.subr.bf16.mxu0 0
        %2060 = vmatpush2.bf16.xpose.msra.mxu0 0
        %2061 = vmatprep.subr.bf16.mxu0 0
        %2062 = vmatpush2.bf16.xpose.msra.mxu0 0
        %2063 = vmatprep.subr.bf16.mxu0 0
        %2064 = vmatpush2.bf16.xpose.msra.mxu0 0
        %2065 = vmatprep.subr.bf16.mxu0 0
        %2066 = vmatpush2.bf16.xpose.msra.mxu0 0
        %2067 = vmatprep.subr.bf16.mxu0 0
        %2068 = vmatpush2.bf16.xpose.msra.mxu0 0
        %2069 = vmatprep.subr.bf16.mxu0 0
        %2070 = vmatpush2.bf16.xpose.msra.mxu0 0
        %2071 = vmatprep.subr.bf16.mxu0 0
        %2072 = vmatpush2.bf16.xpose.msra.mxu0 0
        %2073 = vmatprep.subr.bf16.mxu0 0
        %2074 = vmatpush2.bf16.xpose.msra.mxu0 0
        %2075 = vmatprep.mubr.bf16.mxu0 0
        %2076 = vmatmul.mubr.bf16.gmra.mxu0 %v2020
        %v2077 = vpop.f32.mrf.mxu0
        %v2078 = vadd.f32 0.0, %v2077
        %v2079 = vpop.f32.mrf.mxu0
        %v2080 = vpop.f32.mrf.mxu0
        %v2081 = vadd.f32 0.0, %v2080
        %v2082 = vpop.f32.mrf.mxu0
        %2083 = vmatprep.mubr.bf16.mxu0 0
        %2084 = vmatmul.mubr.bf16.gmra.mxu0 %v2023
        %v2085 = vpop.f32.mrf.mxu0
        %v2086 = vadd.f32 0.0, %v2085
        %v2087 = vpop.f32.mrf.mxu0
        %v2088 = vpop.f32.mrf.mxu0
        %v2089 = vadd.f32 0.0, %v2088
        %v2090 = vpop.f32.mrf.mxu0
        %2091 = vmatprep.mubr.bf16.mxu0 0
        %2092 = vmatmul.mubr.bf16.gmra.mxu0 %v2026
        %v2093 = vpop.f32.mrf.mxu0
        %v2094 = vadd.f32 0.0, %v2093
        %v2095 = vpop.f32.mrf.mxu0
        %v2096 = vpop.f32.mrf.mxu0
        %v2097 = vadd.f32 0.0, %v2096
        %v2098 = vpop.f32.mrf.mxu0
        %2099 = vmatprep.mubr.bf16.mxu0 0
        %2100 = vmatmul.mubr.bf16.gmra.mxu0 %v2029
        %v2101 = vpop.f32.mrf.mxu0
        %v2102 = vadd.f32 0.0, %v2101
        %v2103 = vpop.f32.mrf.mxu0
        %v2104 = vpop.f32.mrf.mxu0
        %v2105 = vadd.f32 0.0, %v2104
        %v2106 = vpop.f32.mrf.mxu0
        %2107 = vdwg.mxu0
        %v2109 = vsel %vm557, %v1299, 0
        %v2112 = vsel %vm557, %v1300, 0
        %v2115 = vsel %vm557, %v1301, 0
        %v2118 = vsel %vm557, %v1302, 0
        %v2121 = vsel %vm557, %v1427, 0
        %v2124 = vsel %vm557, %v1428, 0
        %v2127 = vsel %vm557, %v1429, 0
        %v2130 = vsel %vm557, %v1430, 0
        %2132 = vmatprep.subr.bf16.mxu0 0
        %2133 = vmatpush1.bf16.xpose.msra.mxu0 0
        %2134 = vmatprep.subr.bf16.mxu0 0
        %2135 = vmatpush1.bf16.xpose.msra.mxu0 0
        %2136 = vmatprep.subr.bf16.mxu0 0
        %2137 = vmatpush1.bf16.xpose.msra.mxu0 0
        %2138 = vmatprep.subr.bf16.mxu0 0
        %2139 = vmatpush1.bf16.xpose.msra.mxu0 0
        %2140 = vmatprep.subr.bf16.mxu0 0
        %2141 = vmatpush1.bf16.xpose.msra.mxu0 %v2130
        %2142 = vmatprep.subr.bf16.mxu0 0
        %2143 = vmatpush1.bf16.xpose.msra.mxu0 %v2127
        %2144 = vmatprep.subr.bf16.mxu0 0
        %2145 = vmatpush1.bf16.xpose.msra.mxu0 %v2124
        %2146 = vmatprep.subr.bf16.mxu0 0
        %2147 = vmatpush1.bf16.xpose.msra.mxu0 %v2121
        %2148 = vmatprep.subr.bf16.mxu0 0
        %2149 = vmatpush2.bf16.xpose.msra.mxu0 0
        %2150 = vmatprep.subr.bf16.mxu0 0
        %2151 = vmatpush2.bf16.xpose.msra.mxu0 0
        %2152 = vmatprep.subr.bf16.mxu0 0
        %2153 = vmatpush2.bf16.xpose.msra.mxu0 0
        %2154 = vmatprep.subr.bf16.mxu0 0
        %2155 = vmatpush2.bf16.xpose.msra.mxu0 0
        %2156 = vmatprep.subr.bf16.mxu0 0
        %2157 = vmatpush2.bf16.xpose.msra.mxu0 0
        %2158 = vmatprep.subr.bf16.mxu0 0
        %2159 = vmatpush2.bf16.xpose.msra.mxu0 0
        %2160 = vmatprep.subr.bf16.mxu0 0
        %2161 = vmatpush2.bf16.xpose.msra.mxu0 0
        %2162 = vmatprep.subr.bf16.mxu0 0
        %2163 = vmatpush2.bf16.xpose.msra.mxu0 0
        %2164 = vmatprep.mubr.bf16.mxu0 0
        %2165 = vmatmul.mubr.bf16.gmra.mxu0 %v2109
        %v2166 = vpop.f32.mrf.mxu0
        %v2167 = vadd.f32 0.0, %v2166
        %v2168 = vpop.f32.mrf.mxu0
        %v2169 = vpop.f32.mrf.mxu0
        %v2170 = vadd.f32 0.0, %v2169
        %v2171 = vpop.f32.mrf.mxu0
        %2172 = vmatprep.mubr.bf16.mxu0 0
        %2173 = vmatmul.mubr.bf16.gmra.mxu0 %v2112
        %v2174 = vpop.f32.mrf.mxu0
        %v2175 = vadd.f32 0.0, %v2174
        %v2176 = vpop.f32.mrf.mxu0
        %v2177 = vpop.f32.mrf.mxu0
        %v2178 = vadd.f32 0.0, %v2177
        %v2179 = vpop.f32.mrf.mxu0
        %2180 = vmatprep.mubr.bf16.mxu0 0
        %2181 = vmatmul.mubr.bf16.gmra.mxu0 %v2115
        %v2182 = vpop.f32.mrf.mxu0
        %v2183 = vadd.f32 0.0, %v2182
        %v2184 = vpop.f32.mrf.mxu0
        %v2185 = vpop.f32.mrf.mxu0
        %v2186 = vadd.f32 0.0, %v2185
        %v2187 = vpop.f32.mrf.mxu0
        %2188 = vmatprep.mubr.bf16.mxu0 0
        %2189 = vmatmul.mubr.bf16.gmra.mxu0 %v2118
        %v2190 = vpop.f32.mrf.mxu0
        %v2191 = vadd.f32 0.0, %v2190
        %v2192 = vpop.f32.mrf.mxu0
        %v2193 = vpop.f32.mrf.mxu0
        %v2194 = vadd.f32 0.0, %v2193
        %v2195 = vpop.f32.mrf.mxu0
        %2196 = vdwg.mxu0
        %v2198 = vsel %vm557, %v1303, 0
        %v2201 = vsel %vm557, %v1304, 0
        %v2204 = vsel %vm557, %v1305, 0
        %v2207 = vsel %vm557, %v1306, 0
        %v2210 = vsel %vm557, %v1431, 0
        %v2213 = vsel %vm557, %v1432, 0
        %v2216 = vsel %vm557, %v1433, 0
        %v2219 = vsel %vm557, %v1434, 0
        %2221 = vmatprep.subr.bf16.mxu0 0
        %2222 = vmatpush1.bf16.xpose.msra.mxu0 0
        %2223 = vmatprep.subr.bf16.mxu0 0
        %2224 = vmatpush1.bf16.xpose.msra.mxu0 0
        %2225 = vmatprep.subr.bf16.mxu0 0
        %2226 = vmatpush1.bf16.xpose.msra.mxu0 0
        %2227 = vmatprep.subr.bf16.mxu0 0
        %2228 = vmatpush1.bf16.xpose.msra.mxu0 0
        %2229 = vmatprep.subr.bf16.mxu0 0
        %2230 = vmatpush1.bf16.xpose.msra.mxu0 %v2219
        %2231 = vmatprep.subr.bf16.mxu0 0
        %2232 = vmatpush1.bf16.xpose.msra.mxu0 %v2216
        %2233 = vmatprep.subr.bf16.mxu0 0
        %2234 = vmatpush1.bf16.xpose.msra.mxu0 %v2213
        %2235 = vmatprep.subr.bf16.mxu0 0
        %2236 = vmatpush1.bf16.xpose.msra.mxu0 %v2210
        %2237 = vmatprep.subr.bf16.mxu0 0
        %2238 = vmatpush2.bf16.xpose.msra.mxu0 0
        %2239 = vmatprep.subr.bf16.mxu0 0
        %2240 = vmatpush2.bf16.xpose.msra.mxu0 0
        %2241 = vmatprep.subr.bf16.mxu0 0
        %2242 = vmatpush2.bf16.xpose.msra.mxu0 0
        %2243 = vmatprep.subr.bf16.mxu0 0
        %2244 = vmatpush2.bf16.xpose.msra.mxu0 0
        %2245 = vmatprep.subr.bf16.mxu0 0
        %2246 = vmatpush2.bf16.xpose.msra.mxu0 0
        %2247 = vmatprep.subr.bf16.mxu0 0
        %2248 = vmatpush2.bf16.xpose.msra.mxu0 0
        %2249 = vmatprep.subr.bf16.mxu0 0
        %2250 = vmatpush2.bf16.xpose.msra.mxu0 0
        %2251 = vmatprep.subr.bf16.mxu0 0
        %2252 = vmatpush2.bf16.xpose.msra.mxu0 0
        %2253 = vmatprep.mubr.bf16.mxu0 0
        %2254 = vmatmul.mubr.bf16.gmra.mxu0 %v2198
        %v2255 = vpop.f32.mrf.mxu0
        %v2256 = vadd.f32 0.0, %v2255
        %v2257 = vpop.f32.mrf.mxu0
        %v2258 = vpop.f32.mrf.mxu0
        %v2259 = vadd.f32 0.0, %v2258
        %v2260 = vpop.f32.mrf.mxu0
        %2261 = vmatprep.mubr.bf16.mxu0 0
        %2262 = vmatmul.mubr.bf16.gmra.mxu0 %v2201
        %v2263 = vpop.f32.mrf.mxu0
        %v2264 = vadd.f32 0.0, %v2263
        %v2265 = vpop.f32.mrf.mxu0
        %v2266 = vpop.f32.mrf.mxu0
        %v2267 = vadd.f32 0.0, %v2266
        %v2268 = vpop.f32.mrf.mxu0
        %2269 = vmatprep.mubr.bf16.mxu0 0
        %2270 = vmatmul.mubr.bf16.gmra.mxu0 %v2204
        %v2271 = vpop.f32.mrf.mxu0
        %v2272 = vadd.f32 0.0, %v2271
        %v2273 = vpop.f32.mrf.mxu0
        %v2274 = vpop.f32.mrf.mxu0
        %v2275 = vadd.f32 0.0, %v2274
        %v2276 = vpop.f32.mrf.mxu0
        %2277 = vmatprep.mubr.bf16.mxu0 0
        %2278 = vmatmul.mubr.bf16.gmra.mxu0 %v2207
        %v2279 = vpop.f32.mrf.mxu0
        %v2280 = vadd.f32 0.0, %v2279
        %v2281 = vpop.f32.mrf.mxu0
        %v2282 = vpop.f32.mrf.mxu0
        %v2283 = vadd.f32 0.0, %v2282
        %v2284 = vpop.f32.mrf.mxu0
        %2285 = vdwg.mxu0
        %v2287 = vsel %vm557, %v1307, 0
        %v2290 = vsel %vm557, %v1308, 0
        %v2293 = vsel %vm557, %v1309, 0
        %v2296 = vsel %vm557, %v1310, 0
        %v2299 = vsel %vm557, %v1435, 0
        %v2302 = vsel %vm557, %v1436, 0
        %v2305 = vsel %vm557, %v1437, 0
        %v2308 = vsel %vm557, %v1438, 0
        %2310 = vmatprep.subr.bf16.mxu0 0
        %2311 = vmatpush1.bf16.xpose.msra.mxu0 0
        %2312 = vmatprep.subr.bf16.mxu0 0
        %2313 = vmatpush1.bf16.xpose.msra.mxu0 0
        %2314 = vmatprep.subr.bf16.mxu0 0
        %2315 = vmatpush1.bf16.xpose.msra.mxu0 0
        %2316 = vmatprep.subr.bf16.mxu0 0
        %2317 = vmatpush1.bf16.xpose.msra.mxu0 0
        %2318 = vmatprep.subr.bf16.mxu0 0
        %2319 = vmatpush1.bf16.xpose.msra.mxu0 %v2308
        %2320 = vmatprep.subr.bf16.mxu0 0
        %2321 = vmatpush1.bf16.xpose.msra.mxu0 %v2305
        %2322 = vmatprep.subr.bf16.mxu0 0
        %2323 = vmatpush1.bf16.xpose.msra.mxu0 %v2302
        %2324 = vmatprep.subr.bf16.mxu0 0
        %2325 = vmatpush1.bf16.xpose.msra.mxu0 %v2299
        %2326 = vmatprep.subr.bf16.mxu0 0
        %2327 = vmatpush2.bf16.xpose.msra.mxu0 0
        %2328 = vmatprep.subr.bf16.mxu0 0
        %2329 = vmatpush2.bf16.xpose.msra.mxu0 0
        %2330 = vmatprep.subr.bf16.mxu0 0
        %2331 = vmatpush2.bf16.xpose.msra.mxu0 0
        %2332 = vmatprep.subr.bf16.mxu0 0
        %2333 = vmatpush2.bf16.xpose.msra.mxu0 0
        %2334 = vmatprep.subr.bf16.mxu0 0
        %2335 = vmatpush2.bf16.xpose.msra.mxu0 0
        %2336 = vmatprep.subr.bf16.mxu0 0
        %2337 = vmatpush2.bf16.xpose.msra.mxu0 0
        %2338 = vmatprep.subr.bf16.mxu0 0
        %2339 = vmatpush2.bf16.xpose.msra.mxu0 0
        %2340 = vmatprep.subr.bf16.mxu0 0
        %2341 = vmatpush2.bf16.xpose.msra.mxu0 0
        %2342 = vmatprep.mubr.bf16.mxu0 0
        %2343 = vmatmul.mubr.bf16.gmra.mxu0 %v2287
        %v2344 = vpop.f32.mrf.mxu0
        %v2345 = vadd.f32 0.0, %v2344
        %v2346 = vpop.f32.mrf.mxu0
        %v2347 = vpop.f32.mrf.mxu0
        %v2348 = vadd.f32 0.0, %v2347
        %v2349 = vpop.f32.mrf.mxu0
        %2350 = vmatprep.mubr.bf16.mxu0 0
        %2351 = vmatmul.mubr.bf16.gmra.mxu0 %v2290
        %v2352 = vpop.f32.mrf.mxu0
        %v2353 = vadd.f32 0.0, %v2352
        %v2354 = vpop.f32.mrf.mxu0
        %v2355 = vpop.f32.mrf.mxu0
        %v2356 = vadd.f32 0.0, %v2355
        %v2357 = vpop.f32.mrf.mxu0
        %2358 = vmatprep.mubr.bf16.mxu0 0
        %2359 = vmatmul.mubr.bf16.gmra.mxu0 %v2293
        %v2360 = vpop.f32.mrf.mxu0
        %v2361 = vadd.f32 0.0, %v2360
        %v2362 = vpop.f32.mrf.mxu0
        %v2363 = vpop.f32.mrf.mxu0
        %v2364 = vadd.f32 0.0, %v2363
        %v2365 = vpop.f32.mrf.mxu0
        %2366 = vmatprep.mubr.bf16.mxu0 0
        %2367 = vmatmul.mubr.bf16.gmra.mxu0 %v2296
        %v2368 = vpop.f32.mrf.mxu0
        %v2369 = vadd.f32 0.0, %v2368
        %v2370 = vpop.f32.mrf.mxu0
        %v2371 = vpop.f32.mrf.mxu0
        %v2372 = vadd.f32 0.0, %v2371
        %v2373 = vpop.f32.mrf.mxu0
        %2374 = vdwg.mxu0
        %v2376 = vsel %vm557, %v1311, 0
        %v2379 = vsel %vm557, %v1312, 0
        %v2382 = vsel %vm557, %v1313, 0
        %v2385 = vsel %vm557, %v1314, 0
        %v2388 = vsel %vm557, %v1439, 0
        %v2391 = vsel %vm557, %v1440, 0
        %v2394 = vsel %vm557, %v1441, 0
        %v2397 = vsel %vm557, %v1442, 0
        %2399 = vmatprep.subr.bf16.mxu0 0
        %2400 = vmatpush1.bf16.xpose.msra.mxu0 0
        %2401 = vmatprep.subr.bf16.mxu0 0
        %2402 = vmatpush1.bf16.xpose.msra.mxu0 0
        %2403 = vmatprep.subr.bf16.mxu0 0
        %2404 = vmatpush1.bf16.xpose.msra.mxu0 0
        %2405 = vmatprep.subr.bf16.mxu0 0
        %2406 = vmatpush1.bf16.xpose.msra.mxu0 0
        %2407 = vmatprep.subr.bf16.mxu0 0
        %2408 = vmatpush1.bf16.xpose.msra.mxu0 %v2397
        %2409 = vmatprep.subr.bf16.mxu0 0
        %2410 = vmatpush1.bf16.xpose.msra.mxu0 %v2394
        %2411 = vmatprep.subr.bf16.mxu0 0
        %2412 = vmatpush1.bf16.xpose.msra.mxu0 %v2391
        %2413 = vmatprep.subr.bf16.mxu0 0
        %2414 = vmatpush1.bf16.xpose.msra.mxu0 %v2388
        %2415 = vmatprep.subr.bf16.mxu0 0
        %2416 = vmatpush2.bf16.xpose.msra.mxu0 0
        %2417 = vmatprep.subr.bf16.mxu0 0
        %2418 = vmatpush2.bf16.xpose.msra.mxu0 0
        %2419 = vmatprep.subr.bf16.mxu0 0
        %2420 = vmatpush2.bf16.xpose.msra.mxu0 0
        %2421 = vmatprep.subr.bf16.mxu0 0
        %2422 = vmatpush2.bf16.xpose.msra.mxu0 0
        %2423 = vmatprep.subr.bf16.mxu0 0
        %2424 = vmatpush2.bf16.xpose.msra.mxu0 0
        %2425 = vmatprep.subr.bf16.mxu0 0
        %2426 = vmatpush2.bf16.xpose.msra.mxu0 0
        %2427 = vmatprep.subr.bf16.mxu0 0
        %2428 = vmatpush2.bf16.xpose.msra.mxu0 0
        %2429 = vmatprep.subr.bf16.mxu0 0
        %2430 = vmatpush2.bf16.xpose.msra.mxu0 0
        %2431 = vmatprep.mubr.bf16.mxu0 0
        %2432 = vmatmul.mubr.bf16.gmra.mxu0 %v2376
        %v2433 = vpop.f32.mrf.mxu0
        %v2434 = vadd.f32 0.0, %v2433
        %v2435 = vpop.f32.mrf.mxu0
        %v2436 = vpop.f32.mrf.mxu0
        %v2437 = vadd.f32 0.0, %v2436
        %v2438 = vpop.f32.mrf.mxu0
        %2439 = vmatprep.mubr.bf16.mxu0 0
        %2440 = vmatmul.mubr.bf16.gmra.mxu0 %v2379
        %v2441 = vpop.f32.mrf.mxu0
        %v2442 = vadd.f32 0.0, %v2441
        %v2443 = vpop.f32.mrf.mxu0
        %v2444 = vpop.f32.mrf.mxu0
        %v2445 = vadd.f32 0.0, %v2444
        %v2446 = vpop.f32.mrf.mxu0
        %2447 = vmatprep.mubr.bf16.mxu0 0
        %2448 = vmatmul.mubr.bf16.gmra.mxu0 %v2382
        %v2449 = vpop.f32.mrf.mxu0
        %v2450 = vadd.f32 0.0, %v2449
        %v2451 = vpop.f32.mrf.mxu0
        %v2452 = vpop.f32.mrf.mxu0
        %v2453 = vadd.f32 0.0, %v2452
        %v2454 = vpop.f32.mrf.mxu0
        %2455 = vmatprep.mubr.bf16.mxu0 0
        %2456 = vmatmul.mubr.bf16.gmra.mxu0 %v2385
        %v2457 = vpop.f32.mrf.mxu0
        %v2458 = vadd.f32 0.0, %v2457
        %v2459 = vpop.f32.mrf.mxu0
        %v2460 = vpop.f32.mrf.mxu0
        %v2461 = vadd.f32 0.0, %v2460
        %v2462 = vpop.f32.mrf.mxu0
        %2463 = vdwg.mxu0
        %v2465 = vsel %vm557, %v1315, 0
        %v2468 = vsel %vm557, %v1316, 0
        %v2471 = vsel %vm557, %v1317, 0
        %v2474 = vsel %vm557, %v1318, 0
        %v2477 = vsel %vm557, %v1443, 0
        %v2480 = vsel %vm557, %v1444, 0
        %v2483 = vsel %vm557, %v1445, 0
        %v2486 = vsel %vm557, %v1446, 0
        %2488 = vmatprep.subr.bf16.mxu0 0
        %2489 = vmatpush1.bf16.xpose.msra.mxu0 0
        %2490 = vmatprep.subr.bf16.mxu0 0
        %2491 = vmatpush1.bf16.xpose.msra.mxu0 0
        %2492 = vmatprep.subr.bf16.mxu0 0
        %2493 = vmatpush1.bf16.xpose.msra.mxu0 0
        %2494 = vmatprep.subr.bf16.mxu0 0
        %2495 = vmatpush1.bf16.xpose.msra.mxu0 0
        %2496 = vmatprep.subr.bf16.mxu0 0
        %2497 = vmatpush1.bf16.xpose.msra.mxu0 %v2486
        %2498 = vmatprep.subr.bf16.mxu0 0
        %2499 = vmatpush1.bf16.xpose.msra.mxu0 %v2483
        %2500 = vmatprep.subr.bf16.mxu0 0
        %2501 = vmatpush1.bf16.xpose.msra.mxu0 %v2480
        %2502 = vmatprep.subr.bf16.mxu0 0
        %2503 = vmatpush1.bf16.xpose.msra.mxu0 %v2477
        %2504 = vmatprep.subr.bf16.mxu0 0
        %2505 = vmatpush2.bf16.xpose.msra.mxu0 0
        %2506 = vmatprep.subr.bf16.mxu0 0
        %2507 = vmatpush2.bf16.xpose.msra.mxu0 0
        %2508 = vmatprep.subr.bf16.mxu0 0
        %2509 = vmatpush2.bf16.xpose.msra.mxu0 0
        %2510 = vmatprep.subr.bf16.mxu0 0
        %2511 = vmatpush2.bf16.xpose.msra.mxu0 0
        %2512 = vmatprep.subr.bf16.mxu0 0
        %2513 = vmatpush2.bf16.xpose.msra.mxu0 0
        %2514 = vmatprep.subr.bf16.mxu0 0
        %2515 = vmatpush2.bf16.xpose.msra.mxu0 0
        %2516 = vmatprep.subr.bf16.mxu0 0
        %2517 = vmatpush2.bf16.xpose.msra.mxu0 0
        %2518 = vmatprep.subr.bf16.mxu0 0
        %2519 = vmatpush2.bf16.xpose.msra.mxu0 0
        %2520 = vmatprep.mubr.bf16.mxu0 0
        %2521 = vmatmul.mubr.bf16.gmra.mxu0 %v2465
        %v2522 = vpop.f32.mrf.mxu0
        %v2523 = vadd.f32 0.0, %v2522
        %v2524 = vpop.f32.mrf.mxu0
        %v2525 = vpop.f32.mrf.mxu0
        %v2526 = vadd.f32 0.0, %v2525
        %v2527 = vpop.f32.mrf.mxu0
        %2528 = vmatprep.mubr.bf16.mxu0 0
        %2529 = vmatmul.mubr.bf16.gmra.mxu0 %v2468
        %v2530 = vpop.f32.mrf.mxu0
        %v2531 = vadd.f32 0.0, %v2530
        %v2532 = vpop.f32.mrf.mxu0
        %v2533 = vpop.f32.mrf.mxu0
        %v2534 = vadd.f32 0.0, %v2533
        %v2535 = vpop.f32.mrf.mxu0
        %2536 = vmatprep.mubr.bf16.mxu0 0
        %2537 = vmatmul.mubr.bf16.gmra.mxu0 %v2471
        %v2538 = vpop.f32.mrf.mxu0
        %v2539 = vadd.f32 0.0, %v2538
        %v2540 = vpop.f32.mrf.mxu0
        %v2541 = vpop.f32.mrf.mxu0
        %v2542 = vadd.f32 0.0, %v2541
        %v2543 = vpop.f32.mrf.mxu0
        %2544 = vmatprep.mubr.bf16.mxu0 0
        %2545 = vmatmul.mubr.bf16.gmra.mxu0 %v2474
        %v2546 = vpop.f32.mrf.mxu0
        %v2547 = vadd.f32 0.0, %v2546
        %v2548 = vpop.f32.mrf.mxu0
        %v2549 = vpop.f32.mrf.mxu0
        %v2550 = vadd.f32 0.0, %v2549
        %v2551 = vpop.f32.mrf.mxu0
        %2552 = vdwg.mxu0
        %v2554 = vsel %vm557, %v1319, 0
        %v2557 = vsel %vm557, %v1320, 0
        %v2560 = vsel %vm557, %v1321, 0
        %v2563 = vsel %vm557, %v1322, 0
        %v2566 = vsel %vm557, %v1447, 0
        %v2569 = vsel %vm557, %v1448, 0
        %v2572 = vsel %vm557, %v1449, 0
        %v2575 = vsel %vm557, %v1450, 0
        %2577 = vmatprep.subr.bf16.mxu0 0
        %2578 = vmatpush1.bf16.xpose.msra.mxu0 0
        %2579 = vmatprep.subr.bf16.mxu0 0
        %2580 = vmatpush1.bf16.xpose.msra.mxu0 0
        %2581 = vmatprep.subr.bf16.mxu0 0
        %2582 = vmatpush1.bf16.xpose.msra.mxu0 0
        %2583 = vmatprep.subr.bf16.mxu0 0
        %2584 = vmatpush1.bf16.xpose.msra.mxu0 0
        %2585 = vmatprep.subr.bf16.mxu0 0
        %2586 = vmatpush1.bf16.xpose.msra.mxu0 %v2575
        %2587 = vmatprep.subr.bf16.mxu0 0
        %2588 = vmatpush1.bf16.xpose.msra.mxu0 %v2572
        %2589 = vmatprep.subr.bf16.mxu0 0
        %2590 = vmatpush1.bf16.xpose.msra.mxu0 %v2569
        %2591 = vmatprep.subr.bf16.mxu0 0
        %2592 = vmatpush1.bf16.xpose.msra.mxu0 %v2566
        %2593 = vmatprep.subr.bf16.mxu0 0
        %2594 = vmatpush2.bf16.xpose.msra.mxu0 0
        %2595 = vmatprep.subr.bf16.mxu0 0
        %2596 = vmatpush2.bf16.xpose.msra.mxu0 0
        %2597 = vmatprep.subr.bf16.mxu0 0
        %2598 = vmatpush2.bf16.xpose.msra.mxu0 0
        %2599 = vmatprep.subr.bf16.mxu0 0
        %2600 = vmatpush2.bf16.xpose.msra.mxu0 0
        %2601 = vmatprep.subr.bf16.mxu0 0
        %2602 = vmatpush2.bf16.xpose.msra.mxu0 0
        %2603 = vmatprep.subr.bf16.mxu0 0
        %2604 = vmatpush2.bf16.xpose.msra.mxu0 0
        %2605 = vmatprep.subr.bf16.mxu0 0
        %2606 = vmatpush2.bf16.xpose.msra.mxu0 0
        %2607 = vmatprep.subr.bf16.mxu0 0
        %2608 = vmatpush2.bf16.xpose.msra.mxu0 0
        %2609 = vmatprep.mubr.bf16.mxu0 0
        %2610 = vmatmul.mubr.bf16.gmra.mxu0 %v2554
        %v2611 = vpop.f32.mrf.mxu0
        %v2612 = vadd.f32 0.0, %v2611
        %v2613 = vpop.f32.mrf.mxu0
        %v2614 = vpop.f32.mrf.mxu0
        %v2615 = vadd.f32 0.0, %v2614
        %v2616 = vpop.f32.mrf.mxu0
        %2617 = vmatprep.mubr.bf16.mxu0 0
        %2618 = vmatmul.mubr.bf16.gmra.mxu0 %v2557
        %v2619 = vpop.f32.mrf.mxu0
        %v2620 = vadd.f32 0.0, %v2619
        %v2621 = vpop.f32.mrf.mxu0
        %v2622 = vpop.f32.mrf.mxu0
        %v2623 = vadd.f32 0.0, %v2622
        %v2624 = vpop.f32.mrf.mxu0
        %2625 = vmatprep.mubr.bf16.mxu0 0
        %2626 = vmatmul.mubr.bf16.gmra.mxu0 %v2560
        %v2627 = vpop.f32.mrf.mxu0
        %v2628 = vadd.f32 0.0, %v2627
        %v2629 = vpop.f32.mrf.mxu0
        %v2630 = vpop.f32.mrf.mxu0
        %v2631 = vadd.f32 0.0, %v2630
        %v2632 = vpop.f32.mrf.mxu0
        %2633 = vmatprep.mubr.bf16.mxu0 0
        %2634 = vmatmul.mubr.bf16.gmra.mxu0 %v2563
        %v2635 = vpop.f32.mrf.mxu0
        %v2636 = vadd.f32 0.0, %v2635
        %v2637 = vpop.f32.mrf.mxu0
        %v2638 = vpop.f32.mrf.mxu0
        %v2639 = vadd.f32 0.0, %v2638
        %v2640 = vpop.f32.mrf.mxu0
        %2641 = vdwg.mxu0
        %v2643 = vsel %vm557, %v1323, 0
        %v2646 = vsel %vm557, %v1324, 0
        %v2649 = vsel %vm557, %v1325, 0
        %v2652 = vsel %vm557, %v1326, 0
        %v2655 = vsel %vm557, %v1451, 0
        %v2658 = vsel %vm557, %v1452, 0
        %v2661 = vsel %vm557, %v1453, 0
        %v2664 = vsel %vm557, %v1454, 0
        %2666 = vmatprep.subr.bf16.mxu0 0
        %2667 = vmatpush1.bf16.xpose.msra.mxu0 0
        %2668 = vmatprep.subr.bf16.mxu0 0
        %2669 = vmatpush1.bf16.xpose.msra.mxu0 0
        %2670 = vmatprep.subr.bf16.mxu0 0
        %2671 = vmatpush1.bf16.xpose.msra.mxu0 0
        %2672 = vmatprep.subr.bf16.mxu0 0
        %2673 = vmatpush1.bf16.xpose.msra.mxu0 0
        %2674 = vmatprep.subr.bf16.mxu0 0
        %2675 = vmatpush1.bf16.xpose.msra.mxu0 %v2664
        %2676 = vmatprep.subr.bf16.mxu0 0
        %2677 = vmatpush1.bf16.xpose.msra.mxu0 %v2661
        %2678 = vmatprep.subr.bf16.mxu0 0
        %2679 = vmatpush1.bf16.xpose.msra.mxu0 %v2658
        %2680 = vmatprep.subr.bf16.mxu0 0
        %2681 = vmatpush1.bf16.xpose.msra.mxu0 %v2655
        %2682 = vmatprep.subr.bf16.mxu0 0
        %2683 = vmatpush2.bf16.xpose.msra.mxu0 0
        %2684 = vmatprep.subr.bf16.mxu0 0
        %2685 = vmatpush2.bf16.xpose.msra.mxu0 0
        %2686 = vmatprep.subr.bf16.mxu0 0
        %2687 = vmatpush2.bf16.xpose.msra.mxu0 0
        %2688 = vmatprep.subr.bf16.mxu0 0
        %2689 = vmatpush2.bf16.xpose.msra.mxu0 0
        %2690 = vmatprep.subr.bf16.mxu0 0
        %2691 = vmatpush2.bf16.xpose.msra.mxu0 0
        %2692 = vmatprep.subr.bf16.mxu0 0
        %2693 = vmatpush2.bf16.xpose.msra.mxu0 0
        %2694 = vmatprep.subr.bf16.mxu0 0
        %2695 = vmatpush2.bf16.xpose.msra.mxu0 0
        %2696 = vmatprep.subr.bf16.mxu0 0
        %2697 = vmatpush2.bf16.xpose.msra.mxu0 0
        %2698 = vmatprep.mubr.bf16.mxu0 0
        %2699 = vmatmul.mubr.bf16.gmra.mxu0 %v2643
        %v2700 = vpop.f32.mrf.mxu0
        %v2701 = vadd.f32 0.0, %v2700
        %v2702 = vpop.f32.mrf.mxu0
        %v2703 = vpop.f32.mrf.mxu0
        %v2704 = vadd.f32 0.0, %v2703
        %v2705 = vpop.f32.mrf.mxu0
        %2706 = vmatprep.mubr.bf16.mxu0 0
        %2707 = vmatmul.mubr.bf16.gmra.mxu0 %v2646
        %v2708 = vpop.f32.mrf.mxu0
        %v2709 = vadd.f32 0.0, %v2708
        %v2710 = vpop.f32.mrf.mxu0
        %v2711 = vpop.f32.mrf.mxu0
        %v2712 = vadd.f32 0.0, %v2711
        %v2713 = vpop.f32.mrf.mxu0
        %2714 = vmatprep.mubr.bf16.mxu0 0
        %2715 = vmatmul.mubr.bf16.gmra.mxu0 %v2649
        %v2716 = vpop.f32.mrf.mxu0
        %v2717 = vadd.f32 0.0, %v2716
        %v2718 = vpop.f32.mrf.mxu0
        %v2719 = vpop.f32.mrf.mxu0
        %v2720 = vadd.f32 0.0, %v2719
        %v2721 = vpop.f32.mrf.mxu0
        %2722 = vmatprep.mubr.bf16.mxu0 0
        %2723 = vmatmul.mubr.bf16.gmra.mxu0 %v2652
        %v2724 = vpop.f32.mrf.mxu0
        %v2725 = vadd.f32 0.0, %v2724
        %v2726 = vpop.f32.mrf.mxu0
        %v2727 = vpop.f32.mrf.mxu0
        %v2728 = vadd.f32 0.0, %v2727
        %v2729 = vpop.f32.mrf.mxu0
        %2730 = vdwg.mxu0
        %v2732 = vsel %vm557, %v1327, 0
        %v2735 = vsel %vm557, %v1328, 0
        %v2738 = vsel %vm557, %v1329, 0
        %v2741 = vsel %vm557, %v1330, 0
        %v2744 = vsel %vm557, %v1455, 0
        %v2747 = vsel %vm557, %v1456, 0
        %v2750 = vsel %vm557, %v1457, 0
        %v2753 = vsel %vm557, %v1458, 0
        %2755 = vmatprep.subr.bf16.mxu0 0
        %2756 = vmatpush1.bf16.xpose.msra.mxu0 0
        %2757 = vmatprep.subr.bf16.mxu0 0
        %2758 = vmatpush1.bf16.xpose.msra.mxu0 0
        %2759 = vmatprep.subr.bf16.mxu0 0
        %2760 = vmatpush1.bf16.xpose.msra.mxu0 0
        %2761 = vmatprep.subr.bf16.mxu0 0
        %2762 = vmatpush1.bf16.xpose.msra.mxu0 0
        %2763 = vmatprep.subr.bf16.mxu0 0
        %2764 = vmatpush1.bf16.xpose.msra.mxu0 %v2753
        %2765 = vmatprep.subr.bf16.mxu0 0
        %2766 = vmatpush1.bf16.xpose.msra.mxu0 %v2750
        %2767 = vmatprep.subr.bf16.mxu0 0
        %2768 = vmatpush1.bf16.xpose.msra.mxu0 %v2747
        %2769 = vmatprep.subr.bf16.mxu0 0
        %2770 = vmatpush1.bf16.xpose.msra.mxu0 %v2744
        %2771 = vmatprep.subr.bf16.mxu0 0
        %2772 = vmatpush2.bf16.xpose.msra.mxu0 0
        %2773 = vmatprep.subr.bf16.mxu0 0
        %2774 = vmatpush2.bf16.xpose.msra.mxu0 0
        %2775 = vmatprep.subr.bf16.mxu0 0
        %2776 = vmatpush2.bf16.xpose.msra.mxu0 0
        %2777 = vmatprep.subr.bf16.mxu0 0
        %2778 = vmatpush2.bf16.xpose.msra.mxu0 0
        %2779 = vmatprep.subr.bf16.mxu0 0
        %2780 = vmatpush2.bf16.xpose.msra.mxu0 0
        %2781 = vmatprep.subr.bf16.mxu0 0
        %2782 = vmatpush2.bf16.xpose.msra.mxu0 0
        %2783 = vmatprep.subr.bf16.mxu0 0
        %2784 = vmatpush2.bf16.xpose.msra.mxu0 0
        %2785 = vmatprep.subr.bf16.mxu0 0
        %2786 = vmatpush2.bf16.xpose.msra.mxu0 0
        %2787 = vmatprep.mubr.bf16.mxu0 0
        %2788 = vmatmul.mubr.bf16.gmra.mxu0 %v2732
        %v2789 = vpop.f32.mrf.mxu0
        %v2790 = vadd.f32 0.0, %v2789
        %v2791 = vpop.f32.mrf.mxu0
        %v2792 = vpop.f32.mrf.mxu0
        %v2793 = vadd.f32 0.0, %v2792
        %v2794 = vpop.f32.mrf.mxu0
        %2795 = vmatprep.mubr.bf16.mxu0 0
        %2796 = vmatmul.mubr.bf16.gmra.mxu0 %v2735
        %v2797 = vpop.f32.mrf.mxu0
        %v2798 = vadd.f32 0.0, %v2797
        %v2799 = vpop.f32.mrf.mxu0
        %v2800 = vpop.f32.mrf.mxu0
        %v2801 = vadd.f32 0.0, %v2800
        %v2802 = vpop.f32.mrf.mxu0
        %2803 = vmatprep.mubr.bf16.mxu0 0
        %2804 = vmatmul.mubr.bf16.gmra.mxu0 %v2738
        %v2805 = vpop.f32.mrf.mxu0
        %v2806 = vadd.f32 0.0, %v2805
        %v2807 = vpop.f32.mrf.mxu0
        %v2808 = vpop.f32.mrf.mxu0
        %v2809 = vadd.f32 0.0, %v2808
        %v2810 = vpop.f32.mrf.mxu0
        %2811 = vmatprep.mubr.bf16.mxu0 0
        %2812 = vmatmul.mubr.bf16.gmra.mxu0 %v2741
        %v2813 = vpop.f32.mrf.mxu0
        %v2814 = vadd.f32 0.0, %v2813
        %v2815 = vpop.f32.mrf.mxu0
        %v2816 = vpop.f32.mrf.mxu0
        %v2817 = vadd.f32 0.0, %v2816
        %v2818 = vpop.f32.mrf.mxu0
        %2819 = vdwg.mxu0
        %v2821 = vsel %vm557, %v1331, 0
        %v2824 = vsel %vm557, %v1332, 0
        %v2827 = vsel %vm557, %v1333, 0
        %v2830 = vsel %vm557, %v1334, 0
        %v2833 = vsel %vm557, %v1459, 0
        %v2836 = vsel %vm557, %v1460, 0
        %v2839 = vsel %vm557, %v1461, 0
        %v2842 = vsel %vm557, %v1462, 0
        %2844 = vmatprep.subr.bf16.mxu0 0
        %2845 = vmatpush1.bf16.xpose.msra.mxu0 0
        %2846 = vmatprep.subr.bf16.mxu0 0
        %2847 = vmatpush1.bf16.xpose.msra.mxu0 0
        %2848 = vmatprep.subr.bf16.mxu0 0
        %2849 = vmatpush1.bf16.xpose.msra.mxu0 0
        %2850 = vmatprep.subr.bf16.mxu0 0
        %2851 = vmatpush1.bf16.xpose.msra.mxu0 0
        %2852 = vmatprep.subr.bf16.mxu0 0
        %2853 = vmatpush1.bf16.xpose.msra.mxu0 %v2842
        %2854 = vmatprep.subr.bf16.mxu0 0
        %2855 = vmatpush1.bf16.xpose.msra.mxu0 %v2839
        %2856 = vmatprep.subr.bf16.mxu0 0
        %2857 = vmatpush1.bf16.xpose.msra.mxu0 %v2836
        %2858 = vmatprep.subr.bf16.mxu0 0
        %2859 = vmatpush1.bf16.xpose.msra.mxu0 %v2833
        %2860 = vmatprep.subr.bf16.mxu0 0
        %2861 = vmatpush2.bf16.xpose.msra.mxu0 0
        %2862 = vmatprep.subr.bf16.mxu0 0
        %2863 = vmatpush2.bf16.xpose.msra.mxu0 0
        %2864 = vmatprep.subr.bf16.mxu0 0
        %2865 = vmatpush2.bf16.xpose.msra.mxu0 0
        %2866 = vmatprep.subr.bf16.mxu0 0
        %2867 = vmatpush2.bf16.xpose.msra.mxu0 0
        %2868 = vmatprep.subr.bf16.mxu0 0
        %2869 = vmatpush2.bf16.xpose.msra.mxu0 0
        %2870 = vmatprep.subr.bf16.mxu0 0
        %2871 = vmatpush2.bf16.xpose.msra.mxu0 0
        %2872 = vmatprep.subr.bf16.mxu0 0
        %2873 = vmatpush2.bf16.xpose.msra.mxu0 0
        %2874 = vmatprep.subr.bf16.mxu0 0
        %2875 = vmatpush2.bf16.xpose.msra.mxu0 0
        %2876 = vmatprep.mubr.bf16.mxu0 0
        %2877 = vmatmul.mubr.bf16.gmra.mxu0 %v2821
        %v2878 = vpop.f32.mrf.mxu0
        %v2879 = vadd.f32 0.0, %v2878
        %v2880 = vpop.f32.mrf.mxu0
        %v2881 = vpop.f32.mrf.mxu0
        %v2882 = vadd.f32 0.0, %v2881
        %v2883 = vpop.f32.mrf.mxu0
        %2884 = vmatprep.mubr.bf16.mxu0 0
        %2885 = vmatmul.mubr.bf16.gmra.mxu0 %v2824
        %v2886 = vpop.f32.mrf.mxu0
        %v2887 = vadd.f32 0.0, %v2886
        %v2888 = vpop.f32.mrf.mxu0
        %v2889 = vpop.f32.mrf.mxu0
        %v2890 = vadd.f32 0.0, %v2889
        %v2891 = vpop.f32.mrf.mxu0
        %2892 = vmatprep.mubr.bf16.mxu0 0
        %2893 = vmatmul.mubr.bf16.gmra.mxu0 %v2827
        %v2894 = vpop.f32.mrf.mxu0
        %v2895 = vadd.f32 0.0, %v2894
        %v2896 = vpop.f32.mrf.mxu0
        %v2897 = vpop.f32.mrf.mxu0
        %v2898 = vadd.f32 0.0, %v2897
        %v2899 = vpop.f32.mrf.mxu0
        %2900 = vmatprep.mubr.bf16.mxu0 0
        %2901 = vmatmul.mubr.bf16.gmra.mxu0 %v2830
        %v2902 = vpop.f32.mrf.mxu0
        %v2903 = vadd.f32 0.0, %v2902
        %v2904 = vpop.f32.mrf.mxu0
        %v2905 = vpop.f32.mrf.mxu0
        %v2906 = vadd.f32 0.0, %v2905
        %v2907 = vpop.f32.mrf.mxu0
        %2908 = vdwg.mxu0
        %v2910 = vsel %vm557, %v1335, 0
        %v2913 = vsel %vm557, %v1336, 0
        %v2916 = vsel %vm557, %v1337, 0
        %v2919 = vsel %vm557, %v1338, 0
        %v2922 = vsel %vm557, %v1463, 0
        %v2925 = vsel %vm557, %v1464, 0
        %v2928 = vsel %vm557, %v1465, 0
        %v2931 = vsel %vm557, %v1466, 0
        %2933 = vmatprep.subr.bf16.mxu0 0
        %2934 = vmatpush1.bf16.xpose.msra.mxu0 0
        %2935 = vmatprep.subr.bf16.mxu0 0
        %2936 = vmatpush1.bf16.xpose.msra.mxu0 0
        %2937 = vmatprep.subr.bf16.mxu0 0
        %2938 = vmatpush1.bf16.xpose.msra.mxu0 0
        %2939 = vmatprep.subr.bf16.mxu0 0
        %2940 = vmatpush1.bf16.xpose.msra.mxu0 0
        %2941 = vmatprep.subr.bf16.mxu0 0
        %2942 = vmatpush1.bf16.xpose.msra.mxu0 %v2931
        %2943 = vmatprep.subr.bf16.mxu0 0
        %2944 = vmatpush1.bf16.xpose.msra.mxu0 %v2928
        %2945 = vmatprep.subr.bf16.mxu0 0
        %2946 = vmatpush1.bf16.xpose.msra.mxu0 %v2925
        %2947 = vmatprep.subr.bf16.mxu0 0
        %2948 = vmatpush1.bf16.xpose.msra.mxu0 %v2922
        %2949 = vmatprep.subr.bf16.mxu0 0
        %2950 = vmatpush2.bf16.xpose.msra.mxu0 0
        %2951 = vmatprep.subr.bf16.mxu0 0
        %2952 = vmatpush2.bf16.xpose.msra.mxu0 0
        %2953 = vmatprep.subr.bf16.mxu0 0
        %2954 = vmatpush2.bf16.xpose.msra.mxu0 0
        %2955 = vmatprep.subr.bf16.mxu0 0
        %2956 = vmatpush2.bf16.xpose.msra.mxu0 0
        %2957 = vmatprep.subr.bf16.mxu0 0
        %2958 = vmatpush2.bf16.xpose.msra.mxu0 0
        %2959 = vmatprep.subr.bf16.mxu0 0
        %2960 = vmatpush2.bf16.xpose.msra.mxu0 0
        %2961 = vmatprep.subr.bf16.mxu0 0
        %2962 = vmatpush2.bf16.xpose.msra.mxu0 0
        %2963 = vmatprep.subr.bf16.mxu0 0
        %2964 = vmatpush2.bf16.xpose.msra.mxu0 0
        %2965 = vmatprep.mubr.bf16.mxu0 0
        %2966 = vmatmul.mubr.bf16.gmra.mxu0 %v2910
        %v2967 = vpop.f32.mrf.mxu0
        %v2968 = vadd.f32 0.0, %v2967
        %v2969 = vpop.f32.mrf.mxu0
        %v2970 = vpop.f32.mrf.mxu0
        %v2971 = vadd.f32 0.0, %v2970
        %v2972 = vpop.f32.mrf.mxu0
        %2973 = vmatprep.mubr.bf16.mxu0 0
        %2974 = vmatmul.mubr.bf16.gmra.mxu0 %v2913
        %v2975 = vpop.f32.mrf.mxu0
        %v2976 = vadd.f32 0.0, %v2975
        %v2977 = vpop.f32.mrf.mxu0
        %v2978 = vpop.f32.mrf.mxu0
        %v2979 = vadd.f32 0.0, %v2978
        %v2980 = vpop.f32.mrf.mxu0
        %2981 = vmatprep.mubr.bf16.mxu0 0
        %2982 = vmatmul.mubr.bf16.gmra.mxu0 %v2916
        %v2983 = vpop.f32.mrf.mxu0
        %v2984 = vadd.f32 0.0, %v2983
        %v2985 = vpop.f32.mrf.mxu0
        %v2986 = vpop.f32.mrf.mxu0
        %v2987 = vadd.f32 0.0, %v2986
        %v2988 = vpop.f32.mrf.mxu0
        %2989 = vmatprep.mubr.bf16.mxu0 0
        %2990 = vmatmul.mubr.bf16.gmra.mxu0 %v2919
        %v2991 = vpop.f32.mrf.mxu0
        %v2992 = vadd.f32 0.0, %v2991
        %v2993 = vpop.f32.mrf.mxu0
        %v2994 = vpop.f32.mrf.mxu0
        %v2995 = vadd.f32 0.0, %v2994
        %v2996 = vpop.f32.mrf.mxu0
        %2997 = vdwg.mxu0
        %v2999 = vsel %vm557, %v1339, 0
        %v3002 = vsel %vm557, %v1340, 0
        %v3005 = vsel %vm557, %v1341, 0
        %v3008 = vsel %vm557, %v1342, 0
        %v3011 = vsel %vm557, %v1467, 0
        %v3014 = vsel %vm557, %v1468, 0
        %v3017 = vsel %vm557, %v1469, 0
        %v3020 = vsel %vm557, %v1470, 0
        %3022 = vmatprep.subr.bf16.mxu0 0
        %3023 = vmatpush1.bf16.xpose.msra.mxu0 0
        %3024 = vmatprep.subr.bf16.mxu0 0
        %3025 = vmatpush1.bf16.xpose.msra.mxu0 0
        %3026 = vmatprep.subr.bf16.mxu0 0
        %3027 = vmatpush1.bf16.xpose.msra.mxu0 0
        %3028 = vmatprep.subr.bf16.mxu0 0
        %3029 = vmatpush1.bf16.xpose.msra.mxu0 0
        %3030 = vmatprep.subr.bf16.mxu0 0
        %3031 = vmatpush1.bf16.xpose.msra.mxu0 %v3020
        %3032 = vmatprep.subr.bf16.mxu0 0
        %3033 = vmatpush1.bf16.xpose.msra.mxu0 %v3017
        %3034 = vmatprep.subr.bf16.mxu0 0
        %3035 = vmatpush1.bf16.xpose.msra.mxu0 %v3014
        %3036 = vmatprep.subr.bf16.mxu0 0
        %3037 = vmatpush1.bf16.xpose.msra.mxu0 %v3011
        %3038 = vmatprep.subr.bf16.mxu0 0
        %3039 = vmatpush2.bf16.xpose.msra.mxu0 0
        %3040 = vmatprep.subr.bf16.mxu0 0
        %3041 = vmatpush2.bf16.xpose.msra.mxu0 0
        %3042 = vmatprep.subr.bf16.mxu0 0
        %3043 = vmatpush2.bf16.xpose.msra.mxu0 0
        %3044 = vmatprep.subr.bf16.mxu0 0
        %3045 = vmatpush2.bf16.xpose.msra.mxu0 0
        %3046 = vmatprep.subr.bf16.mxu0 0
        %3047 = vmatpush2.bf16.xpose.msra.mxu0 0
        %3048 = vmatprep.subr.bf16.mxu0 0
        %3049 = vmatpush2.bf16.xpose.msra.mxu0 0
        %3050 = vmatprep.subr.bf16.mxu0 0
        %3051 = vmatpush2.bf16.xpose.msra.mxu0 0
        %3052 = vmatprep.subr.bf16.mxu0 0
        %3053 = vmatpush2.bf16.xpose.msra.mxu0 0
        %3054 = vmatprep.mubr.bf16.mxu0 0
        %3055 = vmatmul.mubr.bf16.gmra.mxu0 %v2999
        %v3056 = vpop.f32.mrf.mxu0
        %v3057 = vadd.f32 0.0, %v3056
        %v3058 = vpop.f32.mrf.mxu0
        %v3059 = vpop.f32.mrf.mxu0
        %v3060 = vadd.f32 0.0, %v3059
        %v3061 = vpop.f32.mrf.mxu0
        %3062 = vmatprep.mubr.bf16.mxu0 0
        %3063 = vmatmul.mubr.bf16.gmra.mxu0 %v3002
        %v3064 = vpop.f32.mrf.mxu0
        %v3065 = vadd.f32 0.0, %v3064
        %v3066 = vpop.f32.mrf.mxu0
        %v3067 = vpop.f32.mrf.mxu0
        %v3068 = vadd.f32 0.0, %v3067
        %v3069 = vpop.f32.mrf.mxu0
        %3070 = vmatprep.mubr.bf16.mxu0 0
        %3071 = vmatmul.mubr.bf16.gmra.mxu0 %v3005
        %v3072 = vpop.f32.mrf.mxu0
        %v3073 = vadd.f32 0.0, %v3072
        %v3074 = vpop.f32.mrf.mxu0
        %v3075 = vpop.f32.mrf.mxu0
        %v3076 = vadd.f32 0.0, %v3075
        %v3077 = vpop.f32.mrf.mxu0
        %3078 = vmatprep.mubr.bf16.mxu0 0
        %3079 = vmatmul.mubr.bf16.gmra.mxu0 %v3008
        %v3080 = vpop.f32.mrf.mxu0
        %v3081 = vadd.f32 0.0, %v3080
        %v3082 = vpop.f32.mrf.mxu0
        %v3083 = vpop.f32.mrf.mxu0
        %v3084 = vadd.f32 0.0, %v3083
        %v3085 = vpop.f32.mrf.mxu0
        %3086 = vdwg.mxu0
        %v3088 = vsel %vm557, %v1343, 0
        %v3091 = vsel %vm557, %v1344, 0
        %v3094 = vsel %vm557, %v1345, 0
        %v3097 = vsel %vm557, %v1346, 0
        %v3100 = vsel %vm557, %v1471, 0
        %v3103 = vsel %vm557, %v1472, 0
        %v3106 = vsel %vm557, %v1473, 0
        %v3109 = vsel %vm557, %v1474, 0
        %3111 = vmatprep.subr.bf16.mxu0 0
        %3112 = vmatpush1.bf16.xpose.msra.mxu0 0
        %3113 = vmatprep.subr.bf16.mxu0 0
        %3114 = vmatpush1.bf16.xpose.msra.mxu0 0
        %3115 = vmatprep.subr.bf16.mxu0 0
        %3116 = vmatpush1.bf16.xpose.msra.mxu0 0
        %3117 = vmatprep.subr.bf16.mxu0 0
        %3118 = vmatpush1.bf16.xpose.msra.mxu0 0
        %3119 = vmatprep.subr.bf16.mxu0 0
        %3120 = vmatpush1.bf16.xpose.msra.mxu0 %v3109
        %3121 = vmatprep.subr.bf16.mxu0 0
        %3122 = vmatpush1.bf16.xpose.msra.mxu0 %v3106
        %3123 = vmatprep.subr.bf16.mxu0 0
        %3124 = vmatpush1.bf16.xpose.msra.mxu0 %v3103
        %3125 = vmatprep.subr.bf16.mxu0 0
        %3126 = vmatpush1.bf16.xpose.msra.mxu0 %v3100
        %3127 = vmatprep.subr.bf16.mxu0 0
        %3128 = vmatpush2.bf16.xpose.msra.mxu0 0
        %3129 = vmatprep.subr.bf16.mxu0 0
        %3130 = vmatpush2.bf16.xpose.msra.mxu0 0
        %3131 = vmatprep.subr.bf16.mxu0 0
        %3132 = vmatpush2.bf16.xpose.msra.mxu0 0
        %3133 = vmatprep.subr.bf16.mxu0 0
        %3134 = vmatpush2.bf16.xpose.msra.mxu0 0
        %3135 = vmatprep.subr.bf16.mxu0 0
        %3136 = vmatpush2.bf16.xpose.msra.mxu0 0
        %3137 = vmatprep.subr.bf16.mxu0 0
        %3138 = vmatpush2.bf16.xpose.msra.mxu0 0
        %3139 = vmatprep.subr.bf16.mxu0 0
        %3140 = vmatpush2.bf16.xpose.msra.mxu0 0
        %3141 = vmatprep.subr.bf16.mxu0 0
        %3142 = vmatpush2.bf16.xpose.msra.mxu0 0
        %3143 = vmatprep.mubr.bf16.mxu0 0
        %3144 = vmatmul.mubr.bf16.gmra.mxu0 %v3088
        %v3145 = vpop.f32.mrf.mxu0
        %v3146 = vadd.f32 0.0, %v3145
        %v3147 = vpop.f32.mrf.mxu0
        %v3148 = vpop.f32.mrf.mxu0
        %v3149 = vadd.f32 0.0, %v3148
        %v3150 = vpop.f32.mrf.mxu0
        %3151 = vmatprep.mubr.bf16.mxu0 0
        %3152 = vmatmul.mubr.bf16.gmra.mxu0 %v3091
        %v3153 = vpop.f32.mrf.mxu0
        %v3154 = vadd.f32 0.0, %v3153
        %v3155 = vpop.f32.mrf.mxu0
        %v3156 = vpop.f32.mrf.mxu0
        %v3157 = vadd.f32 0.0, %v3156
        %v3158 = vpop.f32.mrf.mxu0
        %3159 = vmatprep.mubr.bf16.mxu0 0
        %3160 = vmatmul.mubr.bf16.gmra.mxu0 %v3094
        %v3161 = vpop.f32.mrf.mxu0
        %v3162 = vadd.f32 0.0, %v3161
        %v3163 = vpop.f32.mrf.mxu0
        %v3164 = vpop.f32.mrf.mxu0
        %v3165 = vadd.f32 0.0, %v3164
        %v3166 = vpop.f32.mrf.mxu0
        %3167 = vmatprep.mubr.bf16.mxu0 0
        %3168 = vmatmul.mubr.bf16.gmra.mxu0 %v3097
        %v3169 = vpop.f32.mrf.mxu0
        %v3170 = vadd.f32 0.0, %v3169
        %v3171 = vpop.f32.mrf.mxu0
        %v3172 = vpop.f32.mrf.mxu0
        %v3173 = vadd.f32 0.0, %v3172
        %v3174 = vpop.f32.mrf.mxu0
        %3175 = vdwg.mxu0
        %v3177 = vsel %vm557, %v1347, 0
        %v3180 = vsel %vm557, %v1348, 0
        %v3183 = vsel %vm557, %v1349, 0
        %v3186 = vsel %vm557, %v1350, 0
        %v3189 = vsel %vm557, %v1475, 0
        %v3192 = vsel %vm557, %v1476, 0
        %v3195 = vsel %vm557, %v1477, 0
        %v3198 = vsel %vm557, %v1478, 0
        %3200 = vmatprep.subr.bf16.mxu0 0
        %3201 = vmatpush1.bf16.xpose.msra.mxu0 0
        %3202 = vmatprep.subr.bf16.mxu0 0
        %3203 = vmatpush1.bf16.xpose.msra.mxu0 0
        %3204 = vmatprep.subr.bf16.mxu0 0
        %3205 = vmatpush1.bf16.xpose.msra.mxu0 0
        %3206 = vmatprep.subr.bf16.mxu0 0
        %3207 = vmatpush1.bf16.xpose.msra.mxu0 0
        %3208 = vmatprep.subr.bf16.mxu0 0
        %3209 = vmatpush1.bf16.xpose.msra.mxu0 %v3198
        %3210 = vmatprep.subr.bf16.mxu0 0
        %3211 = vmatpush1.bf16.xpose.msra.mxu0 %v3195
        %3212 = vmatprep.subr.bf16.mxu0 0
        %3213 = vmatpush1.bf16.xpose.msra.mxu0 %v3192
        %3214 = vmatprep.subr.bf16.mxu0 0
        %3215 = vmatpush1.bf16.xpose.msra.mxu0 %v3189
        %3216 = vmatprep.subr.bf16.mxu0 0
        %3217 = vmatpush2.bf16.xpose.msra.mxu0 0
        %3218 = vmatprep.subr.bf16.mxu0 0
        %3219 = vmatpush2.bf16.xpose.msra.mxu0 0
        %3220 = vmatprep.subr.bf16.mxu0 0
        %3221 = vmatpush2.bf16.xpose.msra.mxu0 0
        %3222 = vmatprep.subr.bf16.mxu0 0
        %3223 = vmatpush2.bf16.xpose.msra.mxu0 0
        %3224 = vmatprep.subr.bf16.mxu0 0
        %3225 = vmatpush2.bf16.xpose.msra.mxu0 0
        %3226 = vmatprep.subr.bf16.mxu0 0
        %3227 = vmatpush2.bf16.xpose.msra.mxu0 0
        %3228 = vmatprep.subr.bf16.mxu0 0
        %3229 = vmatpush2.bf16.xpose.msra.mxu0 0
        %3230 = vmatprep.subr.bf16.mxu0 0
        %3231 = vmatpush2.bf16.xpose.msra.mxu0 0
        %3232 = vmatprep.mubr.bf16.mxu0 0
        %3233 = vmatmul.mubr.bf16.gmra.mxu0 %v3177
        %v3234 = vpop.f32.mrf.mxu0
        %v3235 = vadd.f32 0.0, %v3234
        %v3236 = vpop.f32.mrf.mxu0
        %v3237 = vpop.f32.mrf.mxu0
        %v3238 = vadd.f32 0.0, %v3237
        %v3239 = vpop.f32.mrf.mxu0
        %3240 = vmatprep.mubr.bf16.mxu0 0
        %3241 = vmatmul.mubr.bf16.gmra.mxu0 %v3180
        %v3242 = vpop.f32.mrf.mxu0
        %v3243 = vadd.f32 0.0, %v3242
        %v3244 = vpop.f32.mrf.mxu0
        %v3245 = vpop.f32.mrf.mxu0
        %v3246 = vadd.f32 0.0, %v3245
        %v3247 = vpop.f32.mrf.mxu0
        %3248 = vmatprep.mubr.bf16.mxu0 0
        %3249 = vmatmul.mubr.bf16.gmra.mxu0 %v3183
        %v3250 = vpop.f32.mrf.mxu0
        %v3251 = vadd.f32 0.0, %v3250
        %v3252 = vpop.f32.mrf.mxu0
        %v3253 = vpop.f32.mrf.mxu0
        %v3254 = vadd.f32 0.0, %v3253
        %v3255 = vpop.f32.mrf.mxu0
        %3256 = vmatprep.mubr.bf16.mxu0 0
        %3257 = vmatmul.mubr.bf16.gmra.mxu0 %v3186
        %v3258 = vpop.f32.mrf.mxu0
        %v3259 = vadd.f32 0.0, %v3258
        %v3260 = vpop.f32.mrf.mxu0
        %v3261 = vpop.f32.mrf.mxu0
        %v3262 = vadd.f32 0.0, %v3261
        %v3263 = vpop.f32.mrf.mxu0
        %3264 = vdwg.mxu0
        %v3266 = vsel %vm557, %v1351, 0
        %v3269 = vsel %vm557, %v1352, 0
        %v3272 = vsel %vm557, %v1353, 0
        %v3275 = vsel %vm557, %v1354, 0
        %v3278 = vsel %vm557, %v1479, 0
        %v3281 = vsel %vm557, %v1480, 0
        %v3284 = vsel %vm557, %v1481, 0
        %v3287 = vsel %vm557, %v1482, 0
        %3289 = vmatprep.subr.bf16.mxu0 0
        %3290 = vmatpush1.bf16.xpose.msra.mxu0 0
        %3291 = vmatprep.subr.bf16.mxu0 0
        %3292 = vmatpush1.bf16.xpose.msra.mxu0 0
        %3293 = vmatprep.subr.bf16.mxu0 0
        %3294 = vmatpush1.bf16.xpose.msra.mxu0 0
        %3295 = vmatprep.subr.bf16.mxu0 0
        %3296 = vmatpush1.bf16.xpose.msra.mxu0 0
        %3297 = vmatprep.subr.bf16.mxu0 0
        %3298 = vmatpush1.bf16.xpose.msra.mxu0 %v3287
        %3299 = vmatprep.subr.bf16.mxu0 0
        %3300 = vmatpush1.bf16.xpose.msra.mxu0 %v3284
        %3301 = vmatprep.subr.bf16.mxu0 0
        %3302 = vmatpush1.bf16.xpose.msra.mxu0 %v3281
        %3303 = vmatprep.subr.bf16.mxu0 0
        %3304 = vmatpush1.bf16.xpose.msra.mxu0 %v3278
        %3305 = vmatprep.subr.bf16.mxu0 0
        %3306 = vmatpush2.bf16.xpose.msra.mxu0 0
        %3307 = vmatprep.subr.bf16.mxu0 0
        %3308 = vmatpush2.bf16.xpose.msra.mxu0 0
        %3309 = vmatprep.subr.bf16.mxu0 0
        %3310 = vmatpush2.bf16.xpose.msra.mxu0 0
        %3311 = vmatprep.subr.bf16.mxu0 0
        %3312 = vmatpush2.bf16.xpose.msra.mxu0 0
        %3313 = vmatprep.subr.bf16.mxu0 0
        %3314 = vmatpush2.bf16.xpose.msra.mxu0 0
        %3315 = vmatprep.subr.bf16.mxu0 0
        %3316 = vmatpush2.bf16.xpose.msra.mxu0 0
        %3317 = vmatprep.subr.bf16.mxu0 0
        %3318 = vmatpush2.bf16.xpose.msra.mxu0 0
        %3319 = vmatprep.subr.bf16.mxu0 0
        %3320 = vmatpush2.bf16.xpose.msra.mxu0 0
        %3321 = vmatprep.mubr.bf16.mxu0 0
        %3322 = vmatmul.mubr.bf16.gmra.mxu0 %v3266
        %v3323 = vpop.f32.mrf.mxu0
        %v3324 = vadd.f32 0.0, %v3323
        %v3325 = vpop.f32.mrf.mxu0
        %v3326 = vpop.f32.mrf.mxu0
        %v3327 = vadd.f32 0.0, %v3326
        %v3328 = vpop.f32.mrf.mxu0
        %3329 = vmatprep.mubr.bf16.mxu0 0
        %3330 = vmatmul.mubr.bf16.gmra.mxu0 %v3269
        %v3331 = vpop.f32.mrf.mxu0
        %v3332 = vadd.f32 0.0, %v3331
        %v3333 = vpop.f32.mrf.mxu0
        %v3334 = vpop.f32.mrf.mxu0
        %v3335 = vadd.f32 0.0, %v3334
        %v3336 = vpop.f32.mrf.mxu0
        %3337 = vmatprep.mubr.bf16.mxu0 0
        %3338 = vmatmul.mubr.bf16.gmra.mxu0 %v3272
        %v3339 = vpop.f32.mrf.mxu0
        %v3340 = vadd.f32 0.0, %v3339
        %v3341 = vpop.f32.mrf.mxu0
        %v3342 = vpop.f32.mrf.mxu0
        %v3343 = vadd.f32 0.0, %v3342
        %v3344 = vpop.f32.mrf.mxu0
        %3345 = vmatprep.mubr.bf16.mxu0 0
        %3346 = vmatmul.mubr.bf16.gmra.mxu0 %v3275
        %v3347 = vpop.f32.mrf.mxu0
        %v3348 = vadd.f32 0.0, %v3347
        %v3349 = vpop.f32.mrf.mxu0
        %v3350 = vpop.f32.mrf.mxu0
        %v3351 = vadd.f32 0.0, %v3350
        %v3352 = vpop.f32.mrf.mxu0
        %3353 = vdwg.mxu0
        %v3355 = vsel %vm557, %v1355, 0
        %v3358 = vsel %vm557, %v1356, 0
        %v3361 = vsel %vm557, %v1357, 0
        %v3364 = vsel %vm557, %v1358, 0
        %v3367 = vsel %vm557, %v1483, 0
        %v3370 = vsel %vm557, %v1484, 0
        %v3373 = vsel %vm557, %v1485, 0
        %v3376 = vsel %vm557, %v1486, 0
        %3378 = vmatprep.subr.bf16.mxu0 0
        %3379 = vmatpush1.bf16.xpose.msra.mxu0 0
        %3380 = vmatprep.subr.bf16.mxu0 0
        %3381 = vmatpush1.bf16.xpose.msra.mxu0 0
        %3382 = vmatprep.subr.bf16.mxu0 0
        %3383 = vmatpush1.bf16.xpose.msra.mxu0 0
        %3384 = vmatprep.subr.bf16.mxu0 0
        %3385 = vmatpush1.bf16.xpose.msra.mxu0 0
        %3386 = vmatprep.subr.bf16.mxu0 0
        %3387 = vmatpush1.bf16.xpose.msra.mxu0 %v3376
        %3388 = vmatprep.subr.bf16.mxu0 0
        %3389 = vmatpush1.bf16.xpose.msra.mxu0 %v3373
        %3390 = vmatprep.subr.bf16.mxu0 0
        %3391 = vmatpush1.bf16.xpose.msra.mxu0 %v3370
        %3392 = vmatprep.subr.bf16.mxu0 0
        %3393 = vmatpush1.bf16.xpose.msra.mxu0 %v3367
        %3394 = vmatprep.subr.bf16.mxu0 0
        %3395 = vmatpush2.bf16.xpose.msra.mxu0 0
        %3396 = vmatprep.subr.bf16.mxu0 0
        %3397 = vmatpush2.bf16.xpose.msra.mxu0 0
        %3398 = vmatprep.subr.bf16.mxu0 0
        %3399 = vmatpush2.bf16.xpose.msra.mxu0 0
        %3400 = vmatprep.subr.bf16.mxu0 0
        %3401 = vmatpush2.bf16.xpose.msra.mxu0 0
        %3402 = vmatprep.subr.bf16.mxu0 0
        %3403 = vmatpush2.bf16.xpose.msra.mxu0 0
        %3404 = vmatprep.subr.bf16.mxu0 0
        %3405 = vmatpush2.bf16.xpose.msra.mxu0 0
        %3406 = vmatprep.subr.bf16.mxu0 0
        %3407 = vmatpush2.bf16.xpose.msra.mxu0 0
        %3408 = vmatprep.subr.bf16.mxu0 0
        %3409 = vmatpush2.bf16.xpose.msra.mxu0 0
        %3410 = vmatprep.mubr.bf16.mxu0 0
        %3411 = vmatmul.mubr.bf16.gmra.mxu0 %v3355
        %v3412 = vpop.f32.mrf.mxu0
        %v3413 = vadd.f32 0.0, %v3412
        %v3414 = vpop.f32.mrf.mxu0
        %v3415 = vpop.f32.mrf.mxu0
        %v3416 = vadd.f32 0.0, %v3415
        %v3417 = vpop.f32.mrf.mxu0
        %3418 = vmatprep.mubr.bf16.mxu0 0
        %3419 = vmatmul.mubr.bf16.gmra.mxu0 %v3358
        %v3420 = vpop.f32.mrf.mxu0
        %v3421 = vadd.f32 0.0, %v3420
        %v3422 = vpop.f32.mrf.mxu0
        %v3423 = vpop.f32.mrf.mxu0
        %v3424 = vadd.f32 0.0, %v3423
        %v3425 = vpop.f32.mrf.mxu0
        %3426 = vmatprep.mubr.bf16.mxu0 0
        %3427 = vmatmul.mubr.bf16.gmra.mxu0 %v3361
        %v3428 = vpop.f32.mrf.mxu0
        %v3429 = vadd.f32 0.0, %v3428
        %v3430 = vpop.f32.mrf.mxu0
        %v3431 = vpop.f32.mrf.mxu0
        %v3432 = vadd.f32 0.0, %v3431
        %v3433 = vpop.f32.mrf.mxu0
        %3434 = vmatprep.mubr.bf16.mxu0 0
        %3435 = vmatmul.mubr.bf16.gmra.mxu0 %v3364
        %v3436 = vpop.f32.mrf.mxu0
        %v3437 = vadd.f32 0.0, %v3436
        %v3438 = vpop.f32.mrf.mxu0
        %v3439 = vpop.f32.mrf.mxu0
        %v3440 = vadd.f32 0.0, %v3439
        %v3441 = vpop.f32.mrf.mxu0
        %3442 = vdwg.mxu0
        %v3444 = vsel %vm557, %v1359, 0
        %v3447 = vsel %vm557, %v1360, 0
        %v3450 = vsel %vm557, %v1361, 0
        %v3453 = vsel %vm557, %v1362, 0
        %v3456 = vsel %vm557, %v1487, 0
        %v3459 = vsel %vm557, %v1488, 0
        %v3462 = vsel %vm557, %v1489, 0
        %v3465 = vsel %vm557, %v1490, 0
        %3467 = vmatprep.subr.bf16.mxu0 0
        %3468 = vmatpush1.bf16.xpose.msra.mxu0 0
        %3469 = vmatprep.subr.bf16.mxu0 0
        %3470 = vmatpush1.bf16.xpose.msra.mxu0 0
        %3471 = vmatprep.subr.bf16.mxu0 0
        %3472 = vmatpush1.bf16.xpose.msra.mxu0 0
        %3473 = vmatprep.subr.bf16.mxu0 0
        %3474 = vmatpush1.bf16.xpose.msra.mxu0 0
        %3475 = vmatprep.subr.bf16.mxu0 0
        %3476 = vmatpush1.bf16.xpose.msra.mxu0 %v3465
        %3477 = vmatprep.subr.bf16.mxu0 0
        %3478 = vmatpush1.bf16.xpose.msra.mxu0 %v3462
        %3479 = vmatprep.subr.bf16.mxu0 0
        %3480 = vmatpush1.bf16.xpose.msra.mxu0 %v3459
        %3481 = vmatprep.subr.bf16.mxu0 0
        %3482 = vmatpush1.bf16.xpose.msra.mxu0 %v3456
        %3483 = vmatprep.subr.bf16.mxu0 0
        %3484 = vmatpush2.bf16.xpose.msra.mxu0 0
        %3485 = vmatprep.subr.bf16.mxu0 0
        %3486 = vmatpush2.bf16.xpose.msra.mxu0 0
        %3487 = vmatprep.subr.bf16.mxu0 0
        %3488 = vmatpush2.bf16.xpose.msra.mxu0 0
        %3489 = vmatprep.subr.bf16.mxu0 0
        %3490 = vmatpush2.bf16.xpose.msra.mxu0 0
        %3491 = vmatprep.subr.bf16.mxu0 0
        %3492 = vmatpush2.bf16.xpose.msra.mxu0 0
        %3493 = vmatprep.subr.bf16.mxu0 0
        %3494 = vmatpush2.bf16.xpose.msra.mxu0 0
        %3495 = vmatprep.subr.bf16.mxu0 0
        %3496 = vmatpush2.bf16.xpose.msra.mxu0 0
        %3497 = vmatprep.subr.bf16.mxu0 0
        %3498 = vmatpush2.bf16.xpose.msra.mxu0 0
        %3499 = vmatprep.mubr.bf16.mxu0 0
        %3500 = vmatmul.mubr.bf16.gmra.mxu0 %v3444
        %v3501 = vpop.f32.mrf.mxu0
        %v3502 = vadd.f32 0.0, %v3501
        %v3503 = vpop.f32.mrf.mxu0
        %v3504 = vpop.f32.mrf.mxu0
        %v3505 = vadd.f32 0.0, %v3504
        %v3506 = vpop.f32.mrf.mxu0
        %3507 = vmatprep.mubr.bf16.mxu0 0
        %3508 = vmatmul.mubr.bf16.gmra.mxu0 %v3447
        %v3509 = vpop.f32.mrf.mxu0
        %v3510 = vadd.f32 0.0, %v3509
        %v3511 = vpop.f32.mrf.mxu0
        %v3512 = vpop.f32.mrf.mxu0
        %v3513 = vadd.f32 0.0, %v3512
        %v3514 = vpop.f32.mrf.mxu0
        %3515 = vmatprep.mubr.bf16.mxu0 0
        %3516 = vmatmul.mubr.bf16.gmra.mxu0 %v3450
        %v3517 = vpop.f32.mrf.mxu0
        %v3518 = vadd.f32 0.0, %v3517
        %v3519 = vpop.f32.mrf.mxu0
        %v3520 = vpop.f32.mrf.mxu0
        %v3521 = vadd.f32 0.0, %v3520
        %v3522 = vpop.f32.mrf.mxu0
        %3523 = vmatprep.mubr.bf16.mxu0 0
        %3524 = vmatmul.mubr.bf16.gmra.mxu0 %v3453
        %v3525 = vpop.f32.mrf.mxu0
        %v3526 = vadd.f32 0.0, %v3525
        %v3527 = vpop.f32.mrf.mxu0
        %v3528 = vpop.f32.mrf.mxu0
        %v3529 = vadd.f32 0.0, %v3528
        %v3530 = vpop.f32.mrf.mxu0
        %3531 = vdwg.mxu0
        %v3533 = vsel %vm557, %v1363, 0
        %v3536 = vsel %vm557, %v1364, 0
        %v3539 = vsel %vm557, %v1365, 0
        %v3542 = vsel %vm557, %v1366, 0
        %v3545 = vsel %vm557, %v1491, 0
        %v3548 = vsel %vm557, %v1492, 0
        %v3551 = vsel %vm557, %v1493, 0
        %v3554 = vsel %vm557, %v1494, 0
        %3556 = vmatprep.subr.bf16.mxu0 0
        %3557 = vmatpush1.bf16.xpose.msra.mxu0 0
        %3558 = vmatprep.subr.bf16.mxu0 0
        %3559 = vmatpush1.bf16.xpose.msra.mxu0 0
        %3560 = vmatprep.subr.bf16.mxu0 0
        %3561 = vmatpush1.bf16.xpose.msra.mxu0 0
        %3562 = vmatprep.subr.bf16.mxu0 0
        %3563 = vmatpush1.bf16.xpose.msra.mxu0 0
        %3564 = vmatprep.subr.bf16.mxu0 0
        %3565 = vmatpush1.bf16.xpose.msra.mxu0 %v3554
        %3566 = vmatprep.subr.bf16.mxu0 0
        %3567 = vmatpush1.bf16.xpose.msra.mxu0 %v3551
        %3568 = vmatprep.subr.bf16.mxu0 0
        %3569 = vmatpush1.bf16.xpose.msra.mxu0 %v3548
        %3570 = vmatprep.subr.bf16.mxu0 0
        %3571 = vmatpush1.bf16.xpose.msra.mxu0 %v3545
        %3572 = vmatprep.subr.bf16.mxu0 0
        %3573 = vmatpush2.bf16.xpose.msra.mxu0 0
        %3574 = vmatprep.subr.bf16.mxu0 0
        %3575 = vmatpush2.bf16.xpose.msra.mxu0 0
        %3576 = vmatprep.subr.bf16.mxu0 0
        %3577 = vmatpush2.bf16.xpose.msra.mxu0 0
        %3578 = vmatprep.subr.bf16.mxu0 0
        %3579 = vmatpush2.bf16.xpose.msra.mxu0 0
        %3580 = vmatprep.subr.bf16.mxu0 0
        %3581 = vmatpush2.bf16.xpose.msra.mxu0 0
        %3582 = vmatprep.subr.bf16.mxu0 0
        %3583 = vmatpush2.bf16.xpose.msra.mxu0 0
        %3584 = vmatprep.subr.bf16.mxu0 0
        %3585 = vmatpush2.bf16.xpose.msra.mxu0 0
        %3586 = vmatprep.subr.bf16.mxu0 0
        %3587 = vmatpush2.bf16.xpose.msra.mxu0 0
        %3588 = vmatprep.mubr.bf16.mxu0 0
        %3589 = vmatmul.mubr.bf16.gmra.mxu0 %v3533
        %v3590 = vpop.f32.mrf.mxu0
        %v3591 = vadd.f32 0.0, %v3590
        %v3592 = vpop.f32.mrf.mxu0
        %v3593 = vpop.f32.mrf.mxu0
        %v3594 = vadd.f32 0.0, %v3593
        %v3595 = vpop.f32.mrf.mxu0
        %3596 = vmatprep.mubr.bf16.mxu0 0
        %3597 = vmatmul.mubr.bf16.gmra.mxu0 %v3536
        %v3598 = vpop.f32.mrf.mxu0
        %v3599 = vadd.f32 0.0, %v3598
        %v3600 = vpop.f32.mrf.mxu0
        %v3601 = vpop.f32.mrf.mxu0
        %v3602 = vadd.f32 0.0, %v3601
        %v3603 = vpop.f32.mrf.mxu0
        %3604 = vmatprep.mubr.bf16.mxu0 0
        %3605 = vmatmul.mubr.bf16.gmra.mxu0 %v3539
        %v3606 = vpop.f32.mrf.mxu0
        %v3607 = vadd.f32 0.0, %v3606
        %v3608 = vpop.f32.mrf.mxu0
        %v3609 = vpop.f32.mrf.mxu0
        %v3610 = vadd.f32 0.0, %v3609
        %v3611 = vpop.f32.mrf.mxu0
        %3612 = vmatprep.mubr.bf16.mxu0 0
        %3613 = vmatmul.mubr.bf16.gmra.mxu0 %v3542
        %v3614 = vpop.f32.mrf.mxu0
        %v3615 = vadd.f32 0.0, %v3614
        %v3616 = vpop.f32.mrf.mxu0
        %v3617 = vpop.f32.mrf.mxu0
        %v3618 = vadd.f32 0.0, %v3617
        %v3619 = vpop.f32.mrf.mxu0
        %3620 = vdwg.mxu0
        %v3622 = vsel %vm557, %v1367, 0
        %v3625 = vsel %vm557, %v1368, 0
        %v3628 = vsel %vm557, %v1369, 0
        %v3631 = vsel %vm557, %v1370, 0
        %v3634 = vsel %vm557, %v1495, 0
        %v3637 = vsel %vm557, %v1496, 0
        %v3640 = vsel %vm557, %v1497, 0
        %v3643 = vsel %vm557, %v1498, 0
        %3645 = vmatprep.subr.bf16.mxu0 0
        %3646 = vmatpush1.bf16.xpose.msra.mxu0 0
        %3647 = vmatprep.subr.bf16.mxu0 0
        %3648 = vmatpush1.bf16.xpose.msra.mxu0 0
        %3649 = vmatprep.subr.bf16.mxu0 0
        %3650 = vmatpush1.bf16.xpose.msra.mxu0 0
        %3651 = vmatprep.subr.bf16.mxu0 0
        %3652 = vmatpush1.bf16.xpose.msra.mxu0 0
        %3653 = vmatprep.subr.bf16.mxu0 0
        %3654 = vmatpush1.bf16.xpose.msra.mxu0 %v3643
        %3655 = vmatprep.subr.bf16.mxu0 0
        %3656 = vmatpush1.bf16.xpose.msra.mxu0 %v3640
        %3657 = vmatprep.subr.bf16.mxu0 0
        %3658 = vmatpush1.bf16.xpose.msra.mxu0 %v3637
        %3659 = vmatprep.subr.bf16.mxu0 0
        %3660 = vmatpush1.bf16.xpose.msra.mxu0 %v3634
        %3661 = vmatprep.subr.bf16.mxu0 0
        %3662 = vmatpush2.bf16.xpose.msra.mxu0 0
        %3663 = vmatprep.subr.bf16.mxu0 0
        %3664 = vmatpush2.bf16.xpose.msra.mxu0 0
        %3665 = vmatprep.subr.bf16.mxu0 0
        %3666 = vmatpush2.bf16.xpose.msra.mxu0 0
        %3667 = vmatprep.subr.bf16.mxu0 0
        %3668 = vmatpush2.bf16.xpose.msra.mxu0 0
        %3669 = vmatprep.subr.bf16.mxu0 0
        %3670 = vmatpush2.bf16.xpose.msra.mxu0 0
        %3671 = vmatprep.subr.bf16.mxu0 0
        %3672 = vmatpush2.bf16.xpose.msra.mxu0 0
        %3673 = vmatprep.subr.bf16.mxu0 0
        %3674 = vmatpush2.bf16.xpose.msra.mxu0 0
        %3675 = vmatprep.subr.bf16.mxu0 0
        %3676 = vmatpush2.bf16.xpose.msra.mxu0 0
        %3677 = vmatprep.mubr.bf16.mxu0 0
        %3678 = vmatmul.mubr.bf16.gmra.mxu0 %v3622
        %v3679 = vpop.f32.mrf.mxu0
        %v3680 = vadd.f32 0.0, %v3679
        %v3681 = vpop.f32.mrf.mxu0
        %v3682 = vpop.f32.mrf.mxu0
        %v3683 = vadd.f32 0.0, %v3682
        %v3684 = vpop.f32.mrf.mxu0
        %3685 = vmatprep.mubr.bf16.mxu0 0
        %3686 = vmatmul.mubr.bf16.gmra.mxu0 %v3625
        %v3687 = vpop.f32.mrf.mxu0
        %v3688 = vadd.f32 0.0, %v3687
        %v3689 = vpop.f32.mrf.mxu0
        %v3690 = vpop.f32.mrf.mxu0
        %v3691 = vadd.f32 0.0, %v3690
        %v3692 = vpop.f32.mrf.mxu0
        %3693 = vmatprep.mubr.bf16.mxu0 0
        %3694 = vmatmul.mubr.bf16.gmra.mxu0 %v3628
        %v3695 = vpop.f32.mrf.mxu0
        %v3696 = vadd.f32 0.0, %v3695
        %v3697 = vpop.f32.mrf.mxu0
        %v3698 = vpop.f32.mrf.mxu0
        %v3699 = vadd.f32 0.0, %v3698
        %v3700 = vpop.f32.mrf.mxu0
        %3701 = vmatprep.mubr.bf16.mxu0 0
        %3702 = vmatmul.mubr.bf16.gmra.mxu0 %v3631
        %v3703 = vpop.f32.mrf.mxu0
        %v3704 = vadd.f32 0.0, %v3703
        %v3705 = vpop.f32.mrf.mxu0
        %v3706 = vpop.f32.mrf.mxu0
        %v3707 = vadd.f32 0.0, %v3706
        %v3708 = vpop.f32.mrf.mxu0
        %3709 = vdwg.mxu0
        %v3711 = vsel %vm557, %v1371, 0
        %v3714 = vsel %vm557, %v1372, 0
        %v3717 = vsel %vm557, %v1373, 0
        %v3720 = vsel %vm557, %v1374, 0
        %v3723 = vsel %vm557, %v1499, 0
        %v3726 = vsel %vm557, %v1500, 0
        %v3729 = vsel %vm557, %v1501, 0
        %v3732 = vsel %vm557, %v1502, 0
        %3734 = vmatprep.subr.bf16.mxu0 0
        %3735 = vmatpush1.bf16.xpose.msra.mxu0 0
        %3736 = vmatprep.subr.bf16.mxu0 0
        %3737 = vmatpush1.bf16.xpose.msra.mxu0 0
        %3738 = vmatprep.subr.bf16.mxu0 0
        %3739 = vmatpush1.bf16.xpose.msra.mxu0 0
        %3740 = vmatprep.subr.bf16.mxu0 0
        %3741 = vmatpush1.bf16.xpose.msra.mxu0 0
        %3742 = vmatprep.subr.bf16.mxu0 0
        %3743 = vmatpush1.bf16.xpose.msra.mxu0 %v3732
        %3744 = vmatprep.subr.bf16.mxu0 0
        %3745 = vmatpush1.bf16.xpose.msra.mxu0 %v3729
        %3746 = vmatprep.subr.bf16.mxu0 0
        %3747 = vmatpush1.bf16.xpose.msra.mxu0 %v3726
        %3748 = vmatprep.subr.bf16.mxu0 0
        %3749 = vmatpush1.bf16.xpose.msra.mxu0 %v3723
        %3750 = vmatprep.subr.bf16.mxu0 0
        %3751 = vmatpush2.bf16.xpose.msra.mxu0 0
        %3752 = vmatprep.subr.bf16.mxu0 0
        %3753 = vmatpush2.bf16.xpose.msra.mxu0 0
        %3754 = vmatprep.subr.bf16.mxu0 0
        %3755 = vmatpush2.bf16.xpose.msra.mxu0 0
        %3756 = vmatprep.subr.bf16.mxu0 0
        %3757 = vmatpush2.bf16.xpose.msra.mxu0 0
        %3758 = vmatprep.subr.bf16.mxu0 0
        %3759 = vmatpush2.bf16.xpose.msra.mxu0 0
        %3760 = vmatprep.subr.bf16.mxu0 0
        %3761 = vmatpush2.bf16.xpose.msra.mxu0 0
        %3762 = vmatprep.subr.bf16.mxu0 0
        %3763 = vmatpush2.bf16.xpose.msra.mxu0 0
        %3764 = vmatprep.subr.bf16.mxu0 0
        %3765 = vmatpush2.bf16.xpose.msra.mxu0 0
        %3766 = vmatprep.mubr.bf16.mxu0 0
        %3767 = vmatmul.mubr.bf16.gmra.mxu0 %v3711
        %v3768 = vpop.f32.mrf.mxu0
        %v3769 = vadd.f32 0.0, %v3768
        %v3770 = vpop.f32.mrf.mxu0
        %v3771 = vpop.f32.mrf.mxu0
        %v3772 = vadd.f32 0.0, %v3771
        %v3773 = vpop.f32.mrf.mxu0
        %3774 = vmatprep.mubr.bf16.mxu0 0
        %3775 = vmatmul.mubr.bf16.gmra.mxu0 %v3714
        %v3776 = vpop.f32.mrf.mxu0
        %v3777 = vadd.f32 0.0, %v3776
        %v3778 = vpop.f32.mrf.mxu0
        %v3779 = vpop.f32.mrf.mxu0
        %v3780 = vadd.f32 0.0, %v3779
        %v3781 = vpop.f32.mrf.mxu0
        %3782 = vmatprep.mubr.bf16.mxu0 0
        %3783 = vmatmul.mubr.bf16.gmra.mxu0 %v3717
        %v3784 = vpop.f32.mrf.mxu0
        %v3785 = vadd.f32 0.0, %v3784
        %v3786 = vpop.f32.mrf.mxu0
        %v3787 = vpop.f32.mrf.mxu0
        %v3788 = vadd.f32 0.0, %v3787
        %v3789 = vpop.f32.mrf.mxu0
        %3790 = vmatprep.mubr.bf16.mxu0 0
        %3791 = vmatmul.mubr.bf16.gmra.mxu0 %v3720
        %v3792 = vpop.f32.mrf.mxu0
        %v3793 = vadd.f32 0.0, %v3792
        %v3794 = vpop.f32.mrf.mxu0
        %v3795 = vpop.f32.mrf.mxu0
        %v3796 = vadd.f32 0.0, %v3795
        %v3797 = vpop.f32.mrf.mxu0
        %3798 = vdwg.mxu0
        %v3800 = vsel %vm557, %v1375, 0
        %v3803 = vsel %vm557, %v1376, 0
        %v3806 = vsel %vm557, %v1377, 0
        %v3809 = vsel %vm557, %v1378, 0
        %v3812 = vsel %vm557, %v1503, 0
        %v3815 = vsel %vm557, %v1504, 0
        %v3818 = vsel %vm557, %v1505, 0
        %v3821 = vsel %vm557, %v1506, 0
        %3823 = vmatprep.subr.bf16.mxu0 0
        %3824 = vmatpush1.bf16.xpose.msra.mxu0 0
        %3825 = vmatprep.subr.bf16.mxu0 0
        %3826 = vmatpush1.bf16.xpose.msra.mxu0 0
        %3827 = vmatprep.subr.bf16.mxu0 0
        %3828 = vmatpush1.bf16.xpose.msra.mxu0 0
        %3829 = vmatprep.subr.bf16.mxu0 0
        %3830 = vmatpush1.bf16.xpose.msra.mxu0 0
        %3831 = vmatprep.subr.bf16.mxu0 0
        %3832 = vmatpush1.bf16.xpose.msra.mxu0 %v3821
        %3833 = vmatprep.subr.bf16.mxu0 0
        %3834 = vmatpush1.bf16.xpose.msra.mxu0 %v3818
        %3835 = vmatprep.subr.bf16.mxu0 0
        %3836 = vmatpush1.bf16.xpose.msra.mxu0 %v3815
        %3837 = vmatprep.subr.bf16.mxu0 0
        %3838 = vmatpush1.bf16.xpose.msra.mxu0 %v3812
        %3839 = vmatprep.subr.bf16.mxu0 0
        %3840 = vmatpush2.bf16.xpose.msra.mxu0 0
        %3841 = vmatprep.subr.bf16.mxu0 0
        %3842 = vmatpush2.bf16.xpose.msra.mxu0 0
        %3843 = vmatprep.subr.bf16.mxu0 0
        %3844 = vmatpush2.bf16.xpose.msra.mxu0 0
        %3845 = vmatprep.subr.bf16.mxu0 0
        %3846 = vmatpush2.bf16.xpose.msra.mxu0 0
        %3847 = vmatprep.subr.bf16.mxu0 0
        %3848 = vmatpush2.bf16.xpose.msra.mxu0 0
        %3849 = vmatprep.subr.bf16.mxu0 0
        %3850 = vmatpush2.bf16.xpose.msra.mxu0 0
        %3851 = vmatprep.subr.bf16.mxu0 0
        %3852 = vmatpush2.bf16.xpose.msra.mxu0 0
        %3853 = vmatprep.subr.bf16.mxu0 0
        %3854 = vmatpush2.bf16.xpose.msra.mxu0 0
        %3855 = vmatprep.mubr.bf16.mxu0 0
        %3856 = vmatmul.mubr.bf16.gmra.mxu0 %v3800
        %v3857 = vpop.f32.mrf.mxu0
        %v3858 = vadd.f32 0.0, %v3857
        %v3859 = vpop.f32.mrf.mxu0
        %v3860 = vpop.f32.mrf.mxu0
        %v3861 = vadd.f32 0.0, %v3860
        %v3862 = vpop.f32.mrf.mxu0
        %3863 = vmatprep.mubr.bf16.mxu0 0
        %3864 = vmatmul.mubr.bf16.gmra.mxu0 %v3803
        %v3865 = vpop.f32.mrf.mxu0
        %v3866 = vadd.f32 0.0, %v3865
        %v3867 = vpop.f32.mrf.mxu0
        %v3868 = vpop.f32.mrf.mxu0
        %v3869 = vadd.f32 0.0, %v3868
        %v3870 = vpop.f32.mrf.mxu0
        %3871 = vmatprep.mubr.bf16.mxu0 0
        %3872 = vmatmul.mubr.bf16.gmra.mxu0 %v3806
        %v3873 = vpop.f32.mrf.mxu0
        %v3874 = vadd.f32 0.0, %v3873
        %v3875 = vpop.f32.mrf.mxu0
        %v3876 = vpop.f32.mrf.mxu0
        %v3877 = vadd.f32 0.0, %v3876
        %v3878 = vpop.f32.mrf.mxu0
        %3879 = vmatprep.mubr.bf16.mxu0 0
        %3880 = vmatmul.mubr.bf16.gmra.mxu0 %v3809
        %v3881 = vpop.f32.mrf.mxu0
        %v3882 = vadd.f32 0.0, %v3881
        %v3883 = vpop.f32.mrf.mxu0
        %v3884 = vpop.f32.mrf.mxu0
        %v3885 = vadd.f32 0.0, %v3884
        %v3886 = vpop.f32.mrf.mxu0
        %3887 = vdwg.mxu0
        %v3889 = vsel %vm557, %v1379, 0
        %v3892 = vsel %vm557, %v1380, 0
        %v3895 = vsel %vm557, %v1381, 0
        %v3898 = vsel %vm557, %v1382, 0
        %v3901 = vsel %vm557, %v1507, 0
        %v3904 = vsel %vm557, %v1508, 0
        %v3907 = vsel %vm557, %v1509, 0
        %v3910 = vsel %vm557, %v1510, 0
        %3912 = vmatprep.subr.bf16.mxu0 0
        %3913 = vmatpush1.bf16.xpose.msra.mxu0 0
        %3914 = vmatprep.subr.bf16.mxu0 0
        %3915 = vmatpush1.bf16.xpose.msra.mxu0 0
        %3916 = vmatprep.subr.bf16.mxu0 0
        %3917 = vmatpush1.bf16.xpose.msra.mxu0 0
        %3918 = vmatprep.subr.bf16.mxu0 0
        %3919 = vmatpush1.bf16.xpose.msra.mxu0 0
        %3920 = vmatprep.subr.bf16.mxu0 0
        %3921 = vmatpush1.bf16.xpose.msra.mxu0 %v3910
        %3922 = vmatprep.subr.bf16.mxu0 0
        %3923 = vmatpush1.bf16.xpose.msra.mxu0 %v3907
        %3924 = vmatprep.subr.bf16.mxu0 0
        %3925 = vmatpush1.bf16.xpose.msra.mxu0 %v3904
        %3926 = vmatprep.subr.bf16.mxu0 0
        %3927 = vmatpush1.bf16.xpose.msra.mxu0 %v3901
        %3928 = vmatprep.subr.bf16.mxu0 0
        %3929 = vmatpush2.bf16.xpose.msra.mxu0 0
        %3930 = vmatprep.subr.bf16.mxu0 0
        %3931 = vmatpush2.bf16.xpose.msra.mxu0 0
        %3932 = vmatprep.subr.bf16.mxu0 0
        %3933 = vmatpush2.bf16.xpose.msra.mxu0 0
        %3934 = vmatprep.subr.bf16.mxu0 0
        %3935 = vmatpush2.bf16.xpose.msra.mxu0 0
        %3936 = vmatprep.subr.bf16.mxu0 0
        %3937 = vmatpush2.bf16.xpose.msra.mxu0 0
        %3938 = vmatprep.subr.bf16.mxu0 0
        %3939 = vmatpush2.bf16.xpose.msra.mxu0 0
        %3940 = vmatprep.subr.bf16.mxu0 0
        %3941 = vmatpush2.bf16.xpose.msra.mxu0 0
        %3942 = vmatprep.subr.bf16.mxu0 0
        %3943 = vmatpush2.bf16.xpose.msra.mxu0 0
        %3944 = vmatprep.mubr.bf16.mxu0 0
        %3945 = vmatmul.mubr.bf16.gmra.mxu0 %v3889
        %v3946 = vpop.f32.mrf.mxu0
        %v3947 = vadd.f32 0.0, %v3946
        %v3948 = vpop.f32.mrf.mxu0
        %v3949 = vpop.f32.mrf.mxu0
        %v3950 = vadd.f32 0.0, %v3949
        %v3951 = vpop.f32.mrf.mxu0
        %3952 = vmatprep.mubr.bf16.mxu0 0
        %3953 = vmatmul.mubr.bf16.gmra.mxu0 %v3892
        %v3954 = vpop.f32.mrf.mxu0
        %v3955 = vadd.f32 0.0, %v3954
        %v3956 = vpop.f32.mrf.mxu0
        %v3957 = vpop.f32.mrf.mxu0
        %v3958 = vadd.f32 0.0, %v3957
        %v3959 = vpop.f32.mrf.mxu0
        %3960 = vmatprep.mubr.bf16.mxu0 0
        %3961 = vmatmul.mubr.bf16.gmra.mxu0 %v3895
        %v3962 = vpop.f32.mrf.mxu0
        %v3963 = vadd.f32 0.0, %v3962
        %v3964 = vpop.f32.mrf.mxu0
        %v3965 = vpop.f32.mrf.mxu0
        %v3966 = vadd.f32 0.0, %v3965
        %v3967 = vpop.f32.mrf.mxu0
        %3968 = vmatprep.mubr.bf16.mxu0 0
        %3969 = vmatmul.mubr.bf16.gmra.mxu0 %v3898
        %v3970 = vpop.f32.mrf.mxu0
        %v3971 = vadd.f32 0.0, %v3970
        %v3972 = vpop.f32.mrf.mxu0
        %v3973 = vpop.f32.mrf.mxu0
        %v3974 = vadd.f32 0.0, %v3973
        %v3975 = vpop.f32.mrf.mxu0
        %3976 = vdwg.mxu0
        %v3978 = vsel %vm557, %v1383, 0
        %v3981 = vsel %vm557, %v1384, 0
        %v3984 = vsel %vm557, %v1385, 0
        %v3987 = vsel %vm557, %v1386, 0
        %v3990 = vsel %vm557, %v1511, 0
        %v3993 = vsel %vm557, %v1512, 0
        %v3996 = vsel %vm557, %v1513, 0
        %v3999 = vsel %vm557, %v1514, 0
        %4001 = vmatprep.subr.bf16.mxu0 0
        %4002 = vmatpush1.bf16.xpose.msra.mxu0 0
        %4003 = vmatprep.subr.bf16.mxu0 0
        %4004 = vmatpush1.bf16.xpose.msra.mxu0 0
        %4005 = vmatprep.subr.bf16.mxu0 0
        %4006 = vmatpush1.bf16.xpose.msra.mxu0 0
        %4007 = vmatprep.subr.bf16.mxu0 0
        %4008 = vmatpush1.bf16.xpose.msra.mxu0 0
        %4009 = vmatprep.subr.bf16.mxu0 0
        %4010 = vmatpush1.bf16.xpose.msra.mxu0 %v3999
        %4011 = vmatprep.subr.bf16.mxu0 0
        %4012 = vmatpush1.bf16.xpose.msra.mxu0 %v3996
        %4013 = vmatprep.subr.bf16.mxu0 0
        %4014 = vmatpush1.bf16.xpose.msra.mxu0 %v3993
        %4015 = vmatprep.subr.bf16.mxu0 0
        %4016 = vmatpush1.bf16.xpose.msra.mxu0 %v3990
        %4017 = vmatprep.subr.bf16.mxu0 0
        %4018 = vmatpush2.bf16.xpose.msra.mxu0 0
        %4019 = vmatprep.subr.bf16.mxu0 0
        %4020 = vmatpush2.bf16.xpose.msra.mxu0 0
        %4021 = vmatprep.subr.bf16.mxu0 0
        %4022 = vmatpush2.bf16.xpose.msra.mxu0 0
        %4023 = vmatprep.subr.bf16.mxu0 0
        %4024 = vmatpush2.bf16.xpose.msra.mxu0 0
        %4025 = vmatprep.subr.bf16.mxu0 0
        %4026 = vmatpush2.bf16.xpose.msra.mxu0 0
        %4027 = vmatprep.subr.bf16.mxu0 0
        %4028 = vmatpush2.bf16.xpose.msra.mxu0 0
        %4029 = vmatprep.subr.bf16.mxu0 0
        %4030 = vmatpush2.bf16.xpose.msra.mxu0 0
        %4031 = vmatprep.subr.bf16.mxu0 0
        %4032 = vmatpush2.bf16.xpose.msra.mxu0 0
        %4033 = vmatprep.mubr.bf16.mxu0 0
        %4034 = vmatmul.mubr.bf16.gmra.mxu0 %v3978
        %v4035 = vpop.f32.mrf.mxu0
        %v4036 = vadd.f32 0.0, %v4035
        %v4037 = vpop.f32.mrf.mxu0
        %v4038 = vpop.f32.mrf.mxu0
        %v4039 = vadd.f32 0.0, %v4038
        %v4040 = vpop.f32.mrf.mxu0
        %4041 = vmatprep.mubr.bf16.mxu0 0
        %4042 = vmatmul.mubr.bf16.gmra.mxu0 %v3981
        %v4043 = vpop.f32.mrf.mxu0
        %v4044 = vadd.f32 0.0, %v4043
        %v4045 = vpop.f32.mrf.mxu0
        %v4046 = vpop.f32.mrf.mxu0
        %v4047 = vadd.f32 0.0, %v4046
        %v4048 = vpop.f32.mrf.mxu0
        %4049 = vmatprep.mubr.bf16.mxu0 0
        %4050 = vmatmul.mubr.bf16.gmra.mxu0 %v3984
        %v4051 = vpop.f32.mrf.mxu0
        %v4052 = vadd.f32 0.0, %v4051
        %v4053 = vpop.f32.mrf.mxu0
        %v4054 = vpop.f32.mrf.mxu0
        %v4055 = vadd.f32 0.0, %v4054
        %v4056 = vpop.f32.mrf.mxu0
        %4057 = vmatprep.mubr.bf16.mxu0 0
        %4058 = vmatmul.mubr.bf16.gmra.mxu0 %v3987
        %v4059 = vpop.f32.mrf.mxu0
        %v4060 = vadd.f32 0.0, %v4059
        %v4061 = vpop.f32.mrf.mxu0
        %v4062 = vpop.f32.mrf.mxu0
        %v4063 = vadd.f32 0.0, %v4062
        %v4064 = vpop.f32.mrf.mxu0
        %4065 = vdwg.mxu0
        %v4067 = vsel %vm557, %v1387, 0
        %v4070 = vsel %vm557, %v1388, 0
        %v4073 = vsel %vm557, %v1389, 0
        %v4076 = vsel %vm557, %v1390, 0
        %v4079 = vsel %vm557, %v1515, 0
        %v4082 = vsel %vm557, %v1516, 0
        %v4085 = vsel %vm557, %v1517, 0
        %v4088 = vsel %vm557, %v1518, 0
        %4090 = vmatprep.subr.bf16.mxu0 0
        %4091 = vmatpush1.bf16.xpose.msra.mxu0 0
        %4092 = vmatprep.subr.bf16.mxu0 0
        %4093 = vmatpush1.bf16.xpose.msra.mxu0 0
        %4094 = vmatprep.subr.bf16.mxu0 0
        %4095 = vmatpush1.bf16.xpose.msra.mxu0 0
        %4096 = vmatprep.subr.bf16.mxu0 0
        %4097 = vmatpush1.bf16.xpose.msra.mxu0 0
        %4098 = vmatprep.subr.bf16.mxu0 0
        %4099 = vmatpush1.bf16.xpose.msra.mxu0 %v4088
        %4100 = vmatprep.subr.bf16.mxu0 0
        %4101 = vmatpush1.bf16.xpose.msra.mxu0 %v4085
        %4102 = vmatprep.subr.bf16.mxu0 0
        %4103 = vmatpush1.bf16.xpose.msra.mxu0 %v4082
        %4104 = vmatprep.subr.bf16.mxu0 0
        %4105 = vmatpush1.bf16.xpose.msra.mxu0 %v4079
        %4106 = vmatprep.subr.bf16.mxu0 0
        %4107 = vmatpush2.bf16.xpose.msra.mxu0 0
        %4108 = vmatprep.subr.bf16.mxu0 0
        %4109 = vmatpush2.bf16.xpose.msra.mxu0 0
        %4110 = vmatprep.subr.bf16.mxu0 0
        %4111 = vmatpush2.bf16.xpose.msra.mxu0 0
        %4112 = vmatprep.subr.bf16.mxu0 0
        %4113 = vmatpush2.bf16.xpose.msra.mxu0 0
        %4114 = vmatprep.subr.bf16.mxu0 0
        %4115 = vmatpush2.bf16.xpose.msra.mxu0 0
        %4116 = vmatprep.subr.bf16.mxu0 0
        %4117 = vmatpush2.bf16.xpose.msra.mxu0 0
        %4118 = vmatprep.subr.bf16.mxu0 0
        %4119 = vmatpush2.bf16.xpose.msra.mxu0 0
        %4120 = vmatprep.subr.bf16.mxu0 0
        %4121 = vmatpush2.bf16.xpose.msra.mxu0 0
        %4122 = vmatprep.mubr.bf16.mxu0 0
        %4123 = vmatmul.mubr.bf16.gmra.mxu0 %v4067
        %v4124 = vpop.f32.mrf.mxu0
        %v4125 = vadd.f32 0.0, %v4124
        %v4126 = vpop.f32.mrf.mxu0
        %v4127 = vpop.f32.mrf.mxu0
        %v4128 = vadd.f32 0.0, %v4127
        %v4129 = vpop.f32.mrf.mxu0
        %4130 = vmatprep.mubr.bf16.mxu0 0
        %4131 = vmatmul.mubr.bf16.gmra.mxu0 %v4070
        %v4132 = vpop.f32.mrf.mxu0
        %v4133 = vadd.f32 0.0, %v4132
        %v4134 = vpop.f32.mrf.mxu0
        %v4135 = vpop.f32.mrf.mxu0
        %v4136 = vadd.f32 0.0, %v4135
        %v4137 = vpop.f32.mrf.mxu0
        %4138 = vmatprep.mubr.bf16.mxu0 0
        %4139 = vmatmul.mubr.bf16.gmra.mxu0 %v4073
        %v4140 = vpop.f32.mrf.mxu0
        %v4141 = vadd.f32 0.0, %v4140
        %v4142 = vpop.f32.mrf.mxu0
        %v4143 = vpop.f32.mrf.mxu0
        %v4144 = vadd.f32 0.0, %v4143
        %v4145 = vpop.f32.mrf.mxu0
        %4146 = vmatprep.mubr.bf16.mxu0 0
        %4147 = vmatmul.mubr.bf16.gmra.mxu0 %v4076
        %v4148 = vpop.f32.mrf.mxu0
        %v4149 = vadd.f32 0.0, %v4148
        %v4150 = vpop.f32.mrf.mxu0
        %v4151 = vpop.f32.mrf.mxu0
        %v4152 = vadd.f32 0.0, %v4151
        %v4153 = vpop.f32.mrf.mxu0
        %4154 = vdwg.mxu0
        %v4156 = vsel %vm557, %v1391, 0
        %v4159 = vsel %vm557, %v1392, 0
        %v4162 = vsel %vm557, %v1393, 0
        %v4165 = vsel %vm557, %v1394, 0
        %v4168 = vsel %vm557, %v1519, 0
        %v4171 = vsel %vm557, %v1520, 0
        %v4174 = vsel %vm557, %v1521, 0
        %v4177 = vsel %vm557, %v1522, 0
        %4179 = vmatprep.subr.bf16.mxu0 0
        %4180 = vmatpush1.bf16.xpose.msra.mxu0 0
        %4181 = vmatprep.subr.bf16.mxu0 0
        %4182 = vmatpush1.bf16.xpose.msra.mxu0 0
        %4183 = vmatprep.subr.bf16.mxu0 0
        %4184 = vmatpush1.bf16.xpose.msra.mxu0 0
        %4185 = vmatprep.subr.bf16.mxu0 0
        %4186 = vmatpush1.bf16.xpose.msra.mxu0 0
        %4187 = vmatprep.subr.bf16.mxu0 0
        %4188 = vmatpush1.bf16.xpose.msra.mxu0 %v4177
        %4189 = vmatprep.subr.bf16.mxu0 0
        %4190 = vmatpush1.bf16.xpose.msra.mxu0 %v4174
        %4191 = vmatprep.subr.bf16.mxu0 0
        %4192 = vmatpush1.bf16.xpose.msra.mxu0 %v4171
        %4193 = vmatprep.subr.bf16.mxu0 0
        %4194 = vmatpush1.bf16.xpose.msra.mxu0 %v4168
        %4195 = vmatprep.subr.bf16.mxu0 0
        %4196 = vmatpush2.bf16.xpose.msra.mxu0 0
        %4197 = vmatprep.subr.bf16.mxu0 0
        %4198 = vmatpush2.bf16.xpose.msra.mxu0 0
        %4199 = vmatprep.subr.bf16.mxu0 0
        %4200 = vmatpush2.bf16.xpose.msra.mxu0 0
        %4201 = vmatprep.subr.bf16.mxu0 0
        %4202 = vmatpush2.bf16.xpose.msra.mxu0 0
        %4203 = vmatprep.subr.bf16.mxu0 0
        %4204 = vmatpush2.bf16.xpose.msra.mxu0 0
        %4205 = vmatprep.subr.bf16.mxu0 0
        %4206 = vmatpush2.bf16.xpose.msra.mxu0 0
        %4207 = vmatprep.subr.bf16.mxu0 0
        %4208 = vmatpush2.bf16.xpose.msra.mxu0 0
        %4209 = vmatprep.subr.bf16.mxu0 0
        %4210 = vmatpush2.bf16.xpose.msra.mxu0 0
        %4211 = vmatprep.mubr.bf16.mxu0 0
        %4212 = vmatmul.mubr.bf16.gmra.mxu0 %v4156
        %v4213 = vpop.f32.mrf.mxu0
        %v4214 = vadd.f32 0.0, %v4213
        %v4215 = vpop.f32.mrf.mxu0
        %v4216 = vpop.f32.mrf.mxu0
        %v4217 = vadd.f32 0.0, %v4216
        %v4218 = vpop.f32.mrf.mxu0
        %4219 = vmatprep.mubr.bf16.mxu0 0
        %4220 = vmatmul.mubr.bf16.gmra.mxu0 %v4159
        %v4221 = vpop.f32.mrf.mxu0
        %v4222 = vadd.f32 0.0, %v4221
        %v4223 = vpop.f32.mrf.mxu0
        %v4224 = vpop.f32.mrf.mxu0
        %v4225 = vadd.f32 0.0, %v4224
        %v4226 = vpop.f32.mrf.mxu0
        %4227 = vmatprep.mubr.bf16.mxu0 0
        %4228 = vmatmul.mubr.bf16.gmra.mxu0 %v4162
        %v4229 = vpop.f32.mrf.mxu0
        %v4230 = vadd.f32 0.0, %v4229
        %v4231 = vpop.f32.mrf.mxu0
        %v4232 = vpop.f32.mrf.mxu0
        %v4233 = vadd.f32 0.0, %v4232
        %v4234 = vpop.f32.mrf.mxu0
        %4235 = vmatprep.mubr.bf16.mxu0 0
        %4236 = vmatmul.mubr.bf16.gmra.mxu0 %v4165
        %v4237 = vpop.f32.mrf.mxu0
        %v4238 = vadd.f32 0.0, %v4237
        %v4239 = vpop.f32.mrf.mxu0
        %v4240 = vpop.f32.mrf.mxu0
        %v4241 = vadd.f32 0.0, %v4240
        %v4242 = vpop.f32.mrf.mxu0
        %4243 = vdwg.mxu0
        %v4245 = vsel %vm557, %v1395, 0
        %v4248 = vsel %vm557, %v1396, 0
        %v4251 = vsel %vm557, %v1397, 0
        %v4254 = vsel %vm557, %v1398, 0
        %v4257 = vsel %vm557, %v1523, 0
        %v4260 = vsel %vm557, %v1524, 0
        %v4263 = vsel %vm557, %v1525, 0
        %v4266 = vsel %vm557, %v1526, 0
        %4268 = vmatprep.subr.bf16.mxu0 0
        %4269 = vmatpush1.bf16.xpose.msra.mxu0 0
        %4270 = vmatprep.subr.bf16.mxu0 0
        %4271 = vmatpush1.bf16.xpose.msra.mxu0 0
        %4272 = vmatprep.subr.bf16.mxu0 0
        %4273 = vmatpush1.bf16.xpose.msra.mxu0 0
        %4274 = vmatprep.subr.bf16.mxu0 0
        %4275 = vmatpush1.bf16.xpose.msra.mxu0 0
        %4276 = vmatprep.subr.bf16.mxu0 0
        %4277 = vmatpush1.bf16.xpose.msra.mxu0 %v4266
        %4278 = vmatprep.subr.bf16.mxu0 0
        %4279 = vmatpush1.bf16.xpose.msra.mxu0 %v4263
        %4280 = vmatprep.subr.bf16.mxu0 0
        %4281 = vmatpush1.bf16.xpose.msra.mxu0 %v4260
        %4282 = vmatprep.subr.bf16.mxu0 0
        %4283 = vmatpush1.bf16.xpose.msra.mxu0 %v4257
        %4284 = vmatprep.subr.bf16.mxu0 0
        %4285 = vmatpush2.bf16.xpose.msra.mxu0 0
        %4286 = vmatprep.subr.bf16.mxu0 0
        %4287 = vmatpush2.bf16.xpose.msra.mxu0 0
        %4288 = vmatprep.subr.bf16.mxu0 0
        %4289 = vmatpush2.bf16.xpose.msra.mxu0 0
        %4290 = vmatprep.subr.bf16.mxu0 0
        %4291 = vmatpush2.bf16.xpose.msra.mxu0 0
        %4292 = vmatprep.subr.bf16.mxu0 0
        %4293 = vmatpush2.bf16.xpose.msra.mxu0 0
        %4294 = vmatprep.subr.bf16.mxu0 0
        %4295 = vmatpush2.bf16.xpose.msra.mxu0 0
        %4296 = vmatprep.subr.bf16.mxu0 0
        %4297 = vmatpush2.bf16.xpose.msra.mxu0 0
        %4298 = vmatprep.subr.bf16.mxu0 0
        %4299 = vmatpush2.bf16.xpose.msra.mxu0 0
        %4300 = vmatprep.mubr.bf16.mxu0 0
        %4301 = vmatmul.mubr.bf16.gmra.mxu0 %v4245
        %v4302 = vpop.f32.mrf.mxu0
        %v4303 = vadd.f32 0.0, %v4302
        %v4304 = vpop.f32.mrf.mxu0
        %v4305 = vpop.f32.mrf.mxu0
        %v4306 = vadd.f32 0.0, %v4305
        %v4307 = vpop.f32.mrf.mxu0
        %4308 = vmatprep.mubr.bf16.mxu0 0
        %4309 = vmatmul.mubr.bf16.gmra.mxu0 %v4248
        %v4310 = vpop.f32.mrf.mxu0
        %v4311 = vadd.f32 0.0, %v4310
        %v4312 = vpop.f32.mrf.mxu0
        %v4313 = vpop.f32.mrf.mxu0
        %v4314 = vadd.f32 0.0, %v4313
        %v4315 = vpop.f32.mrf.mxu0
        %4316 = vmatprep.mubr.bf16.mxu0 0
        %4317 = vmatmul.mubr.bf16.gmra.mxu0 %v4251
        %v4318 = vpop.f32.mrf.mxu0
        %v4319 = vadd.f32 0.0, %v4318
        %v4320 = vpop.f32.mrf.mxu0
        %v4321 = vpop.f32.mrf.mxu0
        %v4322 = vadd.f32 0.0, %v4321
        %v4323 = vpop.f32.mrf.mxu0
        %4324 = vmatprep.mubr.bf16.mxu0 0
        %4325 = vmatmul.mubr.bf16.gmra.mxu0 %v4254
        %v4326 = vpop.f32.mrf.mxu0
        %v4327 = vadd.f32 0.0, %v4326
        %v4328 = vpop.f32.mrf.mxu0
        %v4329 = vpop.f32.mrf.mxu0
        %v4330 = vadd.f32 0.0, %v4329
        %v4331 = vpop.f32.mrf.mxu0
        %4332 = vdwg.mxu0
        %v4334 = vsel %vm557, %v1399, 0
        %v4337 = vsel %vm557, %v1400, 0
        %v4340 = vsel %vm557, %v1401, 0
        %v4343 = vsel %vm557, %v1402, 0
        %v4346 = vsel %vm557, %v1527, 0
        %v4349 = vsel %vm557, %v1528, 0
        %v4352 = vsel %vm557, %v1529, 0
        %v4355 = vsel %vm557, %v1530, 0
        %4357 = vmatprep.subr.bf16.mxu0 0
        %4358 = vmatpush1.bf16.xpose.msra.mxu0 0
        %4359 = vmatprep.subr.bf16.mxu0 0
        %4360 = vmatpush1.bf16.xpose.msra.mxu0 0
        %4361 = vmatprep.subr.bf16.mxu0 0
        %4362 = vmatpush1.bf16.xpose.msra.mxu0 0
        %4363 = vmatprep.subr.bf16.mxu0 0
        %4364 = vmatpush1.bf16.xpose.msra.mxu0 0
        %4365 = vmatprep.subr.bf16.mxu0 0
        %4366 = vmatpush1.bf16.xpose.msra.mxu0 %v4355
        %4367 = vmatprep.subr.bf16.mxu0 0
        %4368 = vmatpush1.bf16.xpose.msra.mxu0 %v4352
        %4369 = vmatprep.subr.bf16.mxu0 0
        %4370 = vmatpush1.bf16.xpose.msra.mxu0 %v4349
        %4371 = vmatprep.subr.bf16.mxu0 0
        %4372 = vmatpush1.bf16.xpose.msra.mxu0 %v4346
        %4373 = vmatprep.subr.bf16.mxu0 0
        %4374 = vmatpush2.bf16.xpose.msra.mxu0 0
        %4375 = vmatprep.subr.bf16.mxu0 0
        %4376 = vmatpush2.bf16.xpose.msra.mxu0 0
        %4377 = vmatprep.subr.bf16.mxu0 0
        %4378 = vmatpush2.bf16.xpose.msra.mxu0 0
        %4379 = vmatprep.subr.bf16.mxu0 0
        %4380 = vmatpush2.bf16.xpose.msra.mxu0 0
        %4381 = vmatprep.subr.bf16.mxu0 0
        %4382 = vmatpush2.bf16.xpose.msra.mxu0 0
        %4383 = vmatprep.subr.bf16.mxu0 0
        %4384 = vmatpush2.bf16.xpose.msra.mxu0 0
        %4385 = vmatprep.subr.bf16.mxu0 0
        %4386 = vmatpush2.bf16.xpose.msra.mxu0 0
        %4387 = vmatprep.subr.bf16.mxu0 0
        %4388 = vmatpush2.bf16.xpose.msra.mxu0 0
        %4389 = vmatprep.mubr.bf16.mxu0 0
        %4390 = vmatmul.mubr.bf16.gmra.mxu0 %v4334
        %v4391 = vpop.f32.mrf.mxu0
        %v4392 = vadd.f32 0.0, %v4391
        %v4393 = vpop.f32.mrf.mxu0
        %v4394 = vpop.f32.mrf.mxu0
        %v4395 = vadd.f32 0.0, %v4394
        %v4396 = vpop.f32.mrf.mxu0
        %4397 = vmatprep.mubr.bf16.mxu0 0
        %4398 = vmatmul.mubr.bf16.gmra.mxu0 %v4337
        %v4399 = vpop.f32.mrf.mxu0
        %v4400 = vadd.f32 0.0, %v4399
        %v4401 = vpop.f32.mrf.mxu0
        %v4402 = vpop.f32.mrf.mxu0
        %v4403 = vadd.f32 0.0, %v4402
        %v4404 = vpop.f32.mrf.mxu0
        %4405 = vmatprep.mubr.bf16.mxu0 0
        %4406 = vmatmul.mubr.bf16.gmra.mxu0 %v4340
        %v4407 = vpop.f32.mrf.mxu0
        %v4408 = vadd.f32 0.0, %v4407
        %v4409 = vpop.f32.mrf.mxu0
        %v4410 = vpop.f32.mrf.mxu0
        %v4411 = vadd.f32 0.0, %v4410
        %v4412 = vpop.f32.mrf.mxu0
        %4413 = vmatprep.mubr.bf16.mxu0 0
        %4414 = vmatmul.mubr.bf16.gmra.mxu0 %v4343
        %v4415 = vpop.f32.mrf.mxu0
        %v4416 = vadd.f32 0.0, %v4415
        %v4417 = vpop.f32.mrf.mxu0
        %v4418 = vpop.f32.mrf.mxu0
        %v4419 = vadd.f32 0.0, %v4418
        %v4420 = vpop.f32.mrf.mxu0
        %4421 = vdwg.mxu0
        %v4423 = vsel %vm557, %v1403, 0
        %v4426 = vsel %vm557, %v1404, 0
        %v4429 = vsel %vm557, %v1405, 0
        %v4432 = vsel %vm557, %v1406, 0
        %v4435 = vsel %vm557, %v1531, 0
        %v4438 = vsel %vm557, %v1532, 0
        %v4441 = vsel %vm557, %v1533, 0
        %v4444 = vsel %vm557, %v1534, 0
        %4446 = vmatprep.subr.bf16.mxu0 0
        %4447 = vmatpush1.bf16.xpose.msra.mxu0 0
        %4448 = vmatprep.subr.bf16.mxu0 0
        %4449 = vmatpush1.bf16.xpose.msra.mxu0 0
        %4450 = vmatprep.subr.bf16.mxu0 0
        %4451 = vmatpush1.bf16.xpose.msra.mxu0 0
        %4452 = vmatprep.subr.bf16.mxu0 0
        %4453 = vmatpush1.bf16.xpose.msra.mxu0 0
        %4454 = vmatprep.subr.bf16.mxu0 0
        %4455 = vmatpush1.bf16.xpose.msra.mxu0 %v4444
        %4456 = vmatprep.subr.bf16.mxu0 0
        %4457 = vmatpush1.bf16.xpose.msra.mxu0 %v4441
        %4458 = vmatprep.subr.bf16.mxu0 0
        %4459 = vmatpush1.bf16.xpose.msra.mxu0 %v4438
        %4460 = vmatprep.subr.bf16.mxu0 0
        %4461 = vmatpush1.bf16.xpose.msra.mxu0 %v4435
        %4462 = vmatprep.subr.bf16.mxu0 0
        %4463 = vmatpush2.bf16.xpose.msra.mxu0 0
        %4464 = vmatprep.subr.bf16.mxu0 0
        %4465 = vmatpush2.bf16.xpose.msra.mxu0 0
        %4466 = vmatprep.subr.bf16.mxu0 0
        %4467 = vmatpush2.bf16.xpose.msra.mxu0 0
        %4468 = vmatprep.subr.bf16.mxu0 0
        %4469 = vmatpush2.bf16.xpose.msra.mxu0 0
        %4470 = vmatprep.subr.bf16.mxu0 0
        %4471 = vmatpush2.bf16.xpose.msra.mxu0 0
        %4472 = vmatprep.subr.bf16.mxu0 0
        %4473 = vmatpush2.bf16.xpose.msra.mxu0 0
        %4474 = vmatprep.subr.bf16.mxu0 0
        %4475 = vmatpush2.bf16.xpose.msra.mxu0 0
        %4476 = vmatprep.subr.bf16.mxu0 0
        %4477 = vmatpush2.bf16.xpose.msra.mxu0 0
        %4478 = vmatprep.mubr.bf16.mxu0 0
        %4479 = vmatmul.mubr.bf16.gmra.mxu0 %v4423
        %v4480 = vpop.f32.mrf.mxu0
        %v4481 = vadd.f32 0.0, %v4480
        %v4482 = vpop.f32.mrf.mxu0
        %v4483 = vpop.f32.mrf.mxu0
        %v4484 = vadd.f32 0.0, %v4483
        %v4485 = vpop.f32.mrf.mxu0
        %4486 = vmatprep.mubr.bf16.mxu0 0
        %4487 = vmatmul.mubr.bf16.gmra.mxu0 %v4426
        %v4488 = vpop.f32.mrf.mxu0
        %v4489 = vadd.f32 0.0, %v4488
        %v4490 = vpop.f32.mrf.mxu0
        %v4491 = vpop.f32.mrf.mxu0
        %v4492 = vadd.f32 0.0, %v4491
        %v4493 = vpop.f32.mrf.mxu0
        %4494 = vmatprep.mubr.bf16.mxu0 0
        %4495 = vmatmul.mubr.bf16.gmra.mxu0 %v4429
        %v4496 = vpop.f32.mrf.mxu0
        %v4497 = vadd.f32 0.0, %v4496
        %v4498 = vpop.f32.mrf.mxu0
        %v4499 = vpop.f32.mrf.mxu0
        %v4500 = vadd.f32 0.0, %v4499
        %v4501 = vpop.f32.mrf.mxu0
        %4502 = vmatprep.mubr.bf16.mxu0 0
        %4503 = vmatmul.mubr.bf16.gmra.mxu0 %v4432
        %v4504 = vpop.f32.mrf.mxu0
        %v4505 = vadd.f32 0.0, %v4504
        %v4506 = vpop.f32.mrf.mxu0
        %v4507 = vpop.f32.mrf.mxu0
        %v4508 = vadd.f32 0.0, %v4507
        %v4509 = vpop.f32.mrf.mxu0
        %4510 = vdwg.mxu0
        %v4511 = vld [vmem:[#allocation2] sm:$0xff]
        %v4512 = vld [vmem:[#allocation2 + $0x8] sm:$0xff]
        %v4513 = vld [vmem:[#allocation2 + $0x10] sm:$0xff]
        %v4514 = vld [vmem:[#allocation2 + $0x18] sm:$0xff]
        %v4515 = vld [vmem:[#allocation2 + $0x20] sm:$0xff]
        %v4516 = vld [vmem:[#allocation2 + $0x28] sm:$0xff]
        %v4517 = vld [vmem:[#allocation2 + $0x30] sm:$0xff]
        %v4518 = vld [vmem:[#allocation2 + $0x38] sm:$0xff]
        %v4519 = vld [vmem:[#allocation2 + $0x40] sm:$0xff]
        %v4520 = vld [vmem:[#allocation2 + $0x48] sm:$0xff]
        %v4521 = vld [vmem:[#allocation2 + $0x50] sm:$0xff]
        %v4522 = vld [vmem:[#allocation2 + $0x58] sm:$0xff]
        %v4523 = vld [vmem:[#allocation2 + $0x60] sm:$0xff]
        %v4524 = vld [vmem:[#allocation2 + $0x68] sm:$0xff]
        %v4525 = vld [vmem:[#allocation2 + $0x70] sm:$0xff]
        %v4526 = vld [vmem:[#allocation2 + $0x78] sm:$0xff]
        %v4527 = vld [vmem:[#allocation2 + $0x80] sm:$0xff]
        %v4528 = vld [vmem:[#allocation2 + $0x88] sm:$0xff]
        %v4529 = vld [vmem:[#allocation2 + $0x90] sm:$0xff]
        %v4530 = vld [vmem:[#allocation2 + $0x98] sm:$0xff]
        %v4531 = vld [vmem:[#allocation2 + $0xa0] sm:$0xff]
        %v4532 = vld [vmem:[#allocation2 + $0xa8] sm:$0xff]
        %v4533 = vld [vmem:[#allocation2 + $0xb0] sm:$0xff]
        %v4534 = vld [vmem:[#allocation2 + $0xb8] sm:$0xff]
        %v4535 = vld [vmem:[#allocation2 + $0xc0] sm:$0xff]
        %v4536 = vld [vmem:[#allocation2 + $0xc8] sm:$0xff]
        %v4537 = vld [vmem:[#allocation2 + $0xd0] sm:$0xff]
        %v4538 = vld [vmem:[#allocation2 + $0xd8] sm:$0xff]
        %v4539 = vld [vmem:[#allocation2 + $0xe0] sm:$0xff]
        %v4540 = vld [vmem:[#allocation2 + $0xe8] sm:$0xff]
        %v4541 = vld [vmem:[#allocation2 + $0xf0] sm:$0xff]
        %v4542 = vld [vmem:[#allocation2 + $0xf8] sm:$0xff]
        %v4543 = vld [vmem:[#allocation2 + $0x100] sm:$0xff]
        %v4544 = vld [vmem:[#allocation2 + $0x108] sm:$0xff]
        %v4545 = vld [vmem:[#allocation2 + $0x110] sm:$0xff]
        %v4546 = vld [vmem:[#allocation2 + $0x118] sm:$0xff]
        %v4547 = vld [vmem:[#allocation2 + $0x120] sm:$0xff]
        %v4548 = vld [vmem:[#allocation2 + $0x128] sm:$0xff]
        %v4549 = vld [vmem:[#allocation2 + $0x130] sm:$0xff]
        %v4550 = vld [vmem:[#allocation2 + $0x138] sm:$0xff]
        %v4551 = vld [vmem:[#allocation2 + $0x140] sm:$0xff]
        %v4552 = vld [vmem:[#allocation2 + $0x148] sm:$0xff]
        %v4553 = vld [vmem:[#allocation2 + $0x150] sm:$0xff]
        %v4554 = vld [vmem:[#allocation2 + $0x158] sm:$0xff]
        %v4555 = vld [vmem:[#allocation2 + $0x160] sm:$0xff]
        %v4556 = vld [vmem:[#allocation2 + $0x168] sm:$0xff]
        %v4557 = vld [vmem:[#allocation2 + $0x170] sm:$0xff]
        %v4558 = vld [vmem:[#allocation2 + $0x178] sm:$0xff]
        %v4559 = vld [vmem:[#allocation2 + $0x180] sm:$0xff]
        %v4560 = vld [vmem:[#allocation2 + $0x188] sm:$0xff]
        %v4561 = vld [vmem:[#allocation2 + $0x190] sm:$0xff]
        %v4562 = vld [vmem:[#allocation2 + $0x198] sm:$0xff]
        %v4563 = vld [vmem:[#allocation2 + $0x1a0] sm:$0xff]
        %v4564 = vld [vmem:[#allocation2 + $0x1a8] sm:$0xff]
        %v4565 = vld [vmem:[#allocation2 + $0x1b0] sm:$0xff]
        %v4566 = vld [vmem:[#allocation2 + $0x1b8] sm:$0xff]
        %v4567 = vld [vmem:[#allocation2 + $0x1c0] sm:$0xff]
        %v4568 = vld [vmem:[#allocation2 + $0x1c8] sm:$0xff]
        %v4569 = vld [vmem:[#allocation2 + $0x1d0] sm:$0xff]
        %v4570 = vld [vmem:[#allocation2 + $0x1d8] sm:$0xff]
        %v4571 = vld [vmem:[#allocation2 + $0x1e0] sm:$0xff]
        %v4572 = vld [vmem:[#allocation2 + $0x1e8] sm:$0xff]
        %v4573 = vld [vmem:[#allocation2 + $0x1f0] sm:$0xff]
        %v4574 = vld [vmem:[#allocation2 + $0x1f8] sm:$0xff]
        %v4575 = vadd.f32 %v1722, %v4511
        %v4576 = vadd.f32 %v1725, %v4512
        %v4577 = vadd.f32 %v1730, %v4513
        %v4578 = vadd.f32 %v1733, %v4514
        %v4579 = vadd.f32 %v1738, %v4515
        %v4580 = vadd.f32 %v1741, %v4516
        %v4581 = vadd.f32 %v1746, %v4517
        %v4582 = vadd.f32 %v1749, %v4518
        %v4583 = vadd.f32 %v1811, %v4519
        %v4584 = vadd.f32 %v1814, %v4520
        %v4585 = vadd.f32 %v1819, %v4521
        %v4586 = vadd.f32 %v1822, %v4522
        %v4587 = vadd.f32 %v1827, %v4523
        %v4588 = vadd.f32 %v1830, %v4524
        %v4589 = vadd.f32 %v1835, %v4525
        %v4590 = vadd.f32 %v1838, %v4526
        %v4591 = vadd.f32 %v1900, %v4527
        %v4592 = vadd.f32 %v1903, %v4528
        %v4593 = vadd.f32 %v1908, %v4529
        %v4594 = vadd.f32 %v1911, %v4530
        %v4595 = vadd.f32 %v1916, %v4531
        %v4596 = vadd.f32 %v1919, %v4532
        %v4597 = vadd.f32 %v1924, %v4533
        %v4598 = vadd.f32 %v1927, %v4534
        %v4599 = vadd.f32 %v1989, %v4535
        %v4600 = vadd.f32 %v1992, %v4536
        %v4601 = vadd.f32 %v1997, %v4537
        %v4602 = vadd.f32 %v2000, %v4538
        %v4603 = vadd.f32 %v2005, %v4539
        %v4604 = vadd.f32 %v2008, %v4540
        %v4605 = vadd.f32 %v2013, %v4541
        %v4606 = vadd.f32 %v2016, %v4542
        %v4607 = vadd.f32 %v2078, %v4543
        %v4608 = vadd.f32 %v2081, %v4544
        %v4609 = vadd.f32 %v2086, %v4545
        %v4610 = vadd.f32 %v2089, %v4546
        %v4611 = vadd.f32 %v2094, %v4547
        %v4612 = vadd.f32 %v2097, %v4548
        %v4613 = vadd.f32 %v2102, %v4549
        %v4614 = vadd.f32 %v2105, %v4550
        %v4615 = vadd.f32 %v2167, %v4551
        %v4616 = vadd.f32 %v2170, %v4552
        %v4617 = vadd.f32 %v2175, %v4553
        %v4618 = vadd.f32 %v2178, %v4554
        %v4619 = vadd.f32 %v2183, %v4555
        %v4620 = vadd.f32 %v2186, %v4556
        %v4621 = vadd.f32 %v2191, %v4557
        %v4622 = vadd.f32 %v2194, %v4558
        %v4623 = vadd.f32 %v2256, %v4559
        %v4624 = vadd.f32 %v2259, %v4560
        %v4625 = vadd.f32 %v2264, %v4561
        %v4626 = vadd.f32 %v2267, %v4562
        %v4627 = vadd.f32 %v2272, %v4563
        %v4628 = vadd.f32 %v2275, %v4564
        %v4629 = vadd.f32 %v2280, %v4565
        %v4630 = vadd.f32 %v2283, %v4566
        %v4631 = vadd.f32 %v2345, %v4567
        %v4632 = vadd.f32 %v2348, %v4568
        %v4633 = vadd.f32 %v2353, %v4569
        %v4634 = vadd.f32 %v2356, %v4570
        %v4635 = vadd.f32 %v2361, %v4571
        %v4636 = vadd.f32 %v2364, %v4572
        %v4637 = vadd.f32 %v2369, %v4573
        %v4638 = vadd.f32 %v2372, %v4574
        %v4639 = vadd.f32 %v2434, %v4511
        %v4640 = vadd.f32 %v2437, %v4512
        %v4641 = vadd.f32 %v2442, %v4513
        %v4642 = vadd.f32 %v2445, %v4514
        %v4643 = vadd.f32 %v2450, %v4515
        %v4644 = vadd.f32 %v2453, %v4516
        %v4645 = vadd.f32 %v2458, %v4517
        %v4646 = vadd.f32 %v2461, %v4518
        %v4647 = vadd.f32 %v2523, %v4519
        %v4648 = vadd.f32 %v2526, %v4520
        %v4649 = vadd.f32 %v2531, %v4521
        %v4650 = vadd.f32 %v2534, %v4522
        %v4651 = vadd.f32 %v2539, %v4523
        %v4652 = vadd.f32 %v2542, %v4524
        %v4653 = vadd.f32 %v2547, %v4525
        %v4654 = vadd.f32 %v2550, %v4526
        %v4655 = vadd.f32 %v2612, %v4527
        %v4656 = vadd.f32 %v2615, %v4528
        %v4657 = vadd.f32 %v2620, %v4529
        %v4658 = vadd.f32 %v2623, %v4530
        %v4659 = vadd.f32 %v2628, %v4531
        %v4660 = vadd.f32 %v2631, %v4532
        %v4661 = vadd.f32 %v2636, %v4533
        %v4662 = vadd.f32 %v2639, %v4534
        %v4663 = vadd.f32 %v2701, %v4535
        %v4664 = vadd.f32 %v2704, %v4536
        %v4665 = vadd.f32 %v2709, %v4537
        %v4666 = vadd.f32 %v2712, %v4538
        %v4667 = vadd.f32 %v2717, %v4539
        %v4668 = vadd.f32 %v2720, %v4540
        %v4669 = vadd.f32 %v2725, %v4541
        %v4670 = vadd.f32 %v2728, %v4542
        %v4671 = vadd.f32 %v2790, %v4543
        %v4672 = vadd.f32 %v2793, %v4544
        %v4673 = vadd.f32 %v2798, %v4545
        %v4674 = vadd.f32 %v2801, %v4546
        %v4675 = vadd.f32 %v2806, %v4547
        %v4676 = vadd.f32 %v2809, %v4548
        %v4677 = vadd.f32 %v2814, %v4549
        %v4678 = vadd.f32 %v2817, %v4550
        %v4679 = vadd.f32 %v2879, %v4551
        %v4680 = vadd.f32 %v2882, %v4552
        %v4681 = vadd.f32 %v2887, %v4553
        %v4682 = vadd.f32 %v2890, %v4554
        %v4683 = vadd.f32 %v2895, %v4555
        %v4684 = vadd.f32 %v2898, %v4556
        %v4685 = vadd.f32 %v2903, %v4557
        %v4686 = vadd.f32 %v2906, %v4558
        %v4687 = vadd.f32 %v2968, %v4559
        %v4688 = vadd.f32 %v2971, %v4560
        %v4689 = vadd.f32 %v2976, %v4561
        %v4690 = vadd.f32 %v2979, %v4562
        %v4691 = vadd.f32 %v2984, %v4563
        %v4692 = vadd.f32 %v2987, %v4564
        %v4693 = vadd.f32 %v2992, %v4565
        %v4694 = vadd.f32 %v2995, %v4566
        %v4695 = vadd.f32 %v3057, %v4567
        %v4696 = vadd.f32 %v3060, %v4568
        %v4697 = vadd.f32 %v3065, %v4569
        %v4698 = vadd.f32 %v3068, %v4570
        %v4699 = vadd.f32 %v3073, %v4571
        %v4700 = vadd.f32 %v3076, %v4572
        %v4701 = vadd.f32 %v3081, %v4573
        %v4702 = vadd.f32 %v3084, %v4574
        %v4703 = vadd.f32 %v3146, %v4511
        %v4704 = vadd.f32 %v3149, %v4512
        %v4705 = vadd.f32 %v3154, %v4513
        %v4706 = vadd.f32 %v3157, %v4514
        %v4707 = vadd.f32 %v3162, %v4515
        %v4708 = vadd.f32 %v3165, %v4516
        %v4709 = vadd.f32 %v3170, %v4517
        %v4710 = vadd.f32 %v3173, %v4518
        %v4711 = vadd.f32 %v3235, %v4519
        %v4712 = vadd.f32 %v3238, %v4520
        %v4713 = vadd.f32 %v3243, %v4521
        %v4714 = vadd.f32 %v3246, %v4522
        %v4715 = vadd.f32 %v3251, %v4523
        %v4716 = vadd.f32 %v3254, %v4524
        %v4717 = vadd.f32 %v3259, %v4525
        %v4718 = vadd.f32 %v3262, %v4526
        %v4719 = vadd.f32 %v3324, %v4527
        %v4720 = vadd.f32 %v3327, %v4528
        %v4721 = vadd.f32 %v3332, %v4529
        %v4722 = vadd.f32 %v3335, %v4530
        %v4723 = vadd.f32 %v3340, %v4531
        %v4724 = vadd.f32 %v3343, %v4532
        %v4725 = vadd.f32 %v3348, %v4533
        %v4726 = vadd.f32 %v3351, %v4534
        %v4727 = vadd.f32 %v3413, %v4535
        %v4728 = vadd.f32 %v3416, %v4536
        %v4729 = vadd.f32 %v3421, %v4537
        %v4730 = vadd.f32 %v3424, %v4538
        %v4731 = vadd.f32 %v3429, %v4539
        %v4732 = vadd.f32 %v3432, %v4540
        %v4733 = vadd.f32 %v3437, %v4541
        %v4734 = vadd.f32 %v3440, %v4542
        %v4735 = vadd.f32 %v3502, %v4543
        %v4736 = vadd.f32 %v3505, %v4544
        %v4737 = vadd.f32 %v3510, %v4545
        %v4738 = vadd.f32 %v3513, %v4546
        %v4739 = vadd.f32 %v3518, %v4547
        %v4740 = vadd.f32 %v3521, %v4548
        %v4741 = vadd.f32 %v3526, %v4549
        %v4742 = vadd.f32 %v3529, %v4550
        %v4743 = vadd.f32 %v3591, %v4551
        %v4744 = vadd.f32 %v3594, %v4552
        %v4745 = vadd.f32 %v3599, %v4553
        %v4746 = vadd.f32 %v3602, %v4554
        %v4747 = vadd.f32 %v3607, %v4555
        %v4748 = vadd.f32 %v3610, %v4556
        %v4749 = vadd.f32 %v3615, %v4557
        %v4750 = vadd.f32 %v3618, %v4558
        %v4751 = vadd.f32 %v3680, %v4559
        %v4752 = vadd.f32 %v3683, %v4560
        %v4753 = vadd.f32 %v3688, %v4561
        %v4754 = vadd.f32 %v3691, %v4562
        %v4755 = vadd.f32 %v3696, %v4563
        %v4756 = vadd.f32 %v3699, %v4564
        %v4757 = vadd.f32 %v3704, %v4565
        %v4758 = vadd.f32 %v3707, %v4566
        %v4759 = vadd.f32 %v3769, %v4567
        %v4760 = vadd.f32 %v3772, %v4568
        %v4761 = vadd.f32 %v3777, %v4569
        %v4762 = vadd.f32 %v3780, %v4570
        %v4763 = vadd.f32 %v3785, %v4571
        %v4764 = vadd.f32 %v3788, %v4572
        %v4765 = vadd.f32 %v3793, %v4573
        %v4766 = vadd.f32 %v3796, %v4574
        %v4767 = vadd.f32 %v3858, %v4511
        %v4768 = vadd.f32 %v3861, %v4512
        %v4769 = vadd.f32 %v3866, %v4513
        %v4770 = vadd.f32 %v3869, %v4514
        %v4771 = vadd.f32 %v3874, %v4515
        %v4772 = vadd.f32 %v3877, %v4516
        %v4773 = vadd.f32 %v3882, %v4517
        %v4774 = vadd.f32 %v3885, %v4518
        %v4775 = vadd.f32 %v3947, %v4519
        %v4776 = vadd.f32 %v3950, %v4520
        %v4777 = vadd.f32 %v3955, %v4521
        %v4778 = vadd.f32 %v3958, %v4522
        %v4779 = vadd.f32 %v3963, %v4523
        %v4780 = vadd.f32 %v3966, %v4524
        %v4781 = vadd.f32 %v3971, %v4525
        %v4782 = vadd.f32 %v3974, %v4526
        %v4783 = vadd.f32 %v4036, %v4527
        %v4784 = vadd.f32 %v4039, %v4528
        %v4785 = vadd.f32 %v4044, %v4529
        %v4786 = vadd.f32 %v4047, %v4530
        %v4787 = vadd.f32 %v4052, %v4531
        %v4788 = vadd.f32 %v4055, %v4532
        %v4789 = vadd.f32 %v4060, %v4533
        %v4790 = vadd.f32 %v4063, %v4534
        %v4791 = vadd.f32 %v4125, %v4535
        %v4792 = vadd.f32 %v4128, %v4536
        %v4793 = vadd.f32 %v4133, %v4537
        %v4794 = vadd.f32 %v4136, %v4538
        %v4795 = vadd.f32 %v4141, %v4539
        %v4796 = vadd.f32 %v4144, %v4540
        %v4797 = vadd.f32 %v4149, %v4541
        %v4798 = vadd.f32 %v4152, %v4542
        %v4799 = vadd.f32 %v4214, %v4543
        %v4800 = vadd.f32 %v4217, %v4544
        %v4801 = vadd.f32 %v4222, %v4545
        %v4802 = vadd.f32 %v4225, %v4546
        %v4803 = vadd.f32 %v4230, %v4547
        %v4804 = vadd.f32 %v4233, %v4548
        %v4805 = vadd.f32 %v4238, %v4549
        %v4806 = vadd.f32 %v4241, %v4550
        %v4807 = vadd.f32 %v4303, %v4551
        %v4808 = vadd.f32 %v4306, %v4552
        %v4809 = vadd.f32 %v4311, %v4553
        %v4810 = vadd.f32 %v4314, %v4554
        %v4811 = vadd.f32 %v4319, %v4555
        %v4812 = vadd.f32 %v4322, %v4556
        %v4813 = vadd.f32 %v4327, %v4557
        %v4814 = vadd.f32 %v4330, %v4558
        %v4815 = vadd.f32 %v4392, %v4559
        %v4816 = vadd.f32 %v4395, %v4560
        %v4817 = vadd.f32 %v4400, %v4561
        %v4818 = vadd.f32 %v4403, %v4562
        %v4819 = vadd.f32 %v4408, %v4563
        %v4820 = vadd.f32 %v4411, %v4564
        %v4821 = vadd.f32 %v4416, %v4565
        %v4822 = vadd.f32 %v4419, %v4566
        %v4823 = vadd.f32 %v4481, %v4567
        %v4824 = vadd.f32 %v4484, %v4568
        %v4825 = vadd.f32 %v4489, %v4569
        %v4826 = vadd.f32 %v4492, %v4570
        %v4827 = vadd.f32 %v4497, %v4571
        %v4828 = vadd.f32 %v4500, %v4572
        %v4829 = vadd.f32 %v4505, %v4573
        %v4830 = vadd.f32 %v4508, %v4574
        %v4831 = vsel %vm557, %v4575, -inf
        %4832 = vmax.xlane.f32.xlu0 %v4831
        %v4833 = vpop.xlane.xlu0 %4832
        %v4834 = vsel %vm557, %v4576, -inf
        %4835 = vmax.xlane.f32.xlu0 %v4834
        %v4836 = vpop.xlane.xlu0 %4835
        %v4837 = vsel %vm557, %v4577, -inf
        %4838 = vmax.xlane.f32.xlu0 %v4837
        %v4839 = vpop.xlane.xlu0 %4838
        %v4840 = vsel %vm557, %v4578, -inf
        %4841 = vmax.xlane.f32.xlu0 %v4840
        %v4842 = vpop.xlane.xlu0 %4841
        %v4843 = vsel %vm557, %v4579, -inf
        %4844 = vmax.xlane.f32.xlu0 %v4843
        %v4845 = vpop.xlane.xlu0 %4844
        %v4846 = vsel %vm557, %v4580, -inf
        %4847 = vmax.xlane.f32.xlu0 %v4846
        %v4848 = vpop.xlane.xlu0 %4847
        %v4849 = vsel %vm557, %v4581, -inf
        %4850 = vmax.xlane.f32.xlu0 %v4849
        %v4851 = vpop.xlane.xlu0 %4850
        %v4852 = vsel %vm557, %v4582, -inf
        %4853 = vmax.xlane.f32.xlu0 %v4852
        %v4854 = vpop.xlane.xlu0 %4853
        %v4855 = vsel %vm557, %v4583, -inf
        %4856 = vmax.xlane.f32.xlu0 %v4855
        %v4857 = vpop.xlane.xlu0 %4856
        %v4858 = vsel %vm557, %v4584, -inf
        %4859 = vmax.xlane.f32.xlu0 %v4858
        %v4860 = vpop.xlane.xlu0 %4859
        %v4861 = vsel %vm557, %v4585, -inf
        %4862 = vmax.xlane.f32.xlu0 %v4861
        %v4863 = vpop.xlane.xlu0 %4862
        %v4864 = vsel %vm557, %v4586, -inf
        %4865 = vmax.xlane.f32.xlu0 %v4864
        %v4866 = vpop.xlane.xlu0 %4865
        %v4867 = vsel %vm557, %v4587, -inf
        %4868 = vmax.xlane.f32.xlu0 %v4867
        %v4869 = vpop.xlane.xlu0 %4868
        %v4870 = vsel %vm557, %v4588, -inf
        %4871 = vmax.xlane.f32.xlu0 %v4870
        %v4872 = vpop.xlane.xlu0 %4871
        %v4873 = vsel %vm557, %v4589, -inf
        %4874 = vmax.xlane.f32.xlu0 %v4873
        %v4875 = vpop.xlane.xlu0 %4874
        %v4876 = vsel %vm557, %v4590, -inf
        %4877 = vmax.xlane.f32.xlu0 %v4876
        %v4878 = vpop.xlane.xlu0 %4877
        %v4879 = vsel %vm557, %v4591, -inf
        %4880 = vmax.xlane.f32.xlu0 %v4879
        %v4881 = vpop.xlane.xlu0 %4880
        %v4882 = vsel %vm557, %v4592, -inf
        %4883 = vmax.xlane.f32.xlu0 %v4882
        %v4884 = vpop.xlane.xlu0 %4883
        %v4885 = vsel %vm557, %v4593, -inf
        %4886 = vmax.xlane.f32.xlu0 %v4885
        %v4887 = vpop.xlane.xlu0 %4886
        %v4888 = vsel %vm557, %v4594, -inf
        %4889 = vmax.xlane.f32.xlu0 %v4888
        %v4890 = vpop.xlane.xlu0 %4889
        %v4891 = vsel %vm557, %v4595, -inf
        %4892 = vmax.xlane.f32.xlu0 %v4891
        %v4893 = vpop.xlane.xlu0 %4892
        %v4894 = vsel %vm557, %v4596, -inf
        %4895 = vmax.xlane.f32.xlu0 %v4894
        %v4896 = vpop.xlane.xlu0 %4895
        %v4897 = vsel %vm557, %v4597, -inf
        %4898 = vmax.xlane.f32.xlu0 %v4897
        %v4899 = vpop.xlane.xlu0 %4898
        %v4900 = vsel %vm557, %v4598, -inf
        %4901 = vmax.xlane.f32.xlu0 %v4900
        %v4902 = vpop.xlane.xlu0 %4901
        %v4903 = vsel %vm557, %v4599, -inf
        %4904 = vmax.xlane.f32.xlu0 %v4903
        %v4905 = vpop.xlane.xlu0 %4904
        %v4906 = vsel %vm557, %v4600, -inf
        %4907 = vmax.xlane.f32.xlu0 %v4906
        %v4908 = vpop.xlane.xlu0 %4907
        %v4909 = vsel %vm557, %v4601, -inf
        %4910 = vmax.xlane.f32.xlu0 %v4909
        %v4911 = vpop.xlane.xlu0 %4910
        %v4912 = vsel %vm557, %v4602, -inf
        %4913 = vmax.xlane.f32.xlu0 %v4912
        %v4914 = vpop.xlane.xlu0 %4913
        %v4915 = vsel %vm557, %v4603, -inf
        %4916 = vmax.xlane.f32.xlu0 %v4915
        %v4917 = vpop.xlane.xlu0 %4916
        %v4918 = vsel %vm557, %v4604, -inf
        %4919 = vmax.xlane.f32.xlu0 %v4918
        %v4920 = vpop.xlane.xlu0 %4919
        %v4921 = vsel %vm557, %v4605, -inf
        %4922 = vmax.xlane.f32.xlu0 %v4921
        %v4923 = vpop.xlane.xlu0 %4922
        %v4924 = vsel %vm557, %v4606, -inf
        %4925 = vmax.xlane.f32.xlu0 %v4924
        %v4926 = vpop.xlane.xlu0 %4925
        %v4927 = vsel %vm557, %v4607, -inf
        %4928 = vmax.xlane.f32.xlu0 %v4927
        %v4929 = vpop.xlane.xlu0 %4928
        %v4930 = vsel %vm557, %v4608, -inf
        %4931 = vmax.xlane.f32.xlu0 %v4930
        %v4932 = vpop.xlane.xlu0 %4931
        %v4933 = vsel %vm557, %v4609, -inf
        %4934 = vmax.xlane.f32.xlu0 %v4933
        %v4935 = vpop.xlane.xlu0 %4934
        %v4936 = vsel %vm557, %v4610, -inf
        %4937 = vmax.xlane.f32.xlu0 %v4936
        %v4938 = vpop.xlane.xlu0 %4937
        %v4939 = vsel %vm557, %v4611, -inf
        %4940 = vmax.xlane.f32.xlu0 %v4939
        %v4941 = vpop.xlane.xlu0 %4940
        %v4942 = vsel %vm557, %v4612, -inf
        %4943 = vmax.xlane.f32.xlu0 %v4942
        %v4944 = vpop.xlane.xlu0 %4943
        %v4945 = vsel %vm557, %v4613, -inf
        %4946 = vmax.xlane.f32.xlu0 %v4945
        %v4947 = vpop.xlane.xlu0 %4946
        %v4948 = vsel %vm557, %v4614, -inf
        %4949 = vmax.xlane.f32.xlu0 %v4948
        %v4950 = vpop.xlane.xlu0 %4949
        %v4951 = vsel %vm557, %v4615, -inf
        %4952 = vmax.xlane.f32.xlu0 %v4951
        %v4953 = vpop.xlane.xlu0 %4952
        %v4954 = vsel %vm557, %v4616, -inf
        %4955 = vmax.xlane.f32.xlu0 %v4954
        %v4956 = vpop.xlane.xlu0 %4955
        %v4957 = vsel %vm557, %v4617, -inf
        %4958 = vmax.xlane.f32.xlu0 %v4957
        %v4959 = vpop.xlane.xlu0 %4958
        %v4960 = vsel %vm557, %v4618, -inf
        %4961 = vmax.xlane.f32.xlu0 %v4960
        %v4962 = vpop.xlane.xlu0 %4961
        %v4963 = vsel %vm557, %v4619, -inf
        %4964 = vmax.xlane.f32.xlu0 %v4963
        %v4965 = vpop.xlane.xlu0 %4964
        %v4966 = vsel %vm557, %v4620, -inf
        %4967 = vmax.xlane.f32.xlu0 %v4966
        %v4968 = vpop.xlane.xlu0 %4967
        %v4969 = vsel %vm557, %v4621, -inf
        %4970 = vmax.xlane.f32.xlu0 %v4969
        %v4971 = vpop.xlane.xlu0 %4970
        %v4972 = vsel %vm557, %v4622, -inf
        %4973 = vmax.xlane.f32.xlu0 %v4972
        %v4974 = vpop.xlane.xlu0 %4973
        %v4975 = vsel %vm557, %v4623, -inf
        %4976 = vmax.xlane.f32.xlu0 %v4975
        %v4977 = vpop.xlane.xlu0 %4976
        %v4978 = vsel %vm557, %v4624, -inf
        %4979 = vmax.xlane.f32.xlu0 %v4978
        %v4980 = vpop.xlane.xlu0 %4979
        %v4981 = vsel %vm557, %v4625, -inf
        %4982 = vmax.xlane.f32.xlu0 %v4981
        %v4983 = vpop.xlane.xlu0 %4982
        %v4984 = vsel %vm557, %v4626, -inf
        %4985 = vmax.xlane.f32.xlu0 %v4984
        %v4986 = vpop.xlane.xlu0 %4985
        %v4987 = vsel %vm557, %v4627, -inf
        %4988 = vmax.xlane.f32.xlu0 %v4987
        %v4989 = vpop.xlane.xlu0 %4988
        %v4990 = vsel %vm557, %v4628, -inf
        %4991 = vmax.xlane.f32.xlu0 %v4990
        %v4992 = vpop.xlane.xlu0 %4991
        %v4993 = vsel %vm557, %v4629, -inf
        %4994 = vmax.xlane.f32.xlu0 %v4993
        %v4995 = vpop.xlane.xlu0 %4994
        %v4996 = vsel %vm557, %v4630, -inf
        %4997 = vmax.xlane.f32.xlu0 %v4996
        %v4998 = vpop.xlane.xlu0 %4997
        %v4999 = vsel %vm557, %v4631, -inf
        %5000 = vmax.xlane.f32.xlu0 %v4999
        %v5001 = vpop.xlane.xlu0 %5000
        %v5002 = vsel %vm557, %v4632, -inf
        %5003 = vmax.xlane.f32.xlu0 %v5002
        %v5004 = vpop.xlane.xlu0 %5003
        %v5005 = vsel %vm557, %v4633, -inf
        %5006 = vmax.xlane.f32.xlu0 %v5005
        %v5007 = vpop.xlane.xlu0 %5006
        %v5008 = vsel %vm557, %v4634, -inf
        %5009 = vmax.xlane.f32.xlu0 %v5008
        %v5010 = vpop.xlane.xlu0 %5009
        %v5011 = vsel %vm557, %v4635, -inf
        %5012 = vmax.xlane.f32.xlu0 %v5011
        %v5013 = vpop.xlane.xlu0 %5012
        %v5014 = vsel %vm557, %v4636, -inf
        %5015 = vmax.xlane.f32.xlu0 %v5014
        %v5016 = vpop.xlane.xlu0 %5015
        %v5017 = vsel %vm557, %v4637, -inf
        %5018 = vmax.xlane.f32.xlu0 %v5017
        %v5019 = vpop.xlane.xlu0 %5018
        %v5020 = vsel %vm557, %v4638, -inf
        %5021 = vmax.xlane.f32.xlu0 %v5020
        %v5022 = vpop.xlane.xlu0 %5021
        %v5023 = vsel %vm557, %v4639, -inf
        %5024 = vmax.xlane.f32.xlu0 %v5023
        %v5025 = vpop.xlane.xlu0 %5024
        %v5026 = vsel %vm557, %v4640, -inf
        %5027 = vmax.xlane.f32.xlu0 %v5026
        %v5028 = vpop.xlane.xlu0 %5027
        %v5029 = vsel %vm557, %v4641, -inf
        %5030 = vmax.xlane.f32.xlu0 %v5029
        %v5031 = vpop.xlane.xlu0 %5030
        %v5032 = vsel %vm557, %v4642, -inf
        %5033 = vmax.xlane.f32.xlu0 %v5032
        %v5034 = vpop.xlane.xlu0 %5033
        %v5035 = vsel %vm557, %v4643, -inf
        %5036 = vmax.xlane.f32.xlu0 %v5035
        %v5037 = vpop.xlane.xlu0 %5036
        %v5038 = vsel %vm557, %v4644, -inf
        %5039 = vmax.xlane.f32.xlu0 %v5038
        %v5040 = vpop.xlane.xlu0 %5039
        %v5041 = vsel %vm557, %v4645, -inf
        %5042 = vmax.xlane.f32.xlu0 %v5041
        %v5043 = vpop.xlane.xlu0 %5042
        %v5044 = vsel %vm557, %v4646, -inf
        %5045 = vmax.xlane.f32.xlu0 %v5044
        %v5046 = vpop.xlane.xlu0 %5045
        %v5047 = vsel %vm557, %v4647, -inf
        %5048 = vmax.xlane.f32.xlu0 %v5047
        %v5049 = vpop.xlane.xlu0 %5048
        %v5050 = vsel %vm557, %v4648, -inf
        %5051 = vmax.xlane.f32.xlu0 %v5050
        %v5052 = vpop.xlane.xlu0 %5051
        %v5053 = vsel %vm557, %v4649, -inf
        %5054 = vmax.xlane.f32.xlu0 %v5053
        %v5055 = vpop.xlane.xlu0 %5054
        %v5056 = vsel %vm557, %v4650, -inf
        %5057 = vmax.xlane.f32.xlu0 %v5056
        %v5058 = vpop.xlane.xlu0 %5057
        %v5059 = vsel %vm557, %v4651, -inf
        %5060 = vmax.xlane.f32.xlu0 %v5059
        %v5061 = vpop.xlane.xlu0 %5060
        %v5062 = vsel %vm557, %v4652, -inf
        %5063 = vmax.xlane.f32.xlu0 %v5062
        %v5064 = vpop.xlane.xlu0 %5063
        %v5065 = vsel %vm557, %v4653, -inf
        %5066 = vmax.xlane.f32.xlu0 %v5065
        %v5067 = vpop.xlane.xlu0 %5066
        %v5068 = vsel %vm557, %v4654, -inf
        %5069 = vmax.xlane.f32.xlu0 %v5068
        %v5070 = vpop.xlane.xlu0 %5069
        %v5071 = vsel %vm557, %v4655, -inf
        %5072 = vmax.xlane.f32.xlu0 %v5071
        %v5073 = vpop.xlane.xlu0 %5072
        %v5074 = vsel %vm557, %v4656, -inf
        %5075 = vmax.xlane.f32.xlu0 %v5074
        %v5076 = vpop.xlane.xlu0 %5075
        %v5077 = vsel %vm557, %v4657, -inf
        %5078 = vmax.xlane.f32.xlu0 %v5077
        %v5079 = vpop.xlane.xlu0 %5078
        %v5080 = vsel %vm557, %v4658, -inf
        %5081 = vmax.xlane.f32.xlu0 %v5080
        %v5082 = vpop.xlane.xlu0 %5081
        %v5083 = vsel %vm557, %v4659, -inf
        %5084 = vmax.xlane.f32.xlu0 %v5083
        %v5085 = vpop.xlane.xlu0 %5084
        %v5086 = vsel %vm557, %v4660, -inf
        %5087 = vmax.xlane.f32.xlu0 %v5086
        %v5088 = vpop.xlane.xlu0 %5087
        %v5089 = vsel %vm557, %v4661, -inf
        %5090 = vmax.xlane.f32.xlu0 %v5089
        %v5091 = vpop.xlane.xlu0 %5090
        %v5092 = vsel %vm557, %v4662, -inf
        %5093 = vmax.xlane.f32.xlu0 %v5092
        %v5094 = vpop.xlane.xlu0 %5093
        %v5095 = vsel %vm557, %v4663, -inf
        %5096 = vmax.xlane.f32.xlu0 %v5095
        %v5097 = vpop.xlane.xlu0 %5096
        %v5098 = vsel %vm557, %v4664, -inf
        %5099 = vmax.xlane.f32.xlu0 %v5098
        %v5100 = vpop.xlane.xlu0 %5099
        %v5101 = vsel %vm557, %v4665, -inf
        %5102 = vmax.xlane.f32.xlu0 %v5101
        %v5103 = vpop.xlane.xlu0 %5102
        %v5104 = vsel %vm557, %v4666, -inf
        %5105 = vmax.xlane.f32.xlu0 %v5104
        %v5106 = vpop.xlane.xlu0 %5105
        %v5107 = vsel %vm557, %v4667, -inf
        %5108 = vmax.xlane.f32.xlu0 %v5107
        %v5109 = vpop.xlane.xlu0 %5108
        %v5110 = vsel %vm557, %v4668, -inf
        %5111 = vmax.xlane.f32.xlu0 %v5110
        %v5112 = vpop.xlane.xlu0 %5111
        %v5113 = vsel %vm557, %v4669, -inf
        %5114 = vmax.xlane.f32.xlu0 %v5113
        %v5115 = vpop.xlane.xlu0 %5114
        %v5116 = vsel %vm557, %v4670, -inf
        %5117 = vmax.xlane.f32.xlu0 %v5116
        %v5118 = vpop.xlane.xlu0 %5117
        %v5119 = vsel %vm557, %v4671, -inf
        %5120 = vmax.xlane.f32.xlu0 %v5119
        %v5121 = vpop.xlane.xlu0 %5120
        %v5122 = vsel %vm557, %v4672, -inf
        %5123 = vmax.xlane.f32.xlu0 %v5122
        %v5124 = vpop.xlane.xlu0 %5123
        %v5125 = vsel %vm557, %v4673, -inf
        %5126 = vmax.xlane.f32.xlu0 %v5125
        %v5127 = vpop.xlane.xlu0 %5126
        %v5128 = vsel %vm557, %v4674, -inf
        %5129 = vmax.xlane.f32.xlu0 %v5128
        %v5130 = vpop.xlane.xlu0 %5129
        %v5131 = vsel %vm557, %v4675, -inf
        %5132 = vmax.xlane.f32.xlu0 %v5131
        %v5133 = vpop.xlane.xlu0 %5132
        %v5134 = vsel %vm557, %v4676, -inf
        %5135 = vmax.xlane.f32.xlu0 %v5134
        %v5136 = vpop.xlane.xlu0 %5135
        %v5137 = vsel %vm557, %v4677, -inf
        %5138 = vmax.xlane.f32.xlu0 %v5137
        %v5139 = vpop.xlane.xlu0 %5138
        %v5140 = vsel %vm557, %v4678, -inf
        %5141 = vmax.xlane.f32.xlu0 %v5140
        %v5142 = vpop.xlane.xlu0 %5141
        %v5143 = vsel %vm557, %v4679, -inf
        %5144 = vmax.xlane.f32.xlu0 %v5143
        %v5145 = vpop.xlane.xlu0 %5144
        %v5146 = vsel %vm557, %v4680, -inf
        %5147 = vmax.xlane.f32.xlu0 %v5146
        %v5148 = vpop.xlane.xlu0 %5147
        %v5149 = vsel %vm557, %v4681, -inf
        %5150 = vmax.xlane.f32.xlu0 %v5149
        %v5151 = vpop.xlane.xlu0 %5150
        %v5152 = vsel %vm557, %v4682, -inf
        %5153 = vmax.xlane.f32.xlu0 %v5152
        %v5154 = vpop.xlane.xlu0 %5153
        %v5155 = vsel %vm557, %v4683, -inf
        %5156 = vmax.xlane.f32.xlu0 %v5155
        %v5157 = vpop.xlane.xlu0 %5156
        %v5158 = vsel %vm557, %v4684, -inf
        %5159 = vmax.xlane.f32.xlu0 %v5158
        %v5160 = vpop.xlane.xlu0 %5159
        %v5161 = vsel %vm557, %v4685, -inf
        %5162 = vmax.xlane.f32.xlu0 %v5161
        %v5163 = vpop.xlane.xlu0 %5162
        %v5164 = vsel %vm557, %v4686, -inf
        %5165 = vmax.xlane.f32.xlu0 %v5164
        %v5166 = vpop.xlane.xlu0 %5165
        %v5167 = vsel %vm557, %v4687, -inf
        %5168 = vmax.xlane.f32.xlu0 %v5167
        %v5169 = vpop.xlane.xlu0 %5168
        %v5170 = vsel %vm557, %v4688, -inf
        %5171 = vmax.xlane.f32.xlu0 %v5170
        %v5172 = vpop.xlane.xlu0 %5171
        %v5173 = vsel %vm557, %v4689, -inf
        %5174 = vmax.xlane.f32.xlu0 %v5173
        %v5175 = vpop.xlane.xlu0 %5174
        %v5176 = vsel %vm557, %v4690, -inf
        %5177 = vmax.xlane.f32.xlu0 %v5176
        %v5178 = vpop.xlane.xlu0 %5177
        %v5179 = vsel %vm557, %v4691, -inf
        %5180 = vmax.xlane.f32.xlu0 %v5179
        %v5181 = vpop.xlane.xlu0 %5180
        %v5182 = vsel %vm557, %v4692, -inf
        %5183 = vmax.xlane.f32.xlu0 %v5182
        %v5184 = vpop.xlane.xlu0 %5183
        %v5185 = vsel %vm557, %v4693, -inf
        %5186 = vmax.xlane.f32.xlu0 %v5185
        %v5187 = vpop.xlane.xlu0 %5186
        %v5188 = vsel %vm557, %v4694, -inf
        %5189 = vmax.xlane.f32.xlu0 %v5188
        %v5190 = vpop.xlane.xlu0 %5189
        %v5191 = vsel %vm557, %v4695, -inf
        %5192 = vmax.xlane.f32.xlu0 %v5191
        %v5193 = vpop.xlane.xlu0 %5192
        %v5194 = vsel %vm557, %v4696, -inf
        %5195 = vmax.xlane.f32.xlu0 %v5194
        %v5196 = vpop.xlane.xlu0 %5195
        %v5197 = vsel %vm557, %v4697, -inf
        %5198 = vmax.xlane.f32.xlu0 %v5197
        %v5199 = vpop.xlane.xlu0 %5198
        %v5200 = vsel %vm557, %v4698, -inf
        %5201 = vmax.xlane.f32.xlu0 %v5200
        %v5202 = vpop.xlane.xlu0 %5201
        %v5203 = vsel %vm557, %v4699, -inf
        %5204 = vmax.xlane.f32.xlu0 %v5203
        %v5205 = vpop.xlane.xlu0 %5204
        %v5206 = vsel %vm557, %v4700, -inf
        %5207 = vmax.xlane.f32.xlu0 %v5206
        %v5208 = vpop.xlane.xlu0 %5207
        %v5209 = vsel %vm557, %v4701, -inf
        %5210 = vmax.xlane.f32.xlu0 %v5209
        %v5211 = vpop.xlane.xlu0 %5210
        %v5212 = vsel %vm557, %v4702, -inf
        %5213 = vmax.xlane.f32.xlu0 %v5212
        %v5214 = vpop.xlane.xlu0 %5213
        %v5215 = vsel %vm557, %v4703, -inf
        %5216 = vmax.xlane.f32.xlu0 %v5215
        %v5217 = vpop.xlane.xlu0 %5216
        %v5218 = vsel %vm557, %v4704, -inf
        %5219 = vmax.xlane.f32.xlu0 %v5218
        %v5220 = vpop.xlane.xlu0 %5219
        %v5221 = vsel %vm557, %v4705, -inf
        %5222 = vmax.xlane.f32.xlu0 %v5221
        %v5223 = vpop.xlane.xlu0 %5222
        %v5224 = vsel %vm557, %v4706, -inf
        %5225 = vmax.xlane.f32.xlu0 %v5224
        %v5226 = vpop.xlane.xlu0 %5225
        %v5227 = vsel %vm557, %v4707, -inf
        %5228 = vmax.xlane.f32.xlu0 %v5227
        %v5229 = vpop.xlane.xlu0 %5228
        %v5230 = vsel %vm557, %v4708, -inf
        %5231 = vmax.xlane.f32.xlu0 %v5230
        %v5232 = vpop.xlane.xlu0 %5231
        %v5233 = vsel %vm557, %v4709, -inf
        %5234 = vmax.xlane.f32.xlu0 %v5233
        %v5235 = vpop.xlane.xlu0 %5234
        %v5236 = vsel %vm557, %v4710, -inf
        %5237 = vmax.xlane.f32.xlu0 %v5236
        %v5238 = vpop.xlane.xlu0 %5237
        %v5239 = vsel %vm557, %v4711, -inf
        %5240 = vmax.xlane.f32.xlu0 %v5239
        %v5241 = vpop.xlane.xlu0 %5240
        %v5242 = vsel %vm557, %v4712, -inf
        %5243 = vmax.xlane.f32.xlu0 %v5242
        %v5244 = vpop.xlane.xlu0 %5243
        %v5245 = vsel %vm557, %v4713, -inf
        %5246 = vmax.xlane.f32.xlu0 %v5245
        %v5247 = vpop.xlane.xlu0 %5246
        %v5248 = vsel %vm557, %v4714, -inf
        %5249 = vmax.xlane.f32.xlu0 %v5248
        %v5250 = vpop.xlane.xlu0 %5249
        %v5251 = vsel %vm557, %v4715, -inf
        %5252 = vmax.xlane.f32.xlu0 %v5251
        %v5253 = vpop.xlane.xlu0 %5252
        %v5254 = vsel %vm557, %v4716, -inf
        %5255 = vmax.xlane.f32.xlu0 %v5254
        %v5256 = vpop.xlane.xlu0 %5255
        %v5257 = vsel %vm557, %v4717, -inf
        %5258 = vmax.xlane.f32.xlu0 %v5257
        %v5259 = vpop.xlane.xlu0 %5258
        %v5260 = vsel %vm557, %v4718, -inf
        %5261 = vmax.xlane.f32.xlu0 %v5260
        %v5262 = vpop.xlane.xlu0 %5261
        %v5263 = vsel %vm557, %v4719, -inf
        %5264 = vmax.xlane.f32.xlu0 %v5263
        %v5265 = vpop.xlane.xlu0 %5264
        %v5266 = vsel %vm557, %v4720, -inf
        %5267 = vmax.xlane.f32.xlu0 %v5266
        %v5268 = vpop.xlane.xlu0 %5267
        %v5269 = vsel %vm557, %v4721, -inf
        %5270 = vmax.xlane.f32.xlu0 %v5269
        %v5271 = vpop.xlane.xlu0 %5270
        %v5272 = vsel %vm557, %v4722, -inf
        %5273 = vmax.xlane.f32.xlu0 %v5272
        %v5274 = vpop.xlane.xlu0 %5273
        %v5275 = vsel %vm557, %v4723, -inf
        %5276 = vmax.xlane.f32.xlu0 %v5275
        %v5277 = vpop.xlane.xlu0 %5276
        %v5278 = vsel %vm557, %v4724, -inf
        %5279 = vmax.xlane.f32.xlu0 %v5278
        %v5280 = vpop.xlane.xlu0 %5279
        %v5281 = vsel %vm557, %v4725, -inf
        %5282 = vmax.xlane.f32.xlu0 %v5281
        %v5283 = vpop.xlane.xlu0 %5282
        %v5284 = vsel %vm557, %v4726, -inf
        %5285 = vmax.xlane.f32.xlu0 %v5284
        %v5286 = vpop.xlane.xlu0 %5285
        %v5287 = vsel %vm557, %v4727, -inf
        %5288 = vmax.xlane.f32.xlu0 %v5287
        %v5289 = vpop.xlane.xlu0 %5288
        %v5290 = vsel %vm557, %v4728, -inf
        %5291 = vmax.xlane.f32.xlu0 %v5290
        %v5292 = vpop.xlane.xlu0 %5291
        %v5293 = vsel %vm557, %v4729, -inf
        %5294 = vmax.xlane.f32.xlu0 %v5293
        %v5295 = vpop.xlane.xlu0 %5294
        %v5296 = vsel %vm557, %v4730, -inf
        %5297 = vmax.xlane.f32.xlu0 %v5296
        %v5298 = vpop.xlane.xlu0 %5297
        %v5299 = vsel %vm557, %v4731, -inf
        %5300 = vmax.xlane.f32.xlu0 %v5299
        %v5301 = vpop.xlane.xlu0 %5300
        %v5302 = vsel %vm557, %v4732, -inf
        %5303 = vmax.xlane.f32.xlu0 %v5302
        %v5304 = vpop.xlane.xlu0 %5303
        %v5305 = vsel %vm557, %v4733, -inf
        %5306 = vmax.xlane.f32.xlu0 %v5305
        %v5307 = vpop.xlane.xlu0 %5306
        %v5308 = vsel %vm557, %v4734, -inf
        %5309 = vmax.xlane.f32.xlu0 %v5308
        %v5310 = vpop.xlane.xlu0 %5309
        %v5311 = vsel %vm557, %v4735, -inf
        %5312 = vmax.xlane.f32.xlu0 %v5311
        %v5313 = vpop.xlane.xlu0 %5312
        %v5314 = vsel %vm557, %v4736, -inf
        %5315 = vmax.xlane.f32.xlu0 %v5314
        %v5316 = vpop.xlane.xlu0 %5315
        %v5317 = vsel %vm557, %v4737, -inf
        %5318 = vmax.xlane.f32.xlu0 %v5317
        %v5319 = vpop.xlane.xlu0 %5318
        %v5320 = vsel %vm557, %v4738, -inf
        %5321 = vmax.xlane.f32.xlu0 %v5320
        %v5322 = vpop.xlane.xlu0 %5321
        %v5323 = vsel %vm557, %v4739, -inf
        %5324 = vmax.xlane.f32.xlu0 %v5323
        %v5325 = vpop.xlane.xlu0 %5324
        %v5326 = vsel %vm557, %v4740, -inf
        %5327 = vmax.xlane.f32.xlu0 %v5326
        %v5328 = vpop.xlane.xlu0 %5327
        %v5329 = vsel %vm557, %v4741, -inf
        %5330 = vmax.xlane.f32.xlu0 %v5329
        %v5331 = vpop.xlane.xlu0 %5330
        %v5332 = vsel %vm557, %v4742, -inf
        %5333 = vmax.xlane.f32.xlu0 %v5332
        %v5334 = vpop.xlane.xlu0 %5333
        %v5335 = vsel %vm557, %v4743, -inf
        %5336 = vmax.xlane.f32.xlu0 %v5335
        %v5337 = vpop.xlane.xlu0 %5336
        %v5338 = vsel %vm557, %v4744, -inf
        %5339 = vmax.xlane.f32.xlu0 %v5338
        %v5340 = vpop.xlane.xlu0 %5339
        %v5341 = vsel %vm557, %v4745, -inf
        %5342 = vmax.xlane.f32.xlu0 %v5341
        %v5343 = vpop.xlane.xlu0 %5342
        %v5344 = vsel %vm557, %v4746, -inf
        %5345 = vmax.xlane.f32.xlu0 %v5344
        %v5346 = vpop.xlane.xlu0 %5345
        %v5347 = vsel %vm557, %v4747, -inf
        %5348 = vmax.xlane.f32.xlu0 %v5347
        %v5349 = vpop.xlane.xlu0 %5348
        %v5350 = vsel %vm557, %v4748, -inf
        %5351 = vmax.xlane.f32.xlu0 %v5350
        %v5352 = vpop.xlane.xlu0 %5351
        %v5353 = vsel %vm557, %v4749, -inf
        %5354 = vmax.xlane.f32.xlu0 %v5353
        %v5355 = vpop.xlane.xlu0 %5354
        %v5356 = vsel %vm557, %v4750, -inf
        %5357 = vmax.xlane.f32.xlu0 %v5356
        %v5358 = vpop.xlane.xlu0 %5357
        %v5359 = vsel %vm557, %v4751, -inf
        %5360 = vmax.xlane.f32.xlu0 %v5359
        %v5361 = vpop.xlane.xlu0 %5360
        %v5362 = vsel %vm557, %v4752, -inf
        %5363 = vmax.xlane.f32.xlu0 %v5362
        %v5364 = vpop.xlane.xlu0 %5363
        %v5365 = vsel %vm557, %v4753, -inf
        %5366 = vmax.xlane.f32.xlu0 %v5365
        %v5367 = vpop.xlane.xlu0 %5366
        %v5368 = vsel %vm557, %v4754, -inf
        %5369 = vmax.xlane.f32.xlu0 %v5368
        %v5370 = vpop.xlane.xlu0 %5369
        %v5371 = vsel %vm557, %v4755, -inf
        %5372 = vmax.xlane.f32.xlu0 %v5371
        %v5373 = vpop.xlane.xlu0 %5372
        %v5374 = vsel %vm557, %v4756, -inf
        %5375 = vmax.xlane.f32.xlu0 %v5374
        %v5376 = vpop.xlane.xlu0 %5375
        %v5377 = vsel %vm557, %v4757, -inf
        %5378 = vmax.xlane.f32.xlu0 %v5377
        %v5379 = vpop.xlane.xlu0 %5378
        %v5380 = vsel %vm557, %v4758, -inf
        %5381 = vmax.xlane.f32.xlu0 %v5380
        %v5382 = vpop.xlane.xlu0 %5381
        %v5383 = vsel %vm557, %v4759, -inf
        %5384 = vmax.xlane.f32.xlu0 %v5383
        %v5385 = vpop.xlane.xlu0 %5384
        %v5386 = vsel %vm557, %v4760, -inf
        %5387 = vmax.xlane.f32.xlu0 %v5386
        %v5388 = vpop.xlane.xlu0 %5387
        %v5389 = vsel %vm557, %v4761, -inf
        %5390 = vmax.xlane.f32.xlu0 %v5389
        %v5391 = vpop.xlane.xlu0 %5390
        %v5392 = vsel %vm557, %v4762, -inf
        %5393 = vmax.xlane.f32.xlu0 %v5392
        %v5394 = vpop.xlane.xlu0 %5393
        %v5395 = vsel %vm557, %v4763, -inf
        %5396 = vmax.xlane.f32.xlu0 %v5395
        %v5397 = vpop.xlane.xlu0 %5396
        %v5398 = vsel %vm557, %v4764, -inf
        %5399 = vmax.xlane.f32.xlu0 %v5398
        %v5400 = vpop.xlane.xlu0 %5399
        %v5401 = vsel %vm557, %v4765, -inf
        %5402 = vmax.xlane.f32.xlu0 %v5401
        %v5403 = vpop.xlane.xlu0 %5402
        %v5404 = vsel %vm557, %v4766, -inf
        %5405 = vmax.xlane.f32.xlu0 %v5404
        %v5406 = vpop.xlane.xlu0 %5405
        %v5407 = vsel %vm557, %v4767, -inf
        %5408 = vmax.xlane.f32.xlu0 %v5407
        %v5409 = vpop.xlane.xlu0 %5408
        %v5410 = vsel %vm557, %v4768, -inf
        %5411 = vmax.xlane.f32.xlu0 %v5410
        %v5412 = vpop.xlane.xlu0 %5411
        %v5413 = vsel %vm557, %v4769, -inf
        %5414 = vmax.xlane.f32.xlu0 %v5413
        %v5415 = vpop.xlane.xlu0 %5414
        %v5416 = vsel %vm557, %v4770, -inf
        %5417 = vmax.xlane.f32.xlu0 %v5416
        %v5418 = vpop.xlane.xlu0 %5417
        %v5419 = vsel %vm557, %v4771, -inf
        %5420 = vmax.xlane.f32.xlu0 %v5419
        %v5421 = vpop.xlane.xlu0 %5420
        %v5422 = vsel %vm557, %v4772, -inf
        %5423 = vmax.xlane.f32.xlu0 %v5422
        %v5424 = vpop.xlane.xlu0 %5423
        %v5425 = vsel %vm557, %v4773, -inf
        %5426 = vmax.xlane.f32.xlu0 %v5425
        %v5427 = vpop.xlane.xlu0 %5426
        %v5428 = vsel %vm557, %v4774, -inf
        %5429 = vmax.xlane.f32.xlu0 %v5428
        %v5430 = vpop.xlane.xlu0 %5429
        %v5431 = vsel %vm557, %v4775, -inf
        %5432 = vmax.xlane.f32.xlu0 %v5431
        %v5433 = vpop.xlane.xlu0 %5432
        %v5434 = vsel %vm557, %v4776, -inf
        %5435 = vmax.xlane.f32.xlu0 %v5434
        %v5436 = vpop.xlane.xlu0 %5435
        %v5437 = vsel %vm557, %v4777, -inf
        %5438 = vmax.xlane.f32.xlu0 %v5437
        %v5439 = vpop.xlane.xlu0 %5438
        %v5440 = vsel %vm557, %v4778, -inf
        %5441 = vmax.xlane.f32.xlu0 %v5440
        %v5442 = vpop.xlane.xlu0 %5441
        %v5443 = vsel %vm557, %v4779, -inf
        %5444 = vmax.xlane.f32.xlu0 %v5443
        %v5445 = vpop.xlane.xlu0 %5444
        %v5446 = vsel %vm557, %v4780, -inf
        %5447 = vmax.xlane.f32.xlu0 %v5446
        %v5448 = vpop.xlane.xlu0 %5447
        %v5449 = vsel %vm557, %v4781, -inf
        %5450 = vmax.xlane.f32.xlu0 %v5449
        %v5451 = vpop.xlane.xlu0 %5450
        %v5452 = vsel %vm557, %v4782, -inf
        %5453 = vmax.xlane.f32.xlu0 %v5452
        %v5454 = vpop.xlane.xlu0 %5453
        %v5455 = vsel %vm557, %v4783, -inf
        %5456 = vmax.xlane.f32.xlu0 %v5455
        %v5457 = vpop.xlane.xlu0 %5456
        %v5458 = vsel %vm557, %v4784, -inf
        %5459 = vmax.xlane.f32.xlu0 %v5458
        %v5460 = vpop.xlane.xlu0 %5459
        %v5461 = vsel %vm557, %v4785, -inf
        %5462 = vmax.xlane.f32.xlu0 %v5461
        %v5463 = vpop.xlane.xlu0 %5462
        %v5464 = vsel %vm557, %v4786, -inf
        %5465 = vmax.xlane.f32.xlu0 %v5464
        %v5466 = vpop.xlane.xlu0 %5465
        %v5467 = vsel %vm557, %v4787, -inf
        %5468 = vmax.xlane.f32.xlu0 %v5467
        %v5469 = vpop.xlane.xlu0 %5468
        %v5470 = vsel %vm557, %v4788, -inf
        %5471 = vmax.xlane.f32.xlu0 %v5470
        %v5472 = vpop.xlane.xlu0 %5471
        %v5473 = vsel %vm557, %v4789, -inf
        %5474 = vmax.xlane.f32.xlu0 %v5473
        %v5475 = vpop.xlane.xlu0 %5474
        %v5476 = vsel %vm557, %v4790, -inf
        %5477 = vmax.xlane.f32.xlu0 %v5476
        %v5478 = vpop.xlane.xlu0 %5477
        %v5479 = vsel %vm557, %v4791, -inf
        %5480 = vmax.xlane.f32.xlu0 %v5479
        %v5481 = vpop.xlane.xlu0 %5480
        %v5482 = vsel %vm557, %v4792, -inf
        %5483 = vmax.xlane.f32.xlu0 %v5482
        %v5484 = vpop.xlane.xlu0 %5483
        %v5485 = vsel %vm557, %v4793, -inf
        %5486 = vmax.xlane.f32.xlu0 %v5485
        %v5487 = vpop.xlane.xlu0 %5486
        %v5488 = vsel %vm557, %v4794, -inf
        %5489 = vmax.xlane.f32.xlu0 %v5488
        %v5490 = vpop.xlane.xlu0 %5489
        %v5491 = vsel %vm557, %v4795, -inf
        %5492 = vmax.xlane.f32.xlu0 %v5491
        %v5493 = vpop.xlane.xlu0 %5492
        %v5494 = vsel %vm557, %v4796, -inf
        %5495 = vmax.xlane.f32.xlu0 %v5494
        %v5496 = vpop.xlane.xlu0 %5495
        %v5497 = vsel %vm557, %v4797, -inf
        %5498 = vmax.xlane.f32.xlu0 %v5497
        %v5499 = vpop.xlane.xlu0 %5498
        %v5500 = vsel %vm557, %v4798, -inf
        %5501 = vmax.xlane.f32.xlu0 %v5500
        %v5502 = vpop.xlane.xlu0 %5501
        %v5503 = vsel %vm557, %v4799, -inf
        %5504 = vmax.xlane.f32.xlu0 %v5503
        %v5505 = vpop.xlane.xlu0 %5504
        %v5506 = vsel %vm557, %v4800, -inf
        %5507 = vmax.xlane.f32.xlu0 %v5506
        %v5508 = vpop.xlane.xlu0 %5507
        %v5509 = vsel %vm557, %v4801, -inf
        %5510 = vmax.xlane.f32.xlu0 %v5509
        %v5511 = vpop.xlane.xlu0 %5510
        %v5512 = vsel %vm557, %v4802, -inf
        %5513 = vmax.xlane.f32.xlu0 %v5512
        %v5514 = vpop.xlane.xlu0 %5513
        %v5515 = vsel %vm557, %v4803, -inf
        %5516 = vmax.xlane.f32.xlu0 %v5515
        %v5517 = vpop.xlane.xlu0 %5516
        %v5518 = vsel %vm557, %v4804, -inf
        %5519 = vmax.xlane.f32.xlu0 %v5518
        %v5520 = vpop.xlane.xlu0 %5519
        %v5521 = vsel %vm557, %v4805, -inf
        %5522 = vmax.xlane.f32.xlu0 %v5521
        %v5523 = vpop.xlane.xlu0 %5522
        %v5524 = vsel %vm557, %v4806, -inf
        %5525 = vmax.xlane.f32.xlu0 %v5524
        %v5526 = vpop.xlane.xlu0 %5525
        %v5527 = vsel %vm557, %v4807, -inf
        %5528 = vmax.xlane.f32.xlu0 %v5527
        %v5529 = vpop.xlane.xlu0 %5528
        %v5530 = vsel %vm557, %v4808, -inf
        %5531 = vmax.xlane.f32.xlu0 %v5530
        %v5532 = vpop.xlane.xlu0 %5531
        %v5533 = vsel %vm557, %v4809, -inf
        %5534 = vmax.xlane.f32.xlu0 %v5533
        %v5535 = vpop.xlane.xlu0 %5534
        %v5536 = vsel %vm557, %v4810, -inf
        %5537 = vmax.xlane.f32.xlu0 %v5536
        %v5538 = vpop.xlane.xlu0 %5537
        %v5539 = vsel %vm557, %v4811, -inf
        %5540 = vmax.xlane.f32.xlu0 %v5539
        %v5541 = vpop.xlane.xlu0 %5540
        %v5542 = vsel %vm557, %v4812, -inf
        %5543 = vmax.xlane.f32.xlu0 %v5542
        %v5544 = vpop.xlane.xlu0 %5543
        %v5545 = vsel %vm557, %v4813, -inf
        %5546 = vmax.xlane.f32.xlu0 %v5545
        %v5547 = vpop.xlane.xlu0 %5546
        %v5548 = vsel %vm557, %v4814, -inf
        %5549 = vmax.xlane.f32.xlu0 %v5548
        %v5550 = vpop.xlane.xlu0 %5549
        %v5551 = vsel %vm557, %v4815, -inf
        %5552 = vmax.xlane.f32.xlu0 %v5551
        %v5553 = vpop.xlane.xlu0 %5552
        %v5554 = vsel %vm557, %v4816, -inf
        %5555 = vmax.xlane.f32.xlu0 %v5554
        %v5556 = vpop.xlane.xlu0 %5555
        %v5557 = vsel %vm557, %v4817, -inf
        %5558 = vmax.xlane.f32.xlu0 %v5557
        %v5559 = vpop.xlane.xlu0 %5558
        %v5560 = vsel %vm557, %v4818, -inf
        %5561 = vmax.xlane.f32.xlu0 %v5560
        %v5562 = vpop.xlane.xlu0 %5561
        %v5563 = vsel %vm557, %v4819, -inf
        %5564 = vmax.xlane.f32.xlu0 %v5563
        %v5565 = vpop.xlane.xlu0 %5564
        %v5566 = vsel %vm557, %v4820, -inf
        %5567 = vmax.xlane.f32.xlu0 %v5566
        %v5568 = vpop.xlane.xlu0 %5567
        %v5569 = vsel %vm557, %v4821, -inf
        %5570 = vmax.xlane.f32.xlu0 %v5569
        %v5571 = vpop.xlane.xlu0 %5570
        %v5572 = vsel %vm557, %v4822, -inf
        %5573 = vmax.xlane.f32.xlu0 %v5572
        %v5574 = vpop.xlane.xlu0 %5573
        %v5575 = vsel %vm557, %v4823, -inf
        %5576 = vmax.xlane.f32.xlu0 %v5575
        %v5577 = vpop.xlane.xlu0 %5576
        %v5578 = vsel %vm557, %v4824, -inf
        %5579 = vmax.xlane.f32.xlu0 %v5578
        %v5580 = vpop.xlane.xlu0 %5579
        %v5581 = vsel %vm557, %v4825, -inf
        %5582 = vmax.xlane.f32.xlu0 %v5581
        %v5583 = vpop.xlane.xlu0 %5582
        %v5584 = vsel %vm557, %v4826, -inf
        %5585 = vmax.xlane.f32.xlu0 %v5584
        %v5586 = vpop.xlane.xlu0 %5585
        %v5587 = vsel %vm557, %v4827, -inf
        %5588 = vmax.xlane.f32.xlu0 %v5587
        %v5589 = vpop.xlane.xlu0 %5588
        %v5590 = vsel %vm557, %v4828, -inf
        %5591 = vmax.xlane.f32.xlu0 %v5590
        %v5592 = vpop.xlane.xlu0 %5591
        %v5593 = vsel %vm557, %v4829, -inf
        %5594 = vmax.xlane.f32.xlu0 %v5593
        %v5595 = vpop.xlane.xlu0 %5594
        %v5596 = vsel %vm557, %v4830, -inf
        %5597 = vmax.xlane.f32.xlu0 %v5596
        %v5598 = vpop.xlane.xlu0 %5597
        %v5599 = vsub.f32 %v4575, %v4833
        %v5600 = vsub.f32 %v4576, %v4836
        %v5601 = vsub.f32 %v4577, %v4839
        %v5602 = vsub.f32 %v4578, %v4842
        %v5603 = vsub.f32 %v4579, %v4845
        %v5604 = vsub.f32 %v4580, %v4848
        %v5605 = vsub.f32 %v4581, %v4851
        %v5606 = vsub.f32 %v4582, %v4854
        %v5607 = vsub.f32 %v4583, %v4857
        %v5608 = vsub.f32 %v4584, %v4860
        %v5609 = vsub.f32 %v4585, %v4863
        %v5610 = vsub.f32 %v4586, %v4866
        %v5611 = vsub.f32 %v4587, %v4869
        %v5612 = vsub.f32 %v4588, %v4872
        %v5613 = vsub.f32 %v4589, %v4875
        %v5614 = vsub.f32 %v4590, %v4878
        %v5615 = vsub.f32 %v4591, %v4881
        %v5616 = vsub.f32 %v4592, %v4884
        %v5617 = vsub.f32 %v4593, %v4887
        %v5618 = vsub.f32 %v4594, %v4890
        %v5619 = vsub.f32 %v4595, %v4893
        %v5620 = vsub.f32 %v4596, %v4896
        %v5621 = vsub.f32 %v4597, %v4899
        %v5622 = vsub.f32 %v4598, %v4902
        %v5623 = vsub.f32 %v4599, %v4905
        %v5624 = vsub.f32 %v4600, %v4908
        %v5625 = vsub.f32 %v4601, %v4911
        %v5626 = vsub.f32 %v4602, %v4914
        %v5627 = vsub.f32 %v4603, %v4917
        %v5628 = vsub.f32 %v4604, %v4920
        %v5629 = vsub.f32 %v4605, %v4923
        %v5630 = vsub.f32 %v4606, %v4926
        %v5631 = vsub.f32 %v4607, %v4929
        %v5632 = vsub.f32 %v4608, %v4932
        %v5633 = vsub.f32 %v4609, %v4935
        %v5634 = vsub.f32 %v4610, %v4938
        %v5635 = vsub.f32 %v4611, %v4941
        %v5636 = vsub.f32 %v4612, %v4944
        %v5637 = vsub.f32 %v4613, %v4947
        %v5638 = vsub.f32 %v4614, %v4950
        %v5639 = vsub.f32 %v4615, %v4953
        %v5640 = vsub.f32 %v4616, %v4956
        %v5641 = vsub.f32 %v4617, %v4959
        %v5642 = vsub.f32 %v4618, %v4962
        %v5643 = vsub.f32 %v4619, %v4965
        %v5644 = vsub.f32 %v4620, %v4968
        %v5645 = vsub.f32 %v4621, %v4971
        %v5646 = vsub.f32 %v4622, %v4974
        %v5647 = vsub.f32 %v4623, %v4977
        %v5648 = vsub.f32 %v4624, %v4980
        %v5649 = vsub.f32 %v4625, %v4983
        %v5650 = vsub.f32 %v4626, %v4986
        %v5651 = vsub.f32 %v4627, %v4989
        %v5652 = vsub.f32 %v4628, %v4992
        %v5653 = vsub.f32 %v4629, %v4995
        %v5654 = vsub.f32 %v4630, %v4998
        %v5655 = vsub.f32 %v4631, %v5001
        %v5656 = vsub.f32 %v4632, %v5004
        %v5657 = vsub.f32 %v4633, %v5007
        %v5658 = vsub.f32 %v4634, %v5010
        %v5659 = vsub.f32 %v4635, %v5013
        %v5660 = vsub.f32 %v4636, %v5016
        %v5661 = vsub.f32 %v4637, %v5019
        %v5662 = vsub.f32 %v4638, %v5022
        %v5663 = vsub.f32 %v4639, %v5025
        %v5664 = vsub.f32 %v4640, %v5028
        %v5665 = vsub.f32 %v4641, %v5031
        %v5666 = vsub.f32 %v4642, %v5034
        %v5667 = vsub.f32 %v4643, %v5037
        %v5668 = vsub.f32 %v4644, %v5040
        %v5669 = vsub.f32 %v4645, %v5043
        %v5670 = vsub.f32 %v4646, %v5046
        %v5671 = vsub.f32 %v4647, %v5049
        %v5672 = vsub.f32 %v4648, %v5052
        %v5673 = vsub.f32 %v4649, %v5055
        %v5674 = vsub.f32 %v4650, %v5058
        %v5675 = vsub.f32 %v4651, %v5061
        %v5676 = vsub.f32 %v4652, %v5064
        %v5677 = vsub.f32 %v4653, %v5067
        %v5678 = vsub.f32 %v4654, %v5070
        %v5679 = vsub.f32 %v4655, %v5073
        %v5680 = vsub.f32 %v4656, %v5076
        %v5681 = vsub.f32 %v4657, %v5079
        %v5682 = vsub.f32 %v4658, %v5082
        %v5683 = vsub.f32 %v4659, %v5085
        %v5684 = vsub.f32 %v4660, %v5088
        %v5685 = vsub.f32 %v4661, %v5091
        %v5686 = vsub.f32 %v4662, %v5094
        %v5687 = vsub.f32 %v4663, %v5097
        %v5688 = vsub.f32 %v4664, %v5100
        %v5689 = vsub.f32 %v4665, %v5103
        %v5690 = vsub.f32 %v4666, %v5106
        %v5691 = vsub.f32 %v4667, %v5109
        %v5692 = vsub.f32 %v4668, %v5112
        %v5693 = vsub.f32 %v4669, %v5115
        %v5694 = vsub.f32 %v4670, %v5118
        %v5695 = vsub.f32 %v4671, %v5121
        %v5696 = vsub.f32 %v4672, %v5124
        %v5697 = vsub.f32 %v4673, %v5127
        %v5698 = vsub.f32 %v4674, %v5130
        %v5699 = vsub.f32 %v4675, %v5133
        %v5700 = vsub.f32 %v4676, %v5136
        %v5701 = vsub.f32 %v4677, %v5139
        %v5702 = vsub.f32 %v4678, %v5142
        %v5703 = vsub.f32 %v4679, %v5145
        %v5704 = vsub.f32 %v4680, %v5148
        %v5705 = vsub.f32 %v4681, %v5151
        %v5706 = vsub.f32 %v4682, %v5154
        %v5707 = vsub.f32 %v4683, %v5157
        %v5708 = vsub.f32 %v4684, %v5160
        %v5709 = vsub.f32 %v4685, %v5163
        %v5710 = vsub.f32 %v4686, %v5166
        %v5711 = vsub.f32 %v4687, %v5169
        %v5712 = vsub.f32 %v4688, %v5172
        %v5713 = vsub.f32 %v4689, %v5175
        %v5714 = vsub.f32 %v4690, %v5178
        %v5715 = vsub.f32 %v4691, %v5181
        %v5716 = vsub.f32 %v4692, %v5184
        %v5717 = vsub.f32 %v4693, %v5187
        %v5718 = vsub.f32 %v4694, %v5190
        %v5719 = vsub.f32 %v4695, %v5193
        %v5720 = vsub.f32 %v4696, %v5196
        %v5721 = vsub.f32 %v4697, %v5199
        %v5722 = vsub.f32 %v4698, %v5202
        %v5723 = vsub.f32 %v4699, %v5205
        %v5724 = vsub.f32 %v4700, %v5208
        %v5725 = vsub.f32 %v4701, %v5211
        %v5726 = vsub.f32 %v4702, %v5214
        %v5727 = vsub.f32 %v4703, %v5217
        %v5728 = vsub.f32 %v4704, %v5220
        %v5729 = vsub.f32 %v4705, %v5223
        %v5730 = vsub.f32 %v4706, %v5226
        %v5731 = vsub.f32 %v4707, %v5229
        %v5732 = vsub.f32 %v4708, %v5232
        %v5733 = vsub.f32 %v4709, %v5235
        %v5734 = vsub.f32 %v4710, %v5238
        %v5735 = vsub.f32 %v4711, %v5241
        %v5736 = vsub.f32 %v4712, %v5244
        %v5737 = vsub.f32 %v4713, %v5247
        %v5738 = vsub.f32 %v4714, %v5250
        %v5739 = vsub.f32 %v4715, %v5253
        %v5740 = vsub.f32 %v4716, %v5256
        %v5741 = vsub.f32 %v4717, %v5259
        %v5742 = vsub.f32 %v4718, %v5262
        %v5743 = vsub.f32 %v4719, %v5265
        %v5744 = vsub.f32 %v4720, %v5268
        %v5745 = vsub.f32 %v4721, %v5271
        %v5746 = vsub.f32 %v4722, %v5274
        %v5747 = vsub.f32 %v4723, %v5277
        %v5748 = vsub.f32 %v4724, %v5280
        %v5749 = vsub.f32 %v4725, %v5283
        %v5750 = vsub.f32 %v4726, %v5286
        %v5751 = vsub.f32 %v4727, %v5289
        %v5752 = vsub.f32 %v4728, %v5292
        %v5753 = vsub.f32 %v4729, %v5295
        %v5754 = vsub.f32 %v4730, %v5298
        %v5755 = vsub.f32 %v4731, %v5301
        %v5756 = vsub.f32 %v4732, %v5304
        %v5757 = vsub.f32 %v4733, %v5307
        %v5758 = vsub.f32 %v4734, %v5310
        %v5759 = vsub.f32 %v4735, %v5313
        %v5760 = vsub.f32 %v4736, %v5316
        %v5761 = vsub.f32 %v4737, %v5319
        %v5762 = vsub.f32 %v4738, %v5322
        %v5763 = vsub.f32 %v4739, %v5325
        %v5764 = vsub.f32 %v4740, %v5328
        %v5765 = vsub.f32 %v4741, %v5331
        %v5766 = vsub.f32 %v4742, %v5334
        %v5767 = vsub.f32 %v4743, %v5337
        %v5768 = vsub.f32 %v4744, %v5340
        %v5769 = vsub.f32 %v4745, %v5343
        %v5770 = vsub.f32 %v4746, %v5346
        %v5771 = vsub.f32 %v4747, %v5349
        %v5772 = vsub.f32 %v4748, %v5352
        %v5773 = vsub.f32 %v4749, %v5355
        %v5774 = vsub.f32 %v4750, %v5358
        %v5775 = vsub.f32 %v4751, %v5361
        %v5776 = vsub.f32 %v4752, %v5364
        %v5777 = vsub.f32 %v4753, %v5367
        %v5778 = vsub.f32 %v4754, %v5370
        %v5779 = vsub.f32 %v4755, %v5373
        %v5780 = vsub.f32 %v4756, %v5376
        %v5781 = vsub.f32 %v4757, %v5379
        %v5782 = vsub.f32 %v4758, %v5382
        %v5783 = vsub.f32 %v4759, %v5385
        %v5784 = vsub.f32 %v4760, %v5388
        %v5785 = vsub.f32 %v4761, %v5391
        %v5786 = vsub.f32 %v4762, %v5394
        %v5787 = vsub.f32 %v4763, %v5397
        %v5788 = vsub.f32 %v4764, %v5400
        %v5789 = vsub.f32 %v4765, %v5403
        %v5790 = vsub.f32 %v4766, %v5406
        %v5791 = vsub.f32 %v4767, %v5409
        %v5792 = vsub.f32 %v4768, %v5412
        %v5793 = vsub.f32 %v4769, %v5415
        %v5794 = vsub.f32 %v4770, %v5418
        %v5795 = vsub.f32 %v4771, %v5421
        %v5796 = vsub.f32 %v4772, %v5424
        %v5797 = vsub.f32 %v4773, %v5427
        %v5798 = vsub.f32 %v4774, %v5430
        %v5799 = vsub.f32 %v4775, %v5433
        %v5800 = vsub.f32 %v4776, %v5436
        %v5801 = vsub.f32 %v4777, %v5439
        %v5802 = vsub.f32 %v4778, %v5442
        %v5803 = vsub.f32 %v4779, %v5445
        %v5804 = vsub.f32 %v4780, %v5448
        %v5805 = vsub.f32 %v4781, %v5451
        %v5806 = vsub.f32 %v4782, %v5454
        %v5807 = vsub.f32 %v4783, %v5457
        %v5808 = vsub.f32 %v4784, %v5460
        %v5809 = vsub.f32 %v4785, %v5463
        %v5810 = vsub.f32 %v4786, %v5466
        %v5811 = vsub.f32 %v4787, %v5469
        %v5812 = vsub.f32 %v4788, %v5472
        %v5813 = vsub.f32 %v4789, %v5475
        %v5814 = vsub.f32 %v4790, %v5478
        %v5815 = vsub.f32 %v4791, %v5481
        %v5816 = vsub.f32 %v4792, %v5484
        %v5817 = vsub.f32 %v4793, %v5487
        %v5818 = vsub.f32 %v4794, %v5490
        %v5819 = vsub.f32 %v4795, %v5493
        %v5820 = vsub.f32 %v4796, %v5496
        %v5821 = vsub.f32 %v4797, %v5499
        %v5822 = vsub.f32 %v4798, %v5502
        %v5823 = vsub.f32 %v4799, %v5505
        %v5824 = vsub.f32 %v4800, %v5508
        %v5825 = vsub.f32 %v4801, %v5511
        %v5826 = vsub.f32 %v4802, %v5514
        %v5827 = vsub.f32 %v4803, %v5517
        %v5828 = vsub.f32 %v4804, %v5520
        %v5829 = vsub.f32 %v4805, %v5523
        %v5830 = vsub.f32 %v4806, %v5526
        %v5831 = vsub.f32 %v4807, %v5529
        %v5832 = vsub.f32 %v4808, %v5532
        %v5833 = vsub.f32 %v4809, %v5535
        %v5834 = vsub.f32 %v4810, %v5538
        %v5835 = vsub.f32 %v4811, %v5541
        %v5836 = vsub.f32 %v4812, %v5544
        %v5837 = vsub.f32 %v4813, %v5547
        %v5838 = vsub.f32 %v4814, %v5550
        %v5839 = vsub.f32 %v4815, %v5553
        %v5840 = vsub.f32 %v4816, %v5556
        %v5841 = vsub.f32 %v4817, %v5559
        %v5842 = vsub.f32 %v4818, %v5562
        %v5843 = vsub.f32 %v4819, %v5565
        %v5844 = vsub.f32 %v4820, %v5568
        %v5845 = vsub.f32 %v4821, %v5571
        %v5846 = vsub.f32 %v4822, %v5574
        %v5847 = vsub.f32 %v4823, %v5577
        %v5848 = vsub.f32 %v4824, %v5580
        %v5849 = vsub.f32 %v4825, %v5583
        %v5850 = vsub.f32 %v4826, %v5586
        %v5851 = vsub.f32 %v4827, %v5589
        %v5852 = vsub.f32 %v4828, %v5592
        %v5853 = vsub.f32 %v4829, %v5595
        %v5854 = vsub.f32 %v4830, %v5598
        %v5855 = vmul.f32 %v5599, 1.442695
        %v5856 = vpow.pop %v5855
        %v5857 = vmul.f32 %v5600, 1.442695
        %v5858 = vpow.pop %v5857
        %v5859 = vmul.f32 %v5601, 1.442695
        %v5860 = vpow.pop %v5859
        %v5861 = vmul.f32 %v5602, 1.442695
        %v5862 = vpow.pop %v5861
        %v5863 = vmul.f32 %v5603, 1.442695
        %v5864 = vpow.pop %v5863
        %v5865 = vmul.f32 %v5604, 1.442695
        %v5866 = vpow.pop %v5865
        %v5867 = vmul.f32 %v5605, 1.442695
        %v5868 = vpow.pop %v5867
        %v5869 = vmul.f32 %v5606, 1.442695
        %v5870 = vpow.pop %v5869
        %v5871 = vmul.f32 %v5607, 1.442695
        %v5872 = vpow.pop %v5871
        %v5873 = vmul.f32 %v5608, 1.442695
        %v5874 = vpow.pop %v5873
        %v5875 = vmul.f32 %v5609, 1.442695
        %v5876 = vpow.pop %v5875
        %v5877 = vmul.f32 %v5610, 1.442695
        %v5878 = vpow.pop %v5877
        %v5879 = vmul.f32 %v5611, 1.442695
        %v5880 = vpow.pop %v5879
        %v5881 = vmul.f32 %v5612, 1.442695
        %v5882 = vpow.pop %v5881
        %v5883 = vmul.f32 %v5613, 1.442695
        %v5884 = vpow.pop %v5883
        %v5885 = vmul.f32 %v5614, 1.442695
        %v5886 = vpow.pop %v5885
        %v5887 = vmul.f32 %v5615, 1.442695
        %v5888 = vpow.pop %v5887
        %v5889 = vmul.f32 %v5616, 1.442695
        %v5890 = vpow.pop %v5889
        %v5891 = vmul.f32 %v5617, 1.442695
        %v5892 = vpow.pop %v5891
        %v5893 = vmul.f32 %v5618, 1.442695
        %v5894 = vpow.pop %v5893
        %v5895 = vmul.f32 %v5619, 1.442695
        %v5896 = vpow.pop %v5895
        %v5897 = vmul.f32 %v5620, 1.442695
        %v5898 = vpow.pop %v5897
        %v5899 = vmul.f32 %v5621, 1.442695
        %v5900 = vpow.pop %v5899
        %v5901 = vmul.f32 %v5622, 1.442695
        %v5902 = vpow.pop %v5901
        %v5903 = vmul.f32 %v5623, 1.442695
        %v5904 = vpow.pop %v5903
        %v5905 = vmul.f32 %v5624, 1.442695
        %v5906 = vpow.pop %v5905
        %v5907 = vmul.f32 %v5625, 1.442695
        %v5908 = vpow.pop %v5907
        %v5909 = vmul.f32 %v5626, 1.442695
        %v5910 = vpow.pop %v5909
        %v5911 = vmul.f32 %v5627, 1.442695
        %v5912 = vpow.pop %v5911
        %v5913 = vmul.f32 %v5628, 1.442695
        %v5914 = vpow.pop %v5913
        %v5915 = vmul.f32 %v5629, 1.442695
        %v5916 = vpow.pop %v5915
        %v5917 = vmul.f32 %v5630, 1.442695
        %v5918 = vpow.pop %v5917
        %v5919 = vmul.f32 %v5631, 1.442695
        %v5920 = vpow.pop %v5919
        %v5921 = vmul.f32 %v5632, 1.442695
        %v5922 = vpow.pop %v5921
        %v5923 = vmul.f32 %v5633, 1.442695
        %v5924 = vpow.pop %v5923
        %v5925 = vmul.f32 %v5634, 1.442695
        %v5926 = vpow.pop %v5925
        %v5927 = vmul.f32 %v5635, 1.442695
        %v5928 = vpow.pop %v5927
        %v5929 = vmul.f32 %v5636, 1.442695
        %v5930 = vpow.pop %v5929
        %v5931 = vmul.f32 %v5637, 1.442695
        %v5932 = vpow.pop %v5931
        %v5933 = vmul.f32 %v5638, 1.442695
        %v5934 = vpow.pop %v5933
        %v5935 = vmul.f32 %v5639, 1.442695
        %v5936 = vpow.pop %v5935
        %v5937 = vmul.f32 %v5640, 1.442695
        %v5938 = vpow.pop %v5937
        %v5939 = vmul.f32 %v5641, 1.442695
        %v5940 = vpow.pop %v5939
        %v5941 = vmul.f32 %v5642, 1.442695
        %v5942 = vpow.pop %v5941
        %v5943 = vmul.f32 %v5643, 1.442695
        %v5944 = vpow.pop %v5943
        %v5945 = vmul.f32 %v5644, 1.442695
        %v5946 = vpow.pop %v5945
        %v5947 = vmul.f32 %v5645, 1.442695
        %v5948 = vpow.pop %v5947
        %v5949 = vmul.f32 %v5646, 1.442695
        %v5950 = vpow.pop %v5949
        %v5951 = vmul.f32 %v5647, 1.442695
        %v5952 = vpow.pop %v5951
        %v5953 = vmul.f32 %v5648, 1.442695
        %v5954 = vpow.pop %v5953
        %v5955 = vmul.f32 %v5649, 1.442695
        %v5956 = vpow.pop %v5955
        %v5957 = vmul.f32 %v5650, 1.442695
        %v5958 = vpow.pop %v5957
        %v5959 = vmul.f32 %v5651, 1.442695
        %v5960 = vpow.pop %v5959
        %v5961 = vmul.f32 %v5652, 1.442695
        %v5962 = vpow.pop %v5961
        %v5963 = vmul.f32 %v5653, 1.442695
        %v5964 = vpow.pop %v5963
        %v5965 = vmul.f32 %v5654, 1.442695
        %v5966 = vpow.pop %v5965
        %v5967 = vmul.f32 %v5655, 1.442695
        %v5968 = vpow.pop %v5967
        %v5969 = vmul.f32 %v5656, 1.442695
        %v5970 = vpow.pop %v5969
        %v5971 = vmul.f32 %v5657, 1.442695
        %v5972 = vpow.pop %v5971
        %v5973 = vmul.f32 %v5658, 1.442695
        %v5974 = vpow.pop %v5973
        %v5975 = vmul.f32 %v5659, 1.442695
        %v5976 = vpow.pop %v5975
        %v5977 = vmul.f32 %v5660, 1.442695
        %v5978 = vpow.pop %v5977
        %v5979 = vmul.f32 %v5661, 1.442695
        %v5980 = vpow.pop %v5979
        %v5981 = vmul.f32 %v5662, 1.442695
        %v5982 = vpow.pop %v5981
        %v5983 = vmul.f32 %v5663, 1.442695
        %v5984 = vpow.pop %v5983
        %v5985 = vmul.f32 %v5664, 1.442695
        %v5986 = vpow.pop %v5985
        %v5987 = vmul.f32 %v5665, 1.442695
        %v5988 = vpow.pop %v5987
        %v5989 = vmul.f32 %v5666, 1.442695
        %v5990 = vpow.pop %v5989
        %v5991 = vmul.f32 %v5667, 1.442695
        %v5992 = vpow.pop %v5991
        %v5993 = vmul.f32 %v5668, 1.442695
        %v5994 = vpow.pop %v5993
        %v5995 = vmul.f32 %v5669, 1.442695
        %v5996 = vpow.pop %v5995
        %v5997 = vmul.f32 %v5670, 1.442695
        %v5998 = vpow.pop %v5997
        %v5999 = vmul.f32 %v5671, 1.442695
        %v6000 = vpow.pop %v5999
        %v6001 = vmul.f32 %v5672, 1.442695
        %v6002 = vpow.pop %v6001
        %v6003 = vmul.f32 %v5673, 1.442695
        %v6004 = vpow.pop %v6003
        %v6005 = vmul.f32 %v5674, 1.442695
        %v6006 = vpow.pop %v6005
        %v6007 = vmul.f32 %v5675, 1.442695
        %v6008 = vpow.pop %v6007
        %v6009 = vmul.f32 %v5676, 1.442695
        %v6010 = vpow.pop %v6009
        %v6011 = vmul.f32 %v5677, 1.442695
        %v6012 = vpow.pop %v6011
        %v6013 = vmul.f32 %v5678, 1.442695
        %v6014 = vpow.pop %v6013
        %v6015 = vmul.f32 %v5679, 1.442695
        %v6016 = vpow.pop %v6015
        %v6017 = vmul.f32 %v5680, 1.442695
        %v6018 = vpow.pop %v6017
        %v6019 = vmul.f32 %v5681, 1.442695
        %v6020 = vpow.pop %v6019
        %v6021 = vmul.f32 %v5682, 1.442695
        %v6022 = vpow.pop %v6021
        %v6023 = vmul.f32 %v5683, 1.442695
        %v6024 = vpow.pop %v6023
        %v6025 = vmul.f32 %v5684, 1.442695
        %v6026 = vpow.pop %v6025
        %v6027 = vmul.f32 %v5685, 1.442695
        %v6028 = vpow.pop %v6027
        %v6029 = vmul.f32 %v5686, 1.442695
        %v6030 = vpow.pop %v6029
        %v6031 = vmul.f32 %v5687, 1.442695
        %v6032 = vpow.pop %v6031
        %v6033 = vmul.f32 %v5688, 1.442695
        %v6034 = vpow.pop %v6033
        %v6035 = vmul.f32 %v5689, 1.442695
        %v6036 = vpow.pop %v6035
        %v6037 = vmul.f32 %v5690, 1.442695
        %v6038 = vpow.pop %v6037
        %v6039 = vmul.f32 %v5691, 1.442695
        %v6040 = vpow.pop %v6039
        %v6041 = vmul.f32 %v5692, 1.442695
        %v6042 = vpow.pop %v6041
        %v6043 = vmul.f32 %v5693, 1.442695
        %v6044 = vpow.pop %v6043
        %v6045 = vmul.f32 %v5694, 1.442695
        %v6046 = vpow.pop %v6045
        %v6047 = vmul.f32 %v5695, 1.442695
        %v6048 = vpow.pop %v6047
        %v6049 = vmul.f32 %v5696, 1.442695
        %v6050 = vpow.pop %v6049
        %v6051 = vmul.f32 %v5697, 1.442695
        %v6052 = vpow.pop %v6051
        %v6053 = vmul.f32 %v5698, 1.442695
        %v6054 = vpow.pop %v6053
        %v6055 = vmul.f32 %v5699, 1.442695
        %v6056 = vpow.pop %v6055
        %v6057 = vmul.f32 %v5700, 1.442695
        %v6058 = vpow.pop %v6057
        %v6059 = vmul.f32 %v5701, 1.442695
        %v6060 = vpow.pop %v6059
        %v6061 = vmul.f32 %v5702, 1.442695
        %v6062 = vpow.pop %v6061
        %v6063 = vmul.f32 %v5703, 1.442695
        %v6064 = vpow.pop %v6063
        %v6065 = vmul.f32 %v5704, 1.442695
        %v6066 = vpow.pop %v6065
        %v6067 = vmul.f32 %v5705, 1.442695
        %v6068 = vpow.pop %v6067
        %v6069 = vmul.f32 %v5706, 1.442695
        %v6070 = vpow.pop %v6069
        %v6071 = vmul.f32 %v5707, 1.442695
        %v6072 = vpow.pop %v6071
        %v6073 = vmul.f32 %v5708, 1.442695
        %v6074 = vpow.pop %v6073
        %v6075 = vmul.f32 %v5709, 1.442695
        %v6076 = vpow.pop %v6075
        %v6077 = vmul.f32 %v5710, 1.442695
        %v6078 = vpow.pop %v6077
        %v6079 = vmul.f32 %v5711, 1.442695
        %v6080 = vpow.pop %v6079
        %v6081 = vmul.f32 %v5712, 1.442695
        %v6082 = vpow.pop %v6081
        %v6083 = vmul.f32 %v5713, 1.442695
        %v6084 = vpow.pop %v6083
        %v6085 = vmul.f32 %v5714, 1.442695
        %v6086 = vpow.pop %v6085
        %v6087 = vmul.f32 %v5715, 1.442695
        %v6088 = vpow.pop %v6087
        %v6089 = vmul.f32 %v5716, 1.442695
        %v6090 = vpow.pop %v6089
        %v6091 = vmul.f32 %v5717, 1.442695
        %v6092 = vpow.pop %v6091
        %v6093 = vmul.f32 %v5718, 1.442695
        %v6094 = vpow.pop %v6093
        %v6095 = vmul.f32 %v5719, 1.442695
        %v6096 = vpow.pop %v6095
        %v6097 = vmul.f32 %v5720, 1.442695
        %v6098 = vpow.pop %v6097
        %v6099 = vmul.f32 %v5721, 1.442695
        %v6100 = vpow.pop %v6099
        %v6101 = vmul.f32 %v5722, 1.442695
        %v6102 = vpow.pop %v6101
        %v6103 = vmul.f32 %v5723, 1.442695
        %v6104 = vpow.pop %v6103
        %v6105 = vmul.f32 %v5724, 1.442695
        %v6106 = vpow.pop %v6105
        %v6107 = vmul.f32 %v5725, 1.442695
        %v6108 = vpow.pop %v6107
        %v6109 = vmul.f32 %v5726, 1.442695
        %v6110 = vpow.pop %v6109
        %v6111 = vmul.f32 %v5727, 1.442695
        %v6112 = vpow.pop %v6111
        %v6113 = vmul.f32 %v5728, 1.442695
        %v6114 = vpow.pop %v6113
        %v6115 = vmul.f32 %v5729, 1.442695
        %v6116 = vpow.pop %v6115
        %v6117 = vmul.f32 %v5730, 1.442695
        %v6118 = vpow.pop %v6117
        %v6119 = vmul.f32 %v5731, 1.442695
        %v6120 = vpow.pop %v6119
        %v6121 = vmul.f32 %v5732, 1.442695
        %v6122 = vpow.pop %v6121
        %v6123 = vmul.f32 %v5733, 1.442695
        %v6124 = vpow.pop %v6123
        %v6125 = vmul.f32 %v5734, 1.442695
        %v6126 = vpow.pop %v6125
        %v6127 = vmul.f32 %v5735, 1.442695
        %v6128 = vpow.pop %v6127
        %v6129 = vmul.f32 %v5736, 1.442695
        %v6130 = vpow.pop %v6129
        %v6131 = vmul.f32 %v5737, 1.442695
        %v6132 = vpow.pop %v6131
        %v6133 = vmul.f32 %v5738, 1.442695
        %v6134 = vpow.pop %v6133
        %v6135 = vmul.f32 %v5739, 1.442695
        %v6136 = vpow.pop %v6135
        %v6137 = vmul.f32 %v5740, 1.442695
        %v6138 = vpow.pop %v6137
        %v6139 = vmul.f32 %v5741, 1.442695
        %v6140 = vpow.pop %v6139
        %v6141 = vmul.f32 %v5742, 1.442695
        %v6142 = vpow.pop %v6141
        %v6143 = vmul.f32 %v5743, 1.442695
        %v6144 = vpow.pop %v6143
        %v6145 = vmul.f32 %v5744, 1.442695
        %v6146 = vpow.pop %v6145
        %v6147 = vmul.f32 %v5745, 1.442695
        %v6148 = vpow.pop %v6147
        %v6149 = vmul.f32 %v5746, 1.442695
        %v6150 = vpow.pop %v6149
        %v6151 = vmul.f32 %v5747, 1.442695
        %v6152 = vpow.pop %v6151
        %v6153 = vmul.f32 %v5748, 1.442695
        %v6154 = vpow.pop %v6153
        %v6155 = vmul.f32 %v5749, 1.442695
        %v6156 = vpow.pop %v6155
        %v6157 = vmul.f32 %v5750, 1.442695
        %v6158 = vpow.pop %v6157
        %v6159 = vmul.f32 %v5751, 1.442695
        %v6160 = vpow.pop %v6159
        %v6161 = vmul.f32 %v5752, 1.442695
        %v6162 = vpow.pop %v6161
        %v6163 = vmul.f32 %v5753, 1.442695
        %v6164 = vpow.pop %v6163
        %v6165 = vmul.f32 %v5754, 1.442695
        %v6166 = vpow.pop %v6165
        %v6167 = vmul.f32 %v5755, 1.442695
        %v6168 = vpow.pop %v6167
        %v6169 = vmul.f32 %v5756, 1.442695
        %v6170 = vpow.pop %v6169
        %v6171 = vmul.f32 %v5757, 1.442695
        %v6172 = vpow.pop %v6171
        %v6173 = vmul.f32 %v5758, 1.442695
        %v6174 = vpow.pop %v6173
        %v6175 = vmul.f32 %v5759, 1.442695
        %v6176 = vpow.pop %v6175
        %v6177 = vmul.f32 %v5760, 1.442695
        %v6178 = vpow.pop %v6177
        %v6179 = vmul.f32 %v5761, 1.442695
        %v6180 = vpow.pop %v6179
        %v6181 = vmul.f32 %v5762, 1.442695
        %v6182 = vpow.pop %v6181
        %v6183 = vmul.f32 %v5763, 1.442695
        %v6184 = vpow.pop %v6183
        %v6185 = vmul.f32 %v5764, 1.442695
        %v6186 = vpow.pop %v6185
        %v6187 = vmul.f32 %v5765, 1.442695
        %v6188 = vpow.pop %v6187
        %v6189 = vmul.f32 %v5766, 1.442695
        %v6190 = vpow.pop %v6189
        %v6191 = vmul.f32 %v5767, 1.442695
        %v6192 = vpow.pop %v6191
        %v6193 = vmul.f32 %v5768, 1.442695
        %v6194 = vpow.pop %v6193
        %v6195 = vmul.f32 %v5769, 1.442695
        %v6196 = vpow.pop %v6195
        %v6197 = vmul.f32 %v5770, 1.442695
        %v6198 = vpow.pop %v6197
        %v6199 = vmul.f32 %v5771, 1.442695
        %v6200 = vpow.pop %v6199
        %v6201 = vmul.f32 %v5772, 1.442695
        %v6202 = vpow.pop %v6201
        %v6203 = vmul.f32 %v5773, 1.442695
        %v6204 = vpow.pop %v6203
        %v6205 = vmul.f32 %v5774, 1.442695
        %v6206 = vpow.pop %v6205
        %v6207 = vmul.f32 %v5775, 1.442695
        %v6208 = vpow.pop %v6207
        %v6209 = vmul.f32 %v5776, 1.442695
        %v6210 = vpow.pop %v6209
        %v6211 = vmul.f32 %v5777, 1.442695
        %v6212 = vpow.pop %v6211
        %v6213 = vmul.f32 %v5778, 1.442695
        %v6214 = vpow.pop %v6213
        %v6215 = vmul.f32 %v5779, 1.442695
        %v6216 = vpow.pop %v6215
        %v6217 = vmul.f32 %v5780, 1.442695
        %v6218 = vpow.pop %v6217
        %v6219 = vmul.f32 %v5781, 1.442695
        %v6220 = vpow.pop %v6219
        %v6221 = vmul.f32 %v5782, 1.442695
        %v6222 = vpow.pop %v6221
        %v6223 = vmul.f32 %v5783, 1.442695
        %v6224 = vpow.pop %v6223
        %v6225 = vmul.f32 %v5784, 1.442695
        %v6226 = vpow.pop %v6225
        %v6227 = vmul.f32 %v5785, 1.442695
        %v6228 = vpow.pop %v6227
        %v6229 = vmul.f32 %v5786, 1.442695
        %v6230 = vpow.pop %v6229
        %v6231 = vmul.f32 %v5787, 1.442695
        %v6232 = vpow.pop %v6231
        %v6233 = vmul.f32 %v5788, 1.442695
        %v6234 = vpow.pop %v6233
        %v6235 = vmul.f32 %v5789, 1.442695
        %v6236 = vpow.pop %v6235
        %v6237 = vmul.f32 %v5790, 1.442695
        %v6238 = vpow.pop %v6237
        %v6239 = vmul.f32 %v5791, 1.442695
        %v6240 = vpow.pop %v6239
        %v6241 = vmul.f32 %v5792, 1.442695
        %v6242 = vpow.pop %v6241
        %v6243 = vmul.f32 %v5793, 1.442695
        %v6244 = vpow.pop %v6243
        %v6245 = vmul.f32 %v5794, 1.442695
        %v6246 = vpow.pop %v6245
        %v6247 = vmul.f32 %v5795, 1.442695
        %v6248 = vpow.pop %v6247
        %v6249 = vmul.f32 %v5796, 1.442695
        %v6250 = vpow.pop %v6249
        %v6251 = vmul.f32 %v5797, 1.442695
        %v6252 = vpow.pop %v6251
        %v6253 = vmul.f32 %v5798, 1.442695
        %v6254 = vpow.pop %v6253
        %v6255 = vmul.f32 %v5799, 1.442695
        %v6256 = vpow.pop %v6255
        %v6257 = vmul.f32 %v5800, 1.442695
        %v6258 = vpow.pop %v6257
        %v6259 = vmul.f32 %v5801, 1.442695
        %v6260 = vpow.pop %v6259
        %v6261 = vmul.f32 %v5802, 1.442695
        %v6262 = vpow.pop %v6261
        %v6263 = vmul.f32 %v5803, 1.442695
        %v6264 = vpow.pop %v6263
        %v6265 = vmul.f32 %v5804, 1.442695
        %v6266 = vpow.pop %v6265
        %v6267 = vmul.f32 %v5805, 1.442695
        %v6268 = vpow.pop %v6267
        %v6269 = vmul.f32 %v5806, 1.442695
        %v6270 = vpow.pop %v6269
        %v6271 = vmul.f32 %v5807, 1.442695
        %v6272 = vpow.pop %v6271
        %v6273 = vmul.f32 %v5808, 1.442695
        %v6274 = vpow.pop %v6273
        %v6275 = vmul.f32 %v5809, 1.442695
        %v6276 = vpow.pop %v6275
        %v6277 = vmul.f32 %v5810, 1.442695
        %v6278 = vpow.pop %v6277
        %v6279 = vmul.f32 %v5811, 1.442695
        %v6280 = vpow.pop %v6279
        %v6281 = vmul.f32 %v5812, 1.442695
        %v6282 = vpow.pop %v6281
        %v6283 = vmul.f32 %v5813, 1.442695
        %v6284 = vpow.pop %v6283
        %v6285 = vmul.f32 %v5814, 1.442695
        %v6286 = vpow.pop %v6285
        %v6287 = vmul.f32 %v5815, 1.442695
        %v6288 = vpow.pop %v6287
        %v6289 = vmul.f32 %v5816, 1.442695
        %v6290 = vpow.pop %v6289
        %v6291 = vmul.f32 %v5817, 1.442695
        %v6292 = vpow.pop %v6291
        %v6293 = vmul.f32 %v5818, 1.442695
        %v6294 = vpow.pop %v6293
        %v6295 = vmul.f32 %v5819, 1.442695
        %v6296 = vpow.pop %v6295
        %v6297 = vmul.f32 %v5820, 1.442695
        %v6298 = vpow.pop %v6297
        %v6299 = vmul.f32 %v5821, 1.442695
        %v6300 = vpow.pop %v6299
        %v6301 = vmul.f32 %v5822, 1.442695
        %v6302 = vpow.pop %v6301
        %v6303 = vmul.f32 %v5823, 1.442695
        %v6304 = vpow.pop %v6303
        %v6305 = vmul.f32 %v5824, 1.442695
        %v6306 = vpow.pop %v6305
        %v6307 = vmul.f32 %v5825, 1.442695
        %v6308 = vpow.pop %v6307
        %v6309 = vmul.f32 %v5826, 1.442695
        %v6310 = vpow.pop %v6309
        %v6311 = vmul.f32 %v5827, 1.442695
        %v6312 = vpow.pop %v6311
        %v6313 = vmul.f32 %v5828, 1.442695
        %v6314 = vpow.pop %v6313
        %v6315 = vmul.f32 %v5829, 1.442695
        %v6316 = vpow.pop %v6315
        %v6317 = vmul.f32 %v5830, 1.442695
        %v6318 = vpow.pop %v6317
        %v6319 = vmul.f32 %v5831, 1.442695
        %v6320 = vpow.pop %v6319
        %v6321 = vmul.f32 %v5832, 1.442695
        %v6322 = vpow.pop %v6321
        %v6323 = vmul.f32 %v5833, 1.442695
        %v6324 = vpow.pop %v6323
        %v6325 = vmul.f32 %v5834, 1.442695
        %v6326 = vpow.pop %v6325
        %v6327 = vmul.f32 %v5835, 1.442695
        %v6328 = vpow.pop %v6327
        %v6329 = vmul.f32 %v5836, 1.442695
        %v6330 = vpow.pop %v6329
        %v6331 = vmul.f32 %v5837, 1.442695
        %v6332 = vpow.pop %v6331
        %v6333 = vmul.f32 %v5838, 1.442695
        %v6334 = vpow.pop %v6333
        %v6335 = vmul.f32 %v5839, 1.442695
        %v6336 = vpow.pop %v6335
        %v6337 = vmul.f32 %v5840, 1.442695
        %v6338 = vpow.pop %v6337
        %v6339 = vmul.f32 %v5841, 1.442695
        %v6340 = vpow.pop %v6339
        %v6341 = vmul.f32 %v5842, 1.442695
        %v6342 = vpow.pop %v6341
        %v6343 = vmul.f32 %v5843, 1.442695
        %v6344 = vpow.pop %v6343
        %v6345 = vmul.f32 %v5844, 1.442695
        %v6346 = vpow.pop %v6345
        %v6347 = vmul.f32 %v5845, 1.442695
        %v6348 = vpow.pop %v6347
        %v6349 = vmul.f32 %v5846, 1.442695
        %v6350 = vpow.pop %v6349
        %v6351 = vmul.f32 %v5847, 1.442695
        %v6352 = vpow.pop %v6351
        %v6353 = vmul.f32 %v5848, 1.442695
        %v6354 = vpow.pop %v6353
        %v6355 = vmul.f32 %v5849, 1.442695
        %v6356 = vpow.pop %v6355
        %v6357 = vmul.f32 %v5850, 1.442695
        %v6358 = vpow.pop %v6357
        %v6359 = vmul.f32 %v5851, 1.442695
        %v6360 = vpow.pop %v6359
        %v6361 = vmul.f32 %v5852, 1.442695
        %v6362 = vpow.pop %v6361
        %v6363 = vmul.f32 %v5853, 1.442695
        %v6364 = vpow.pop %v6363
        %v6365 = vmul.f32 %v5854, 1.442695
        %v6366 = vpow.pop %v6365
        %v6367 = vsel %vm557, %v5856, 0.0
        %6368 = vadd.xlane.f32.xlu0 %v6367
        %v6369 = vpop.xlane.xlu0 %6368
        %v6370 = vsel %vm557, %v5858, 0.0
        %6371 = vadd.xlane.f32.xlu0 %v6370
        %v6372 = vpop.xlane.xlu0 %6371
        %v6373 = vsel %vm557, %v5860, 0.0
        %6374 = vadd.xlane.f32.xlu0 %v6373
        %v6375 = vpop.xlane.xlu0 %6374
        %v6376 = vsel %vm557, %v5862, 0.0
        %6377 = vadd.xlane.f32.xlu0 %v6376
        %v6378 = vpop.xlane.xlu0 %6377
        %v6379 = vsel %vm557, %v5864, 0.0
        %6380 = vadd.xlane.f32.xlu0 %v6379
        %v6381 = vpop.xlane.xlu0 %6380
        %v6382 = vsel %vm557, %v5866, 0.0
        %6383 = vadd.xlane.f32.xlu0 %v6382
        %v6384 = vpop.xlane.xlu0 %6383
        %v6385 = vsel %vm557, %v5868, 0.0
        %6386 = vadd.xlane.f32.xlu0 %v6385
        %v6387 = vpop.xlane.xlu0 %6386
        %v6388 = vsel %vm557, %v5870, 0.0
        %6389 = vadd.xlane.f32.xlu0 %v6388
        %v6390 = vpop.xlane.xlu0 %6389
        %v6391 = vsel %vm557, %v5872, 0.0
        %6392 = vadd.xlane.f32.xlu0 %v6391
        %v6393 = vpop.xlane.xlu0 %6392
        %v6394 = vsel %vm557, %v5874, 0.0
        %6395 = vadd.xlane.f32.xlu0 %v6394
        %v6396 = vpop.xlane.xlu0 %6395
        %v6397 = vsel %vm557, %v5876, 0.0
        %6398 = vadd.xlane.f32.xlu0 %v6397
        %v6399 = vpop.xlane.xlu0 %6398
        %v6400 = vsel %vm557, %v5878, 0.0
        %6401 = vadd.xlane.f32.xlu0 %v6400
        %v6402 = vpop.xlane.xlu0 %6401
        %v6403 = vsel %vm557, %v5880, 0.0
        %6404 = vadd.xlane.f32.xlu0 %v6403
        %v6405 = vpop.xlane.xlu0 %6404
        %v6406 = vsel %vm557, %v5882, 0.0
        %6407 = vadd.xlane.f32.xlu0 %v6406
        %v6408 = vpop.xlane.xlu0 %6407
        %v6409 = vsel %vm557, %v5884, 0.0
        %6410 = vadd.xlane.f32.xlu0 %v6409
        %v6411 = vpop.xlane.xlu0 %6410
        %v6412 = vsel %vm557, %v5886, 0.0
        %6413 = vadd.xlane.f32.xlu0 %v6412
        %v6414 = vpop.xlane.xlu0 %6413
        %v6415 = vsel %vm557, %v5888, 0.0
        %6416 = vadd.xlane.f32.xlu0 %v6415
        %v6417 = vpop.xlane.xlu0 %6416
        %v6418 = vsel %vm557, %v5890, 0.0
        %6419 = vadd.xlane.f32.xlu0 %v6418
        %v6420 = vpop.xlane.xlu0 %6419
        %v6421 = vsel %vm557, %v5892, 0.0
        %6422 = vadd.xlane.f32.xlu0 %v6421
        %v6423 = vpop.xlane.xlu0 %6422
        %v6424 = vsel %vm557, %v5894, 0.0
        %6425 = vadd.xlane.f32.xlu0 %v6424
        %v6426 = vpop.xlane.xlu0 %6425
        %v6427 = vsel %vm557, %v5896, 0.0
        %6428 = vadd.xlane.f32.xlu0 %v6427
        %v6429 = vpop.xlane.xlu0 %6428
        %v6430 = vsel %vm557, %v5898, 0.0
        %6431 = vadd.xlane.f32.xlu0 %v6430
        %v6432 = vpop.xlane.xlu0 %6431
        %v6433 = vsel %vm557, %v5900, 0.0
        %6434 = vadd.xlane.f32.xlu0 %v6433
        %v6435 = vpop.xlane.xlu0 %6434
        %v6436 = vsel %vm557, %v5902, 0.0
        %6437 = vadd.xlane.f32.xlu0 %v6436
        %v6438 = vpop.xlane.xlu0 %6437
        %v6439 = vsel %vm557, %v5904, 0.0
        %6440 = vadd.xlane.f32.xlu0 %v6439
        %v6441 = vpop.xlane.xlu0 %6440
        %v6442 = vsel %vm557, %v5906, 0.0
        %6443 = vadd.xlane.f32.xlu0 %v6442
        %v6444 = vpop.xlane.xlu0 %6443
        %v6445 = vsel %vm557, %v5908, 0.0
        %6446 = vadd.xlane.f32.xlu0 %v6445
        %v6447 = vpop.xlane.xlu0 %6446
        %v6448 = vsel %vm557, %v5910, 0.0
        %6449 = vadd.xlane.f32.xlu0 %v6448
        %v6450 = vpop.xlane.xlu0 %6449
        %v6451 = vsel %vm557, %v5912, 0.0
        %6452 = vadd.xlane.f32.xlu0 %v6451
        %v6453 = vpop.xlane.xlu0 %6452
        %v6454 = vsel %vm557, %v5914, 0.0
        %6455 = vadd.xlane.f32.xlu0 %v6454
        %v6456 = vpop.xlane.xlu0 %6455
        %v6457 = vsel %vm557, %v5916, 0.0
        %6458 = vadd.xlane.f32.xlu0 %v6457
        %v6459 = vpop.xlane.xlu0 %6458
        %v6460 = vsel %vm557, %v5918, 0.0
        %6461 = vadd.xlane.f32.xlu0 %v6460
        %v6462 = vpop.xlane.xlu0 %6461
        %v6463 = vsel %vm557, %v5920, 0.0
        %6464 = vadd.xlane.f32.xlu0 %v6463
        %v6465 = vpop.xlane.xlu0 %6464
        %v6466 = vsel %vm557, %v5922, 0.0
        %6467 = vadd.xlane.f32.xlu0 %v6466
        %v6468 = vpop.xlane.xlu0 %6467
        %v6469 = vsel %vm557, %v5924, 0.0
        %6470 = vadd.xlane.f32.xlu0 %v6469
        %v6471 = vpop.xlane.xlu0 %6470
        %v6472 = vsel %vm557, %v5926, 0.0
        %6473 = vadd.xlane.f32.xlu0 %v6472
        %v6474 = vpop.xlane.xlu0 %6473
        %v6475 = vsel %vm557, %v5928, 0.0
        %6476 = vadd.xlane.f32.xlu0 %v6475
        %v6477 = vpop.xlane.xlu0 %6476
        %v6478 = vsel %vm557, %v5930, 0.0
        %6479 = vadd.xlane.f32.xlu0 %v6478
        %v6480 = vpop.xlane.xlu0 %6479
        %v6481 = vsel %vm557, %v5932, 0.0
        %6482 = vadd.xlane.f32.xlu0 %v6481
        %v6483 = vpop.xlane.xlu0 %6482
        %v6484 = vsel %vm557, %v5934, 0.0
        %6485 = vadd.xlane.f32.xlu0 %v6484
        %v6486 = vpop.xlane.xlu0 %6485
        %v6487 = vsel %vm557, %v5936, 0.0
        %6488 = vadd.xlane.f32.xlu0 %v6487
        %v6489 = vpop.xlane.xlu0 %6488
        %v6490 = vsel %vm557, %v5938, 0.0
        %6491 = vadd.xlane.f32.xlu0 %v6490
        %v6492 = vpop.xlane.xlu0 %6491
        %v6493 = vsel %vm557, %v5940, 0.0
        %6494 = vadd.xlane.f32.xlu0 %v6493
        %v6495 = vpop.xlane.xlu0 %6494
        %v6496 = vsel %vm557, %v5942, 0.0
        %6497 = vadd.xlane.f32.xlu0 %v6496
        %v6498 = vpop.xlane.xlu0 %6497
        %v6499 = vsel %vm557, %v5944, 0.0
        %6500 = vadd.xlane.f32.xlu0 %v6499
        %v6501 = vpop.xlane.xlu0 %6500
        %v6502 = vsel %vm557, %v5946, 0.0
        %6503 = vadd.xlane.f32.xlu0 %v6502
        %v6504 = vpop.xlane.xlu0 %6503
        %v6505 = vsel %vm557, %v5948, 0.0
        %6506 = vadd.xlane.f32.xlu0 %v6505
        %v6507 = vpop.xlane.xlu0 %6506
        %v6508 = vsel %vm557, %v5950, 0.0
        %6509 = vadd.xlane.f32.xlu0 %v6508
        %v6510 = vpop.xlane.xlu0 %6509
        %v6511 = vsel %vm557, %v5952, 0.0
        %6512 = vadd.xlane.f32.xlu0 %v6511
        %v6513 = vpop.xlane.xlu0 %6512
        %v6514 = vsel %vm557, %v5954, 0.0
        %6515 = vadd.xlane.f32.xlu0 %v6514
        %v6516 = vpop.xlane.xlu0 %6515
        %v6517 = vsel %vm557, %v5956, 0.0
        %6518 = vadd.xlane.f32.xlu0 %v6517
        %v6519 = vpop.xlane.xlu0 %6518
        %v6520 = vsel %vm557, %v5958, 0.0
        %6521 = vadd.xlane.f32.xlu0 %v6520
        %v6522 = vpop.xlane.xlu0 %6521
        %v6523 = vsel %vm557, %v5960, 0.0
        %6524 = vadd.xlane.f32.xlu0 %v6523
        %v6525 = vpop.xlane.xlu0 %6524
        %v6526 = vsel %vm557, %v5962, 0.0
        %6527 = vadd.xlane.f32.xlu0 %v6526
        %v6528 = vpop.xlane.xlu0 %6527
        %v6529 = vsel %vm557, %v5964, 0.0
        %6530 = vadd.xlane.f32.xlu0 %v6529
        %v6531 = vpop.xlane.xlu0 %6530
        %v6532 = vsel %vm557, %v5966, 0.0
        %6533 = vadd.xlane.f32.xlu0 %v6532
        %v6534 = vpop.xlane.xlu0 %6533
        %v6535 = vsel %vm557, %v5968, 0.0
        %6536 = vadd.xlane.f32.xlu0 %v6535
        %v6537 = vpop.xlane.xlu0 %6536
        %v6538 = vsel %vm557, %v5970, 0.0
        %6539 = vadd.xlane.f32.xlu0 %v6538
        %v6540 = vpop.xlane.xlu0 %6539
        %v6541 = vsel %vm557, %v5972, 0.0
        %6542 = vadd.xlane.f32.xlu0 %v6541
        %v6543 = vpop.xlane.xlu0 %6542
        %v6544 = vsel %vm557, %v5974, 0.0
        %6545 = vadd.xlane.f32.xlu0 %v6544
        %v6546 = vpop.xlane.xlu0 %6545
        %v6547 = vsel %vm557, %v5976, 0.0
        %6548 = vadd.xlane.f32.xlu0 %v6547
        %v6549 = vpop.xlane.xlu0 %6548
        %v6550 = vsel %vm557, %v5978, 0.0
        %6551 = vadd.xlane.f32.xlu0 %v6550
        %v6552 = vpop.xlane.xlu0 %6551
        %v6553 = vsel %vm557, %v5980, 0.0
        %6554 = vadd.xlane.f32.xlu0 %v6553
        %v6555 = vpop.xlane.xlu0 %6554
        %v6556 = vsel %vm557, %v5982, 0.0
        %6557 = vadd.xlane.f32.xlu0 %v6556
        %v6558 = vpop.xlane.xlu0 %6557
        %v6559 = vsel %vm557, %v5984, 0.0
        %6560 = vadd.xlane.f32.xlu0 %v6559
        %v6561 = vpop.xlane.xlu0 %6560
        %v6562 = vsel %vm557, %v5986, 0.0
        %6563 = vadd.xlane.f32.xlu0 %v6562
        %v6564 = vpop.xlane.xlu0 %6563
        %v6565 = vsel %vm557, %v5988, 0.0
        %6566 = vadd.xlane.f32.xlu0 %v6565
        %v6567 = vpop.xlane.xlu0 %6566
        %v6568 = vsel %vm557, %v5990, 0.0
        %6569 = vadd.xlane.f32.xlu0 %v6568
        %v6570 = vpop.xlane.xlu0 %6569
        %v6571 = vsel %vm557, %v5992, 0.0
        %6572 = vadd.xlane.f32.xlu0 %v6571
        %v6573 = vpop.xlane.xlu0 %6572
        %v6574 = vsel %vm557, %v5994, 0.0
        %6575 = vadd.xlane.f32.xlu0 %v6574
        %v6576 = vpop.xlane.xlu0 %6575
        %v6577 = vsel %vm557, %v5996, 0.0
        %6578 = vadd.xlane.f32.xlu0 %v6577
        %v6579 = vpop.xlane.xlu0 %6578
        %v6580 = vsel %vm557, %v5998, 0.0
        %6581 = vadd.xlane.f32.xlu0 %v6580
        %v6582 = vpop.xlane.xlu0 %6581
        %v6583 = vsel %vm557, %v6000, 0.0
        %6584 = vadd.xlane.f32.xlu0 %v6583
        %v6585 = vpop.xlane.xlu0 %6584
        %v6586 = vsel %vm557, %v6002, 0.0
        %6587 = vadd.xlane.f32.xlu0 %v6586
        %v6588 = vpop.xlane.xlu0 %6587
        %v6589 = vsel %vm557, %v6004, 0.0
        %6590 = vadd.xlane.f32.xlu0 %v6589
        %v6591 = vpop.xlane.xlu0 %6590
        %v6592 = vsel %vm557, %v6006, 0.0
        %6593 = vadd.xlane.f32.xlu0 %v6592
        %v6594 = vpop.xlane.xlu0 %6593
        %v6595 = vsel %vm557, %v6008, 0.0
        %6596 = vadd.xlane.f32.xlu0 %v6595
        %v6597 = vpop.xlane.xlu0 %6596
        %v6598 = vsel %vm557, %v6010, 0.0
        %6599 = vadd.xlane.f32.xlu0 %v6598
        %v6600 = vpop.xlane.xlu0 %6599
        %v6601 = vsel %vm557, %v6012, 0.0
        %6602 = vadd.xlane.f32.xlu0 %v6601
        %v6603 = vpop.xlane.xlu0 %6602
        %v6604 = vsel %vm557, %v6014, 0.0
        %6605 = vadd.xlane.f32.xlu0 %v6604
        %v6606 = vpop.xlane.xlu0 %6605
        %v6607 = vsel %vm557, %v6016, 0.0
        %6608 = vadd.xlane.f32.xlu0 %v6607
        %v6609 = vpop.xlane.xlu0 %6608
        %v6610 = vsel %vm557, %v6018, 0.0
        %6611 = vadd.xlane.f32.xlu0 %v6610
        %v6612 = vpop.xlane.xlu0 %6611
        %v6613 = vsel %vm557, %v6020, 0.0
        %6614 = vadd.xlane.f32.xlu0 %v6613
        %v6615 = vpop.xlane.xlu0 %6614
        %v6616 = vsel %vm557, %v6022, 0.0
        %6617 = vadd.xlane.f32.xlu0 %v6616
        %v6618 = vpop.xlane.xlu0 %6617
        %v6619 = vsel %vm557, %v6024, 0.0
        %6620 = vadd.xlane.f32.xlu0 %v6619
        %v6621 = vpop.xlane.xlu0 %6620
        %v6622 = vsel %vm557, %v6026, 0.0
        %6623 = vadd.xlane.f32.xlu0 %v6622
        %v6624 = vpop.xlane.xlu0 %6623
        %v6625 = vsel %vm557, %v6028, 0.0
        %6626 = vadd.xlane.f32.xlu0 %v6625
        %v6627 = vpop.xlane.xlu0 %6626
        %v6628 = vsel %vm557, %v6030, 0.0
        %6629 = vadd.xlane.f32.xlu0 %v6628
        %v6630 = vpop.xlane.xlu0 %6629
        %v6631 = vsel %vm557, %v6032, 0.0
        %6632 = vadd.xlane.f32.xlu0 %v6631
        %v6633 = vpop.xlane.xlu0 %6632
        %v6634 = vsel %vm557, %v6034, 0.0
        %6635 = vadd.xlane.f32.xlu0 %v6634
        %v6636 = vpop.xlane.xlu0 %6635
        %v6637 = vsel %vm557, %v6036, 0.0
        %6638 = vadd.xlane.f32.xlu0 %v6637
        %v6639 = vpop.xlane.xlu0 %6638
        %v6640 = vsel %vm557, %v6038, 0.0
        %6641 = vadd.xlane.f32.xlu0 %v6640
        %v6642 = vpop.xlane.xlu0 %6641
        %v6643 = vsel %vm557, %v6040, 0.0
        %6644 = vadd.xlane.f32.xlu0 %v6643
        %v6645 = vpop.xlane.xlu0 %6644
        %v6646 = vsel %vm557, %v6042, 0.0
        %6647 = vadd.xlane.f32.xlu0 %v6646
        %v6648 = vpop.xlane.xlu0 %6647
        %v6649 = vsel %vm557, %v6044, 0.0
        %6650 = vadd.xlane.f32.xlu0 %v6649
        %v6651 = vpop.xlane.xlu0 %6650
        %v6652 = vsel %vm557, %v6046, 0.0
        %6653 = vadd.xlane.f32.xlu0 %v6652
        %v6654 = vpop.xlane.xlu0 %6653
        %v6655 = vsel %vm557, %v6048, 0.0
        %6656 = vadd.xlane.f32.xlu0 %v6655
        %v6657 = vpop.xlane.xlu0 %6656
        %v6658 = vsel %vm557, %v6050, 0.0
        %6659 = vadd.xlane.f32.xlu0 %v6658
        %v6660 = vpop.xlane.xlu0 %6659
        %v6661 = vsel %vm557, %v6052, 0.0
        %6662 = vadd.xlane.f32.xlu0 %v6661
        %v6663 = vpop.xlane.xlu0 %6662
        %v6664 = vsel %vm557, %v6054, 0.0
        %6665 = vadd.xlane.f32.xlu0 %v6664
        %v6666 = vpop.xlane.xlu0 %6665
        %v6667 = vsel %vm557, %v6056, 0.0
        %6668 = vadd.xlane.f32.xlu0 %v6667
        %v6669 = vpop.xlane.xlu0 %6668
        %v6670 = vsel %vm557, %v6058, 0.0
        %6671 = vadd.xlane.f32.xlu0 %v6670
        %v6672 = vpop.xlane.xlu0 %6671
        %v6673 = vsel %vm557, %v6060, 0.0
        %6674 = vadd.xlane.f32.xlu0 %v6673
        %v6675 = vpop.xlane.xlu0 %6674
        %v6676 = vsel %vm557, %v6062, 0.0
        %6677 = vadd.xlane.f32.xlu0 %v6676
        %v6678 = vpop.xlane.xlu0 %6677
        %v6679 = vsel %vm557, %v6064, 0.0
        %6680 = vadd.xlane.f32.xlu0 %v6679
        %v6681 = vpop.xlane.xlu0 %6680
        %v6682 = vsel %vm557, %v6066, 0.0
        %6683 = vadd.xlane.f32.xlu0 %v6682
        %v6684 = vpop.xlane.xlu0 %6683
        %v6685 = vsel %vm557, %v6068, 0.0
        %6686 = vadd.xlane.f32.xlu0 %v6685
        %v6687 = vpop.xlane.xlu0 %6686
        %v6688 = vsel %vm557, %v6070, 0.0
        %6689 = vadd.xlane.f32.xlu0 %v6688
        %v6690 = vpop.xlane.xlu0 %6689
        %v6691 = vsel %vm557, %v6072, 0.0
        %6692 = vadd.xlane.f32.xlu0 %v6691
        %v6693 = vpop.xlane.xlu0 %6692
        %v6694 = vsel %vm557, %v6074, 0.0
        %6695 = vadd.xlane.f32.xlu0 %v6694
        %v6696 = vpop.xlane.xlu0 %6695
        %v6697 = vsel %vm557, %v6076, 0.0
        %6698 = vadd.xlane.f32.xlu0 %v6697
        %v6699 = vpop.xlane.xlu0 %6698
        %v6700 = vsel %vm557, %v6078, 0.0
        %6701 = vadd.xlane.f32.xlu0 %v6700
        %v6702 = vpop.xlane.xlu0 %6701
        %v6703 = vsel %vm557, %v6080, 0.0
        %6704 = vadd.xlane.f32.xlu0 %v6703
        %v6705 = vpop.xlane.xlu0 %6704
        %v6706 = vsel %vm557, %v6082, 0.0
        %6707 = vadd.xlane.f32.xlu0 %v6706
        %v6708 = vpop.xlane.xlu0 %6707
        %v6709 = vsel %vm557, %v6084, 0.0
        %6710 = vadd.xlane.f32.xlu0 %v6709
        %v6711 = vpop.xlane.xlu0 %6710
        %v6712 = vsel %vm557, %v6086, 0.0
        %6713 = vadd.xlane.f32.xlu0 %v6712
        %v6714 = vpop.xlane.xlu0 %6713
        %v6715 = vsel %vm557, %v6088, 0.0
        %6716 = vadd.xlane.f32.xlu0 %v6715
        %v6717 = vpop.xlane.xlu0 %6716
        %v6718 = vsel %vm557, %v6090, 0.0
        %6719 = vadd.xlane.f32.xlu0 %v6718
        %v6720 = vpop.xlane.xlu0 %6719
        %v6721 = vsel %vm557, %v6092, 0.0
        %6722 = vadd.xlane.f32.xlu0 %v6721
        %v6723 = vpop.xlane.xlu0 %6722
        %v6724 = vsel %vm557, %v6094, 0.0
        %6725 = vadd.xlane.f32.xlu0 %v6724
        %v6726 = vpop.xlane.xlu0 %6725
        %v6727 = vsel %vm557, %v6096, 0.0
        %6728 = vadd.xlane.f32.xlu0 %v6727
        %v6729 = vpop.xlane.xlu0 %6728
        %v6730 = vsel %vm557, %v6098, 0.0
        %6731 = vadd.xlane.f32.xlu0 %v6730
        %v6732 = vpop.xlane.xlu0 %6731
        %v6733 = vsel %vm557, %v6100, 0.0
        %6734 = vadd.xlane.f32.xlu0 %v6733
        %v6735 = vpop.xlane.xlu0 %6734
        %v6736 = vsel %vm557, %v6102, 0.0
        %6737 = vadd.xlane.f32.xlu0 %v6736
        %v6738 = vpop.xlane.xlu0 %6737
        %v6739 = vsel %vm557, %v6104, 0.0
        %6740 = vadd.xlane.f32.xlu0 %v6739
        %v6741 = vpop.xlane.xlu0 %6740
        %v6742 = vsel %vm557, %v6106, 0.0
        %6743 = vadd.xlane.f32.xlu0 %v6742
        %v6744 = vpop.xlane.xlu0 %6743
        %v6745 = vsel %vm557, %v6108, 0.0
        %6746 = vadd.xlane.f32.xlu0 %v6745
        %v6747 = vpop.xlane.xlu0 %6746
        %v6748 = vsel %vm557, %v6110, 0.0
        %6749 = vadd.xlane.f32.xlu0 %v6748
        %v6750 = vpop.xlane.xlu0 %6749
        %v6751 = vsel %vm557, %v6112, 0.0
        %6752 = vadd.xlane.f32.xlu0 %v6751
        %v6753 = vpop.xlane.xlu0 %6752
        %v6754 = vsel %vm557, %v6114, 0.0
        %6755 = vadd.xlane.f32.xlu0 %v6754
        %v6756 = vpop.xlane.xlu0 %6755
        %v6757 = vsel %vm557, %v6116, 0.0
        %6758 = vadd.xlane.f32.xlu0 %v6757
        %v6759 = vpop.xlane.xlu0 %6758
        %v6760 = vsel %vm557, %v6118, 0.0
        %6761 = vadd.xlane.f32.xlu0 %v6760
        %v6762 = vpop.xlane.xlu0 %6761
        %v6763 = vsel %vm557, %v6120, 0.0
        %6764 = vadd.xlane.f32.xlu0 %v6763
        %v6765 = vpop.xlane.xlu0 %6764
        %v6766 = vsel %vm557, %v6122, 0.0
        %6767 = vadd.xlane.f32.xlu0 %v6766
        %v6768 = vpop.xlane.xlu0 %6767
        %v6769 = vsel %vm557, %v6124, 0.0
        %6770 = vadd.xlane.f32.xlu0 %v6769
        %v6771 = vpop.xlane.xlu0 %6770
        %v6772 = vsel %vm557, %v6126, 0.0
        %6773 = vadd.xlane.f32.xlu0 %v6772
        %v6774 = vpop.xlane.xlu0 %6773
        %v6775 = vsel %vm557, %v6128, 0.0
        %6776 = vadd.xlane.f32.xlu0 %v6775
        %v6777 = vpop.xlane.xlu0 %6776
        %v6778 = vsel %vm557, %v6130, 0.0
        %6779 = vadd.xlane.f32.xlu0 %v6778
        %v6780 = vpop.xlane.xlu0 %6779
        %v6781 = vsel %vm557, %v6132, 0.0
        %6782 = vadd.xlane.f32.xlu0 %v6781
        %v6783 = vpop.xlane.xlu0 %6782
        %v6784 = vsel %vm557, %v6134, 0.0
        %6785 = vadd.xlane.f32.xlu0 %v6784
        %v6786 = vpop.xlane.xlu0 %6785
        %v6787 = vsel %vm557, %v6136, 0.0
        %6788 = vadd.xlane.f32.xlu0 %v6787
        %v6789 = vpop.xlane.xlu0 %6788
        %v6790 = vsel %vm557, %v6138, 0.0
        %6791 = vadd.xlane.f32.xlu0 %v6790
        %v6792 = vpop.xlane.xlu0 %6791
        %v6793 = vsel %vm557, %v6140, 0.0
        %6794 = vadd.xlane.f32.xlu0 %v6793
        %v6795 = vpop.xlane.xlu0 %6794
        %v6796 = vsel %vm557, %v6142, 0.0
        %6797 = vadd.xlane.f32.xlu0 %v6796
        %v6798 = vpop.xlane.xlu0 %6797
        %v6799 = vsel %vm557, %v6144, 0.0
        %6800 = vadd.xlane.f32.xlu0 %v6799
        %v6801 = vpop.xlane.xlu0 %6800
        %v6802 = vsel %vm557, %v6146, 0.0
        %6803 = vadd.xlane.f32.xlu0 %v6802
        %v6804 = vpop.xlane.xlu0 %6803
        %v6805 = vsel %vm557, %v6148, 0.0
        %6806 = vadd.xlane.f32.xlu0 %v6805
        %v6807 = vpop.xlane.xlu0 %6806
        %v6808 = vsel %vm557, %v6150, 0.0
        %6809 = vadd.xlane.f32.xlu0 %v6808
        %v6810 = vpop.xlane.xlu0 %6809
        %v6811 = vsel %vm557, %v6152, 0.0
        %6812 = vadd.xlane.f32.xlu0 %v6811
        %v6813 = vpop.xlane.xlu0 %6812
        %v6814 = vsel %vm557, %v6154, 0.0
        %6815 = vadd.xlane.f32.xlu0 %v6814
        %v6816 = vpop.xlane.xlu0 %6815
        %v6817 = vsel %vm557, %v6156, 0.0
        %6818 = vadd.xlane.f32.xlu0 %v6817
        %v6819 = vpop.xlane.xlu0 %6818
        %v6820 = vsel %vm557, %v6158, 0.0
        %6821 = vadd.xlane.f32.xlu0 %v6820
        %v6822 = vpop.xlane.xlu0 %6821
        %v6823 = vsel %vm557, %v6160, 0.0
        %6824 = vadd.xlane.f32.xlu0 %v6823
        %v6825 = vpop.xlane.xlu0 %6824
        %v6826 = vsel %vm557, %v6162, 0.0
        %6827 = vadd.xlane.f32.xlu0 %v6826
        %v6828 = vpop.xlane.xlu0 %6827
        %v6829 = vsel %vm557, %v6164, 0.0
        %6830 = vadd.xlane.f32.xlu0 %v6829
        %v6831 = vpop.xlane.xlu0 %6830
        %v6832 = vsel %vm557, %v6166, 0.0
        %6833 = vadd.xlane.f32.xlu0 %v6832
        %v6834 = vpop.xlane.xlu0 %6833
        %v6835 = vsel %vm557, %v6168, 0.0
        %6836 = vadd.xlane.f32.xlu0 %v6835
        %v6837 = vpop.xlane.xlu0 %6836
        %v6838 = vsel %vm557, %v6170, 0.0
        %6839 = vadd.xlane.f32.xlu0 %v6838
        %v6840 = vpop.xlane.xlu0 %6839
        %v6841 = vsel %vm557, %v6172, 0.0
        %6842 = vadd.xlane.f32.xlu0 %v6841
        %v6843 = vpop.xlane.xlu0 %6842
        %v6844 = vsel %vm557, %v6174, 0.0
        %6845 = vadd.xlane.f32.xlu0 %v6844
        %v6846 = vpop.xlane.xlu0 %6845
        %v6847 = vsel %vm557, %v6176, 0.0
        %6848 = vadd.xlane.f32.xlu0 %v6847
        %v6849 = vpop.xlane.xlu0 %6848
        %v6850 = vsel %vm557, %v6178, 0.0
        %6851 = vadd.xlane.f32.xlu0 %v6850
        %v6852 = vpop.xlane.xlu0 %6851
        %v6853 = vsel %vm557, %v6180, 0.0
        %6854 = vadd.xlane.f32.xlu0 %v6853
        %v6855 = vpop.xlane.xlu0 %6854
        %v6856 = vsel %vm557, %v6182, 0.0
        %6857 = vadd.xlane.f32.xlu0 %v6856
        %v6858 = vpop.xlane.xlu0 %6857
        %v6859 = vsel %vm557, %v6184, 0.0
        %6860 = vadd.xlane.f32.xlu0 %v6859
        %v6861 = vpop.xlane.xlu0 %6860
        %v6862 = vsel %vm557, %v6186, 0.0
        %6863 = vadd.xlane.f32.xlu0 %v6862
        %v6864 = vpop.xlane.xlu0 %6863
        %v6865 = vsel %vm557, %v6188, 0.0
        %6866 = vadd.xlane.f32.xlu0 %v6865
        %v6867 = vpop.xlane.xlu0 %6866
        %v6868 = vsel %vm557, %v6190, 0.0
        %6869 = vadd.xlane.f32.xlu0 %v6868
        %v6870 = vpop.xlane.xlu0 %6869
        %v6871 = vsel %vm557, %v6192, 0.0
        %6872 = vadd.xlane.f32.xlu0 %v6871
        %v6873 = vpop.xlane.xlu0 %6872
        %v6874 = vsel %vm557, %v6194, 0.0
        %6875 = vadd.xlane.f32.xlu0 %v6874
        %v6876 = vpop.xlane.xlu0 %6875
        %v6877 = vsel %vm557, %v6196, 0.0
        %6878 = vadd.xlane.f32.xlu0 %v6877
        %v6879 = vpop.xlane.xlu0 %6878
        %v6880 = vsel %vm557, %v6198, 0.0
        %6881 = vadd.xlane.f32.xlu0 %v6880
        %v6882 = vpop.xlane.xlu0 %6881
        %v6883 = vsel %vm557, %v6200, 0.0
        %6884 = vadd.xlane.f32.xlu0 %v6883
        %v6885 = vpop.xlane.xlu0 %6884
        %v6886 = vsel %vm557, %v6202, 0.0
        %6887 = vadd.xlane.f32.xlu0 %v6886
        %v6888 = vpop.xlane.xlu0 %6887
        %v6889 = vsel %vm557, %v6204, 0.0
        %6890 = vadd.xlane.f32.xlu0 %v6889
        %v6891 = vpop.xlane.xlu0 %6890
        %v6892 = vsel %vm557, %v6206, 0.0
        %6893 = vadd.xlane.f32.xlu0 %v6892
        %v6894 = vpop.xlane.xlu0 %6893
        %v6895 = vsel %vm557, %v6208, 0.0
        %6896 = vadd.xlane.f32.xlu0 %v6895
        %v6897 = vpop.xlane.xlu0 %6896
        %v6898 = vsel %vm557, %v6210, 0.0
        %6899 = vadd.xlane.f32.xlu0 %v6898
        %v6900 = vpop.xlane.xlu0 %6899
        %v6901 = vsel %vm557, %v6212, 0.0
        %6902 = vadd.xlane.f32.xlu0 %v6901
        %v6903 = vpop.xlane.xlu0 %6902
        %v6904 = vsel %vm557, %v6214, 0.0
        %6905 = vadd.xlane.f32.xlu0 %v6904
        %v6906 = vpop.xlane.xlu0 %6905
        %v6907 = vsel %vm557, %v6216, 0.0
        %6908 = vadd.xlane.f32.xlu0 %v6907
        %v6909 = vpop.xlane.xlu0 %6908
        %v6910 = vsel %vm557, %v6218, 0.0
        %6911 = vadd.xlane.f32.xlu0 %v6910
        %v6912 = vpop.xlane.xlu0 %6911
        %v6913 = vsel %vm557, %v6220, 0.0
        %6914 = vadd.xlane.f32.xlu0 %v6913
        %v6915 = vpop.xlane.xlu0 %6914
        %v6916 = vsel %vm557, %v6222, 0.0
        %6917 = vadd.xlane.f32.xlu0 %v6916
        %v6918 = vpop.xlane.xlu0 %6917
        %v6919 = vsel %vm557, %v6224, 0.0
        %6920 = vadd.xlane.f32.xlu0 %v6919
        %v6921 = vpop.xlane.xlu0 %6920
        %v6922 = vsel %vm557, %v6226, 0.0
        %6923 = vadd.xlane.f32.xlu0 %v6922
        %v6924 = vpop.xlane.xlu0 %6923
        %v6925 = vsel %vm557, %v6228, 0.0
        %6926 = vadd.xlane.f32.xlu0 %v6925
        %v6927 = vpop.xlane.xlu0 %6926
        %v6928 = vsel %vm557, %v6230, 0.0
        %6929 = vadd.xlane.f32.xlu0 %v6928
        %v6930 = vpop.xlane.xlu0 %6929
        %v6931 = vsel %vm557, %v6232, 0.0
        %6932 = vadd.xlane.f32.xlu0 %v6931
        %v6933 = vpop.xlane.xlu0 %6932
        %v6934 = vsel %vm557, %v6234, 0.0
        %6935 = vadd.xlane.f32.xlu0 %v6934
        %v6936 = vpop.xlane.xlu0 %6935
        %v6937 = vsel %vm557, %v6236, 0.0
        %6938 = vadd.xlane.f32.xlu0 %v6937
        %v6939 = vpop.xlane.xlu0 %6938
        %v6940 = vsel %vm557, %v6238, 0.0
        %6941 = vadd.xlane.f32.xlu0 %v6940
        %v6942 = vpop.xlane.xlu0 %6941
        %v6943 = vsel %vm557, %v6240, 0.0
        %6944 = vadd.xlane.f32.xlu0 %v6943
        %v6945 = vpop.xlane.xlu0 %6944
        %v6946 = vsel %vm557, %v6242, 0.0
        %6947 = vadd.xlane.f32.xlu0 %v6946
        %v6948 = vpop.xlane.xlu0 %6947
        %v6949 = vsel %vm557, %v6244, 0.0
        %6950 = vadd.xlane.f32.xlu0 %v6949
        %v6951 = vpop.xlane.xlu0 %6950
        %v6952 = vsel %vm557, %v6246, 0.0
        %6953 = vadd.xlane.f32.xlu0 %v6952
        %v6954 = vpop.xlane.xlu0 %6953
        %v6955 = vsel %vm557, %v6248, 0.0
        %6956 = vadd.xlane.f32.xlu0 %v6955
        %v6957 = vpop.xlane.xlu0 %6956
        %v6958 = vsel %vm557, %v6250, 0.0
        %6959 = vadd.xlane.f32.xlu0 %v6958
        %v6960 = vpop.xlane.xlu0 %6959
        %v6961 = vsel %vm557, %v6252, 0.0
        %6962 = vadd.xlane.f32.xlu0 %v6961
        %v6963 = vpop.xlane.xlu0 %6962
        %v6964 = vsel %vm557, %v6254, 0.0
        %6965 = vadd.xlane.f32.xlu0 %v6964
        %v6966 = vpop.xlane.xlu0 %6965
        %v6967 = vsel %vm557, %v6256, 0.0
        %6968 = vadd.xlane.f32.xlu0 %v6967
        %v6969 = vpop.xlane.xlu0 %6968
        %v6970 = vsel %vm557, %v6258, 0.0
        %6971 = vadd.xlane.f32.xlu0 %v6970
        %v6972 = vpop.xlane.xlu0 %6971
        %v6973 = vsel %vm557, %v6260, 0.0
        %6974 = vadd.xlane.f32.xlu0 %v6973
        %v6975 = vpop.xlane.xlu0 %6974
        %v6976 = vsel %vm557, %v6262, 0.0
        %6977 = vadd.xlane.f32.xlu0 %v6976
        %v6978 = vpop.xlane.xlu0 %6977
        %v6979 = vsel %vm557, %v6264, 0.0
        %6980 = vadd.xlane.f32.xlu0 %v6979
        %v6981 = vpop.xlane.xlu0 %6980
        %v6982 = vsel %vm557, %v6266, 0.0
        %6983 = vadd.xlane.f32.xlu0 %v6982
        %v6984 = vpop.xlane.xlu0 %6983
        %v6985 = vsel %vm557, %v6268, 0.0
        %6986 = vadd.xlane.f32.xlu0 %v6985
        %v6987 = vpop.xlane.xlu0 %6986
        %v6988 = vsel %vm557, %v6270, 0.0
        %6989 = vadd.xlane.f32.xlu0 %v6988
        %v6990 = vpop.xlane.xlu0 %6989
        %v6991 = vsel %vm557, %v6272, 0.0
        %6992 = vadd.xlane.f32.xlu0 %v6991
        %v6993 = vpop.xlane.xlu0 %6992
        %v6994 = vsel %vm557, %v6274, 0.0
        %6995 = vadd.xlane.f32.xlu0 %v6994
        %v6996 = vpop.xlane.xlu0 %6995
        %v6997 = vsel %vm557, %v6276, 0.0
        %6998 = vadd.xlane.f32.xlu0 %v6997
        %v6999 = vpop.xlane.xlu0 %6998
        %v7000 = vsel %vm557, %v6278, 0.0
        %7001 = vadd.xlane.f32.xlu0 %v7000
        %v7002 = vpop.xlane.xlu0 %7001
        %v7003 = vsel %vm557, %v6280, 0.0
        %7004 = vadd.xlane.f32.xlu0 %v7003
        %v7005 = vpop.xlane.xlu0 %7004
        %v7006 = vsel %vm557, %v6282, 0.0
        %7007 = vadd.xlane.f32.xlu0 %v7006
        %v7008 = vpop.xlane.xlu0 %7007
        %v7009 = vsel %vm557, %v6284, 0.0
        %7010 = vadd.xlane.f32.xlu0 %v7009
        %v7011 = vpop.xlane.xlu0 %7010
        %v7012 = vsel %vm557, %v6286, 0.0
        %7013 = vadd.xlane.f32.xlu0 %v7012
        %v7014 = vpop.xlane.xlu0 %7013
        %v7015 = vsel %vm557, %v6288, 0.0
        %7016 = vadd.xlane.f32.xlu0 %v7015
        %v7017 = vpop.xlane.xlu0 %7016
        %v7018 = vsel %vm557, %v6290, 0.0
        %7019 = vadd.xlane.f32.xlu0 %v7018
        %v7020 = vpop.xlane.xlu0 %7019
        %v7021 = vsel %vm557, %v6292, 0.0
        %7022 = vadd.xlane.f32.xlu0 %v7021
        %v7023 = vpop.xlane.xlu0 %7022
        %v7024 = vsel %vm557, %v6294, 0.0
        %7025 = vadd.xlane.f32.xlu0 %v7024
        %v7026 = vpop.xlane.xlu0 %7025
        %v7027 = vsel %vm557, %v6296, 0.0
        %7028 = vadd.xlane.f32.xlu0 %v7027
        %v7029 = vpop.xlane.xlu0 %7028
        %v7030 = vsel %vm557, %v6298, 0.0
        %7031 = vadd.xlane.f32.xlu0 %v7030
        %v7032 = vpop.xlane.xlu0 %7031
        %v7033 = vsel %vm557, %v6300, 0.0
        %7034 = vadd.xlane.f32.xlu0 %v7033
        %v7035 = vpop.xlane.xlu0 %7034
        %v7036 = vsel %vm557, %v6302, 0.0
        %7037 = vadd.xlane.f32.xlu0 %v7036
        %v7038 = vpop.xlane.xlu0 %7037
        %v7039 = vsel %vm557, %v6304, 0.0
        %7040 = vadd.xlane.f32.xlu0 %v7039
        %v7041 = vpop.xlane.xlu0 %7040
        %v7042 = vsel %vm557, %v6306, 0.0
        %7043 = vadd.xlane.f32.xlu0 %v7042
        %v7044 = vpop.xlane.xlu0 %7043
        %v7045 = vsel %vm557, %v6308, 0.0
        %7046 = vadd.xlane.f32.xlu0 %v7045
        %v7047 = vpop.xlane.xlu0 %7046
        %v7048 = vsel %vm557, %v6310, 0.0
        %7049 = vadd.xlane.f32.xlu0 %v7048
        %v7050 = vpop.xlane.xlu0 %7049
        %v7051 = vsel %vm557, %v6312, 0.0
        %7052 = vadd.xlane.f32.xlu0 %v7051
        %v7053 = vpop.xlane.xlu0 %7052
        %v7054 = vsel %vm557, %v6314, 0.0
        %7055 = vadd.xlane.f32.xlu0 %v7054
        %v7056 = vpop.xlane.xlu0 %7055
        %v7057 = vsel %vm557, %v6316, 0.0
        %7058 = vadd.xlane.f32.xlu0 %v7057
        %v7059 = vpop.xlane.xlu0 %7058
        %v7060 = vsel %vm557, %v6318, 0.0
        %7061 = vadd.xlane.f32.xlu0 %v7060
        %v7062 = vpop.xlane.xlu0 %7061
        %v7063 = vsel %vm557, %v6320, 0.0
        %7064 = vadd.xlane.f32.xlu0 %v7063
        %v7065 = vpop.xlane.xlu0 %7064
        %v7066 = vsel %vm557, %v6322, 0.0
        %7067 = vadd.xlane.f32.xlu0 %v7066
        %v7068 = vpop.xlane.xlu0 %7067
        %v7069 = vsel %vm557, %v6324, 0.0
        %7070 = vadd.xlane.f32.xlu0 %v7069
        %v7071 = vpop.xlane.xlu0 %7070
        %v7072 = vsel %vm557, %v6326, 0.0
        %7073 = vadd.xlane.f32.xlu0 %v7072
        %v7074 = vpop.xlane.xlu0 %7073
        %v7075 = vsel %vm557, %v6328, 0.0
        %7076 = vadd.xlane.f32.xlu0 %v7075
        %v7077 = vpop.xlane.xlu0 %7076
        %v7078 = vsel %vm557, %v6330, 0.0
        %7079 = vadd.xlane.f32.xlu0 %v7078
        %v7080 = vpop.xlane.xlu0 %7079
        %v7081 = vsel %vm557, %v6332, 0.0
        %7082 = vadd.xlane.f32.xlu0 %v7081
        %v7083 = vpop.xlane.xlu0 %7082
        %v7084 = vsel %vm557, %v6334, 0.0
        %7085 = vadd.xlane.f32.xlu0 %v7084
        %v7086 = vpop.xlane.xlu0 %7085
        %v7087 = vsel %vm557, %v6336, 0.0
        %7088 = vadd.xlane.f32.xlu0 %v7087
        %v7089 = vpop.xlane.xlu0 %7088
        %v7090 = vsel %vm557, %v6338, 0.0
        %7091 = vadd.xlane.f32.xlu0 %v7090
        %v7092 = vpop.xlane.xlu0 %7091
        %v7093 = vsel %vm557, %v6340, 0.0
        %7094 = vadd.xlane.f32.xlu0 %v7093
        %v7095 = vpop.xlane.xlu0 %7094
        %v7096 = vsel %vm557, %v6342, 0.0
        %7097 = vadd.xlane.f32.xlu0 %v7096
        %v7098 = vpop.xlane.xlu0 %7097
        %v7099 = vsel %vm557, %v6344, 0.0
        %7100 = vadd.xlane.f32.xlu0 %v7099
        %v7101 = vpop.xlane.xlu0 %7100
        %v7102 = vsel %vm557, %v6346, 0.0
        %7103 = vadd.xlane.f32.xlu0 %v7102
        %v7104 = vpop.xlane.xlu0 %7103
        %v7105 = vsel %vm557, %v6348, 0.0
        %7106 = vadd.xlane.f32.xlu0 %v7105
        %v7107 = vpop.xlane.xlu0 %7106
        %v7108 = vsel %vm557, %v6350, 0.0
        %7109 = vadd.xlane.f32.xlu0 %v7108
        %v7110 = vpop.xlane.xlu0 %7109
        %v7111 = vsel %vm557, %v6352, 0.0
        %7112 = vadd.xlane.f32.xlu0 %v7111
        %v7113 = vpop.xlane.xlu0 %7112
        %v7114 = vsel %vm557, %v6354, 0.0
        %7115 = vadd.xlane.f32.xlu0 %v7114
        %v7116 = vpop.xlane.xlu0 %7115
        %v7117 = vsel %vm557, %v6356, 0.0
        %7118 = vadd.xlane.f32.xlu0 %v7117
        %v7119 = vpop.xlane.xlu0 %7118
        %v7120 = vsel %vm557, %v6358, 0.0
        %7121 = vadd.xlane.f32.xlu0 %v7120
        %v7122 = vpop.xlane.xlu0 %7121
        %v7123 = vsel %vm557, %v6360, 0.0
        %7124 = vadd.xlane.f32.xlu0 %v7123
        %v7125 = vpop.xlane.xlu0 %7124
        %v7126 = vsel %vm557, %v6362, 0.0
        %7127 = vadd.xlane.f32.xlu0 %v7126
        %v7128 = vpop.xlane.xlu0 %7127
        %v7129 = vsel %vm557, %v6364, 0.0
        %7130 = vadd.xlane.f32.xlu0 %v7129
        %v7131 = vpop.xlane.xlu0 %7130
        %v7132 = vsel %vm557, %v6366, 0.0
        %7133 = vadd.xlane.f32.xlu0 %v7132
        %v7134 = vpop.xlane.xlu0 %7133
        %v7135 = vrcp.pop %v6369
        %v7136 = vrcp.pop %v6372
        %v7137 = vrcp.pop %v6375
        %v7138 = vrcp.pop %v6378
        %v7139 = vrcp.pop %v6381
        %v7140 = vrcp.pop %v6384
        %v7141 = vrcp.pop %v6387
        %v7142 = vrcp.pop %v6390
        %v7143 = vrcp.pop %v6393
        %v7144 = vrcp.pop %v6396
        %v7145 = vrcp.pop %v6399
        %v7146 = vrcp.pop %v6402
        %v7147 = vrcp.pop %v6405
        %v7148 = vrcp.pop %v6408
        %v7149 = vrcp.pop %v6411
        %v7150 = vrcp.pop %v6414
        %v7151 = vrcp.pop %v6417
        %v7152 = vrcp.pop %v6420
        %v7153 = vrcp.pop %v6423
        %v7154 = vrcp.pop %v6426
        %v7155 = vrcp.pop %v6429
        %v7156 = vrcp.pop %v6432
        %v7157 = vrcp.pop %v6435
        %v7158 = vrcp.pop %v6438
        %v7159 = vrcp.pop %v6441
        %v7160 = vrcp.pop %v6444
        %v7161 = vrcp.pop %v6447
        %v7162 = vrcp.pop %v6450
        %v7163 = vrcp.pop %v6453
        %v7164 = vrcp.pop %v6456
        %v7165 = vrcp.pop %v6459
        %v7166 = vrcp.pop %v6462
        %v7167 = vrcp.pop %v6465
        %v7168 = vrcp.pop %v6468
        %v7169 = vrcp.pop %v6471
        %v7170 = vrcp.pop %v6474
        %v7171 = vrcp.pop %v6477
        %v7172 = vrcp.pop %v6480
        %v7173 = vrcp.pop %v6483
        %v7174 = vrcp.pop %v6486
        %v7175 = vrcp.pop %v6489
        %v7176 = vrcp.pop %v6492
        %v7177 = vrcp.pop %v6495
        %v7178 = vrcp.pop %v6498
        %v7179 = vrcp.pop %v6501
        %v7180 = vrcp.pop %v6504
        %v7181 = vrcp.pop %v6507
        %v7182 = vrcp.pop %v6510
        %v7183 = vrcp.pop %v6513
        %v7184 = vrcp.pop %v6516
        %v7185 = vrcp.pop %v6519
        %v7186 = vrcp.pop %v6522
        %v7187 = vrcp.pop %v6525
        %v7188 = vrcp.pop %v6528
        %v7189 = vrcp.pop %v6531
        %v7190 = vrcp.pop %v6534
        %v7191 = vrcp.pop %v6537
        %v7192 = vrcp.pop %v6540
        %v7193 = vrcp.pop %v6543
        %v7194 = vrcp.pop %v6546
        %v7195 = vrcp.pop %v6549
        %v7196 = vrcp.pop %v6552
        %v7197 = vrcp.pop %v6555
        %v7198 = vrcp.pop %v6558
        %v7199 = vrcp.pop %v6561
        %v7200 = vrcp.pop %v6564
        %v7201 = vrcp.pop %v6567
        %v7202 = vrcp.pop %v6570
        %v7203 = vrcp.pop %v6573
        %v7204 = vrcp.pop %v6576
        %v7205 = vrcp.pop %v6579
        %v7206 = vrcp.pop %v6582
        %v7207 = vrcp.pop %v6585
        %v7208 = vrcp.pop %v6588
        %v7209 = vrcp.pop %v6591
        %v7210 = vrcp.pop %v6594
        %v7211 = vrcp.pop %v6597
        %v7212 = vrcp.pop %v6600
        %v7213 = vrcp.pop %v6603
        %v7214 = vrcp.pop %v6606
        %v7215 = vrcp.pop %v6609
        %v7216 = vrcp.pop %v6612
        %v7217 = vrcp.pop %v6615
        %v7218 = vrcp.pop %v6618
        %v7219 = vrcp.pop %v6621
        %v7220 = vrcp.pop %v6624
        %v7221 = vrcp.pop %v6627
        %v7222 = vrcp.pop %v6630
        %v7223 = vrcp.pop %v6633
        %v7224 = vrcp.pop %v6636
        %v7225 = vrcp.pop %v6639
        %v7226 = vrcp.pop %v6642
        %v7227 = vrcp.pop %v6645
        %v7228 = vrcp.pop %v6648
        %v7229 = vrcp.pop %v6651
        %v7230 = vrcp.pop %v6654
        %v7231 = vrcp.pop %v6657
        %v7232 = vrcp.pop %v6660
        %v7233 = vrcp.pop %v6663
        %v7234 = vrcp.pop %v6666
        %v7235 = vrcp.pop %v6669
        %v7236 = vrcp.pop %v6672
        %v7237 = vrcp.pop %v6675
        %v7238 = vrcp.pop %v6678
        %v7239 = vrcp.pop %v6681
        %v7240 = vrcp.pop %v6684
        %v7241 = vrcp.pop %v6687
        %v7242 = vrcp.pop %v6690
        %v7243 = vrcp.pop %v6693
        %v7244 = vrcp.pop %v6696
        %v7245 = vrcp.pop %v6699
        %v7246 = vrcp.pop %v6702
        %v7247 = vrcp.pop %v6705
        %v7248 = vrcp.pop %v6708
        %v7249 = vrcp.pop %v6711
        %v7250 = vrcp.pop %v6714
        %v7251 = vrcp.pop %v6717
        %v7252 = vrcp.pop %v6720
        %v7253 = vrcp.pop %v6723
        %v7254 = vrcp.pop %v6726
        %v7255 = vrcp.pop %v6729
        %v7256 = vrcp.pop %v6732
        %v7257 = vrcp.pop %v6735
        %v7258 = vrcp.pop %v6738
        %v7259 = vrcp.pop %v6741
        %v7260 = vrcp.pop %v6744
        %v7261 = vrcp.pop %v6747
        %v7262 = vrcp.pop %v6750
        %v7263 = vrcp.pop %v6753
        %v7264 = vrcp.pop %v6756
        %v7265 = vrcp.pop %v6759
        %v7266 = vrcp.pop %v6762
        %v7267 = vrcp.pop %v6765
        %v7268 = vrcp.pop %v6768
        %v7269 = vrcp.pop %v6771
        %v7270 = vrcp.pop %v6774
        %v7271 = vrcp.pop %v6777
        %v7272 = vrcp.pop %v6780
        %v7273 = vrcp.pop %v6783
        %v7274 = vrcp.pop %v6786
        %v7275 = vrcp.pop %v6789
        %v7276 = vrcp.pop %v6792
        %v7277 = vrcp.pop %v6795
        %v7278 = vrcp.pop %v6798
        %v7279 = vrcp.pop %v6801
        %v7280 = vrcp.pop %v6804
        %v7281 = vrcp.pop %v6807
        %v7282 = vrcp.pop %v6810
        %v7283 = vrcp.pop %v6813
        %v7284 = vrcp.pop %v6816
        %v7285 = vrcp.pop %v6819
        %v7286 = vrcp.pop %v6822
        %v7287 = vrcp.pop %v6825
        %v7288 = vrcp.pop %v6828
        %v7289 = vrcp.pop %v6831
        %v7290 = vrcp.pop %v6834
        %v7291 = vrcp.pop %v6837
        %v7292 = vrcp.pop %v6840
        %v7293 = vrcp.pop %v6843
        %v7294 = vrcp.pop %v6846
        %v7295 = vrcp.pop %v6849
        %v7296 = vrcp.pop %v6852
        %v7297 = vrcp.pop %v6855
        %v7298 = vrcp.pop %v6858
        %v7299 = vrcp.pop %v6861
        %v7300 = vrcp.pop %v6864
        %v7301 = vrcp.pop %v6867
        %v7302 = vrcp.pop %v6870
        %v7303 = vrcp.pop %v6873
        %v7304 = vrcp.pop %v6876
        %v7305 = vrcp.pop %v6879
        %v7306 = vrcp.pop %v6882
        %v7307 = vrcp.pop %v6885
        %v7308 = vrcp.pop %v6888
        %v7309 = vrcp.pop %v6891
        %v7310 = vrcp.pop %v6894
        %v7311 = vrcp.pop %v6897
        %v7312 = vrcp.pop %v6900
        %v7313 = vrcp.pop %v6903
        %v7314 = vrcp.pop %v6906
        %v7315 = vrcp.pop %v6909
        %v7316 = vrcp.pop %v6912
        %v7317 = vrcp.pop %v6915
        %v7318 = vrcp.pop %v6918
        %v7319 = vrcp.pop %v6921
        %v7320 = vrcp.pop %v6924
        %v7321 = vrcp.pop %v6927
        %v7322 = vrcp.pop %v6930
        %v7323 = vrcp.pop %v6933
        %v7324 = vrcp.pop %v6936
        %v7325 = vrcp.pop %v6939
        %v7326 = vrcp.pop %v6942
        %v7327 = vrcp.pop %v6945
        %v7328 = vrcp.pop %v6948
        %v7329 = vrcp.pop %v6951
        %v7330 = vrcp.pop %v6954
        %v7331 = vrcp.pop %v6957
        %v7332 = vrcp.pop %v6960
        %v7333 = vrcp.pop %v6963
        %v7334 = vrcp.pop %v6966
        %v7335 = vrcp.pop %v6969
        %v7336 = vrcp.pop %v6972
        %v7337 = vrcp.pop %v6975
        %v7338 = vrcp.pop %v6978
        %v7339 = vrcp.pop %v6981
        %v7340 = vrcp.pop %v6984
        %v7341 = vrcp.pop %v6987
        %v7342 = vrcp.pop %v6990
        %v7343 = vrcp.pop %v6993
        %v7344 = vrcp.pop %v6996
        %v7345 = vrcp.pop %v6999
        %v7346 = vrcp.pop %v7002
        %v7347 = vrcp.pop %v7005
        %v7348 = vrcp.pop %v7008
        %v7349 = vrcp.pop %v7011
        %v7350 = vrcp.pop %v7014
        %v7351 = vrcp.pop %v7017
        %v7352 = vrcp.pop %v7020
        %v7353 = vrcp.pop %v7023
        %v7354 = vrcp.pop %v7026
        %v7355 = vrcp.pop %v7029
        %v7356 = vrcp.pop %v7032
        %v7357 = vrcp.pop %v7035
        %v7358 = vrcp.pop %v7038
        %v7359 = vrcp.pop %v7041
        %v7360 = vrcp.pop %v7044
        %v7361 = vrcp.pop %v7047
        %v7362 = vrcp.pop %v7050
        %v7363 = vrcp.pop %v7053
        %v7364 = vrcp.pop %v7056
        %v7365 = vrcp.pop %v7059
        %v7366 = vrcp.pop %v7062
        %v7367 = vrcp.pop %v7065
        %v7368 = vrcp.pop %v7068
        %v7369 = vrcp.pop %v7071
        %v7370 = vrcp.pop %v7074
        %v7371 = vrcp.pop %v7077
        %v7372 = vrcp.pop %v7080
        %v7373 = vrcp.pop %v7083
        %v7374 = vrcp.pop %v7086
        %v7375 = vrcp.pop %v7089
        %v7376 = vrcp.pop %v7092
        %v7377 = vrcp.pop %v7095
        %v7378 = vrcp.pop %v7098
        %v7379 = vrcp.pop %v7101
        %v7380 = vrcp.pop %v7104
        %v7381 = vrcp.pop %v7107
        %v7382 = vrcp.pop %v7110
        %v7383 = vrcp.pop %v7113
        %v7384 = vrcp.pop %v7116
        %v7385 = vrcp.pop %v7119
        %v7386 = vrcp.pop %v7122
        %v7387 = vrcp.pop %v7125
        %v7388 = vrcp.pop %v7128
        %v7389 = vrcp.pop %v7131
        %v7390 = vrcp.pop %v7134
        %v7391 = vmul.f32 %v5856, %v7135
        %v7392 = vmul.f32 %v5858, %v7136
        %v7393 = vmul.f32 %v5860, %v7137
        %v7394 = vmul.f32 %v5862, %v7138
        %v7395 = vmul.f32 %v5864, %v7139
        %v7396 = vmul.f32 %v5866, %v7140
        %v7397 = vmul.f32 %v5868, %v7141
        %v7398 = vmul.f32 %v5870, %v7142
        %v7399 = vmul.f32 %v5872, %v7143
        %v7400 = vmul.f32 %v5874, %v7144
        %v7401 = vmul.f32 %v5876, %v7145
        %v7402 = vmul.f32 %v5878, %v7146
        %v7403 = vmul.f32 %v5880, %v7147
        %v7404 = vmul.f32 %v5882, %v7148
        %v7405 = vmul.f32 %v5884, %v7149
        %v7406 = vmul.f32 %v5886, %v7150
        %v7407 = vmul.f32 %v5888, %v7151
        %v7408 = vmul.f32 %v5890, %v7152
        %v7409 = vmul.f32 %v5892, %v7153
        %v7410 = vmul.f32 %v5894, %v7154
        %v7411 = vmul.f32 %v5896, %v7155
        %v7412 = vmul.f32 %v5898, %v7156
        %v7413 = vmul.f32 %v5900, %v7157
        %v7414 = vmul.f32 %v5902, %v7158
        %v7415 = vmul.f32 %v5904, %v7159
        %v7416 = vmul.f32 %v5906, %v7160
        %v7417 = vmul.f32 %v5908, %v7161
        %v7418 = vmul.f32 %v5910, %v7162
        %v7419 = vmul.f32 %v5912, %v7163
        %v7420 = vmul.f32 %v5914, %v7164
        %v7421 = vmul.f32 %v5916, %v7165
        %v7422 = vmul.f32 %v5918, %v7166
        %v7423 = vmul.f32 %v5920, %v7167
        %v7424 = vmul.f32 %v5922, %v7168
        %v7425 = vmul.f32 %v5924, %v7169
        %v7426 = vmul.f32 %v5926, %v7170
        %v7427 = vmul.f32 %v5928, %v7171
        %v7428 = vmul.f32 %v5930, %v7172
        %v7429 = vmul.f32 %v5932, %v7173
        %v7430 = vmul.f32 %v5934, %v7174
        %v7431 = vmul.f32 %v5936, %v7175
        %v7432 = vmul.f32 %v5938, %v7176
        %v7433 = vmul.f32 %v5940, %v7177
        %v7434 = vmul.f32 %v5942, %v7178
        %v7435 = vmul.f32 %v5944, %v7179
        %v7436 = vmul.f32 %v5946, %v7180
        %v7437 = vmul.f32 %v5948, %v7181
        %v7438 = vmul.f32 %v5950, %v7182
        %v7439 = vmul.f32 %v5952, %v7183
        %v7440 = vmul.f32 %v5954, %v7184
        %v7441 = vmul.f32 %v5956, %v7185
        %v7442 = vmul.f32 %v5958, %v7186
        %v7443 = vmul.f32 %v5960, %v7187
        %v7444 = vmul.f32 %v5962, %v7188
        %v7445 = vmul.f32 %v5964, %v7189
        %v7446 = vmul.f32 %v5966, %v7190
        %v7447 = vmul.f32 %v5968, %v7191
        %v7448 = vmul.f32 %v5970, %v7192
        %v7449 = vmul.f32 %v5972, %v7193
        %v7450 = vmul.f32 %v5974, %v7194
        %v7451 = vmul.f32 %v5976, %v7195
        %v7452 = vmul.f32 %v5978, %v7196
        %v7453 = vmul.f32 %v5980, %v7197
        %v7454 = vmul.f32 %v5982, %v7198
        %v7455 = vmul.f32 %v5984, %v7199
        %v7456 = vmul.f32 %v5986, %v7200
        %v7457 = vmul.f32 %v5988, %v7201
        %v7458 = vmul.f32 %v5990, %v7202
        %v7459 = vmul.f32 %v5992, %v7203
        %v7460 = vmul.f32 %v5994, %v7204
        %v7461 = vmul.f32 %v5996, %v7205
        %v7462 = vmul.f32 %v5998, %v7206
        %v7463 = vmul.f32 %v6000, %v7207
        %v7464 = vmul.f32 %v6002, %v7208
        %v7465 = vmul.f32 %v6004, %v7209
        %v7466 = vmul.f32 %v6006, %v7210
        %v7467 = vmul.f32 %v6008, %v7211
        %v7468 = vmul.f32 %v6010, %v7212
        %v7469 = vmul.f32 %v6012, %v7213
        %v7470 = vmul.f32 %v6014, %v7214
        %v7471 = vmul.f32 %v6016, %v7215
        %v7472 = vmul.f32 %v6018, %v7216
        %v7473 = vmul.f32 %v6020, %v7217
        %v7474 = vmul.f32 %v6022, %v7218
        %v7475 = vmul.f32 %v6024, %v7219
        %v7476 = vmul.f32 %v6026, %v7220
        %v7477 = vmul.f32 %v6028, %v7221
        %v7478 = vmul.f32 %v6030, %v7222
        %v7479 = vmul.f32 %v6032, %v7223
        %v7480 = vmul.f32 %v6034, %v7224
        %v7481 = vmul.f32 %v6036, %v7225
        %v7482 = vmul.f32 %v6038, %v7226
        %v7483 = vmul.f32 %v6040, %v7227
        %v7484 = vmul.f32 %v6042, %v7228
        %v7485 = vmul.f32 %v6044, %v7229
        %v7486 = vmul.f32 %v6046, %v7230
        %v7487 = vmul.f32 %v6048, %v7231
        %v7488 = vmul.f32 %v6050, %v7232
        %v7489 = vmul.f32 %v6052, %v7233
        %v7490 = vmul.f32 %v6054, %v7234
        %v7491 = vmul.f32 %v6056, %v7235
        %v7492 = vmul.f32 %v6058, %v7236
        %v7493 = vmul.f32 %v6060, %v7237
        %v7494 = vmul.f32 %v6062, %v7238
        %v7495 = vmul.f32 %v6064, %v7239
        %v7496 = vmul.f32 %v6066, %v7240
        %v7497 = vmul.f32 %v6068, %v7241
        %v7498 = vmul.f32 %v6070, %v7242
        %v7499 = vmul.f32 %v6072, %v7243
        %v7500 = vmul.f32 %v6074, %v7244
        %v7501 = vmul.f32 %v6076, %v7245
        %v7502 = vmul.f32 %v6078, %v7246
        %v7503 = vmul.f32 %v6080, %v7247
        %v7504 = vmul.f32 %v6082, %v7248
        %v7505 = vmul.f32 %v6084, %v7249
        %v7506 = vmul.f32 %v6086, %v7250
        %v7507 = vmul.f32 %v6088, %v7251
        %v7508 = vmul.f32 %v6090, %v7252
        %v7509 = vmul.f32 %v6092, %v7253
        %v7510 = vmul.f32 %v6094, %v7254
        %v7511 = vmul.f32 %v6096, %v7255
        %v7512 = vmul.f32 %v6098, %v7256
        %v7513 = vmul.f32 %v6100, %v7257
        %v7514 = vmul.f32 %v6102, %v7258
        %v7515 = vmul.f32 %v6104, %v7259
        %v7516 = vmul.f32 %v6106, %v7260
        %v7517 = vmul.f32 %v6108, %v7261
        %v7518 = vmul.f32 %v6110, %v7262
        %v7519 = vmul.f32 %v6112, %v7263
        %v7520 = vmul.f32 %v6114, %v7264
        %v7521 = vmul.f32 %v6116, %v7265
        %v7522 = vmul.f32 %v6118, %v7266
        %v7523 = vmul.f32 %v6120, %v7267
        %v7524 = vmul.f32 %v6122, %v7268
        %v7525 = vmul.f32 %v6124, %v7269
        %v7526 = vmul.f32 %v6126, %v7270
        %v7527 = vmul.f32 %v6128, %v7271
        %v7528 = vmul.f32 %v6130, %v7272
        %v7529 = vmul.f32 %v6132, %v7273
        %v7530 = vmul.f32 %v6134, %v7274
        %v7531 = vmul.f32 %v6136, %v7275
        %v7532 = vmul.f32 %v6138, %v7276
        %v7533 = vmul.f32 %v6140, %v7277
        %v7534 = vmul.f32 %v6142, %v7278
        %v7535 = vmul.f32 %v6144, %v7279
        %v7536 = vmul.f32 %v6146, %v7280
        %v7537 = vmul.f32 %v6148, %v7281
        %v7538 = vmul.f32 %v6150, %v7282
        %v7539 = vmul.f32 %v6152, %v7283
        %v7540 = vmul.f32 %v6154, %v7284
        %v7541 = vmul.f32 %v6156, %v7285
        %v7542 = vmul.f32 %v6158, %v7286
        %v7543 = vmul.f32 %v6160, %v7287
        %v7544 = vmul.f32 %v6162, %v7288
        %v7545 = vmul.f32 %v6164, %v7289
        %v7546 = vmul.f32 %v6166, %v7290
        %v7547 = vmul.f32 %v6168, %v7291
        %v7548 = vmul.f32 %v6170, %v7292
        %v7549 = vmul.f32 %v6172, %v7293
        %v7550 = vmul.f32 %v6174, %v7294
        %v7551 = vmul.f32 %v6176, %v7295
        %v7552 = vmul.f32 %v6178, %v7296
        %v7553 = vmul.f32 %v6180, %v7297
        %v7554 = vmul.f32 %v6182, %v7298
        %v7555 = vmul.f32 %v6184, %v7299
        %v7556 = vmul.f32 %v6186, %v7300
        %v7557 = vmul.f32 %v6188, %v7301
        %v7558 = vmul.f32 %v6190, %v7302
        %v7559 = vmul.f32 %v6192, %v7303
        %v7560 = vmul.f32 %v6194, %v7304
        %v7561 = vmul.f32 %v6196, %v7305
        %v7562 = vmul.f32 %v6198, %v7306
        %v7563 = vmul.f32 %v6200, %v7307
        %v7564 = vmul.f32 %v6202, %v7308
        %v7565 = vmul.f32 %v6204, %v7309
        %v7566 = vmul.f32 %v6206, %v7310
        %v7567 = vmul.f32 %v6208, %v7311
        %v7568 = vmul.f32 %v6210, %v7312
        %v7569 = vmul.f32 %v6212, %v7313
        %v7570 = vmul.f32 %v6214, %v7314
        %v7571 = vmul.f32 %v6216, %v7315
        %v7572 = vmul.f32 %v6218, %v7316
        %v7573 = vmul.f32 %v6220, %v7317
        %v7574 = vmul.f32 %v6222, %v7318
        %v7575 = vmul.f32 %v6224, %v7319
        %v7576 = vmul.f32 %v6226, %v7320
        %v7577 = vmul.f32 %v6228, %v7321
        %v7578 = vmul.f32 %v6230, %v7322
        %v7579 = vmul.f32 %v6232, %v7323
        %v7580 = vmul.f32 %v6234, %v7324
        %v7581 = vmul.f32 %v6236, %v7325
        %v7582 = vmul.f32 %v6238, %v7326
        %v7583 = vmul.f32 %v6240, %v7327
        %v7584 = vmul.f32 %v6242, %v7328
        %v7585 = vmul.f32 %v6244, %v7329
        %v7586 = vmul.f32 %v6246, %v7330
        %v7587 = vmul.f32 %v6248, %v7331
        %v7588 = vmul.f32 %v6250, %v7332
        %v7589 = vmul.f32 %v6252, %v7333
        %v7590 = vmul.f32 %v6254, %v7334
        %v7591 = vmul.f32 %v6256, %v7335
        %v7592 = vmul.f32 %v6258, %v7336
        %v7593 = vmul.f32 %v6260, %v7337
        %v7594 = vmul.f32 %v6262, %v7338
        %v7595 = vmul.f32 %v6264, %v7339
        %v7596 = vmul.f32 %v6266, %v7340
        %v7597 = vmul.f32 %v6268, %v7341
        %v7598 = vmul.f32 %v6270, %v7342
        %v7599 = vmul.f32 %v6272, %v7343
        %v7600 = vmul.f32 %v6274, %v7344
        %v7601 = vmul.f32 %v6276, %v7345
        %v7602 = vmul.f32 %v6278, %v7346
        %v7603 = vmul.f32 %v6280, %v7347
        %v7604 = vmul.f32 %v6282, %v7348
        %v7605 = vmul.f32 %v6284, %v7349
        %v7606 = vmul.f32 %v6286, %v7350
        %v7607 = vmul.f32 %v6288, %v7351
        %v7608 = vmul.f32 %v6290, %v7352
        %v7609 = vmul.f32 %v6292, %v7353
        %v7610 = vmul.f32 %v6294, %v7354
        %v7611 = vmul.f32 %v6296, %v7355
        %v7612 = vmul.f32 %v6298, %v7356
        %v7613 = vmul.f32 %v6300, %v7357
        %v7614 = vmul.f32 %v6302, %v7358
        %v7615 = vmul.f32 %v6304, %v7359
        %v7616 = vmul.f32 %v6306, %v7360
        %v7617 = vmul.f32 %v6308, %v7361
        %v7618 = vmul.f32 %v6310, %v7362
        %v7619 = vmul.f32 %v6312, %v7363
        %v7620 = vmul.f32 %v6314, %v7364
        %v7621 = vmul.f32 %v6316, %v7365
        %v7622 = vmul.f32 %v6318, %v7366
        %v7623 = vmul.f32 %v6320, %v7367
        %v7624 = vmul.f32 %v6322, %v7368
        %v7625 = vmul.f32 %v6324, %v7369
        %v7626 = vmul.f32 %v6326, %v7370
        %v7627 = vmul.f32 %v6328, %v7371
        %v7628 = vmul.f32 %v6330, %v7372
        %v7629 = vmul.f32 %v6332, %v7373
        %v7630 = vmul.f32 %v6334, %v7374
        %v7631 = vmul.f32 %v6336, %v7375
        %v7632 = vmul.f32 %v6338, %v7376
        %v7633 = vmul.f32 %v6340, %v7377
        %v7634 = vmul.f32 %v6342, %v7378
        %v7635 = vmul.f32 %v6344, %v7379
        %v7636 = vmul.f32 %v6346, %v7380
        %v7637 = vmul.f32 %v6348, %v7381
        %v7638 = vmul.f32 %v6350, %v7382
        %v7639 = vmul.f32 %v6352, %v7383
        %v7640 = vmul.f32 %v6354, %v7384
        %v7641 = vmul.f32 %v6356, %v7385
        %v7642 = vmul.f32 %v6358, %v7386
        %v7643 = vmul.f32 %v6360, %v7387
        %v7644 = vmul.f32 %v6362, %v7388
        %v7645 = vmul.f32 %v6364, %v7389
        %v7646 = vmul.f32 %v6366, %v7390
        %v7647 = vpack.c.bf16 %v7392, %v7391
        %v7648 = vpack.c.bf16 %v7394, %v7393
        %v7649 = vpack.c.bf16 %v7396, %v7395
        %v7650 = vpack.c.bf16 %v7398, %v7397
        %v7651 = vpack.c.bf16 %v7400, %v7399
        %v7652 = vpack.c.bf16 %v7402, %v7401
        %v7653 = vpack.c.bf16 %v7404, %v7403
        %v7654 = vpack.c.bf16 %v7406, %v7405
        %v7655 = vpack.c.bf16 %v7408, %v7407
        %v7656 = vpack.c.bf16 %v7410, %v7409
        %v7657 = vpack.c.bf16 %v7412, %v7411
        %v7658 = vpack.c.bf16 %v7414, %v7413
        %v7659 = vpack.c.bf16 %v7416, %v7415
        %v7660 = vpack.c.bf16 %v7418, %v7417
        %v7661 = vpack.c.bf16 %v7420, %v7419
        %v7662 = vpack.c.bf16 %v7422, %v7421
        %v7663 = vpack.c.bf16 %v7424, %v7423
        %v7664 = vpack.c.bf16 %v7426, %v7425
        %v7665 = vpack.c.bf16 %v7428, %v7427
        %v7666 = vpack.c.bf16 %v7430, %v7429
        %v7667 = vpack.c.bf16 %v7432, %v7431
        %v7668 = vpack.c.bf16 %v7434, %v7433
        %v7669 = vpack.c.bf16 %v7436, %v7435
        %v7670 = vpack.c.bf16 %v7438, %v7437
        %v7671 = vpack.c.bf16 %v7440, %v7439
        %v7672 = vpack.c.bf16 %v7442, %v7441
        %v7673 = vpack.c.bf16 %v7444, %v7443
        %v7674 = vpack.c.bf16 %v7446, %v7445
        %v7675 = vpack.c.bf16 %v7448, %v7447
        %v7676 = vpack.c.bf16 %v7450, %v7449
        %v7677 = vpack.c.bf16 %v7452, %v7451
        %v7678 = vpack.c.bf16 %v7454, %v7453
        %v7679 = vpack.c.bf16 %v7456, %v7455
        %v7680 = vpack.c.bf16 %v7458, %v7457
        %v7681 = vpack.c.bf16 %v7460, %v7459
        %v7682 = vpack.c.bf16 %v7462, %v7461
        %v7683 = vpack.c.bf16 %v7464, %v7463
        %v7684 = vpack.c.bf16 %v7466, %v7465
        %v7685 = vpack.c.bf16 %v7468, %v7467
        %v7686 = vpack.c.bf16 %v7470, %v7469
        %v7687 = vpack.c.bf16 %v7472, %v7471
        %v7688 = vpack.c.bf16 %v7474, %v7473
        %v7689 = vpack.c.bf16 %v7476, %v7475
        %v7690 = vpack.c.bf16 %v7478, %v7477
        %v7691 = vpack.c.bf16 %v7480, %v7479
        %v7692 = vpack.c.bf16 %v7482, %v7481
        %v7693 = vpack.c.bf16 %v7484, %v7483
        %v7694 = vpack.c.bf16 %v7486, %v7485
        %v7695 = vpack.c.bf16 %v7488, %v7487
        %v7696 = vpack.c.bf16 %v7490, %v7489
        %v7697 = vpack.c.bf16 %v7492, %v7491
        %v7698 = vpack.c.bf16 %v7494, %v7493
        %v7699 = vpack.c.bf16 %v7496, %v7495
        %v7700 = vpack.c.bf16 %v7498, %v7497
        %v7701 = vpack.c.bf16 %v7500, %v7499
        %v7702 = vpack.c.bf16 %v7502, %v7501
        %v7703 = vpack.c.bf16 %v7504, %v7503
        %v7704 = vpack.c.bf16 %v7506, %v7505
        %v7705 = vpack.c.bf16 %v7508, %v7507
        %v7706 = vpack.c.bf16 %v7510, %v7509
        %v7707 = vpack.c.bf16 %v7512, %v7511
        %v7708 = vpack.c.bf16 %v7514, %v7513
        %v7709 = vpack.c.bf16 %v7516, %v7515
        %v7710 = vpack.c.bf16 %v7518, %v7517
        %v7711 = vpack.c.bf16 %v7520, %v7519
        %v7712 = vpack.c.bf16 %v7522, %v7521
        %v7713 = vpack.c.bf16 %v7524, %v7523
        %v7714 = vpack.c.bf16 %v7526, %v7525
        %v7715 = vpack.c.bf16 %v7528, %v7527
        %v7716 = vpack.c.bf16 %v7530, %v7529
        %v7717 = vpack.c.bf16 %v7532, %v7531
        %v7718 = vpack.c.bf16 %v7534, %v7533
        %v7719 = vpack.c.bf16 %v7536, %v7535
        %v7720 = vpack.c.bf16 %v7538, %v7537
        %v7721 = vpack.c.bf16 %v7540, %v7539
        %v7722 = vpack.c.bf16 %v7542, %v7541
        %v7723 = vpack.c.bf16 %v7544, %v7543
        %v7724 = vpack.c.bf16 %v7546, %v7545
        %v7725 = vpack.c.bf16 %v7548, %v7547
        %v7726 = vpack.c.bf16 %v7550, %v7549
        %v7727 = vpack.c.bf16 %v7552, %v7551
        %v7728 = vpack.c.bf16 %v7554, %v7553
        %v7729 = vpack.c.bf16 %v7556, %v7555
        %v7730 = vpack.c.bf16 %v7558, %v7557
        %v7731 = vpack.c.bf16 %v7560, %v7559
        %v7732 = vpack.c.bf16 %v7562, %v7561
        %v7733 = vpack.c.bf16 %v7564, %v7563
        %v7734 = vpack.c.bf16 %v7566, %v7565
        %v7735 = vpack.c.bf16 %v7568, %v7567
        %v7736 = vpack.c.bf16 %v7570, %v7569
        %v7737 = vpack.c.bf16 %v7572, %v7571
        %v7738 = vpack.c.bf16 %v7574, %v7573
        %v7739 = vpack.c.bf16 %v7576, %v7575
        %v7740 = vpack.c.bf16 %v7578, %v7577
        %v7741 = vpack.c.bf16 %v7580, %v7579
        %v7742 = vpack.c.bf16 %v7582, %v7581
        %v7743 = vpack.c.bf16 %v7584, %v7583
        %v7744 = vpack.c.bf16 %v7586, %v7585
        %v7745 = vpack.c.bf16 %v7588, %v7587
        %v7746 = vpack.c.bf16 %v7590, %v7589
        %v7747 = vpack.c.bf16 %v7592, %v7591
        %v7748 = vpack.c.bf16 %v7594, %v7593
        %v7749 = vpack.c.bf16 %v7596, %v7595
        %v7750 = vpack.c.bf16 %v7598, %v7597
        %v7751 = vpack.c.bf16 %v7600, %v7599
        %v7752 = vpack.c.bf16 %v7602, %v7601
        %v7753 = vpack.c.bf16 %v7604, %v7603
        %v7754 = vpack.c.bf16 %v7606, %v7605
        %v7755 = vpack.c.bf16 %v7608, %v7607
        %v7756 = vpack.c.bf16 %v7610, %v7609
        %v7757 = vpack.c.bf16 %v7612, %v7611
        %v7758 = vpack.c.bf16 %v7614, %v7613
        %v7759 = vpack.c.bf16 %v7616, %v7615
        %v7760 = vpack.c.bf16 %v7618, %v7617
        %v7761 = vpack.c.bf16 %v7620, %v7619
        %v7762 = vpack.c.bf16 %v7622, %v7621
        %v7763 = vpack.c.bf16 %v7624, %v7623
        %v7764 = vpack.c.bf16 %v7626, %v7625
        %v7765 = vpack.c.bf16 %v7628, %v7627
        %v7766 = vpack.c.bf16 %v7630, %v7629
        %v7767 = vpack.c.bf16 %v7632, %v7631
        %v7768 = vpack.c.bf16 %v7634, %v7633
        %v7769 = vpack.c.bf16 %v7636, %v7635
        %v7770 = vpack.c.bf16 %v7638, %v7637
        %v7771 = vpack.c.bf16 %v7640, %v7639
        %v7772 = vpack.c.bf16 %v7642, %v7641
        %v7773 = vpack.c.bf16 %v7644, %v7643
        %v7774 = vpack.c.bf16 %v7646, %v7645
        %v7776 = vsel %vm557, %v7647, 0
        %v7779 = vsel %vm557, %v7648, 0
        %v7782 = vsel %vm557, %v7649, 0
        %v7785 = vsel %vm557, %v7650, 0
        %7787 = vmatprep.subr.bf16.mxu0 0
        %7788 = vmatpush1.bf16.msra.mxu0 0
        %7789 = vmatprep.subr.bf16.mxu0 0
        %7790 = vmatpush1.bf16.msra.mxu0 0
        %7791 = vmatprep.subr.bf16.mxu0 0
        %7792 = vmatpush1.bf16.msra.mxu0 0
        %7793 = vmatprep.subr.bf16.mxu0 0
        %7794 = vmatpush1.bf16.msra.mxu0 0
        %7795 = vmatprep.subr.bf16.mxu0 0
        %7796 = vmatpush1.bf16.msra.mxu0 %v1538
        %7797 = vmatprep.subr.bf16.mxu0 0
        %7798 = vmatpush1.bf16.msra.mxu0 %v1537
        %7799 = vmatprep.subr.bf16.mxu0 0
        %7800 = vmatpush1.bf16.msra.mxu0 %v1536
        %7801 = vmatprep.subr.bf16.mxu0 0
        %7802 = vmatpush1.bf16.msra.mxu0 %v1535
        %7803 = vmatprep.subr.bf16.mxu0 0
        %7804 = vmatpush2.bf16.msra.mxu0 0
        %7805 = vmatprep.subr.bf16.mxu0 0
        %7806 = vmatpush2.bf16.msra.mxu0 0
        %7807 = vmatprep.subr.bf16.mxu0 0
        %7808 = vmatpush2.bf16.msra.mxu0 0
        %7809 = vmatprep.subr.bf16.mxu0 0
        %7810 = vmatpush2.bf16.msra.mxu0 0
        %7811 = vmatprep.subr.bf16.mxu0 0
        %7812 = vmatpush2.bf16.msra.mxu0 0
        %7813 = vmatprep.subr.bf16.mxu0 0
        %7814 = vmatpush2.bf16.msra.mxu0 0
        %7815 = vmatprep.subr.bf16.mxu0 0
        %7816 = vmatpush2.bf16.msra.mxu0 0
        %7817 = vmatprep.subr.bf16.mxu0 0
        %7818 = vmatpush2.bf16.msra.mxu0 0
        %7819 = vmatprep.mubr.bf16.mxu0 0
        %7820 = vmatmul.mubr.bf16.gmra.mxu0 %v7776
        %v7821 = vpop.f32.mrf.mxu0
        %v7822 = vadd.f32 0.0, %v7821
        %v7823 = vpop.f32.mrf.mxu0
        %v7824 = vpop.f32.mrf.mxu0
        %v7825 = vadd.f32 0.0, %v7824
        %v7826 = vpop.f32.mrf.mxu0
        %7827 = vmatprep.mubr.bf16.mxu0 0
        %7828 = vmatmul.mubr.bf16.gmra.mxu0 %v7779
        %v7829 = vpop.f32.mrf.mxu0
        %v7830 = vadd.f32 0.0, %v7829
        %v7831 = vpop.f32.mrf.mxu0
        %v7832 = vpop.f32.mrf.mxu0
        %v7833 = vadd.f32 0.0, %v7832
        %v7834 = vpop.f32.mrf.mxu0
        %7835 = vmatprep.mubr.bf16.mxu0 0
        %7836 = vmatmul.mubr.bf16.gmra.mxu0 %v7782
        %v7837 = vpop.f32.mrf.mxu0
        %v7838 = vadd.f32 0.0, %v7837
        %v7839 = vpop.f32.mrf.mxu0
        %v7840 = vpop.f32.mrf.mxu0
        %v7841 = vadd.f32 0.0, %v7840
        %v7842 = vpop.f32.mrf.mxu0
        %7843 = vmatprep.mubr.bf16.mxu0 0
        %7844 = vmatmul.mubr.bf16.gmra.mxu0 %v7785
        %v7845 = vpop.f32.mrf.mxu0
        %v7846 = vadd.f32 0.0, %v7845
        %v7847 = vpop.f32.mrf.mxu0
        %v7848 = vpop.f32.mrf.mxu0
        %v7849 = vadd.f32 0.0, %v7848
        %v7850 = vpop.f32.mrf.mxu0
        %7851 = vdwg.mxu0
        %v7853 = vsel %vm557, %v7651, 0
        %v7856 = vsel %vm557, %v7652, 0
        %v7859 = vsel %vm557, %v7653, 0
        %v7862 = vsel %vm557, %v7654, 0
        %7864 = vmatprep.subr.bf16.mxu0 0
        %7865 = vmatpush1.bf16.msra.mxu0 0
        %7866 = vmatprep.subr.bf16.mxu0 0
        %7867 = vmatpush1.bf16.msra.mxu0 0
        %7868 = vmatprep.subr.bf16.mxu0 0
        %7869 = vmatpush1.bf16.msra.mxu0 0
        %7870 = vmatprep.subr.bf16.mxu0 0
        %7871 = vmatpush1.bf16.msra.mxu0 0
        %7872 = vmatprep.subr.bf16.mxu0 0
        %7873 = vmatpush1.bf16.msra.mxu0 %v1542
        %7874 = vmatprep.subr.bf16.mxu0 0
        %7875 = vmatpush1.bf16.msra.mxu0 %v1541
        %7876 = vmatprep.subr.bf16.mxu0 0
        %7877 = vmatpush1.bf16.msra.mxu0 %v1540
        %7878 = vmatprep.subr.bf16.mxu0 0
        %7879 = vmatpush1.bf16.msra.mxu0 %v1539
        %7880 = vmatprep.subr.bf16.mxu0 0
        %7881 = vmatpush2.bf16.msra.mxu0 0
        %7882 = vmatprep.subr.bf16.mxu0 0
        %7883 = vmatpush2.bf16.msra.mxu0 0
        %7884 = vmatprep.subr.bf16.mxu0 0
        %7885 = vmatpush2.bf16.msra.mxu0 0
        %7886 = vmatprep.subr.bf16.mxu0 0
        %7887 = vmatpush2.bf16.msra.mxu0 0
        %7888 = vmatprep.subr.bf16.mxu0 0
        %7889 = vmatpush2.bf16.msra.mxu0 0
        %7890 = vmatprep.subr.bf16.mxu0 0
        %7891 = vmatpush2.bf16.msra.mxu0 0
        %7892 = vmatprep.subr.bf16.mxu0 0
        %7893 = vmatpush2.bf16.msra.mxu0 0
        %7894 = vmatprep.subr.bf16.mxu0 0
        %7895 = vmatpush2.bf16.msra.mxu0 0
        %7896 = vmatprep.mubr.bf16.mxu0 0
        %7897 = vmatmul.mubr.bf16.gmra.mxu0 %v7853
        %v7898 = vpop.f32.mrf.mxu0
        %v7899 = vadd.f32 0.0, %v7898
        %v7900 = vpop.f32.mrf.mxu0
        %v7901 = vpop.f32.mrf.mxu0
        %v7902 = vadd.f32 0.0, %v7901
        %v7903 = vpop.f32.mrf.mxu0
        %7904 = vmatprep.mubr.bf16.mxu0 0
        %7905 = vmatmul.mubr.bf16.gmra.mxu0 %v7856
        %v7906 = vpop.f32.mrf.mxu0
        %v7907 = vadd.f32 0.0, %v7906
        %v7908 = vpop.f32.mrf.mxu0
        %v7909 = vpop.f32.mrf.mxu0
        %v7910 = vadd.f32 0.0, %v7909
        %v7911 = vpop.f32.mrf.mxu0
        %7912 = vmatprep.mubr.bf16.mxu0 0
        %7913 = vmatmul.mubr.bf16.gmra.mxu0 %v7859
        %v7914 = vpop.f32.mrf.mxu0
        %v7915 = vadd.f32 0.0, %v7914
        %v7916 = vpop.f32.mrf.mxu0
        %v7917 = vpop.f32.mrf.mxu0
        %v7918 = vadd.f32 0.0, %v7917
        %v7919 = vpop.f32.mrf.mxu0
        %7920 = vmatprep.mubr.bf16.mxu0 0
        %7921 = vmatmul.mubr.bf16.gmra.mxu0 %v7862
        %v7922 = vpop.f32.mrf.mxu0
        %v7923 = vadd.f32 0.0, %v7922
        %v7924 = vpop.f32.mrf.mxu0
        %v7925 = vpop.f32.mrf.mxu0
        %v7926 = vadd.f32 0.0, %v7925
        %v7927 = vpop.f32.mrf.mxu0
        %7928 = vdwg.mxu0
        %v7930 = vsel %vm557, %v7655, 0
        %v7933 = vsel %vm557, %v7656, 0
        %v7936 = vsel %vm557, %v7657, 0
        %v7939 = vsel %vm557, %v7658, 0
        %7941 = vmatprep.subr.bf16.mxu0 0
        %7942 = vmatpush1.bf16.msra.mxu0 0
        %7943 = vmatprep.subr.bf16.mxu0 0
        %7944 = vmatpush1.bf16.msra.mxu0 0
        %7945 = vmatprep.subr.bf16.mxu0 0
        %7946 = vmatpush1.bf16.msra.mxu0 0
        %7947 = vmatprep.subr.bf16.mxu0 0
        %7948 = vmatpush1.bf16.msra.mxu0 0
        %7949 = vmatprep.subr.bf16.mxu0 0
        %7950 = vmatpush1.bf16.msra.mxu0 %v1546
        %7951 = vmatprep.subr.bf16.mxu0 0
        %7952 = vmatpush1.bf16.msra.mxu0 %v1545
        %7953 = vmatprep.subr.bf16.mxu0 0
        %7954 = vmatpush1.bf16.msra.mxu0 %v1544
        %7955 = vmatprep.subr.bf16.mxu0 0
        %7956 = vmatpush1.bf16.msra.mxu0 %v1543
        %7957 = vmatprep.subr.bf16.mxu0 0
        %7958 = vmatpush2.bf16.msra.mxu0 0
        %7959 = vmatprep.subr.bf16.mxu0 0
        %7960 = vmatpush2.bf16.msra.mxu0 0
        %7961 = vmatprep.subr.bf16.mxu0 0
        %7962 = vmatpush2.bf16.msra.mxu0 0
        %7963 = vmatprep.subr.bf16.mxu0 0
        %7964 = vmatpush2.bf16.msra.mxu0 0
        %7965 = vmatprep.subr.bf16.mxu0 0
        %7966 = vmatpush2.bf16.msra.mxu0 0
        %7967 = vmatprep.subr.bf16.mxu0 0
        %7968 = vmatpush2.bf16.msra.mxu0 0
        %7969 = vmatprep.subr.bf16.mxu0 0
        %7970 = vmatpush2.bf16.msra.mxu0 0
        %7971 = vmatprep.subr.bf16.mxu0 0
        %7972 = vmatpush2.bf16.msra.mxu0 0
        %7973 = vmatprep.mubr.bf16.mxu0 0
        %7974 = vmatmul.mubr.bf16.gmra.mxu0 %v7930
        %v7975 = vpop.f32.mrf.mxu0
        %v7976 = vadd.f32 0.0, %v7975
        %v7977 = vpop.f32.mrf.mxu0
        %v7978 = vpop.f32.mrf.mxu0
        %v7979 = vadd.f32 0.0, %v7978
        %v7980 = vpop.f32.mrf.mxu0
        %7981 = vmatprep.mubr.bf16.mxu0 0
        %7982 = vmatmul.mubr.bf16.gmra.mxu0 %v7933
        %v7983 = vpop.f32.mrf.mxu0
        %v7984 = vadd.f32 0.0, %v7983
        %v7985 = vpop.f32.mrf.mxu0
        %v7986 = vpop.f32.mrf.mxu0
        %v7987 = vadd.f32 0.0, %v7986
        %v7988 = vpop.f32.mrf.mxu0
        %7989 = vmatprep.mubr.bf16.mxu0 0
        %7990 = vmatmul.mubr.bf16.gmra.mxu0 %v7936
        %v7991 = vpop.f32.mrf.mxu0
        %v7992 = vadd.f32 0.0, %v7991
        %v7993 = vpop.f32.mrf.mxu0
        %v7994 = vpop.f32.mrf.mxu0
        %v7995 = vadd.f32 0.0, %v7994
        %v7996 = vpop.f32.mrf.mxu0
        %7997 = vmatprep.mubr.bf16.mxu0 0
        %7998 = vmatmul.mubr.bf16.gmra.mxu0 %v7939
        %v7999 = vpop.f32.mrf.mxu0
        %v8000 = vadd.f32 0.0, %v7999
        %v8001 = vpop.f32.mrf.mxu0
        %v8002 = vpop.f32.mrf.mxu0
        %v8003 = vadd.f32 0.0, %v8002
        %v8004 = vpop.f32.mrf.mxu0
        %8005 = vdwg.mxu0
        %v8007 = vsel %vm557, %v7659, 0
        %v8010 = vsel %vm557, %v7660, 0
        %v8013 = vsel %vm557, %v7661, 0
        %v8016 = vsel %vm557, %v7662, 0
        %8018 = vmatprep.subr.bf16.mxu0 0
        %8019 = vmatpush1.bf16.msra.mxu0 0
        %8020 = vmatprep.subr.bf16.mxu0 0
        %8021 = vmatpush1.bf16.msra.mxu0 0
        %8022 = vmatprep.subr.bf16.mxu0 0
        %8023 = vmatpush1.bf16.msra.mxu0 0
        %8024 = vmatprep.subr.bf16.mxu0 0
        %8025 = vmatpush1.bf16.msra.mxu0 0
        %8026 = vmatprep.subr.bf16.mxu0 0
        %8027 = vmatpush1.bf16.msra.mxu0 %v1550
        %8028 = vmatprep.subr.bf16.mxu0 0
        %8029 = vmatpush1.bf16.msra.mxu0 %v1549
        %8030 = vmatprep.subr.bf16.mxu0 0
        %8031 = vmatpush1.bf16.msra.mxu0 %v1548
        %8032 = vmatprep.subr.bf16.mxu0 0
        %8033 = vmatpush1.bf16.msra.mxu0 %v1547
        %8034 = vmatprep.subr.bf16.mxu0 0
        %8035 = vmatpush2.bf16.msra.mxu0 0
        %8036 = vmatprep.subr.bf16.mxu0 0
        %8037 = vmatpush2.bf16.msra.mxu0 0
        %8038 = vmatprep.subr.bf16.mxu0 0
        %8039 = vmatpush2.bf16.msra.mxu0 0
        %8040 = vmatprep.subr.bf16.mxu0 0
        %8041 = vmatpush2.bf16.msra.mxu0 0
        %8042 = vmatprep.subr.bf16.mxu0 0
        %8043 = vmatpush2.bf16.msra.mxu0 0
        %8044 = vmatprep.subr.bf16.mxu0 0
        %8045 = vmatpush2.bf16.msra.mxu0 0
        %8046 = vmatprep.subr.bf16.mxu0 0
        %8047 = vmatpush2.bf16.msra.mxu0 0
        %8048 = vmatprep.subr.bf16.mxu0 0
        %8049 = vmatpush2.bf16.msra.mxu0 0
        %8050 = vmatprep.mubr.bf16.mxu0 0
        %8051 = vmatmul.mubr.bf16.gmra.mxu0 %v8007
        %v8052 = vpop.f32.mrf.mxu0
        %v8053 = vadd.f32 0.0, %v8052
        %v8054 = vpop.f32.mrf.mxu0
        %v8055 = vpop.f32.mrf.mxu0
        %v8056 = vadd.f32 0.0, %v8055
        %v8057 = vpop.f32.mrf.mxu0
        %8058 = vmatprep.mubr.bf16.mxu0 0
        %8059 = vmatmul.mubr.bf16.gmra.mxu0 %v8010
        %v8060 = vpop.f32.mrf.mxu0
        %v8061 = vadd.f32 0.0, %v8060
        %v8062 = vpop.f32.mrf.mxu0
        %v8063 = vpop.f32.mrf.mxu0
        %v8064 = vadd.f32 0.0, %v8063
        %v8065 = vpop.f32.mrf.mxu0
        %8066 = vmatprep.mubr.bf16.mxu0 0
        %8067 = vmatmul.mubr.bf16.gmra.mxu0 %v8013
        %v8068 = vpop.f32.mrf.mxu0
        %v8069 = vadd.f32 0.0, %v8068
        %v8070 = vpop.f32.mrf.mxu0
        %v8071 = vpop.f32.mrf.mxu0
        %v8072 = vadd.f32 0.0, %v8071
        %v8073 = vpop.f32.mrf.mxu0
        %8074 = vmatprep.mubr.bf16.mxu0 0
        %8075 = vmatmul.mubr.bf16.gmra.mxu0 %v8016
        %v8076 = vpop.f32.mrf.mxu0
        %v8077 = vadd.f32 0.0, %v8076
        %v8078 = vpop.f32.mrf.mxu0
        %v8079 = vpop.f32.mrf.mxu0
        %v8080 = vadd.f32 0.0, %v8079
        %v8081 = vpop.f32.mrf.mxu0
        %8082 = vdwg.mxu0
        %v8084 = vsel %vm557, %v7663, 0
        %v8087 = vsel %vm557, %v7664, 0
        %v8090 = vsel %vm557, %v7665, 0
        %v8093 = vsel %vm557, %v7666, 0
        %8095 = vmatprep.subr.bf16.mxu0 0
        %8096 = vmatpush1.bf16.msra.mxu0 0
        %8097 = vmatprep.subr.bf16.mxu0 0
        %8098 = vmatpush1.bf16.msra.mxu0 0
        %8099 = vmatprep.subr.bf16.mxu0 0
        %8100 = vmatpush1.bf16.msra.mxu0 0
        %8101 = vmatprep.subr.bf16.mxu0 0
        %8102 = vmatpush1.bf16.msra.mxu0 0
        %8103 = vmatprep.subr.bf16.mxu0 0
        %8104 = vmatpush1.bf16.msra.mxu0 %v1554
        %8105 = vmatprep.subr.bf16.mxu0 0
        %8106 = vmatpush1.bf16.msra.mxu0 %v1553
        %8107 = vmatprep.subr.bf16.mxu0 0
        %8108 = vmatpush1.bf16.msra.mxu0 %v1552
        %8109 = vmatprep.subr.bf16.mxu0 0
        %8110 = vmatpush1.bf16.msra.mxu0 %v1551
        %8111 = vmatprep.subr.bf16.mxu0 0
        %8112 = vmatpush2.bf16.msra.mxu0 0
        %8113 = vmatprep.subr.bf16.mxu0 0
        %8114 = vmatpush2.bf16.msra.mxu0 0
        %8115 = vmatprep.subr.bf16.mxu0 0
        %8116 = vmatpush2.bf16.msra.mxu0 0
        %8117 = vmatprep.subr.bf16.mxu0 0
        %8118 = vmatpush2.bf16.msra.mxu0 0
        %8119 = vmatprep.subr.bf16.mxu0 0
        %8120 = vmatpush2.bf16.msra.mxu0 0
        %8121 = vmatprep.subr.bf16.mxu0 0
        %8122 = vmatpush2.bf16.msra.mxu0 0
        %8123 = vmatprep.subr.bf16.mxu0 0
        %8124 = vmatpush2.bf16.msra.mxu0 0
        %8125 = vmatprep.subr.bf16.mxu0 0
        %8126 = vmatpush2.bf16.msra.mxu0 0
        %8127 = vmatprep.mubr.bf16.mxu0 0
        %8128 = vmatmul.mubr.bf16.gmra.mxu0 %v8084
        %v8129 = vpop.f32.mrf.mxu0
        %v8130 = vadd.f32 0.0, %v8129
        %v8131 = vpop.f32.mrf.mxu0
        %v8132 = vpop.f32.mrf.mxu0
        %v8133 = vadd.f32 0.0, %v8132
        %v8134 = vpop.f32.mrf.mxu0
        %8135 = vmatprep.mubr.bf16.mxu0 0
        %8136 = vmatmul.mubr.bf16.gmra.mxu0 %v8087
        %v8137 = vpop.f32.mrf.mxu0
        %v8138 = vadd.f32 0.0, %v8137
        %v8139 = vpop.f32.mrf.mxu0
        %v8140 = vpop.f32.mrf.mxu0
        %v8141 = vadd.f32 0.0, %v8140
        %v8142 = vpop.f32.mrf.mxu0
        %8143 = vmatprep.mubr.bf16.mxu0 0
        %8144 = vmatmul.mubr.bf16.gmra.mxu0 %v8090
        %v8145 = vpop.f32.mrf.mxu0
        %v8146 = vadd.f32 0.0, %v8145
        %v8147 = vpop.f32.mrf.mxu0
        %v8148 = vpop.f32.mrf.mxu0
        %v8149 = vadd.f32 0.0, %v8148
        %v8150 = vpop.f32.mrf.mxu0
        %8151 = vmatprep.mubr.bf16.mxu0 0
        %8152 = vmatmul.mubr.bf16.gmra.mxu0 %v8093
        %v8153 = vpop.f32.mrf.mxu0
        %v8154 = vadd.f32 0.0, %v8153
        %v8155 = vpop.f32.mrf.mxu0
        %v8156 = vpop.f32.mrf.mxu0
        %v8157 = vadd.f32 0.0, %v8156
        %v8158 = vpop.f32.mrf.mxu0
        %8159 = vdwg.mxu0
        %v8161 = vsel %vm557, %v7667, 0
        %v8164 = vsel %vm557, %v7668, 0
        %v8167 = vsel %vm557, %v7669, 0
        %v8170 = vsel %vm557, %v7670, 0
        %8172 = vmatprep.subr.bf16.mxu0 0
        %8173 = vmatpush1.bf16.msra.mxu0 0
        %8174 = vmatprep.subr.bf16.mxu0 0
        %8175 = vmatpush1.bf16.msra.mxu0 0
        %8176 = vmatprep.subr.bf16.mxu0 0
        %8177 = vmatpush1.bf16.msra.mxu0 0
        %8178 = vmatprep.subr.bf16.mxu0 0
        %8179 = vmatpush1.bf16.msra.mxu0 0
        %8180 = vmatprep.subr.bf16.mxu0 0
        %8181 = vmatpush1.bf16.msra.mxu0 %v1558
        %8182 = vmatprep.subr.bf16.mxu0 0
        %8183 = vmatpush1.bf16.msra.mxu0 %v1557
        %8184 = vmatprep.subr.bf16.mxu0 0
        %8185 = vmatpush1.bf16.msra.mxu0 %v1556
        %8186 = vmatprep.subr.bf16.mxu0 0
        %8187 = vmatpush1.bf16.msra.mxu0 %v1555
        %8188 = vmatprep.subr.bf16.mxu0 0
        %8189 = vmatpush2.bf16.msra.mxu0 0
        %8190 = vmatprep.subr.bf16.mxu0 0
        %8191 = vmatpush2.bf16.msra.mxu0 0
        %8192 = vmatprep.subr.bf16.mxu0 0
        %8193 = vmatpush2.bf16.msra.mxu0 0
        %8194 = vmatprep.subr.bf16.mxu0 0
        %8195 = vmatpush2.bf16.msra.mxu0 0
        %8196 = vmatprep.subr.bf16.mxu0 0
        %8197 = vmatpush2.bf16.msra.mxu0 0
        %8198 = vmatprep.subr.bf16.mxu0 0
        %8199 = vmatpush2.bf16.msra.mxu0 0
        %8200 = vmatprep.subr.bf16.mxu0 0
        %8201 = vmatpush2.bf16.msra.mxu0 0
        %8202 = vmatprep.subr.bf16.mxu0 0
        %8203 = vmatpush2.bf16.msra.mxu0 0
        %8204 = vmatprep.mubr.bf16.mxu0 0
        %8205 = vmatmul.mubr.bf16.gmra.mxu0 %v8161
        %v8206 = vpop.f32.mrf.mxu0
        %v8207 = vadd.f32 0.0, %v8206
        %v8208 = vpop.f32.mrf.mxu0
        %v8209 = vpop.f32.mrf.mxu0
        %v8210 = vadd.f32 0.0, %v8209
        %v8211 = vpop.f32.mrf.mxu0
        %8212 = vmatprep.mubr.bf16.mxu0 0
        %8213 = vmatmul.mubr.bf16.gmra.mxu0 %v8164
        %v8214 = vpop.f32.mrf.mxu0
        %v8215 = vadd.f32 0.0, %v8214
        %v8216 = vpop.f32.mrf.mxu0
        %v8217 = vpop.f32.mrf.mxu0
        %v8218 = vadd.f32 0.0, %v8217
        %v8219 = vpop.f32.mrf.mxu0
        %8220 = vmatprep.mubr.bf16.mxu0 0
        %8221 = vmatmul.mubr.bf16.gmra.mxu0 %v8167
        %v8222 = vpop.f32.mrf.mxu0
        %v8223 = vadd.f32 0.0, %v8222
        %v8224 = vpop.f32.mrf.mxu0
        %v8225 = vpop.f32.mrf.mxu0
        %v8226 = vadd.f32 0.0, %v8225
        %v8227 = vpop.f32.mrf.mxu0
        %8228 = vmatprep.mubr.bf16.mxu0 0
        %8229 = vmatmul.mubr.bf16.gmra.mxu0 %v8170
        %v8230 = vpop.f32.mrf.mxu0
        %v8231 = vadd.f32 0.0, %v8230
        %v8232 = vpop.f32.mrf.mxu0
        %v8233 = vpop.f32.mrf.mxu0
        %v8234 = vadd.f32 0.0, %v8233
        %v8235 = vpop.f32.mrf.mxu0
        %8236 = vdwg.mxu0
        %v8238 = vsel %vm557, %v7671, 0
        %v8241 = vsel %vm557, %v7672, 0
        %v8244 = vsel %vm557, %v7673, 0
        %v8247 = vsel %vm557, %v7674, 0
        %8249 = vmatprep.subr.bf16.mxu0 0
        %8250 = vmatpush1.bf16.msra.mxu0 0
        %8251 = vmatprep.subr.bf16.mxu0 0
        %8252 = vmatpush1.bf16.msra.mxu0 0
        %8253 = vmatprep.subr.bf16.mxu0 0
        %8254 = vmatpush1.bf16.msra.mxu0 0
        %8255 = vmatprep.subr.bf16.mxu0 0
        %8256 = vmatpush1.bf16.msra.mxu0 0
        %8257 = vmatprep.subr.bf16.mxu0 0
        %8258 = vmatpush1.bf16.msra.mxu0 %v1562
        %8259 = vmatprep.subr.bf16.mxu0 0
        %8260 = vmatpush1.bf16.msra.mxu0 %v1561
        %8261 = vmatprep.subr.bf16.mxu0 0
        %8262 = vmatpush1.bf16.msra.mxu0 %v1560
        %8263 = vmatprep.subr.bf16.mxu0 0
        %8264 = vmatpush1.bf16.msra.mxu0 %v1559
        %8265 = vmatprep.subr.bf16.mxu0 0
        %8266 = vmatpush2.bf16.msra.mxu0 0
        %8267 = vmatprep.subr.bf16.mxu0 0
        %8268 = vmatpush2.bf16.msra.mxu0 0
        %8269 = vmatprep.subr.bf16.mxu0 0
        %8270 = vmatpush2.bf16.msra.mxu0 0
        %8271 = vmatprep.subr.bf16.mxu0 0
        %8272 = vmatpush2.bf16.msra.mxu0 0
        %8273 = vmatprep.subr.bf16.mxu0 0
        %8274 = vmatpush2.bf16.msra.mxu0 0
        %8275 = vmatprep.subr.bf16.mxu0 0
        %8276 = vmatpush2.bf16.msra.mxu0 0
        %8277 = vmatprep.subr.bf16.mxu0 0
        %8278 = vmatpush2.bf16.msra.mxu0 0
        %8279 = vmatprep.subr.bf16.mxu0 0
        %8280 = vmatpush2.bf16.msra.mxu0 0
        %8281 = vmatprep.mubr.bf16.mxu0 0
        %8282 = vmatmul.mubr.bf16.gmra.mxu0 %v8238
        %v8283 = vpop.f32.mrf.mxu0
        %v8284 = vadd.f32 0.0, %v8283
        %v8285 = vpop.f32.mrf.mxu0
        %v8286 = vpop.f32.mrf.mxu0
        %v8287 = vadd.f32 0.0, %v8286
        %v8288 = vpop.f32.mrf.mxu0
        %8289 = vmatprep.mubr.bf16.mxu0 0
        %8290 = vmatmul.mubr.bf16.gmra.mxu0 %v8241
        %v8291 = vpop.f32.mrf.mxu0
        %v8292 = vadd.f32 0.0, %v8291
        %v8293 = vpop.f32.mrf.mxu0
        %v8294 = vpop.f32.mrf.mxu0
        %v8295 = vadd.f32 0.0, %v8294
        %v8296 = vpop.f32.mrf.mxu0
        %8297 = vmatprep.mubr.bf16.mxu0 0
        %8298 = vmatmul.mubr.bf16.gmra.mxu0 %v8244
        %v8299 = vpop.f32.mrf.mxu0
        %v8300 = vadd.f32 0.0, %v8299
        %v8301 = vpop.f32.mrf.mxu0
        %v8302 = vpop.f32.mrf.mxu0
        %v8303 = vadd.f32 0.0, %v8302
        %v8304 = vpop.f32.mrf.mxu0
        %8305 = vmatprep.mubr.bf16.mxu0 0
        %8306 = vmatmul.mubr.bf16.gmra.mxu0 %v8247
        %v8307 = vpop.f32.mrf.mxu0
        %v8308 = vadd.f32 0.0, %v8307
        %v8309 = vpop.f32.mrf.mxu0
        %v8310 = vpop.f32.mrf.mxu0
        %v8311 = vadd.f32 0.0, %v8310
        %v8312 = vpop.f32.mrf.mxu0
        %8313 = vdwg.mxu0
        %v8315 = vsel %vm557, %v7675, 0
        %v8318 = vsel %vm557, %v7676, 0
        %v8321 = vsel %vm557, %v7677, 0
        %v8324 = vsel %vm557, %v7678, 0
        %8326 = vmatprep.subr.bf16.mxu0 0
        %8327 = vmatpush1.bf16.msra.mxu0 0
        %8328 = vmatprep.subr.bf16.mxu0 0
        %8329 = vmatpush1.bf16.msra.mxu0 0
        %8330 = vmatprep.subr.bf16.mxu0 0
        %8331 = vmatpush1.bf16.msra.mxu0 0
        %8332 = vmatprep.subr.bf16.mxu0 0
        %8333 = vmatpush1.bf16.msra.mxu0 0
        %8334 = vmatprep.subr.bf16.mxu0 0
        %8335 = vmatpush1.bf16.msra.mxu0 %v1566
        %8336 = vmatprep.subr.bf16.mxu0 0
        %8337 = vmatpush1.bf16.msra.mxu0 %v1565
        %8338 = vmatprep.subr.bf16.mxu0 0
        %8339 = vmatpush1.bf16.msra.mxu0 %v1564
        %8340 = vmatprep.subr.bf16.mxu0 0
        %8341 = vmatpush1.bf16.msra.mxu0 %v1563
        %8342 = vmatprep.subr.bf16.mxu0 0
        %8343 = vmatpush2.bf16.msra.mxu0 0
        %8344 = vmatprep.subr.bf16.mxu0 0
        %8345 = vmatpush2.bf16.msra.mxu0 0
        %8346 = vmatprep.subr.bf16.mxu0 0
        %8347 = vmatpush2.bf16.msra.mxu0 0
        %8348 = vmatprep.subr.bf16.mxu0 0
        %8349 = vmatpush2.bf16.msra.mxu0 0
        %8350 = vmatprep.subr.bf16.mxu0 0
        %8351 = vmatpush2.bf16.msra.mxu0 0
        %8352 = vmatprep.subr.bf16.mxu0 0
        %8353 = vmatpush2.bf16.msra.mxu0 0
        %8354 = vmatprep.subr.bf16.mxu0 0
        %8355 = vmatpush2.bf16.msra.mxu0 0
        %8356 = vmatprep.subr.bf16.mxu0 0
        %8357 = vmatpush2.bf16.msra.mxu0 0
        %8358 = vmatprep.mubr.bf16.mxu0 0
        %8359 = vmatmul.mubr.bf16.gmra.mxu0 %v8315
        %v8360 = vpop.f32.mrf.mxu0
        %v8361 = vadd.f32 0.0, %v8360
        %v8362 = vpop.f32.mrf.mxu0
        %v8363 = vpop.f32.mrf.mxu0
        %v8364 = vadd.f32 0.0, %v8363
        %v8365 = vpop.f32.mrf.mxu0
        %8366 = vmatprep.mubr.bf16.mxu0 0
        %8367 = vmatmul.mubr.bf16.gmra.mxu0 %v8318
        %v8368 = vpop.f32.mrf.mxu0
        %v8369 = vadd.f32 0.0, %v8368
        %v8370 = vpop.f32.mrf.mxu0
        %v8371 = vpop.f32.mrf.mxu0
        %v8372 = vadd.f32 0.0, %v8371
        %v8373 = vpop.f32.mrf.mxu0
        %8374 = vmatprep.mubr.bf16.mxu0 0
        %8375 = vmatmul.mubr.bf16.gmra.mxu0 %v8321
        %v8376 = vpop.f32.mrf.mxu0
        %v8377 = vadd.f32 0.0, %v8376
        %v8378 = vpop.f32.mrf.mxu0
        %v8379 = vpop.f32.mrf.mxu0
        %v8380 = vadd.f32 0.0, %v8379
        %v8381 = vpop.f32.mrf.mxu0
        %8382 = vmatprep.mubr.bf16.mxu0 0
        %8383 = vmatmul.mubr.bf16.gmra.mxu0 %v8324
        %v8384 = vpop.f32.mrf.mxu0
        %v8385 = vadd.f32 0.0, %v8384
        %v8386 = vpop.f32.mrf.mxu0
        %v8387 = vpop.f32.mrf.mxu0
        %v8388 = vadd.f32 0.0, %v8387
        %v8389 = vpop.f32.mrf.mxu0
        %8390 = vdwg.mxu0
        %v8392 = vsel %vm557, %v7679, 0
        %v8395 = vsel %vm557, %v7680, 0
        %v8398 = vsel %vm557, %v7681, 0
        %v8401 = vsel %vm557, %v7682, 0
        %8403 = vmatprep.subr.bf16.mxu0 0
        %8404 = vmatpush1.bf16.msra.mxu0 0
        %8405 = vmatprep.subr.bf16.mxu0 0
        %8406 = vmatpush1.bf16.msra.mxu0 0
        %8407 = vmatprep.subr.bf16.mxu0 0
        %8408 = vmatpush1.bf16.msra.mxu0 0
        %8409 = vmatprep.subr.bf16.mxu0 0
        %8410 = vmatpush1.bf16.msra.mxu0 0
        %8411 = vmatprep.subr.bf16.mxu0 0
        %8412 = vmatpush1.bf16.msra.mxu0 %v1570
        %8413 = vmatprep.subr.bf16.mxu0 0
        %8414 = vmatpush1.bf16.msra.mxu0 %v1569
        %8415 = vmatprep.subr.bf16.mxu0 0
        %8416 = vmatpush1.bf16.msra.mxu0 %v1568
        %8417 = vmatprep.subr.bf16.mxu0 0
        %8418 = vmatpush1.bf16.msra.mxu0 %v1567
        %8419 = vmatprep.subr.bf16.mxu0 0
        %8420 = vmatpush2.bf16.msra.mxu0 0
        %8421 = vmatprep.subr.bf16.mxu0 0
        %8422 = vmatpush2.bf16.msra.mxu0 0
        %8423 = vmatprep.subr.bf16.mxu0 0
        %8424 = vmatpush2.bf16.msra.mxu0 0
        %8425 = vmatprep.subr.bf16.mxu0 0
        %8426 = vmatpush2.bf16.msra.mxu0 0
        %8427 = vmatprep.subr.bf16.mxu0 0
        %8428 = vmatpush2.bf16.msra.mxu0 0
        %8429 = vmatprep.subr.bf16.mxu0 0
        %8430 = vmatpush2.bf16.msra.mxu0 0
        %8431 = vmatprep.subr.bf16.mxu0 0
        %8432 = vmatpush2.bf16.msra.mxu0 0
        %8433 = vmatprep.subr.bf16.mxu0 0
        %8434 = vmatpush2.bf16.msra.mxu0 0
        %8435 = vmatprep.mubr.bf16.mxu0 0
        %8436 = vmatmul.mubr.bf16.gmra.mxu0 %v8392
        %v8437 = vpop.f32.mrf.mxu0
        %v8438 = vadd.f32 0.0, %v8437
        %v8439 = vpop.f32.mrf.mxu0
        %v8440 = vpop.f32.mrf.mxu0
        %v8441 = vadd.f32 0.0, %v8440
        %v8442 = vpop.f32.mrf.mxu0
        %8443 = vmatprep.mubr.bf16.mxu0 0
        %8444 = vmatmul.mubr.bf16.gmra.mxu0 %v8395
        %v8445 = vpop.f32.mrf.mxu0
        %v8446 = vadd.f32 0.0, %v8445
        %v8447 = vpop.f32.mrf.mxu0
        %v8448 = vpop.f32.mrf.mxu0
        %v8449 = vadd.f32 0.0, %v8448
        %v8450 = vpop.f32.mrf.mxu0
        %8451 = vmatprep.mubr.bf16.mxu0 0
        %8452 = vmatmul.mubr.bf16.gmra.mxu0 %v8398
        %v8453 = vpop.f32.mrf.mxu0
        %v8454 = vadd.f32 0.0, %v8453
        %v8455 = vpop.f32.mrf.mxu0
        %v8456 = vpop.f32.mrf.mxu0
        %v8457 = vadd.f32 0.0, %v8456
        %v8458 = vpop.f32.mrf.mxu0
        %8459 = vmatprep.mubr.bf16.mxu0 0
        %8460 = vmatmul.mubr.bf16.gmra.mxu0 %v8401
        %v8461 = vpop.f32.mrf.mxu0
        %v8462 = vadd.f32 0.0, %v8461
        %v8463 = vpop.f32.mrf.mxu0
        %v8464 = vpop.f32.mrf.mxu0
        %v8465 = vadd.f32 0.0, %v8464
        %v8466 = vpop.f32.mrf.mxu0
        %8467 = vdwg.mxu0
        %v8469 = vsel %vm557, %v7683, 0
        %v8472 = vsel %vm557, %v7684, 0
        %v8475 = vsel %vm557, %v7685, 0
        %v8478 = vsel %vm557, %v7686, 0
        %8480 = vmatprep.subr.bf16.mxu0 0
        %8481 = vmatpush1.bf16.msra.mxu0 0
        %8482 = vmatprep.subr.bf16.mxu0 0
        %8483 = vmatpush1.bf16.msra.mxu0 0
        %8484 = vmatprep.subr.bf16.mxu0 0
        %8485 = vmatpush1.bf16.msra.mxu0 0
        %8486 = vmatprep.subr.bf16.mxu0 0
        %8487 = vmatpush1.bf16.msra.mxu0 0
        %8488 = vmatprep.subr.bf16.mxu0 0
        %8489 = vmatpush1.bf16.msra.mxu0 %v1574
        %8490 = vmatprep.subr.bf16.mxu0 0
        %8491 = vmatpush1.bf16.msra.mxu0 %v1573
        %8492 = vmatprep.subr.bf16.mxu0 0
        %8493 = vmatpush1.bf16.msra.mxu0 %v1572
        %8494 = vmatprep.subr.bf16.mxu0 0
        %8495 = vmatpush1.bf16.msra.mxu0 %v1571
        %8496 = vmatprep.subr.bf16.mxu0 0
        %8497 = vmatpush2.bf16.msra.mxu0 0
        %8498 = vmatprep.subr.bf16.mxu0 0
        %8499 = vmatpush2.bf16.msra.mxu0 0
        %8500 = vmatprep.subr.bf16.mxu0 0
        %8501 = vmatpush2.bf16.msra.mxu0 0
        %8502 = vmatprep.subr.bf16.mxu0 0
        %8503 = vmatpush2.bf16.msra.mxu0 0
        %8504 = vmatprep.subr.bf16.mxu0 0
        %8505 = vmatpush2.bf16.msra.mxu0 0
        %8506 = vmatprep.subr.bf16.mxu0 0
        %8507 = vmatpush2.bf16.msra.mxu0 0
        %8508 = vmatprep.subr.bf16.mxu0 0
        %8509 = vmatpush2.bf16.msra.mxu0 0
        %8510 = vmatprep.subr.bf16.mxu0 0
        %8511 = vmatpush2.bf16.msra.mxu0 0
        %8512 = vmatprep.mubr.bf16.mxu0 0
        %8513 = vmatmul.mubr.bf16.gmra.mxu0 %v8469
        %v8514 = vpop.f32.mrf.mxu0
        %v8515 = vadd.f32 0.0, %v8514
        %v8516 = vpop.f32.mrf.mxu0
        %v8517 = vpop.f32.mrf.mxu0
        %v8518 = vadd.f32 0.0, %v8517
        %v8519 = vpop.f32.mrf.mxu0
        %8520 = vmatprep.mubr.bf16.mxu0 0
        %8521 = vmatmul.mubr.bf16.gmra.mxu0 %v8472
        %v8522 = vpop.f32.mrf.mxu0
        %v8523 = vadd.f32 0.0, %v8522
        %v8524 = vpop.f32.mrf.mxu0
        %v8525 = vpop.f32.mrf.mxu0
        %v8526 = vadd.f32 0.0, %v8525
        %v8527 = vpop.f32.mrf.mxu0
        %8528 = vmatprep.mubr.bf16.mxu0 0
        %8529 = vmatmul.mubr.bf16.gmra.mxu0 %v8475
        %v8530 = vpop.f32.mrf.mxu0
        %v8531 = vadd.f32 0.0, %v8530
        %v8532 = vpop.f32.mrf.mxu0
        %v8533 = vpop.f32.mrf.mxu0
        %v8534 = vadd.f32 0.0, %v8533
        %v8535 = vpop.f32.mrf.mxu0
        %8536 = vmatprep.mubr.bf16.mxu0 0
        %8537 = vmatmul.mubr.bf16.gmra.mxu0 %v8478
        %v8538 = vpop.f32.mrf.mxu0
        %v8539 = vadd.f32 0.0, %v8538
        %v8540 = vpop.f32.mrf.mxu0
        %v8541 = vpop.f32.mrf.mxu0
        %v8542 = vadd.f32 0.0, %v8541
        %v8543 = vpop.f32.mrf.mxu0
        %8544 = vdwg.mxu0
        %v8546 = vsel %vm557, %v7687, 0
        %v8549 = vsel %vm557, %v7688, 0
        %v8552 = vsel %vm557, %v7689, 0
        %v8555 = vsel %vm557, %v7690, 0
        %8557 = vmatprep.subr.bf16.mxu0 0
        %8558 = vmatpush1.bf16.msra.mxu0 0
        %8559 = vmatprep.subr.bf16.mxu0 0
        %8560 = vmatpush1.bf16.msra.mxu0 0
        %8561 = vmatprep.subr.bf16.mxu0 0
        %8562 = vmatpush1.bf16.msra.mxu0 0
        %8563 = vmatprep.subr.bf16.mxu0 0
        %8564 = vmatpush1.bf16.msra.mxu0 0
        %8565 = vmatprep.subr.bf16.mxu0 0
        %8566 = vmatpush1.bf16.msra.mxu0 %v1578
        %8567 = vmatprep.subr.bf16.mxu0 0
        %8568 = vmatpush1.bf16.msra.mxu0 %v1577
        %8569 = vmatprep.subr.bf16.mxu0 0
        %8570 = vmatpush1.bf16.msra.mxu0 %v1576
        %8571 = vmatprep.subr.bf16.mxu0 0
        %8572 = vmatpush1.bf16.msra.mxu0 %v1575
        %8573 = vmatprep.subr.bf16.mxu0 0
        %8574 = vmatpush2.bf16.msra.mxu0 0
        %8575 = vmatprep.subr.bf16.mxu0 0
        %8576 = vmatpush2.bf16.msra.mxu0 0
        %8577 = vmatprep.subr.bf16.mxu0 0
        %8578 = vmatpush2.bf16.msra.mxu0 0
        %8579 = vmatprep.subr.bf16.mxu0 0
        %8580 = vmatpush2.bf16.msra.mxu0 0
        %8581 = vmatprep.subr.bf16.mxu0 0
        %8582 = vmatpush2.bf16.msra.mxu0 0
        %8583 = vmatprep.subr.bf16.mxu0 0
        %8584 = vmatpush2.bf16.msra.mxu0 0
        %8585 = vmatprep.subr.bf16.mxu0 0
        %8586 = vmatpush2.bf16.msra.mxu0 0
        %8587 = vmatprep.subr.bf16.mxu0 0
        %8588 = vmatpush2.bf16.msra.mxu0 0
        %8589 = vmatprep.mubr.bf16.mxu0 0
        %8590 = vmatmul.mubr.bf16.gmra.mxu0 %v8546
        %v8591 = vpop.f32.mrf.mxu0
        %v8592 = vadd.f32 0.0, %v8591
        %v8593 = vpop.f32.mrf.mxu0
        %v8594 = vpop.f32.mrf.mxu0
        %v8595 = vadd.f32 0.0, %v8594
        %v8596 = vpop.f32.mrf.mxu0
        %8597 = vmatprep.mubr.bf16.mxu0 0
        %8598 = vmatmul.mubr.bf16.gmra.mxu0 %v8549
        %v8599 = vpop.f32.mrf.mxu0
        %v8600 = vadd.f32 0.0, %v8599
        %v8601 = vpop.f32.mrf.mxu0
        %v8602 = vpop.f32.mrf.mxu0
        %v8603 = vadd.f32 0.0, %v8602
        %v8604 = vpop.f32.mrf.mxu0
        %8605 = vmatprep.mubr.bf16.mxu0 0
        %8606 = vmatmul.mubr.bf16.gmra.mxu0 %v8552
        %v8607 = vpop.f32.mrf.mxu0
        %v8608 = vadd.f32 0.0, %v8607
        %v8609 = vpop.f32.mrf.mxu0
        %v8610 = vpop.f32.mrf.mxu0
        %v8611 = vadd.f32 0.0, %v8610
        %v8612 = vpop.f32.mrf.mxu0
        %8613 = vmatprep.mubr.bf16.mxu0 0
        %8614 = vmatmul.mubr.bf16.gmra.mxu0 %v8555
        %v8615 = vpop.f32.mrf.mxu0
        %v8616 = vadd.f32 0.0, %v8615
        %v8617 = vpop.f32.mrf.mxu0
        %v8618 = vpop.f32.mrf.mxu0
        %v8619 = vadd.f32 0.0, %v8618
        %v8620 = vpop.f32.mrf.mxu0
        %8621 = vdwg.mxu0
        %v8623 = vsel %vm557, %v7691, 0
        %v8626 = vsel %vm557, %v7692, 0
        %v8629 = vsel %vm557, %v7693, 0
        %v8632 = vsel %vm557, %v7694, 0
        %8634 = vmatprep.subr.bf16.mxu0 0
        %8635 = vmatpush1.bf16.msra.mxu0 0
        %8636 = vmatprep.subr.bf16.mxu0 0
        %8637 = vmatpush1.bf16.msra.mxu0 0
        %8638 = vmatprep.subr.bf16.mxu0 0
        %8639 = vmatpush1.bf16.msra.mxu0 0
        %8640 = vmatprep.subr.bf16.mxu0 0
        %8641 = vmatpush1.bf16.msra.mxu0 0
        %8642 = vmatprep.subr.bf16.mxu0 0
        %8643 = vmatpush1.bf16.msra.mxu0 %v1582
        %8644 = vmatprep.subr.bf16.mxu0 0
        %8645 = vmatpush1.bf16.msra.mxu0 %v1581
        %8646 = vmatprep.subr.bf16.mxu0 0
        %8647 = vmatpush1.bf16.msra.mxu0 %v1580
        %8648 = vmatprep.subr.bf16.mxu0 0
        %8649 = vmatpush1.bf16.msra.mxu0 %v1579
        %8650 = vmatprep.subr.bf16.mxu0 0
        %8651 = vmatpush2.bf16.msra.mxu0 0
        %8652 = vmatprep.subr.bf16.mxu0 0
        %8653 = vmatpush2.bf16.msra.mxu0 0
        %8654 = vmatprep.subr.bf16.mxu0 0
        %8655 = vmatpush2.bf16.msra.mxu0 0
        %8656 = vmatprep.subr.bf16.mxu0 0
        %8657 = vmatpush2.bf16.msra.mxu0 0
        %8658 = vmatprep.subr.bf16.mxu0 0
        %8659 = vmatpush2.bf16.msra.mxu0 0
        %8660 = vmatprep.subr.bf16.mxu0 0
        %8661 = vmatpush2.bf16.msra.mxu0 0
        %8662 = vmatprep.subr.bf16.mxu0 0
        %8663 = vmatpush2.bf16.msra.mxu0 0
        %8664 = vmatprep.subr.bf16.mxu0 0
        %8665 = vmatpush2.bf16.msra.mxu0 0
        %8666 = vmatprep.mubr.bf16.mxu0 0
        %8667 = vmatmul.mubr.bf16.gmra.mxu0 %v8623
        %v8668 = vpop.f32.mrf.mxu0
        %v8669 = vadd.f32 0.0, %v8668
        %v8670 = vpop.f32.mrf.mxu0
        %v8671 = vpop.f32.mrf.mxu0
        %v8672 = vadd.f32 0.0, %v8671
        %v8673 = vpop.f32.mrf.mxu0
        %8674 = vmatprep.mubr.bf16.mxu0 0
        %8675 = vmatmul.mubr.bf16.gmra.mxu0 %v8626
        %v8676 = vpop.f32.mrf.mxu0
        %v8677 = vadd.f32 0.0, %v8676
        %v8678 = vpop.f32.mrf.mxu0
        %v8679 = vpop.f32.mrf.mxu0
        %v8680 = vadd.f32 0.0, %v8679
        %v8681 = vpop.f32.mrf.mxu0
        %8682 = vmatprep.mubr.bf16.mxu0 0
        %8683 = vmatmul.mubr.bf16.gmra.mxu0 %v8629
        %v8684 = vpop.f32.mrf.mxu0
        %v8685 = vadd.f32 0.0, %v8684
        %v8686 = vpop.f32.mrf.mxu0
        %v8687 = vpop.f32.mrf.mxu0
        %v8688 = vadd.f32 0.0, %v8687
        %v8689 = vpop.f32.mrf.mxu0
        %8690 = vmatprep.mubr.bf16.mxu0 0
        %8691 = vmatmul.mubr.bf16.gmra.mxu0 %v8632
        %v8692 = vpop.f32.mrf.mxu0
        %v8693 = vadd.f32 0.0, %v8692
        %v8694 = vpop.f32.mrf.mxu0
        %v8695 = vpop.f32.mrf.mxu0
        %v8696 = vadd.f32 0.0, %v8695
        %v8697 = vpop.f32.mrf.mxu0
        %8698 = vdwg.mxu0
        %v8700 = vsel %vm557, %v7695, 0
        %v8703 = vsel %vm557, %v7696, 0
        %v8706 = vsel %vm557, %v7697, 0
        %v8709 = vsel %vm557, %v7698, 0
        %8711 = vmatprep.subr.bf16.mxu0 0
        %8712 = vmatpush1.bf16.msra.mxu0 0
        %8713 = vmatprep.subr.bf16.mxu0 0
        %8714 = vmatpush1.bf16.msra.mxu0 0
        %8715 = vmatprep.subr.bf16.mxu0 0
        %8716 = vmatpush1.bf16.msra.mxu0 0
        %8717 = vmatprep.subr.bf16.mxu0 0
        %8718 = vmatpush1.bf16.msra.mxu0 0
        %8719 = vmatprep.subr.bf16.mxu0 0
        %8720 = vmatpush1.bf16.msra.mxu0 %v1586
        %8721 = vmatprep.subr.bf16.mxu0 0
        %8722 = vmatpush1.bf16.msra.mxu0 %v1585
        %8723 = vmatprep.subr.bf16.mxu0 0
        %8724 = vmatpush1.bf16.msra.mxu0 %v1584
        %8725 = vmatprep.subr.bf16.mxu0 0
        %8726 = vmatpush1.bf16.msra.mxu0 %v1583
        %8727 = vmatprep.subr.bf16.mxu0 0
        %8728 = vmatpush2.bf16.msra.mxu0 0
        %8729 = vmatprep.subr.bf16.mxu0 0
        %8730 = vmatpush2.bf16.msra.mxu0 0
        %8731 = vmatprep.subr.bf16.mxu0 0
        %8732 = vmatpush2.bf16.msra.mxu0 0
        %8733 = vmatprep.subr.bf16.mxu0 0
        %8734 = vmatpush2.bf16.msra.mxu0 0
        %8735 = vmatprep.subr.bf16.mxu0 0
        %8736 = vmatpush2.bf16.msra.mxu0 0
        %8737 = vmatprep.subr.bf16.mxu0 0
        %8738 = vmatpush2.bf16.msra.mxu0 0
        %8739 = vmatprep.subr.bf16.mxu0 0
        %8740 = vmatpush2.bf16.msra.mxu0 0
        %8741 = vmatprep.subr.bf16.mxu0 0
        %8742 = vmatpush2.bf16.msra.mxu0 0
        %8743 = vmatprep.mubr.bf16.mxu0 0
        %8744 = vmatmul.mubr.bf16.gmra.mxu0 %v8700
        %v8745 = vpop.f32.mrf.mxu0
        %v8746 = vadd.f32 0.0, %v8745
        %v8747 = vpop.f32.mrf.mxu0
        %v8748 = vpop.f32.mrf.mxu0
        %v8749 = vadd.f32 0.0, %v8748
        %v8750 = vpop.f32.mrf.mxu0
        %8751 = vmatprep.mubr.bf16.mxu0 0
        %8752 = vmatmul.mubr.bf16.gmra.mxu0 %v8703
        %v8753 = vpop.f32.mrf.mxu0
        %v8754 = vadd.f32 0.0, %v8753
        %v8755 = vpop.f32.mrf.mxu0
        %v8756 = vpop.f32.mrf.mxu0
        %v8757 = vadd.f32 0.0, %v8756
        %v8758 = vpop.f32.mrf.mxu0
        %8759 = vmatprep.mubr.bf16.mxu0 0
        %8760 = vmatmul.mubr.bf16.gmra.mxu0 %v8706
        %v8761 = vpop.f32.mrf.mxu0
        %v8762 = vadd.f32 0.0, %v8761
        %v8763 = vpop.f32.mrf.mxu0
        %v8764 = vpop.f32.mrf.mxu0
        %v8765 = vadd.f32 0.0, %v8764
        %v8766 = vpop.f32.mrf.mxu0
        %8767 = vmatprep.mubr.bf16.mxu0 0
        %8768 = vmatmul.mubr.bf16.gmra.mxu0 %v8709
        %v8769 = vpop.f32.mrf.mxu0
        %v8770 = vadd.f32 0.0, %v8769
        %v8771 = vpop.f32.mrf.mxu0
        %v8772 = vpop.f32.mrf.mxu0
        %v8773 = vadd.f32 0.0, %v8772
        %v8774 = vpop.f32.mrf.mxu0
        %8775 = vdwg.mxu0
        %v8777 = vsel %vm557, %v7699, 0
        %v8780 = vsel %vm557, %v7700, 0
        %v8783 = vsel %vm557, %v7701, 0
        %v8786 = vsel %vm557, %v7702, 0
        %8788 = vmatprep.subr.bf16.mxu0 0
        %8789 = vmatpush1.bf16.msra.mxu0 0
        %8790 = vmatprep.subr.bf16.mxu0 0
        %8791 = vmatpush1.bf16.msra.mxu0 0
        %8792 = vmatprep.subr.bf16.mxu0 0
        %8793 = vmatpush1.bf16.msra.mxu0 0
        %8794 = vmatprep.subr.bf16.mxu0 0
        %8795 = vmatpush1.bf16.msra.mxu0 0
        %8796 = vmatprep.subr.bf16.mxu0 0
        %8797 = vmatpush1.bf16.msra.mxu0 %v1590
        %8798 = vmatprep.subr.bf16.mxu0 0
        %8799 = vmatpush1.bf16.msra.mxu0 %v1589
        %8800 = vmatprep.subr.bf16.mxu0 0
        %8801 = vmatpush1.bf16.msra.mxu0 %v1588
        %8802 = vmatprep.subr.bf16.mxu0 0
        %8803 = vmatpush1.bf16.msra.mxu0 %v1587
        %8804 = vmatprep.subr.bf16.mxu0 0
        %8805 = vmatpush2.bf16.msra.mxu0 0
        %8806 = vmatprep.subr.bf16.mxu0 0
        %8807 = vmatpush2.bf16.msra.mxu0 0
        %8808 = vmatprep.subr.bf16.mxu0 0
        %8809 = vmatpush2.bf16.msra.mxu0 0
        %8810 = vmatprep.subr.bf16.mxu0 0
        %8811 = vmatpush2.bf16.msra.mxu0 0
        %8812 = vmatprep.subr.bf16.mxu0 0
        %8813 = vmatpush2.bf16.msra.mxu0 0
        %8814 = vmatprep.subr.bf16.mxu0 0
        %8815 = vmatpush2.bf16.msra.mxu0 0
        %8816 = vmatprep.subr.bf16.mxu0 0
        %8817 = vmatpush2.bf16.msra.mxu0 0
        %8818 = vmatprep.subr.bf16.mxu0 0
        %8819 = vmatpush2.bf16.msra.mxu0 0
        %8820 = vmatprep.mubr.bf16.mxu0 0
        %8821 = vmatmul.mubr.bf16.gmra.mxu0 %v8777
        %v8822 = vpop.f32.mrf.mxu0
        %v8823 = vadd.f32 0.0, %v8822
        %v8824 = vpop.f32.mrf.mxu0
        %v8825 = vpop.f32.mrf.mxu0
        %v8826 = vadd.f32 0.0, %v8825
        %v8827 = vpop.f32.mrf.mxu0
        %8828 = vmatprep.mubr.bf16.mxu0 0
        %8829 = vmatmul.mubr.bf16.gmra.mxu0 %v8780
        %v8830 = vpop.f32.mrf.mxu0
        %v8831 = vadd.f32 0.0, %v8830
        %v8832 = vpop.f32.mrf.mxu0
        %v8833 = vpop.f32.mrf.mxu0
        %v8834 = vadd.f32 0.0, %v8833
        %v8835 = vpop.f32.mrf.mxu0
        %8836 = vmatprep.mubr.bf16.mxu0 0
        %8837 = vmatmul.mubr.bf16.gmra.mxu0 %v8783
        %v8838 = vpop.f32.mrf.mxu0
        %v8839 = vadd.f32 0.0, %v8838
        %v8840 = vpop.f32.mrf.mxu0
        %v8841 = vpop.f32.mrf.mxu0
        %v8842 = vadd.f32 0.0, %v8841
        %v8843 = vpop.f32.mrf.mxu0
        %8844 = vmatprep.mubr.bf16.mxu0 0
        %8845 = vmatmul.mubr.bf16.gmra.mxu0 %v8786
        %v8846 = vpop.f32.mrf.mxu0
        %v8847 = vadd.f32 0.0, %v8846
        %v8848 = vpop.f32.mrf.mxu0
        %v8849 = vpop.f32.mrf.mxu0
        %v8850 = vadd.f32 0.0, %v8849
        %v8851 = vpop.f32.mrf.mxu0
        %8852 = vdwg.mxu0
        %v8854 = vsel %vm557, %v7703, 0
        %v8857 = vsel %vm557, %v7704, 0
        %v8860 = vsel %vm557, %v7705, 0
        %v8863 = vsel %vm557, %v7706, 0
        %8865 = vmatprep.subr.bf16.mxu0 0
        %8866 = vmatpush1.bf16.msra.mxu0 0
        %8867 = vmatprep.subr.bf16.mxu0 0
        %8868 = vmatpush1.bf16.msra.mxu0 0
        %8869 = vmatprep.subr.bf16.mxu0 0
        %8870 = vmatpush1.bf16.msra.mxu0 0
        %8871 = vmatprep.subr.bf16.mxu0 0
        %8872 = vmatpush1.bf16.msra.mxu0 0
        %8873 = vmatprep.subr.bf16.mxu0 0
        %8874 = vmatpush1.bf16.msra.mxu0 %v1594
        %8875 = vmatprep.subr.bf16.mxu0 0
        %8876 = vmatpush1.bf16.msra.mxu0 %v1593
        %8877 = vmatprep.subr.bf16.mxu0 0
        %8878 = vmatpush1.bf16.msra.mxu0 %v1592
        %8879 = vmatprep.subr.bf16.mxu0 0
        %8880 = vmatpush1.bf16.msra.mxu0 %v1591
        %8881 = vmatprep.subr.bf16.mxu0 0
        %8882 = vmatpush2.bf16.msra.mxu0 0
        %8883 = vmatprep.subr.bf16.mxu0 0
        %8884 = vmatpush2.bf16.msra.mxu0 0
        %8885 = vmatprep.subr.bf16.mxu0 0
        %8886 = vmatpush2.bf16.msra.mxu0 0
        %8887 = vmatprep.subr.bf16.mxu0 0
        %8888 = vmatpush2.bf16.msra.mxu0 0
        %8889 = vmatprep.subr.bf16.mxu0 0
        %8890 = vmatpush2.bf16.msra.mxu0 0
        %8891 = vmatprep.subr.bf16.mxu0 0
        %8892 = vmatpush2.bf16.msra.mxu0 0
        %8893 = vmatprep.subr.bf16.mxu0 0
        %8894 = vmatpush2.bf16.msra.mxu0 0
        %8895 = vmatprep.subr.bf16.mxu0 0
        %8896 = vmatpush2.bf16.msra.mxu0 0
        %8897 = vmatprep.mubr.bf16.mxu0 0
        %8898 = vmatmul.mubr.bf16.gmra.mxu0 %v8854
        %v8899 = vpop.f32.mrf.mxu0
        %v8900 = vadd.f32 0.0, %v8899
        %v8901 = vpop.f32.mrf.mxu0
        %v8902 = vpop.f32.mrf.mxu0
        %v8903 = vadd.f32 0.0, %v8902
        %v8904 = vpop.f32.mrf.mxu0
        %8905 = vmatprep.mubr.bf16.mxu0 0
        %8906 = vmatmul.mubr.bf16.gmra.mxu0 %v8857
        %v8907 = vpop.f32.mrf.mxu0
        %v8908 = vadd.f32 0.0, %v8907
        %v8909 = vpop.f32.mrf.mxu0
        %v8910 = vpop.f32.mrf.mxu0
        %v8911 = vadd.f32 0.0, %v8910
        %v8912 = vpop.f32.mrf.mxu0
        %8913 = vmatprep.mubr.bf16.mxu0 0
        %8914 = vmatmul.mubr.bf16.gmra.mxu0 %v8860
        %v8915 = vpop.f32.mrf.mxu0
        %v8916 = vadd.f32 0.0, %v8915
        %v8917 = vpop.f32.mrf.mxu0
        %v8918 = vpop.f32.mrf.mxu0
        %v8919 = vadd.f32 0.0, %v8918
        %v8920 = vpop.f32.mrf.mxu0
        %8921 = vmatprep.mubr.bf16.mxu0 0
        %8922 = vmatmul.mubr.bf16.gmra.mxu0 %v8863
        %v8923 = vpop.f32.mrf.mxu0
        %v8924 = vadd.f32 0.0, %v8923
        %v8925 = vpop.f32.mrf.mxu0
        %v8926 = vpop.f32.mrf.mxu0
        %v8927 = vadd.f32 0.0, %v8926
        %v8928 = vpop.f32.mrf.mxu0
        %8929 = vdwg.mxu0
        %v8931 = vsel %vm557, %v7707, 0
        %v8934 = vsel %vm557, %v7708, 0
        %v8937 = vsel %vm557, %v7709, 0
        %v8940 = vsel %vm557, %v7710, 0
        %8942 = vmatprep.subr.bf16.mxu0 0
        %8943 = vmatpush1.bf16.msra.mxu0 0
        %8944 = vmatprep.subr.bf16.mxu0 0
        %8945 = vmatpush1.bf16.msra.mxu0 0
        %8946 = vmatprep.subr.bf16.mxu0 0
        %8947 = vmatpush1.bf16.msra.mxu0 0
        %8948 = vmatprep.subr.bf16.mxu0 0
        %8949 = vmatpush1.bf16.msra.mxu0 0
        %8950 = vmatprep.subr.bf16.mxu0 0
        %8951 = vmatpush1.bf16.msra.mxu0 %v1598
        %8952 = vmatprep.subr.bf16.mxu0 0
        %8953 = vmatpush1.bf16.msra.mxu0 %v1597
        %8954 = vmatprep.subr.bf16.mxu0 0
        %8955 = vmatpush1.bf16.msra.mxu0 %v1596
        %8956 = vmatprep.subr.bf16.mxu0 0
        %8957 = vmatpush1.bf16.msra.mxu0 %v1595
        %8958 = vmatprep.subr.bf16.mxu0 0
        %8959 = vmatpush2.bf16.msra.mxu0 0
        %8960 = vmatprep.subr.bf16.mxu0 0
        %8961 = vmatpush2.bf16.msra.mxu0 0
        %8962 = vmatprep.subr.bf16.mxu0 0
        %8963 = vmatpush2.bf16.msra.mxu0 0
        %8964 = vmatprep.subr.bf16.mxu0 0
        %8965 = vmatpush2.bf16.msra.mxu0 0
        %8966 = vmatprep.subr.bf16.mxu0 0
        %8967 = vmatpush2.bf16.msra.mxu0 0
        %8968 = vmatprep.subr.bf16.mxu0 0
        %8969 = vmatpush2.bf16.msra.mxu0 0
        %8970 = vmatprep.subr.bf16.mxu0 0
        %8971 = vmatpush2.bf16.msra.mxu0 0
        %8972 = vmatprep.subr.bf16.mxu0 0
        %8973 = vmatpush2.bf16.msra.mxu0 0
        %8974 = vmatprep.mubr.bf16.mxu0 0
        %8975 = vmatmul.mubr.bf16.gmra.mxu0 %v8931
        %v8976 = vpop.f32.mrf.mxu0
        %v8977 = vadd.f32 0.0, %v8976
        %v8978 = vpop.f32.mrf.mxu0
        %v8979 = vpop.f32.mrf.mxu0
        %v8980 = vadd.f32 0.0, %v8979
        %v8981 = vpop.f32.mrf.mxu0
        %8982 = vmatprep.mubr.bf16.mxu0 0
        %8983 = vmatmul.mubr.bf16.gmra.mxu0 %v8934
        %v8984 = vpop.f32.mrf.mxu0
        %v8985 = vadd.f32 0.0, %v8984
        %v8986 = vpop.f32.mrf.mxu0
        %v8987 = vpop.f32.mrf.mxu0
        %v8988 = vadd.f32 0.0, %v8987
        %v8989 = vpop.f32.mrf.mxu0
        %8990 = vmatprep.mubr.bf16.mxu0 0
        %8991 = vmatmul.mubr.bf16.gmra.mxu0 %v8937
        %v8992 = vpop.f32.mrf.mxu0
        %v8993 = vadd.f32 0.0, %v8992
        %v8994 = vpop.f32.mrf.mxu0
        %v8995 = vpop.f32.mrf.mxu0
        %v8996 = vadd.f32 0.0, %v8995
        %v8997 = vpop.f32.mrf.mxu0
        %8998 = vmatprep.mubr.bf16.mxu0 0
        %8999 = vmatmul.mubr.bf16.gmra.mxu0 %v8940
        %v9000 = vpop.f32.mrf.mxu0
        %v9001 = vadd.f32 0.0, %v9000
        %v9002 = vpop.f32.mrf.mxu0
        %v9003 = vpop.f32.mrf.mxu0
        %v9004 = vadd.f32 0.0, %v9003
        %v9005 = vpop.f32.mrf.mxu0
        %9006 = vdwg.mxu0
        %v9008 = vsel %vm557, %v7711, 0
        %v9011 = vsel %vm557, %v7712, 0
        %v9014 = vsel %vm557, %v7713, 0
        %v9017 = vsel %vm557, %v7714, 0
        %9019 = vmatprep.subr.bf16.mxu0 0
        %9020 = vmatpush1.bf16.msra.mxu0 0
        %9021 = vmatprep.subr.bf16.mxu0 0
        %9022 = vmatpush1.bf16.msra.mxu0 0
        %9023 = vmatprep.subr.bf16.mxu0 0
        %9024 = vmatpush1.bf16.msra.mxu0 0
        %9025 = vmatprep.subr.bf16.mxu0 0
        %9026 = vmatpush1.bf16.msra.mxu0 0
        %9027 = vmatprep.subr.bf16.mxu0 0
        %9028 = vmatpush1.bf16.msra.mxu0 %v1602
        %9029 = vmatprep.subr.bf16.mxu0 0
        %9030 = vmatpush1.bf16.msra.mxu0 %v1601
        %9031 = vmatprep.subr.bf16.mxu0 0
        %9032 = vmatpush1.bf16.msra.mxu0 %v1600
        %9033 = vmatprep.subr.bf16.mxu0 0
        %9034 = vmatpush1.bf16.msra.mxu0 %v1599
        %9035 = vmatprep.subr.bf16.mxu0 0
        %9036 = vmatpush2.bf16.msra.mxu0 0
        %9037 = vmatprep.subr.bf16.mxu0 0
        %9038 = vmatpush2.bf16.msra.mxu0 0
        %9039 = vmatprep.subr.bf16.mxu0 0
        %9040 = vmatpush2.bf16.msra.mxu0 0
        %9041 = vmatprep.subr.bf16.mxu0 0
        %9042 = vmatpush2.bf16.msra.mxu0 0
        %9043 = vmatprep.subr.bf16.mxu0 0
        %9044 = vmatpush2.bf16.msra.mxu0 0
        %9045 = vmatprep.subr.bf16.mxu0 0
        %9046 = vmatpush2.bf16.msra.mxu0 0
        %9047 = vmatprep.subr.bf16.mxu0 0
        %9048 = vmatpush2.bf16.msra.mxu0 0
        %9049 = vmatprep.subr.bf16.mxu0 0
        %9050 = vmatpush2.bf16.msra.mxu0 0
        %9051 = vmatprep.mubr.bf16.mxu0 0
        %9052 = vmatmul.mubr.bf16.gmra.mxu0 %v9008
        %v9053 = vpop.f32.mrf.mxu0
        %v9054 = vadd.f32 0.0, %v9053
        %v9055 = vpop.f32.mrf.mxu0
        %v9056 = vpop.f32.mrf.mxu0
        %v9057 = vadd.f32 0.0, %v9056
        %v9058 = vpop.f32.mrf.mxu0
        %9059 = vmatprep.mubr.bf16.mxu0 0
        %9060 = vmatmul.mubr.bf16.gmra.mxu0 %v9011
        %v9061 = vpop.f32.mrf.mxu0
        %v9062 = vadd.f32 0.0, %v9061
        %v9063 = vpop.f32.mrf.mxu0
        %v9064 = vpop.f32.mrf.mxu0
        %v9065 = vadd.f32 0.0, %v9064
        %v9066 = vpop.f32.mrf.mxu0
        %9067 = vmatprep.mubr.bf16.mxu0 0
        %9068 = vmatmul.mubr.bf16.gmra.mxu0 %v9014
        %v9069 = vpop.f32.mrf.mxu0
        %v9070 = vadd.f32 0.0, %v9069
        %v9071 = vpop.f32.mrf.mxu0
        %v9072 = vpop.f32.mrf.mxu0
        %v9073 = vadd.f32 0.0, %v9072
        %v9074 = vpop.f32.mrf.mxu0
        %9075 = vmatprep.mubr.bf16.mxu0 0
        %9076 = vmatmul.mubr.bf16.gmra.mxu0 %v9017
        %v9077 = vpop.f32.mrf.mxu0
        %v9078 = vadd.f32 0.0, %v9077
        %v9079 = vpop.f32.mrf.mxu0
        %v9080 = vpop.f32.mrf.mxu0
        %v9081 = vadd.f32 0.0, %v9080
        %v9082 = vpop.f32.mrf.mxu0
        %9083 = vdwg.mxu0
        %v9085 = vsel %vm557, %v7715, 0
        %v9088 = vsel %vm557, %v7716, 0
        %v9091 = vsel %vm557, %v7717, 0
        %v9094 = vsel %vm557, %v7718, 0
        %9096 = vmatprep.subr.bf16.mxu0 0
        %9097 = vmatpush1.bf16.msra.mxu0 0
        %9098 = vmatprep.subr.bf16.mxu0 0
        %9099 = vmatpush1.bf16.msra.mxu0 0
        %9100 = vmatprep.subr.bf16.mxu0 0
        %9101 = vmatpush1.bf16.msra.mxu0 0
        %9102 = vmatprep.subr.bf16.mxu0 0
        %9103 = vmatpush1.bf16.msra.mxu0 0
        %9104 = vmatprep.subr.bf16.mxu0 0
        %9105 = vmatpush1.bf16.msra.mxu0 %v1606
        %9106 = vmatprep.subr.bf16.mxu0 0
        %9107 = vmatpush1.bf16.msra.mxu0 %v1605
        %9108 = vmatprep.subr.bf16.mxu0 0
        %9109 = vmatpush1.bf16.msra.mxu0 %v1604
        %9110 = vmatprep.subr.bf16.mxu0 0
        %9111 = vmatpush1.bf16.msra.mxu0 %v1603
        %9112 = vmatprep.subr.bf16.mxu0 0
        %9113 = vmatpush2.bf16.msra.mxu0 0
        %9114 = vmatprep.subr.bf16.mxu0 0
        %9115 = vmatpush2.bf16.msra.mxu0 0
        %9116 = vmatprep.subr.bf16.mxu0 0
        %9117 = vmatpush2.bf16.msra.mxu0 0
        %9118 = vmatprep.subr.bf16.mxu0 0
        %9119 = vmatpush2.bf16.msra.mxu0 0
        %9120 = vmatprep.subr.bf16.mxu0 0
        %9121 = vmatpush2.bf16.msra.mxu0 0
        %9122 = vmatprep.subr.bf16.mxu0 0
        %9123 = vmatpush2.bf16.msra.mxu0 0
        %9124 = vmatprep.subr.bf16.mxu0 0
        %9125 = vmatpush2.bf16.msra.mxu0 0
        %9126 = vmatprep.subr.bf16.mxu0 0
        %9127 = vmatpush2.bf16.msra.mxu0 0
        %9128 = vmatprep.mubr.bf16.mxu0 0
        %9129 = vmatmul.mubr.bf16.gmra.mxu0 %v9085
        %v9130 = vpop.f32.mrf.mxu0
        %v9131 = vadd.f32 0.0, %v9130
        %v9132 = vpop.f32.mrf.mxu0
        %v9133 = vpop.f32.mrf.mxu0
        %v9134 = vadd.f32 0.0, %v9133
        %v9135 = vpop.f32.mrf.mxu0
        %9136 = vmatprep.mubr.bf16.mxu0 0
        %9137 = vmatmul.mubr.bf16.gmra.mxu0 %v9088
        %v9138 = vpop.f32.mrf.mxu0
        %v9139 = vadd.f32 0.0, %v9138
        %v9140 = vpop.f32.mrf.mxu0
        %v9141 = vpop.f32.mrf.mxu0
        %v9142 = vadd.f32 0.0, %v9141
        %v9143 = vpop.f32.mrf.mxu0
        %9144 = vmatprep.mubr.bf16.mxu0 0
        %9145 = vmatmul.mubr.bf16.gmra.mxu0 %v9091
        %v9146 = vpop.f32.mrf.mxu0
        %v9147 = vadd.f32 0.0, %v9146
        %v9148 = vpop.f32.mrf.mxu0
        %v9149 = vpop.f32.mrf.mxu0
        %v9150 = vadd.f32 0.0, %v9149
        %v9151 = vpop.f32.mrf.mxu0
        %9152 = vmatprep.mubr.bf16.mxu0 0
        %9153 = vmatmul.mubr.bf16.gmra.mxu0 %v9094
        %v9154 = vpop.f32.mrf.mxu0
        %v9155 = vadd.f32 0.0, %v9154
        %v9156 = vpop.f32.mrf.mxu0
        %v9157 = vpop.f32.mrf.mxu0
        %v9158 = vadd.f32 0.0, %v9157
        %v9159 = vpop.f32.mrf.mxu0
        %9160 = vdwg.mxu0
        %v9162 = vsel %vm557, %v7719, 0
        %v9165 = vsel %vm557, %v7720, 0
        %v9168 = vsel %vm557, %v7721, 0
        %v9171 = vsel %vm557, %v7722, 0
        %9173 = vmatprep.subr.bf16.mxu0 0
        %9174 = vmatpush1.bf16.msra.mxu0 0
        %9175 = vmatprep.subr.bf16.mxu0 0
        %9176 = vmatpush1.bf16.msra.mxu0 0
        %9177 = vmatprep.subr.bf16.mxu0 0
        %9178 = vmatpush1.bf16.msra.mxu0 0
        %9179 = vmatprep.subr.bf16.mxu0 0
        %9180 = vmatpush1.bf16.msra.mxu0 0
        %9181 = vmatprep.subr.bf16.mxu0 0
        %9182 = vmatpush1.bf16.msra.mxu0 %v1610
        %9183 = vmatprep.subr.bf16.mxu0 0
        %9184 = vmatpush1.bf16.msra.mxu0 %v1609
        %9185 = vmatprep.subr.bf16.mxu0 0
        %9186 = vmatpush1.bf16.msra.mxu0 %v1608
        %9187 = vmatprep.subr.bf16.mxu0 0
        %9188 = vmatpush1.bf16.msra.mxu0 %v1607
        %9189 = vmatprep.subr.bf16.mxu0 0
        %9190 = vmatpush2.bf16.msra.mxu0 0
        %9191 = vmatprep.subr.bf16.mxu0 0
        %9192 = vmatpush2.bf16.msra.mxu0 0
        %9193 = vmatprep.subr.bf16.mxu0 0
        %9194 = vmatpush2.bf16.msra.mxu0 0
        %9195 = vmatprep.subr.bf16.mxu0 0
        %9196 = vmatpush2.bf16.msra.mxu0 0
        %9197 = vmatprep.subr.bf16.mxu0 0
        %9198 = vmatpush2.bf16.msra.mxu0 0
        %9199 = vmatprep.subr.bf16.mxu0 0
        %9200 = vmatpush2.bf16.msra.mxu0 0
        %9201 = vmatprep.subr.bf16.mxu0 0
        %9202 = vmatpush2.bf16.msra.mxu0 0
        %9203 = vmatprep.subr.bf16.mxu0 0
        %9204 = vmatpush2.bf16.msra.mxu0 0
        %9205 = vmatprep.mubr.bf16.mxu0 0
        %9206 = vmatmul.mubr.bf16.gmra.mxu0 %v9162
        %v9207 = vpop.f32.mrf.mxu0
        %v9208 = vadd.f32 0.0, %v9207
        %v9209 = vpop.f32.mrf.mxu0
        %v9210 = vpop.f32.mrf.mxu0
        %v9211 = vadd.f32 0.0, %v9210
        %v9212 = vpop.f32.mrf.mxu0
        %9213 = vmatprep.mubr.bf16.mxu0 0
        %9214 = vmatmul.mubr.bf16.gmra.mxu0 %v9165
        %v9215 = vpop.f32.mrf.mxu0
        %v9216 = vadd.f32 0.0, %v9215
        %v9217 = vpop.f32.mrf.mxu0
        %v9218 = vpop.f32.mrf.mxu0
        %v9219 = vadd.f32 0.0, %v9218
        %v9220 = vpop.f32.mrf.mxu0
        %9221 = vmatprep.mubr.bf16.mxu0 0
        %9222 = vmatmul.mubr.bf16.gmra.mxu0 %v9168
        %v9223 = vpop.f32.mrf.mxu0
        %v9224 = vadd.f32 0.0, %v9223
        %v9225 = vpop.f32.mrf.mxu0
        %v9226 = vpop.f32.mrf.mxu0
        %v9227 = vadd.f32 0.0, %v9226
        %v9228 = vpop.f32.mrf.mxu0
        %9229 = vmatprep.mubr.bf16.mxu0 0
        %9230 = vmatmul.mubr.bf16.gmra.mxu0 %v9171
        %v9231 = vpop.f32.mrf.mxu0
        %v9232 = vadd.f32 0.0, %v9231
        %v9233 = vpop.f32.mrf.mxu0
        %v9234 = vpop.f32.mrf.mxu0
        %v9235 = vadd.f32 0.0, %v9234
        %v9236 = vpop.f32.mrf.mxu0
        %9237 = vdwg.mxu0
        %v9239 = vsel %vm557, %v7723, 0
        %v9242 = vsel %vm557, %v7724, 0
        %v9245 = vsel %vm557, %v7725, 0
        %v9248 = vsel %vm557, %v7726, 0
        %9250 = vmatprep.subr.bf16.mxu0 0
        %9251 = vmatpush1.bf16.msra.mxu0 0
        %9252 = vmatprep.subr.bf16.mxu0 0
        %9253 = vmatpush1.bf16.msra.mxu0 0
        %9254 = vmatprep.subr.bf16.mxu0 0
        %9255 = vmatpush1.bf16.msra.mxu0 0
        %9256 = vmatprep.subr.bf16.mxu0 0
        %9257 = vmatpush1.bf16.msra.mxu0 0
        %9258 = vmatprep.subr.bf16.mxu0 0
        %9259 = vmatpush1.bf16.msra.mxu0 %v1614
        %9260 = vmatprep.subr.bf16.mxu0 0
        %9261 = vmatpush1.bf16.msra.mxu0 %v1613
        %9262 = vmatprep.subr.bf16.mxu0 0
        %9263 = vmatpush1.bf16.msra.mxu0 %v1612
        %9264 = vmatprep.subr.bf16.mxu0 0
        %9265 = vmatpush1.bf16.msra.mxu0 %v1611
        %9266 = vmatprep.subr.bf16.mxu0 0
        %9267 = vmatpush2.bf16.msra.mxu0 0
        %9268 = vmatprep.subr.bf16.mxu0 0
        %9269 = vmatpush2.bf16.msra.mxu0 0
        %9270 = vmatprep.subr.bf16.mxu0 0
        %9271 = vmatpush2.bf16.msra.mxu0 0
        %9272 = vmatprep.subr.bf16.mxu0 0
        %9273 = vmatpush2.bf16.msra.mxu0 0
        %9274 = vmatprep.subr.bf16.mxu0 0
        %9275 = vmatpush2.bf16.msra.mxu0 0
        %9276 = vmatprep.subr.bf16.mxu0 0
        %9277 = vmatpush2.bf16.msra.mxu0 0
        %9278 = vmatprep.subr.bf16.mxu0 0
        %9279 = vmatpush2.bf16.msra.mxu0 0
        %9280 = vmatprep.subr.bf16.mxu0 0
        %9281 = vmatpush2.bf16.msra.mxu0 0
        %9282 = vmatprep.mubr.bf16.mxu0 0
        %9283 = vmatmul.mubr.bf16.gmra.mxu0 %v9239
        %v9284 = vpop.f32.mrf.mxu0
        %v9285 = vadd.f32 0.0, %v9284
        %v9286 = vpop.f32.mrf.mxu0
        %v9287 = vpop.f32.mrf.mxu0
        %v9288 = vadd.f32 0.0, %v9287
        %v9289 = vpop.f32.mrf.mxu0
        %9290 = vmatprep.mubr.bf16.mxu0 0
        %9291 = vmatmul.mubr.bf16.gmra.mxu0 %v9242
        %v9292 = vpop.f32.mrf.mxu0
        %v9293 = vadd.f32 0.0, %v9292
        %v9294 = vpop.f32.mrf.mxu0
        %v9295 = vpop.f32.mrf.mxu0
        %v9296 = vadd.f32 0.0, %v9295
        %v9297 = vpop.f32.mrf.mxu0
        %9298 = vmatprep.mubr.bf16.mxu0 0
        %9299 = vmatmul.mubr.bf16.gmra.mxu0 %v9245
        %v9300 = vpop.f32.mrf.mxu0
        %v9301 = vadd.f32 0.0, %v9300
        %v9302 = vpop.f32.mrf.mxu0
        %v9303 = vpop.f32.mrf.mxu0
        %v9304 = vadd.f32 0.0, %v9303
        %v9305 = vpop.f32.mrf.mxu0
        %9306 = vmatprep.mubr.bf16.mxu0 0
        %9307 = vmatmul.mubr.bf16.gmra.mxu0 %v9248
        %v9308 = vpop.f32.mrf.mxu0
        %v9309 = vadd.f32 0.0, %v9308
        %v9310 = vpop.f32.mrf.mxu0
        %v9311 = vpop.f32.mrf.mxu0
        %v9312 = vadd.f32 0.0, %v9311
        %v9313 = vpop.f32.mrf.mxu0
        %9314 = vdwg.mxu0
        %v9316 = vsel %vm557, %v7727, 0
        %v9319 = vsel %vm557, %v7728, 0
        %v9322 = vsel %vm557, %v7729, 0
        %v9325 = vsel %vm557, %v7730, 0
        %9327 = vmatprep.subr.bf16.mxu0 0
        %9328 = vmatpush1.bf16.msra.mxu0 0
        %9329 = vmatprep.subr.bf16.mxu0 0
        %9330 = vmatpush1.bf16.msra.mxu0 0
        %9331 = vmatprep.subr.bf16.mxu0 0
        %9332 = vmatpush1.bf16.msra.mxu0 0
        %9333 = vmatprep.subr.bf16.mxu0 0
        %9334 = vmatpush1.bf16.msra.mxu0 0
        %9335 = vmatprep.subr.bf16.mxu0 0
        %9336 = vmatpush1.bf16.msra.mxu0 %v1618
        %9337 = vmatprep.subr.bf16.mxu0 0
        %9338 = vmatpush1.bf16.msra.mxu0 %v1617
        %9339 = vmatprep.subr.bf16.mxu0 0
        %9340 = vmatpush1.bf16.msra.mxu0 %v1616
        %9341 = vmatprep.subr.bf16.mxu0 0
        %9342 = vmatpush1.bf16.msra.mxu0 %v1615
        %9343 = vmatprep.subr.bf16.mxu0 0
        %9344 = vmatpush2.bf16.msra.mxu0 0
        %9345 = vmatprep.subr.bf16.mxu0 0
        %9346 = vmatpush2.bf16.msra.mxu0 0
        %9347 = vmatprep.subr.bf16.mxu0 0
        %9348 = vmatpush2.bf16.msra.mxu0 0
        %9349 = vmatprep.subr.bf16.mxu0 0
        %9350 = vmatpush2.bf16.msra.mxu0 0
        %9351 = vmatprep.subr.bf16.mxu0 0
        %9352 = vmatpush2.bf16.msra.mxu0 0
        %9353 = vmatprep.subr.bf16.mxu0 0
        %9354 = vmatpush2.bf16.msra.mxu0 0
        %9355 = vmatprep.subr.bf16.mxu0 0
        %9356 = vmatpush2.bf16.msra.mxu0 0
        %9357 = vmatprep.subr.bf16.mxu0 0
        %9358 = vmatpush2.bf16.msra.mxu0 0
        %9359 = vmatprep.mubr.bf16.mxu0 0
        %9360 = vmatmul.mubr.bf16.gmra.mxu0 %v9316
        %v9361 = vpop.f32.mrf.mxu0
        %v9362 = vadd.f32 0.0, %v9361
        %v9363 = vpop.f32.mrf.mxu0
        %v9364 = vpop.f32.mrf.mxu0
        %v9365 = vadd.f32 0.0, %v9364
        %v9366 = vpop.f32.mrf.mxu0
        %9367 = vmatprep.mubr.bf16.mxu0 0
        %9368 = vmatmul.mubr.bf16.gmra.mxu0 %v9319
        %v9369 = vpop.f32.mrf.mxu0
        %v9370 = vadd.f32 0.0, %v9369
        %v9371 = vpop.f32.mrf.mxu0
        %v9372 = vpop.f32.mrf.mxu0
        %v9373 = vadd.f32 0.0, %v9372
        %v9374 = vpop.f32.mrf.mxu0
        %9375 = vmatprep.mubr.bf16.mxu0 0
        %9376 = vmatmul.mubr.bf16.gmra.mxu0 %v9322
        %v9377 = vpop.f32.mrf.mxu0
        %v9378 = vadd.f32 0.0, %v9377
        %v9379 = vpop.f32.mrf.mxu0
        %v9380 = vpop.f32.mrf.mxu0
        %v9381 = vadd.f32 0.0, %v9380
        %v9382 = vpop.f32.mrf.mxu0
        %9383 = vmatprep.mubr.bf16.mxu0 0
        %9384 = vmatmul.mubr.bf16.gmra.mxu0 %v9325
        %v9385 = vpop.f32.mrf.mxu0
        %v9386 = vadd.f32 0.0, %v9385
        %v9387 = vpop.f32.mrf.mxu0
        %v9388 = vpop.f32.mrf.mxu0
        %v9389 = vadd.f32 0.0, %v9388
        %v9390 = vpop.f32.mrf.mxu0
        %9391 = vdwg.mxu0
        %v9393 = vsel %vm557, %v7731, 0
        %v9396 = vsel %vm557, %v7732, 0
        %v9399 = vsel %vm557, %v7733, 0
        %v9402 = vsel %vm557, %v7734, 0
        %9404 = vmatprep.subr.bf16.mxu0 0
        %9405 = vmatpush1.bf16.msra.mxu0 0
        %9406 = vmatprep.subr.bf16.mxu0 0
        %9407 = vmatpush1.bf16.msra.mxu0 0
        %9408 = vmatprep.subr.bf16.mxu0 0
        %9409 = vmatpush1.bf16.msra.mxu0 0
        %9410 = vmatprep.subr.bf16.mxu0 0
        %9411 = vmatpush1.bf16.msra.mxu0 0
        %9412 = vmatprep.subr.bf16.mxu0 0
        %9413 = vmatpush1.bf16.msra.mxu0 %v1622
        %9414 = vmatprep.subr.bf16.mxu0 0
        %9415 = vmatpush1.bf16.msra.mxu0 %v1621
        %9416 = vmatprep.subr.bf16.mxu0 0
        %9417 = vmatpush1.bf16.msra.mxu0 %v1620
        %9418 = vmatprep.subr.bf16.mxu0 0
        %9419 = vmatpush1.bf16.msra.mxu0 %v1619
        %9420 = vmatprep.subr.bf16.mxu0 0
        %9421 = vmatpush2.bf16.msra.mxu0 0
        %9422 = vmatprep.subr.bf16.mxu0 0
        %9423 = vmatpush2.bf16.msra.mxu0 0
        %9424 = vmatprep.subr.bf16.mxu0 0
        %9425 = vmatpush2.bf16.msra.mxu0 0
        %9426 = vmatprep.subr.bf16.mxu0 0
        %9427 = vmatpush2.bf16.msra.mxu0 0
        %9428 = vmatprep.subr.bf16.mxu0 0
        %9429 = vmatpush2.bf16.msra.mxu0 0
        %9430 = vmatprep.subr.bf16.mxu0 0
        %9431 = vmatpush2.bf16.msra.mxu0 0
        %9432 = vmatprep.subr.bf16.mxu0 0
        %9433 = vmatpush2.bf16.msra.mxu0 0
        %9434 = vmatprep.subr.bf16.mxu0 0
        %9435 = vmatpush2.bf16.msra.mxu0 0
        %9436 = vmatprep.mubr.bf16.mxu0 0
        %9437 = vmatmul.mubr.bf16.gmra.mxu0 %v9393
        %v9438 = vpop.f32.mrf.mxu0
        %v9439 = vadd.f32 0.0, %v9438
        %v9440 = vpop.f32.mrf.mxu0
        %v9441 = vpop.f32.mrf.mxu0
        %v9442 = vadd.f32 0.0, %v9441
        %v9443 = vpop.f32.mrf.mxu0
        %9444 = vmatprep.mubr.bf16.mxu0 0
        %9445 = vmatmul.mubr.bf16.gmra.mxu0 %v9396
        %v9446 = vpop.f32.mrf.mxu0
        %v9447 = vadd.f32 0.0, %v9446
        %v9448 = vpop.f32.mrf.mxu0
        %v9449 = vpop.f32.mrf.mxu0
        %v9450 = vadd.f32 0.0, %v9449
        %v9451 = vpop.f32.mrf.mxu0
        %9452 = vmatprep.mubr.bf16.mxu0 0
        %9453 = vmatmul.mubr.bf16.gmra.mxu0 %v9399
        %v9454 = vpop.f32.mrf.mxu0
        %v9455 = vadd.f32 0.0, %v9454
        %v9456 = vpop.f32.mrf.mxu0
        %v9457 = vpop.f32.mrf.mxu0
        %v9458 = vadd.f32 0.0, %v9457
        %v9459 = vpop.f32.mrf.mxu0
        %9460 = vmatprep.mubr.bf16.mxu0 0
        %9461 = vmatmul.mubr.bf16.gmra.mxu0 %v9402
        %v9462 = vpop.f32.mrf.mxu0
        %v9463 = vadd.f32 0.0, %v9462
        %v9464 = vpop.f32.mrf.mxu0
        %v9465 = vpop.f32.mrf.mxu0
        %v9466 = vadd.f32 0.0, %v9465
        %v9467 = vpop.f32.mrf.mxu0
        %9468 = vdwg.mxu0
        %v9470 = vsel %vm557, %v7735, 0
        %v9473 = vsel %vm557, %v7736, 0
        %v9476 = vsel %vm557, %v7737, 0
        %v9479 = vsel %vm557, %v7738, 0
        %9481 = vmatprep.subr.bf16.mxu0 0
        %9482 = vmatpush1.bf16.msra.mxu0 0
        %9483 = vmatprep.subr.bf16.mxu0 0
        %9484 = vmatpush1.bf16.msra.mxu0 0
        %9485 = vmatprep.subr.bf16.mxu0 0
        %9486 = vmatpush1.bf16.msra.mxu0 0
        %9487 = vmatprep.subr.bf16.mxu0 0
        %9488 = vmatpush1.bf16.msra.mxu0 0
        %9489 = vmatprep.subr.bf16.mxu0 0
        %9490 = vmatpush1.bf16.msra.mxu0 %v1626
        %9491 = vmatprep.subr.bf16.mxu0 0
        %9492 = vmatpush1.bf16.msra.mxu0 %v1625
        %9493 = vmatprep.subr.bf16.mxu0 0
        %9494 = vmatpush1.bf16.msra.mxu0 %v1624
        %9495 = vmatprep.subr.bf16.mxu0 0
        %9496 = vmatpush1.bf16.msra.mxu0 %v1623
        %9497 = vmatprep.subr.bf16.mxu0 0
        %9498 = vmatpush2.bf16.msra.mxu0 0
        %9499 = vmatprep.subr.bf16.mxu0 0
        %9500 = vmatpush2.bf16.msra.mxu0 0
        %9501 = vmatprep.subr.bf16.mxu0 0
        %9502 = vmatpush2.bf16.msra.mxu0 0
        %9503 = vmatprep.subr.bf16.mxu0 0
        %9504 = vmatpush2.bf16.msra.mxu0 0
        %9505 = vmatprep.subr.bf16.mxu0 0
        %9506 = vmatpush2.bf16.msra.mxu0 0
        %9507 = vmatprep.subr.bf16.mxu0 0
        %9508 = vmatpush2.bf16.msra.mxu0 0
        %9509 = vmatprep.subr.bf16.mxu0 0
        %9510 = vmatpush2.bf16.msra.mxu0 0
        %9511 = vmatprep.subr.bf16.mxu0 0
        %9512 = vmatpush2.bf16.msra.mxu0 0
        %9513 = vmatprep.mubr.bf16.mxu0 0
        %9514 = vmatmul.mubr.bf16.gmra.mxu0 %v9470
        %v9515 = vpop.f32.mrf.mxu0
        %v9516 = vadd.f32 0.0, %v9515
        %v9517 = vpop.f32.mrf.mxu0
        %v9518 = vpop.f32.mrf.mxu0
        %v9519 = vadd.f32 0.0, %v9518
        %v9520 = vpop.f32.mrf.mxu0
        %9521 = vmatprep.mubr.bf16.mxu0 0
        %9522 = vmatmul.mubr.bf16.gmra.mxu0 %v9473
        %v9523 = vpop.f32.mrf.mxu0
        %v9524 = vadd.f32 0.0, %v9523
        %v9525 = vpop.f32.mrf.mxu0
        %v9526 = vpop.f32.mrf.mxu0
        %v9527 = vadd.f32 0.0, %v9526
        %v9528 = vpop.f32.mrf.mxu0
        %9529 = vmatprep.mubr.bf16.mxu0 0
        %9530 = vmatmul.mubr.bf16.gmra.mxu0 %v9476
        %v9531 = vpop.f32.mrf.mxu0
        %v9532 = vadd.f32 0.0, %v9531
        %v9533 = vpop.f32.mrf.mxu0
        %v9534 = vpop.f32.mrf.mxu0
        %v9535 = vadd.f32 0.0, %v9534
        %v9536 = vpop.f32.mrf.mxu0
        %9537 = vmatprep.mubr.bf16.mxu0 0
        %9538 = vmatmul.mubr.bf16.gmra.mxu0 %v9479
        %v9539 = vpop.f32.mrf.mxu0
        %v9540 = vadd.f32 0.0, %v9539
        %v9541 = vpop.f32.mrf.mxu0
        %v9542 = vpop.f32.mrf.mxu0
        %v9543 = vadd.f32 0.0, %v9542
        %v9544 = vpop.f32.mrf.mxu0
        %9545 = vdwg.mxu0
        %v9547 = vsel %vm557, %v7739, 0
        %v9550 = vsel %vm557, %v7740, 0
        %v9553 = vsel %vm557, %v7741, 0
        %v9556 = vsel %vm557, %v7742, 0
        %9558 = vmatprep.subr.bf16.mxu0 0
        %9559 = vmatpush1.bf16.msra.mxu0 0
        %9560 = vmatprep.subr.bf16.mxu0 0
        %9561 = vmatpush1.bf16.msra.mxu0 0
        %9562 = vmatprep.subr.bf16.mxu0 0
        %9563 = vmatpush1.bf16.msra.mxu0 0
        %9564 = vmatprep.subr.bf16.mxu0 0
        %9565 = vmatpush1.bf16.msra.mxu0 0
        %9566 = vmatprep.subr.bf16.mxu0 0
        %9567 = vmatpush1.bf16.msra.mxu0 %v1630
        %9568 = vmatprep.subr.bf16.mxu0 0
        %9569 = vmatpush1.bf16.msra.mxu0 %v1629
        %9570 = vmatprep.subr.bf16.mxu0 0
        %9571 = vmatpush1.bf16.msra.mxu0 %v1628
        %9572 = vmatprep.subr.bf16.mxu0 0
        %9573 = vmatpush1.bf16.msra.mxu0 %v1627
        %9574 = vmatprep.subr.bf16.mxu0 0
        %9575 = vmatpush2.bf16.msra.mxu0 0
        %9576 = vmatprep.subr.bf16.mxu0 0
        %9577 = vmatpush2.bf16.msra.mxu0 0
        %9578 = vmatprep.subr.bf16.mxu0 0
        %9579 = vmatpush2.bf16.msra.mxu0 0
        %9580 = vmatprep.subr.bf16.mxu0 0
        %9581 = vmatpush2.bf16.msra.mxu0 0
        %9582 = vmatprep.subr.bf16.mxu0 0
        %9583 = vmatpush2.bf16.msra.mxu0 0
        %9584 = vmatprep.subr.bf16.mxu0 0
        %9585 = vmatpush2.bf16.msra.mxu0 0
        %9586 = vmatprep.subr.bf16.mxu0 0
        %9587 = vmatpush2.bf16.msra.mxu0 0
        %9588 = vmatprep.subr.bf16.mxu0 0
        %9589 = vmatpush2.bf16.msra.mxu0 0
        %9590 = vmatprep.mubr.bf16.mxu0 0
        %9591 = vmatmul.mubr.bf16.gmra.mxu0 %v9547
        %v9592 = vpop.f32.mrf.mxu0
        %v9593 = vadd.f32 0.0, %v9592
        %v9594 = vpop.f32.mrf.mxu0
        %v9595 = vpop.f32.mrf.mxu0
        %v9596 = vadd.f32 0.0, %v9595
        %v9597 = vpop.f32.mrf.mxu0
        %9598 = vmatprep.mubr.bf16.mxu0 0
        %9599 = vmatmul.mubr.bf16.gmra.mxu0 %v9550
        %v9600 = vpop.f32.mrf.mxu0
        %v9601 = vadd.f32 0.0, %v9600
        %v9602 = vpop.f32.mrf.mxu0
        %v9603 = vpop.f32.mrf.mxu0
        %v9604 = vadd.f32 0.0, %v9603
        %v9605 = vpop.f32.mrf.mxu0
        %9606 = vmatprep.mubr.bf16.mxu0 0
        %9607 = vmatmul.mubr.bf16.gmra.mxu0 %v9553
        %v9608 = vpop.f32.mrf.mxu0
        %v9609 = vadd.f32 0.0, %v9608
        %v9610 = vpop.f32.mrf.mxu0
        %v9611 = vpop.f32.mrf.mxu0
        %v9612 = vadd.f32 0.0, %v9611
        %v9613 = vpop.f32.mrf.mxu0
        %9614 = vmatprep.mubr.bf16.mxu0 0
        %9615 = vmatmul.mubr.bf16.gmra.mxu0 %v9556
        %v9616 = vpop.f32.mrf.mxu0
        %v9617 = vadd.f32 0.0, %v9616
        %v9618 = vpop.f32.mrf.mxu0
        %v9619 = vpop.f32.mrf.mxu0
        %v9620 = vadd.f32 0.0, %v9619
        %v9621 = vpop.f32.mrf.mxu0
        %9622 = vdwg.mxu0
        %v9624 = vsel %vm557, %v7743, 0
        %v9627 = vsel %vm557, %v7744, 0
        %v9630 = vsel %vm557, %v7745, 0
        %v9633 = vsel %vm557, %v7746, 0
        %9635 = vmatprep.subr.bf16.mxu0 0
        %9636 = vmatpush1.bf16.msra.mxu0 0
        %9637 = vmatprep.subr.bf16.mxu0 0
        %9638 = vmatpush1.bf16.msra.mxu0 0
        %9639 = vmatprep.subr.bf16.mxu0 0
        %9640 = vmatpush1.bf16.msra.mxu0 0
        %9641 = vmatprep.subr.bf16.mxu0 0
        %9642 = vmatpush1.bf16.msra.mxu0 0
        %9643 = vmatprep.subr.bf16.mxu0 0
        %9644 = vmatpush1.bf16.msra.mxu0 %v1634
        %9645 = vmatprep.subr.bf16.mxu0 0
        %9646 = vmatpush1.bf16.msra.mxu0 %v1633
        %9647 = vmatprep.subr.bf16.mxu0 0
        %9648 = vmatpush1.bf16.msra.mxu0 %v1632
        %9649 = vmatprep.subr.bf16.mxu0 0
        %9650 = vmatpush1.bf16.msra.mxu0 %v1631
        %9651 = vmatprep.subr.bf16.mxu0 0
        %9652 = vmatpush2.bf16.msra.mxu0 0
        %9653 = vmatprep.subr.bf16.mxu0 0
        %9654 = vmatpush2.bf16.msra.mxu0 0
        %9655 = vmatprep.subr.bf16.mxu0 0
        %9656 = vmatpush2.bf16.msra.mxu0 0
        %9657 = vmatprep.subr.bf16.mxu0 0
        %9658 = vmatpush2.bf16.msra.mxu0 0
        %9659 = vmatprep.subr.bf16.mxu0 0
        %9660 = vmatpush2.bf16.msra.mxu0 0
        %9661 = vmatprep.subr.bf16.mxu0 0
        %9662 = vmatpush2.bf16.msra.mxu0 0
        %9663 = vmatprep.subr.bf16.mxu0 0
        %9664 = vmatpush2.bf16.msra.mxu0 0
        %9665 = vmatprep.subr.bf16.mxu0 0
        %9666 = vmatpush2.bf16.msra.mxu0 0
        %9667 = vmatprep.mubr.bf16.mxu0 0
        %9668 = vmatmul.mubr.bf16.gmra.mxu0 %v9624
        %v9669 = vpop.f32.mrf.mxu0
        %v9670 = vadd.f32 0.0, %v9669
        %v9671 = vpop.f32.mrf.mxu0
        %v9672 = vpop.f32.mrf.mxu0
        %v9673 = vadd.f32 0.0, %v9672
        %v9674 = vpop.f32.mrf.mxu0
        %9675 = vmatprep.mubr.bf16.mxu0 0
        %9676 = vmatmul.mubr.bf16.gmra.mxu0 %v9627
        %v9677 = vpop.f32.mrf.mxu0
        %v9678 = vadd.f32 0.0, %v9677
        %v9679 = vpop.f32.mrf.mxu0
        %v9680 = vpop.f32.mrf.mxu0
        %v9681 = vadd.f32 0.0, %v9680
        %v9682 = vpop.f32.mrf.mxu0
        %9683 = vmatprep.mubr.bf16.mxu0 0
        %9684 = vmatmul.mubr.bf16.gmra.mxu0 %v9630
        %v9685 = vpop.f32.mrf.mxu0
        %v9686 = vadd.f32 0.0, %v9685
        %v9687 = vpop.f32.mrf.mxu0
        %v9688 = vpop.f32.mrf.mxu0
        %v9689 = vadd.f32 0.0, %v9688
        %v9690 = vpop.f32.mrf.mxu0
        %9691 = vmatprep.mubr.bf16.mxu0 0
        %9692 = vmatmul.mubr.bf16.gmra.mxu0 %v9633
        %v9693 = vpop.f32.mrf.mxu0
        %v9694 = vadd.f32 0.0, %v9693
        %v9695 = vpop.f32.mrf.mxu0
        %v9696 = vpop.f32.mrf.mxu0
        %v9697 = vadd.f32 0.0, %v9696
        %v9698 = vpop.f32.mrf.mxu0
        %9699 = vdwg.mxu0
        %v9701 = vsel %vm557, %v7747, 0
        %v9704 = vsel %vm557, %v7748, 0
        %v9707 = vsel %vm557, %v7749, 0
        %v9710 = vsel %vm557, %v7750, 0
        %9712 = vmatprep.subr.bf16.mxu0 0
        %9713 = vmatpush1.bf16.msra.mxu0 0
        %9714 = vmatprep.subr.bf16.mxu0 0
        %9715 = vmatpush1.bf16.msra.mxu0 0
        %9716 = vmatprep.subr.bf16.mxu0 0
        %9717 = vmatpush1.bf16.msra.mxu0 0
        %9718 = vmatprep.subr.bf16.mxu0 0
        %9719 = vmatpush1.bf16.msra.mxu0 0
        %9720 = vmatprep.subr.bf16.mxu0 0
        %9721 = vmatpush1.bf16.msra.mxu0 %v1638
        %9722 = vmatprep.subr.bf16.mxu0 0
        %9723 = vmatpush1.bf16.msra.mxu0 %v1637
        %9724 = vmatprep.subr.bf16.mxu0 0
        %9725 = vmatpush1.bf16.msra.mxu0 %v1636
        %9726 = vmatprep.subr.bf16.mxu0 0
        %9727 = vmatpush1.bf16.msra.mxu0 %v1635
        %9728 = vmatprep.subr.bf16.mxu0 0
        %9729 = vmatpush2.bf16.msra.mxu0 0
        %9730 = vmatprep.subr.bf16.mxu0 0
        %9731 = vmatpush2.bf16.msra.mxu0 0
        %9732 = vmatprep.subr.bf16.mxu0 0
        %9733 = vmatpush2.bf16.msra.mxu0 0
        %9734 = vmatprep.subr.bf16.mxu0 0
        %9735 = vmatpush2.bf16.msra.mxu0 0
        %9736 = vmatprep.subr.bf16.mxu0 0
        %9737 = vmatpush2.bf16.msra.mxu0 0
        %9738 = vmatprep.subr.bf16.mxu0 0
        %9739 = vmatpush2.bf16.msra.mxu0 0
        %9740 = vmatprep.subr.bf16.mxu0 0
        %9741 = vmatpush2.bf16.msra.mxu0 0
        %9742 = vmatprep.subr.bf16.mxu0 0
        %9743 = vmatpush2.bf16.msra.mxu0 0
        %9744 = vmatprep.mubr.bf16.mxu0 0
        %9745 = vmatmul.mubr.bf16.gmra.mxu0 %v9701
        %v9746 = vpop.f32.mrf.mxu0
        %v9747 = vadd.f32 0.0, %v9746
        %v9748 = vpop.f32.mrf.mxu0
        %v9749 = vpop.f32.mrf.mxu0
        %v9750 = vadd.f32 0.0, %v9749
        %v9751 = vpop.f32.mrf.mxu0
        %9752 = vmatprep.mubr.bf16.mxu0 0
        %9753 = vmatmul.mubr.bf16.gmra.mxu0 %v9704
        %v9754 = vpop.f32.mrf.mxu0
        %v9755 = vadd.f32 0.0, %v9754
        %v9756 = vpop.f32.mrf.mxu0
        %v9757 = vpop.f32.mrf.mxu0
        %v9758 = vadd.f32 0.0, %v9757
        %v9759 = vpop.f32.mrf.mxu0
        %9760 = vmatprep.mubr.bf16.mxu0 0
        %9761 = vmatmul.mubr.bf16.gmra.mxu0 %v9707
        %v9762 = vpop.f32.mrf.mxu0
        %v9763 = vadd.f32 0.0, %v9762
        %v9764 = vpop.f32.mrf.mxu0
        %v9765 = vpop.f32.mrf.mxu0
        %v9766 = vadd.f32 0.0, %v9765
        %v9767 = vpop.f32.mrf.mxu0
        %9768 = vmatprep.mubr.bf16.mxu0 0
        %9769 = vmatmul.mubr.bf16.gmra.mxu0 %v9710
        %v9770 = vpop.f32.mrf.mxu0
        %v9771 = vadd.f32 0.0, %v9770
        %v9772 = vpop.f32.mrf.mxu0
        %v9773 = vpop.f32.mrf.mxu0
        %v9774 = vadd.f32 0.0, %v9773
        %v9775 = vpop.f32.mrf.mxu0
        %9776 = vdwg.mxu0
        %v9778 = vsel %vm557, %v7751, 0
        %v9781 = vsel %vm557, %v7752, 0
        %v9784 = vsel %vm557, %v7753, 0
        %v9787 = vsel %vm557, %v7754, 0
        %9789 = vmatprep.subr.bf16.mxu0 0
        %9790 = vmatpush1.bf16.msra.mxu0 0
        %9791 = vmatprep.subr.bf16.mxu0 0
        %9792 = vmatpush1.bf16.msra.mxu0 0
        %9793 = vmatprep.subr.bf16.mxu0 0
        %9794 = vmatpush1.bf16.msra.mxu0 0
        %9795 = vmatprep.subr.bf16.mxu0 0
        %9796 = vmatpush1.bf16.msra.mxu0 0
        %9797 = vmatprep.subr.bf16.mxu0 0
        %9798 = vmatpush1.bf16.msra.mxu0 %v1642
        %9799 = vmatprep.subr.bf16.mxu0 0
        %9800 = vmatpush1.bf16.msra.mxu0 %v1641
        %9801 = vmatprep.subr.bf16.mxu0 0
        %9802 = vmatpush1.bf16.msra.mxu0 %v1640
        %9803 = vmatprep.subr.bf16.mxu0 0
        %9804 = vmatpush1.bf16.msra.mxu0 %v1639
        %9805 = vmatprep.subr.bf16.mxu0 0
        %9806 = vmatpush2.bf16.msra.mxu0 0
        %9807 = vmatprep.subr.bf16.mxu0 0
        %9808 = vmatpush2.bf16.msra.mxu0 0
        %9809 = vmatprep.subr.bf16.mxu0 0
        %9810 = vmatpush2.bf16.msra.mxu0 0
        %9811 = vmatprep.subr.bf16.mxu0 0
        %9812 = vmatpush2.bf16.msra.mxu0 0
        %9813 = vmatprep.subr.bf16.mxu0 0
        %9814 = vmatpush2.bf16.msra.mxu0 0
        %9815 = vmatprep.subr.bf16.mxu0 0
        %9816 = vmatpush2.bf16.msra.mxu0 0
        %9817 = vmatprep.subr.bf16.mxu0 0
        %9818 = vmatpush2.bf16.msra.mxu0 0
        %9819 = vmatprep.subr.bf16.mxu0 0
        %9820 = vmatpush2.bf16.msra.mxu0 0
        %9821 = vmatprep.mubr.bf16.mxu0 0
        %9822 = vmatmul.mubr.bf16.gmra.mxu0 %v9778
        %v9823 = vpop.f32.mrf.mxu0
        %v9824 = vadd.f32 0.0, %v9823
        %v9825 = vpop.f32.mrf.mxu0
        %v9826 = vpop.f32.mrf.mxu0
        %v9827 = vadd.f32 0.0, %v9826
        %v9828 = vpop.f32.mrf.mxu0
        %9829 = vmatprep.mubr.bf16.mxu0 0
        %9830 = vmatmul.mubr.bf16.gmra.mxu0 %v9781
        %v9831 = vpop.f32.mrf.mxu0
        %v9832 = vadd.f32 0.0, %v9831
        %v9833 = vpop.f32.mrf.mxu0
        %v9834 = vpop.f32.mrf.mxu0
        %v9835 = vadd.f32 0.0, %v9834
        %v9836 = vpop.f32.mrf.mxu0
        %9837 = vmatprep.mubr.bf16.mxu0 0
        %9838 = vmatmul.mubr.bf16.gmra.mxu0 %v9784
        %v9839 = vpop.f32.mrf.mxu0
        %v9840 = vadd.f32 0.0, %v9839
        %v9841 = vpop.f32.mrf.mxu0
        %v9842 = vpop.f32.mrf.mxu0
        %v9843 = vadd.f32 0.0, %v9842
        %v9844 = vpop.f32.mrf.mxu0
        %9845 = vmatprep.mubr.bf16.mxu0 0
        %9846 = vmatmul.mubr.bf16.gmra.mxu0 %v9787
        %v9847 = vpop.f32.mrf.mxu0
        %v9848 = vadd.f32 0.0, %v9847
        %v9849 = vpop.f32.mrf.mxu0
        %v9850 = vpop.f32.mrf.mxu0
        %v9851 = vadd.f32 0.0, %v9850
        %v9852 = vpop.f32.mrf.mxu0
        %9853 = vdwg.mxu0
        %v9855 = vsel %vm557, %v7755, 0
        %v9858 = vsel %vm557, %v7756, 0
        %v9861 = vsel %vm557, %v7757, 0
        %v9864 = vsel %vm557, %v7758, 0
        %9866 = vmatprep.subr.bf16.mxu0 0
        %9867 = vmatpush1.bf16.msra.mxu0 0
        %9868 = vmatprep.subr.bf16.mxu0 0
        %9869 = vmatpush1.bf16.msra.mxu0 0
        %9870 = vmatprep.subr.bf16.mxu0 0
        %9871 = vmatpush1.bf16.msra.mxu0 0
        %9872 = vmatprep.subr.bf16.mxu0 0
        %9873 = vmatpush1.bf16.msra.mxu0 0
        %9874 = vmatprep.subr.bf16.mxu0 0
        %9875 = vmatpush1.bf16.msra.mxu0 %v1646
        %9876 = vmatprep.subr.bf16.mxu0 0
        %9877 = vmatpush1.bf16.msra.mxu0 %v1645
        %9878 = vmatprep.subr.bf16.mxu0 0
        %9879 = vmatpush1.bf16.msra.mxu0 %v1644
        %9880 = vmatprep.subr.bf16.mxu0 0
        %9881 = vmatpush1.bf16.msra.mxu0 %v1643
        %9882 = vmatprep.subr.bf16.mxu0 0
        %9883 = vmatpush2.bf16.msra.mxu0 0
        %9884 = vmatprep.subr.bf16.mxu0 0
        %9885 = vmatpush2.bf16.msra.mxu0 0
        %9886 = vmatprep.subr.bf16.mxu0 0
        %9887 = vmatpush2.bf16.msra.mxu0 0
        %9888 = vmatprep.subr.bf16.mxu0 0
        %9889 = vmatpush2.bf16.msra.mxu0 0
        %9890 = vmatprep.subr.bf16.mxu0 0
        %9891 = vmatpush2.bf16.msra.mxu0 0
        %9892 = vmatprep.subr.bf16.mxu0 0
        %9893 = vmatpush2.bf16.msra.mxu0 0
        %9894 = vmatprep.subr.bf16.mxu0 0
        %9895 = vmatpush2.bf16.msra.mxu0 0
        %9896 = vmatprep.subr.bf16.mxu0 0
        %9897 = vmatpush2.bf16.msra.mxu0 0
        %9898 = vmatprep.mubr.bf16.mxu0 0
        %9899 = vmatmul.mubr.bf16.gmra.mxu0 %v9855
        %v9900 = vpop.f32.mrf.mxu0
        %v9901 = vadd.f32 0.0, %v9900
        %v9902 = vpop.f32.mrf.mxu0
        %v9903 = vpop.f32.mrf.mxu0
        %v9904 = vadd.f32 0.0, %v9903
        %v9905 = vpop.f32.mrf.mxu0
        %9906 = vmatprep.mubr.bf16.mxu0 0
        %9907 = vmatmul.mubr.bf16.gmra.mxu0 %v9858
        %v9908 = vpop.f32.mrf.mxu0
        %v9909 = vadd.f32 0.0, %v9908
        %v9910 = vpop.f32.mrf.mxu0
        %v9911 = vpop.f32.mrf.mxu0
        %v9912 = vadd.f32 0.0, %v9911
        %v9913 = vpop.f32.mrf.mxu0
        %9914 = vmatprep.mubr.bf16.mxu0 0
        %9915 = vmatmul.mubr.bf16.gmra.mxu0 %v9861
        %v9916 = vpop.f32.mrf.mxu0
        %v9917 = vadd.f32 0.0, %v9916
        %v9918 = vpop.f32.mrf.mxu0
        %v9919 = vpop.f32.mrf.mxu0
        %v9920 = vadd.f32 0.0, %v9919
        %v9921 = vpop.f32.mrf.mxu0
        %9922 = vmatprep.mubr.bf16.mxu0 0
        %9923 = vmatmul.mubr.bf16.gmra.mxu0 %v9864
        %v9924 = vpop.f32.mrf.mxu0
        %v9925 = vadd.f32 0.0, %v9924
        %v9926 = vpop.f32.mrf.mxu0
        %v9927 = vpop.f32.mrf.mxu0
        %v9928 = vadd.f32 0.0, %v9927
        %v9929 = vpop.f32.mrf.mxu0
        %9930 = vdwg.mxu0
        %v9932 = vsel %vm557, %v7759, 0
        %v9935 = vsel %vm557, %v7760, 0
        %v9938 = vsel %vm557, %v7761, 0
        %v9941 = vsel %vm557, %v7762, 0
        %9943 = vmatprep.subr.bf16.mxu0 0
        %9944 = vmatpush1.bf16.msra.mxu0 0
        %9945 = vmatprep.subr.bf16.mxu0 0
        %9946 = vmatpush1.bf16.msra.mxu0 0
        %9947 = vmatprep.subr.bf16.mxu0 0
        %9948 = vmatpush1.bf16.msra.mxu0 0
        %9949 = vmatprep.subr.bf16.mxu0 0
        %9950 = vmatpush1.bf16.msra.mxu0 0
        %9951 = vmatprep.subr.bf16.mxu0 0
        %9952 = vmatpush1.bf16.msra.mxu0 %v1650
        %9953 = vmatprep.subr.bf16.mxu0 0
        %9954 = vmatpush1.bf16.msra.mxu0 %v1649
        %9955 = vmatprep.subr.bf16.mxu0 0
        %9956 = vmatpush1.bf16.msra.mxu0 %v1648
        %9957 = vmatprep.subr.bf16.mxu0 0
        %9958 = vmatpush1.bf16.msra.mxu0 %v1647
        %9959 = vmatprep.subr.bf16.mxu0 0
        %9960 = vmatpush2.bf16.msra.mxu0 0
        %9961 = vmatprep.subr.bf16.mxu0 0
        %9962 = vmatpush2.bf16.msra.mxu0 0
        %9963 = vmatprep.subr.bf16.mxu0 0
        %9964 = vmatpush2.bf16.msra.mxu0 0
        %9965 = vmatprep.subr.bf16.mxu0 0
        %9966 = vmatpush2.bf16.msra.mxu0 0
        %9967 = vmatprep.subr.bf16.mxu0 0
        %9968 = vmatpush2.bf16.msra.mxu0 0
        %9969 = vmatprep.subr.bf16.mxu0 0
        %9970 = vmatpush2.bf16.msra.mxu0 0
        %9971 = vmatprep.subr.bf16.mxu0 0
        %9972 = vmatpush2.bf16.msra.mxu0 0
        %9973 = vmatprep.subr.bf16.mxu0 0
        %9974 = vmatpush2.bf16.msra.mxu0 0
        %9975 = vmatprep.mubr.bf16.mxu0 0
        %9976 = vmatmul.mubr.bf16.gmra.mxu0 %v9932
        %v9977 = vpop.f32.mrf.mxu0
        %v9978 = vadd.f32 0.0, %v9977
        %v9979 = vpop.f32.mrf.mxu0
        %v9980 = vpop.f32.mrf.mxu0
        %v9981 = vadd.f32 0.0, %v9980
        %v9982 = vpop.f32.mrf.mxu0
        %9983 = vmatprep.mubr.bf16.mxu0 0
        %9984 = vmatmul.mubr.bf16.gmra.mxu0 %v9935
        %v9985 = vpop.f32.mrf.mxu0
        %v9986 = vadd.f32 0.0, %v9985
        %v9987 = vpop.f32.mrf.mxu0
        %v9988 = vpop.f32.mrf.mxu0
        %v9989 = vadd.f32 0.0, %v9988
        %v9990 = vpop.f32.mrf.mxu0
        %9991 = vmatprep.mubr.bf16.mxu0 0
        %9992 = vmatmul.mubr.bf16.gmra.mxu0 %v9938
        %v9993 = vpop.f32.mrf.mxu0
        %v9994 = vadd.f32 0.0, %v9993
        %v9995 = vpop.f32.mrf.mxu0
        %v9996 = vpop.f32.mrf.mxu0
        %v9997 = vadd.f32 0.0, %v9996
        %v9998 = vpop.f32.mrf.mxu0
        %9999 = vmatprep.mubr.bf16.mxu0 0
        %10000 = vmatmul.mubr.bf16.gmra.mxu0 %v9941
        %v10001 = vpop.f32.mrf.mxu0
        %v10002 = vadd.f32 0.0, %v10001
        %v10003 = vpop.f32.mrf.mxu0
        %v10004 = vpop.f32.mrf.mxu0
        %v10005 = vadd.f32 0.0, %v10004
        %v10006 = vpop.f32.mrf.mxu0
        %10007 = vdwg.mxu0
        %v10009 = vsel %vm557, %v7763, 0
        %v10012 = vsel %vm557, %v7764, 0
        %v10015 = vsel %vm557, %v7765, 0
        %v10018 = vsel %vm557, %v7766, 0
        %10020 = vmatprep.subr.bf16.mxu0 0
        %10021 = vmatpush1.bf16.msra.mxu0 0
        %10022 = vmatprep.subr.bf16.mxu0 0
        %10023 = vmatpush1.bf16.msra.mxu0 0
        %10024 = vmatprep.subr.bf16.mxu0 0
        %10025 = vmatpush1.bf16.msra.mxu0 0
        %10026 = vmatprep.subr.bf16.mxu0 0
        %10027 = vmatpush1.bf16.msra.mxu0 0
        %10028 = vmatprep.subr.bf16.mxu0 0
        %10029 = vmatpush1.bf16.msra.mxu0 %v1654
        %10030 = vmatprep.subr.bf16.mxu0 0
        %10031 = vmatpush1.bf16.msra.mxu0 %v1653
        %10032 = vmatprep.subr.bf16.mxu0 0
        %10033 = vmatpush1.bf16.msra.mxu0 %v1652
        %10034 = vmatprep.subr.bf16.mxu0 0
        %10035 = vmatpush1.bf16.msra.mxu0 %v1651
        %10036 = vmatprep.subr.bf16.mxu0 0
        %10037 = vmatpush2.bf16.msra.mxu0 0
        %10038 = vmatprep.subr.bf16.mxu0 0
        %10039 = vmatpush2.bf16.msra.mxu0 0
        %10040 = vmatprep.subr.bf16.mxu0 0
        %10041 = vmatpush2.bf16.msra.mxu0 0
        %10042 = vmatprep.subr.bf16.mxu0 0
        %10043 = vmatpush2.bf16.msra.mxu0 0
        %10044 = vmatprep.subr.bf16.mxu0 0
        %10045 = vmatpush2.bf16.msra.mxu0 0
        %10046 = vmatprep.subr.bf16.mxu0 0
        %10047 = vmatpush2.bf16.msra.mxu0 0
        %10048 = vmatprep.subr.bf16.mxu0 0
        %10049 = vmatpush2.bf16.msra.mxu0 0
        %10050 = vmatprep.subr.bf16.mxu0 0
        %10051 = vmatpush2.bf16.msra.mxu0 0
        %10052 = vmatprep.mubr.bf16.mxu0 0
        %10053 = vmatmul.mubr.bf16.gmra.mxu0 %v10009
        %v10054 = vpop.f32.mrf.mxu0
        %v10055 = vadd.f32 0.0, %v10054
        %v10056 = vpop.f32.mrf.mxu0
        %v10057 = vpop.f32.mrf.mxu0
        %v10058 = vadd.f32 0.0, %v10057
        %v10059 = vpop.f32.mrf.mxu0
        %10060 = vmatprep.mubr.bf16.mxu0 0
        %10061 = vmatmul.mubr.bf16.gmra.mxu0 %v10012
        %v10062 = vpop.f32.mrf.mxu0
        %v10063 = vadd.f32 0.0, %v10062
        %v10064 = vpop.f32.mrf.mxu0
        %v10065 = vpop.f32.mrf.mxu0
        %v10066 = vadd.f32 0.0, %v10065
        %v10067 = vpop.f32.mrf.mxu0
        %10068 = vmatprep.mubr.bf16.mxu0 0
        %10069 = vmatmul.mubr.bf16.gmra.mxu0 %v10015
        %v10070 = vpop.f32.mrf.mxu0
        %v10071 = vadd.f32 0.0, %v10070
        %v10072 = vpop.f32.mrf.mxu0
        %v10073 = vpop.f32.mrf.mxu0
        %v10074 = vadd.f32 0.0, %v10073
        %v10075 = vpop.f32.mrf.mxu0
        %10076 = vmatprep.mubr.bf16.mxu0 0
        %10077 = vmatmul.mubr.bf16.gmra.mxu0 %v10018
        %v10078 = vpop.f32.mrf.mxu0
        %v10079 = vadd.f32 0.0, %v10078
        %v10080 = vpop.f32.mrf.mxu0
        %v10081 = vpop.f32.mrf.mxu0
        %v10082 = vadd.f32 0.0, %v10081
        %v10083 = vpop.f32.mrf.mxu0
        %10084 = vdwg.mxu0
        %v10086 = vsel %vm557, %v7767, 0
        %v10089 = vsel %vm557, %v7768, 0
        %v10092 = vsel %vm557, %v7769, 0
        %v10095 = vsel %vm557, %v7770, 0
        %10097 = vmatprep.subr.bf16.mxu0 0
        %10098 = vmatpush1.bf16.msra.mxu0 0
        %10099 = vmatprep.subr.bf16.mxu0 0
        %10100 = vmatpush1.bf16.msra.mxu0 0
        %10101 = vmatprep.subr.bf16.mxu0 0
        %10102 = vmatpush1.bf16.msra.mxu0 0
        %10103 = vmatprep.subr.bf16.mxu0 0
        %10104 = vmatpush1.bf16.msra.mxu0 0
        %10105 = vmatprep.subr.bf16.mxu0 0
        %10106 = vmatpush1.bf16.msra.mxu0 %v1658
        %10107 = vmatprep.subr.bf16.mxu0 0
        %10108 = vmatpush1.bf16.msra.mxu0 %v1657
        %10109 = vmatprep.subr.bf16.mxu0 0
        %10110 = vmatpush1.bf16.msra.mxu0 %v1656
        %10111 = vmatprep.subr.bf16.mxu0 0
        %10112 = vmatpush1.bf16.msra.mxu0 %v1655
        %10113 = vmatprep.subr.bf16.mxu0 0
        %10114 = vmatpush2.bf16.msra.mxu0 0
        %10115 = vmatprep.subr.bf16.mxu0 0
        %10116 = vmatpush2.bf16.msra.mxu0 0
        %10117 = vmatprep.subr.bf16.mxu0 0
        %10118 = vmatpush2.bf16.msra.mxu0 0
        %10119 = vmatprep.subr.bf16.mxu0 0
        %10120 = vmatpush2.bf16.msra.mxu0 0
        %10121 = vmatprep.subr.bf16.mxu0 0
        %10122 = vmatpush2.bf16.msra.mxu0 0
        %10123 = vmatprep.subr.bf16.mxu0 0
        %10124 = vmatpush2.bf16.msra.mxu0 0
        %10125 = vmatprep.subr.bf16.mxu0 0
        %10126 = vmatpush2.bf16.msra.mxu0 0
        %10127 = vmatprep.subr.bf16.mxu0 0
        %10128 = vmatpush2.bf16.msra.mxu0 0
        %10129 = vmatprep.mubr.bf16.mxu0 0
        %10130 = vmatmul.mubr.bf16.gmra.mxu0 %v10086
        %v10131 = vpop.f32.mrf.mxu0
        %v10132 = vadd.f32 0.0, %v10131
        %v10133 = vpop.f32.mrf.mxu0
        %v10134 = vpop.f32.mrf.mxu0
        %v10135 = vadd.f32 0.0, %v10134
        %v10136 = vpop.f32.mrf.mxu0
        %10137 = vmatprep.mubr.bf16.mxu0 0
        %10138 = vmatmul.mubr.bf16.gmra.mxu0 %v10089
        %v10139 = vpop.f32.mrf.mxu0
        %v10140 = vadd.f32 0.0, %v10139
        %v10141 = vpop.f32.mrf.mxu0
        %v10142 = vpop.f32.mrf.mxu0
        %v10143 = vadd.f32 0.0, %v10142
        %v10144 = vpop.f32.mrf.mxu0
        %10145 = vmatprep.mubr.bf16.mxu0 0
        %10146 = vmatmul.mubr.bf16.gmra.mxu0 %v10092
        %v10147 = vpop.f32.mrf.mxu0
        %v10148 = vadd.f32 0.0, %v10147
        %v10149 = vpop.f32.mrf.mxu0
        %v10150 = vpop.f32.mrf.mxu0
        %v10151 = vadd.f32 0.0, %v10150
        %v10152 = vpop.f32.mrf.mxu0
        %10153 = vmatprep.mubr.bf16.mxu0 0
        %10154 = vmatmul.mubr.bf16.gmra.mxu0 %v10095
        %v10155 = vpop.f32.mrf.mxu0
        %v10156 = vadd.f32 0.0, %v10155
        %v10157 = vpop.f32.mrf.mxu0
        %v10158 = vpop.f32.mrf.mxu0
        %v10159 = vadd.f32 0.0, %v10158
        %v10160 = vpop.f32.mrf.mxu0
        %10161 = vdwg.mxu0
        %v10163 = vsel %vm557, %v7771, 0
        %v10166 = vsel %vm557, %v7772, 0
        %v10169 = vsel %vm557, %v7773, 0
        %v10172 = vsel %vm557, %v7774, 0
        %10174 = vmatprep.subr.bf16.mxu0 0
        %10175 = vmatpush1.bf16.msra.mxu0 0
        %10176 = vmatprep.subr.bf16.mxu0 0
        %10177 = vmatpush1.bf16.msra.mxu0 0
        %10178 = vmatprep.subr.bf16.mxu0 0
        %10179 = vmatpush1.bf16.msra.mxu0 0
        %10180 = vmatprep.subr.bf16.mxu0 0
        %10181 = vmatpush1.bf16.msra.mxu0 0
        %10182 = vmatprep.subr.bf16.mxu0 0
        %10183 = vmatpush1.bf16.msra.mxu0 %v1662
        %10184 = vmatprep.subr.bf16.mxu0 0
        %10185 = vmatpush1.bf16.msra.mxu0 %v1661
        %10186 = vmatprep.subr.bf16.mxu0 0
        %10187 = vmatpush1.bf16.msra.mxu0 %v1660
        %10188 = vmatprep.subr.bf16.mxu0 0
        %10189 = vmatpush1.bf16.msra.mxu0 %v1659
        %10190 = vmatprep.subr.bf16.mxu0 0
        %10191 = vmatpush2.bf16.msra.mxu0 0
        %10192 = vmatprep.subr.bf16.mxu0 0
        %10193 = vmatpush2.bf16.msra.mxu0 0
        %10194 = vmatprep.subr.bf16.mxu0 0
        %10195 = vmatpush2.bf16.msra.mxu0 0
        %10196 = vmatprep.subr.bf16.mxu0 0
        %10197 = vmatpush2.bf16.msra.mxu0 0
        %10198 = vmatprep.subr.bf16.mxu0 0
        %10199 = vmatpush2.bf16.msra.mxu0 0
        %10200 = vmatprep.subr.bf16.mxu0 0
        %10201 = vmatpush2.bf16.msra.mxu0 0
        %10202 = vmatprep.subr.bf16.mxu0 0
        %10203 = vmatpush2.bf16.msra.mxu0 0
        %10204 = vmatprep.subr.bf16.mxu0 0
        %10205 = vmatpush2.bf16.msra.mxu0 0
        %10206 = vmatprep.mubr.bf16.mxu0 0
        %10207 = vmatmul.mubr.bf16.gmra.mxu0 %v10163
        %v10208 = vpop.f32.mrf.mxu0
        %v10209 = vadd.f32 0.0, %v10208
        %v10210 = vpop.f32.mrf.mxu0
        %v10211 = vpop.f32.mrf.mxu0
        %v10212 = vadd.f32 0.0, %v10211
        %v10213 = vpop.f32.mrf.mxu0
        %10214 = vmatprep.mubr.bf16.mxu0 0
        %10215 = vmatmul.mubr.bf16.gmra.mxu0 %v10166
        %v10216 = vpop.f32.mrf.mxu0
        %v10217 = vadd.f32 0.0, %v10216
        %v10218 = vpop.f32.mrf.mxu0
        %v10219 = vpop.f32.mrf.mxu0
        %v10220 = vadd.f32 0.0, %v10219
        %v10221 = vpop.f32.mrf.mxu0
        %10222 = vmatprep.mubr.bf16.mxu0 0
        %10223 = vmatmul.mubr.bf16.gmra.mxu0 %v10169
        %v10224 = vpop.f32.mrf.mxu0
        %v10225 = vadd.f32 0.0, %v10224
        %v10226 = vpop.f32.mrf.mxu0
        %v10227 = vpop.f32.mrf.mxu0
        %v10228 = vadd.f32 0.0, %v10227
        %v10229 = vpop.f32.mrf.mxu0
        %10230 = vmatprep.mubr.bf16.mxu0 0
        %10231 = vmatmul.mubr.bf16.gmra.mxu0 %v10172
        %v10232 = vpop.f32.mrf.mxu0
        %v10233 = vadd.f32 0.0, %v10232
        %v10234 = vpop.f32.mrf.mxu0
        %v10235 = vpop.f32.mrf.mxu0
        %v10236 = vadd.f32 0.0, %v10235
        %v10237 = vpop.f32.mrf.mxu0
        %10238 = vdwg.mxu0
        %v10239 = vsel %vm557, %v7822, 0.0
        %v10240 = vsel %vm557, %v7899, 0.0
        %v10241 = vadd.f32 %v10239, %v10240
        %v10242 = vsel %vm557, %v7976, 0.0
        %v10243 = vadd.f32 %v10241, %v10242
        %v10244 = vsel %vm557, %v8053, 0.0
        %v10245 = vadd.f32 %v10243, %v10244
        %v10246 = vsel %vm557, %v8130, 0.0
        %v10247 = vadd.f32 %v10245, %v10246
        %v10248 = vsel %vm557, %v8207, 0.0
        %v10249 = vadd.f32 %v10247, %v10248
        %v10250 = vsel %vm557, %v8284, 0.0
        %v10251 = vadd.f32 %v10249, %v10250
        %v10252 = vsel %vm557, %v8361, 0.0
        %v10253 = vadd.f32 %v10251, %v10252
        %v10254 = vsel %vm557, %v7825, 0.0
        %v10255 = vsel %vm557, %v7902, 0.0
        %v10256 = vadd.f32 %v10254, %v10255
        %v10257 = vsel %vm557, %v7979, 0.0
        %v10258 = vadd.f32 %v10256, %v10257
        %v10259 = vsel %vm557, %v8056, 0.0
        %v10260 = vadd.f32 %v10258, %v10259
        %v10261 = vsel %vm557, %v8133, 0.0
        %v10262 = vadd.f32 %v10260, %v10261
        %v10263 = vsel %vm557, %v8210, 0.0
        %v10264 = vadd.f32 %v10262, %v10263
        %v10265 = vsel %vm557, %v8287, 0.0
        %v10266 = vadd.f32 %v10264, %v10265
        %v10267 = vsel %vm557, %v8364, 0.0
        %v10268 = vadd.f32 %v10266, %v10267
        %v10269 = vsel %vm557, %v7830, 0.0
        %v10270 = vsel %vm557, %v7907, 0.0
        %v10271 = vadd.f32 %v10269, %v10270
        %v10272 = vsel %vm557, %v7984, 0.0
        %v10273 = vadd.f32 %v10271, %v10272
        %v10274 = vsel %vm557, %v8061, 0.0
        %v10275 = vadd.f32 %v10273, %v10274
        %v10276 = vsel %vm557, %v8138, 0.0
        %v10277 = vadd.f32 %v10275, %v10276
        %v10278 = vsel %vm557, %v8215, 0.0
        %v10279 = vadd.f32 %v10277, %v10278
        %v10280 = vsel %vm557, %v8292, 0.0
        %v10281 = vadd.f32 %v10279, %v10280
        %v10282 = vsel %vm557, %v8369, 0.0
        %v10283 = vadd.f32 %v10281, %v10282
        %v10284 = vsel %vm557, %v7833, 0.0
        %v10285 = vsel %vm557, %v7910, 0.0
        %v10286 = vadd.f32 %v10284, %v10285
        %v10287 = vsel %vm557, %v7987, 0.0
        %v10288 = vadd.f32 %v10286, %v10287
        %v10289 = vsel %vm557, %v8064, 0.0
        %v10290 = vadd.f32 %v10288, %v10289
        %v10291 = vsel %vm557, %v8141, 0.0
        %v10292 = vadd.f32 %v10290, %v10291
        %v10293 = vsel %vm557, %v8218, 0.0
        %v10294 = vadd.f32 %v10292, %v10293
        %v10295 = vsel %vm557, %v8295, 0.0
        %v10296 = vadd.f32 %v10294, %v10295
        %v10297 = vsel %vm557, %v8372, 0.0
        %v10298 = vadd.f32 %v10296, %v10297
        %v10299 = vsel %vm557, %v7838, 0.0
        %v10300 = vsel %vm557, %v7915, 0.0
        %v10301 = vadd.f32 %v10299, %v10300
        %v10302 = vsel %vm557, %v7992, 0.0
        %v10303 = vadd.f32 %v10301, %v10302
        %v10304 = vsel %vm557, %v8069, 0.0
        %v10305 = vadd.f32 %v10303, %v10304
        %v10306 = vsel %vm557, %v8146, 0.0
        %v10307 = vadd.f32 %v10305, %v10306
        %v10308 = vsel %vm557, %v8223, 0.0
        %v10309 = vadd.f32 %v10307, %v10308
        %v10310 = vsel %vm557, %v8300, 0.0
        %v10311 = vadd.f32 %v10309, %v10310
        %v10312 = vsel %vm557, %v8377, 0.0
        %v10313 = vadd.f32 %v10311, %v10312
        %v10314 = vsel %vm557, %v7841, 0.0
        %v10315 = vsel %vm557, %v7918, 0.0
        %v10316 = vadd.f32 %v10314, %v10315
        %v10317 = vsel %vm557, %v7995, 0.0
        %v10318 = vadd.f32 %v10316, %v10317
        %v10319 = vsel %vm557, %v8072, 0.0
        %v10320 = vadd.f32 %v10318, %v10319
        %v10321 = vsel %vm557, %v8149, 0.0
        %v10322 = vadd.f32 %v10320, %v10321
        %v10323 = vsel %vm557, %v8226, 0.0
        %v10324 = vadd.f32 %v10322, %v10323
        %v10325 = vsel %vm557, %v8303, 0.0
        %v10326 = vadd.f32 %v10324, %v10325
        %v10327 = vsel %vm557, %v8380, 0.0
        %v10328 = vadd.f32 %v10326, %v10327
        %v10329 = vsel %vm557, %v7846, 0.0
        %v10330 = vsel %vm557, %v7923, 0.0
        %v10331 = vadd.f32 %v10329, %v10330
        %v10332 = vsel %vm557, %v8000, 0.0
        %v10333 = vadd.f32 %v10331, %v10332
        %v10334 = vsel %vm557, %v8077, 0.0
        %v10335 = vadd.f32 %v10333, %v10334
        %v10336 = vsel %vm557, %v8154, 0.0
        %v10337 = vadd.f32 %v10335, %v10336
        %v10338 = vsel %vm557, %v8231, 0.0
        %v10339 = vadd.f32 %v10337, %v10338
        %v10340 = vsel %vm557, %v8308, 0.0
        %v10341 = vadd.f32 %v10339, %v10340
        %v10342 = vsel %vm557, %v8385, 0.0
        %v10343 = vadd.f32 %v10341, %v10342
        %v10344 = vsel %vm557, %v7849, 0.0
        %v10345 = vsel %vm557, %v7926, 0.0
        %v10346 = vadd.f32 %v10344, %v10345
        %v10347 = vsel %vm557, %v8003, 0.0
        %v10348 = vadd.f32 %v10346, %v10347
        %v10349 = vsel %vm557, %v8080, 0.0
        %v10350 = vadd.f32 %v10348, %v10349
        %v10351 = vsel %vm557, %v8157, 0.0
        %v10352 = vadd.f32 %v10350, %v10351
        %v10353 = vsel %vm557, %v8234, 0.0
        %v10354 = vadd.f32 %v10352, %v10353
        %v10355 = vsel %vm557, %v8311, 0.0
        %v10356 = vadd.f32 %v10354, %v10355
        %v10357 = vsel %vm557, %v8388, 0.0
        %v10358 = vadd.f32 %v10356, %v10357
        %v10359 = vsel %vm557, %v8438, 0.0
        %v10360 = vsel %vm557, %v8515, 0.0
        %v10361 = vadd.f32 %v10359, %v10360
        %v10362 = vsel %vm557, %v8592, 0.0
        %v10363 = vadd.f32 %v10361, %v10362
        %v10364 = vsel %vm557, %v8669, 0.0
        %v10365 = vadd.f32 %v10363, %v10364
        %v10366 = vsel %vm557, %v8746, 0.0
        %v10367 = vadd.f32 %v10365, %v10366
        %v10368 = vsel %vm557, %v8823, 0.0
        %v10369 = vadd.f32 %v10367, %v10368
        %v10370 = vsel %vm557, %v8900, 0.0
        %v10371 = vadd.f32 %v10369, %v10370
        %v10372 = vsel %vm557, %v8977, 0.0
        %v10373 = vadd.f32 %v10371, %v10372
        %v10374 = vsel %vm557, %v8441, 0.0
        %v10375 = vsel %vm557, %v8518, 0.0
        %v10376 = vadd.f32 %v10374, %v10375
        %v10377 = vsel %vm557, %v8595, 0.0
        %v10378 = vadd.f32 %v10376, %v10377
        %v10379 = vsel %vm557, %v8672, 0.0
        %v10380 = vadd.f32 %v10378, %v10379
        %v10381 = vsel %vm557, %v8749, 0.0
        %v10382 = vadd.f32 %v10380, %v10381
        %v10383 = vsel %vm557, %v8826, 0.0
        %v10384 = vadd.f32 %v10382, %v10383
        %v10385 = vsel %vm557, %v8903, 0.0
        %v10386 = vadd.f32 %v10384, %v10385
        %v10387 = vsel %vm557, %v8980, 0.0
        %v10388 = vadd.f32 %v10386, %v10387
        %v10389 = vsel %vm557, %v8446, 0.0
        %v10390 = vsel %vm557, %v8523, 0.0
        %v10391 = vadd.f32 %v10389, %v10390
        %v10392 = vsel %vm557, %v8600, 0.0
        %v10393 = vadd.f32 %v10391, %v10392
        %v10394 = vsel %vm557, %v8677, 0.0
        %v10395 = vadd.f32 %v10393, %v10394
        %v10396 = vsel %vm557, %v8754, 0.0
        %v10397 = vadd.f32 %v10395, %v10396
        %v10398 = vsel %vm557, %v8831, 0.0
        %v10399 = vadd.f32 %v10397, %v10398
        %v10400 = vsel %vm557, %v8908, 0.0
        %v10401 = vadd.f32 %v10399, %v10400
        %v10402 = vsel %vm557, %v8985, 0.0
        %v10403 = vadd.f32 %v10401, %v10402
        %v10404 = vsel %vm557, %v8449, 0.0
        %v10405 = vsel %vm557, %v8526, 0.0
        %v10406 = vadd.f32 %v10404, %v10405
        %v10407 = vsel %vm557, %v8603, 0.0
        %v10408 = vadd.f32 %v10406, %v10407
        %v10409 = vsel %vm557, %v8680, 0.0
        %v10410 = vadd.f32 %v10408, %v10409
        %v10411 = vsel %vm557, %v8757, 0.0
        %v10412 = vadd.f32 %v10410, %v10411
        %v10413 = vsel %vm557, %v8834, 0.0
        %v10414 = vadd.f32 %v10412, %v10413
        %v10415 = vsel %vm557, %v8911, 0.0
        %v10416 = vadd.f32 %v10414, %v10415
        %v10417 = vsel %vm557, %v8988, 0.0
        %v10418 = vadd.f32 %v10416, %v10417
        %v10419 = vsel %vm557, %v8454, 0.0
        %v10420 = vsel %vm557, %v8531, 0.0
        %v10421 = vadd.f32 %v10419, %v10420
        %v10422 = vsel %vm557, %v8608, 0.0
        %v10423 = vadd.f32 %v10421, %v10422
        %v10424 = vsel %vm557, %v8685, 0.0
        %v10425 = vadd.f32 %v10423, %v10424
        %v10426 = vsel %vm557, %v8762, 0.0
        %v10427 = vadd.f32 %v10425, %v10426
        %v10428 = vsel %vm557, %v8839, 0.0
        %v10429 = vadd.f32 %v10427, %v10428
        %v10430 = vsel %vm557, %v8916, 0.0
        %v10431 = vadd.f32 %v10429, %v10430
        %v10432 = vsel %vm557, %v8993, 0.0
        %v10433 = vadd.f32 %v10431, %v10432
        %v10434 = vsel %vm557, %v8457, 0.0
        %v10435 = vsel %vm557, %v8534, 0.0
        %v10436 = vadd.f32 %v10434, %v10435
        %v10437 = vsel %vm557, %v8611, 0.0
        %v10438 = vadd.f32 %v10436, %v10437
        %v10439 = vsel %vm557, %v8688, 0.0
        %v10440 = vadd.f32 %v10438, %v10439
        %v10441 = vsel %vm557, %v8765, 0.0
        %v10442 = vadd.f32 %v10440, %v10441
        %v10443 = vsel %vm557, %v8842, 0.0
        %v10444 = vadd.f32 %v10442, %v10443
        %v10445 = vsel %vm557, %v8919, 0.0
        %v10446 = vadd.f32 %v10444, %v10445
        %v10447 = vsel %vm557, %v8996, 0.0
        %v10448 = vadd.f32 %v10446, %v10447
        %v10449 = vsel %vm557, %v8462, 0.0
        %v10450 = vsel %vm557, %v8539, 0.0
        %v10451 = vadd.f32 %v10449, %v10450
        %v10452 = vsel %vm557, %v8616, 0.0
        %v10453 = vadd.f32 %v10451, %v10452
        %v10454 = vsel %vm557, %v8693, 0.0
        %v10455 = vadd.f32 %v10453, %v10454
        %v10456 = vsel %vm557, %v8770, 0.0
        %v10457 = vadd.f32 %v10455, %v10456
        %v10458 = vsel %vm557, %v8847, 0.0
        %v10459 = vadd.f32 %v10457, %v10458
        %v10460 = vsel %vm557, %v8924, 0.0
        %v10461 = vadd.f32 %v10459, %v10460
        %v10462 = vsel %vm557, %v9001, 0.0
        %v10463 = vadd.f32 %v10461, %v10462
        %v10464 = vsel %vm557, %v8465, 0.0
        %v10465 = vsel %vm557, %v8542, 0.0
        %v10466 = vadd.f32 %v10464, %v10465
        %v10467 = vsel %vm557, %v8619, 0.0
        %v10468 = vadd.f32 %v10466, %v10467
        %v10469 = vsel %vm557, %v8696, 0.0
        %v10470 = vadd.f32 %v10468, %v10469
        %v10471 = vsel %vm557, %v8773, 0.0
        %v10472 = vadd.f32 %v10470, %v10471
        %v10473 = vsel %vm557, %v8850, 0.0
        %v10474 = vadd.f32 %v10472, %v10473
        %v10475 = vsel %vm557, %v8927, 0.0
        %v10476 = vadd.f32 %v10474, %v10475
        %v10477 = vsel %vm557, %v9004, 0.0
        %v10478 = vadd.f32 %v10476, %v10477
        %v10479 = vsel %vm557, %v9054, 0.0
        %v10480 = vsel %vm557, %v9131, 0.0
        %v10481 = vadd.f32 %v10479, %v10480
        %v10482 = vsel %vm557, %v9208, 0.0
        %v10483 = vadd.f32 %v10481, %v10482
        %v10484 = vsel %vm557, %v9285, 0.0
        %v10485 = vadd.f32 %v10483, %v10484
        %v10486 = vsel %vm557, %v9362, 0.0
        %v10487 = vadd.f32 %v10485, %v10486
        %v10488 = vsel %vm557, %v9439, 0.0
        %v10489 = vadd.f32 %v10487, %v10488
        %v10490 = vsel %vm557, %v9516, 0.0
        %v10491 = vadd.f32 %v10489, %v10490
        %v10492 = vsel %vm557, %v9593, 0.0
        %v10493 = vadd.f32 %v10491, %v10492
        %v10494 = vsel %vm557, %v9057, 0.0
        %v10495 = vsel %vm557, %v9134, 0.0
        %v10496 = vadd.f32 %v10494, %v10495
        %v10497 = vsel %vm557, %v9211, 0.0
        %v10498 = vadd.f32 %v10496, %v10497
        %v10499 = vsel %vm557, %v9288, 0.0
        %v10500 = vadd.f32 %v10498, %v10499
        %v10501 = vsel %vm557, %v9365, 0.0
        %v10502 = vadd.f32 %v10500, %v10501
        %v10503 = vsel %vm557, %v9442, 0.0
        %v10504 = vadd.f32 %v10502, %v10503
        %v10505 = vsel %vm557, %v9519, 0.0
        %v10506 = vadd.f32 %v10504, %v10505
        %v10507 = vsel %vm557, %v9596, 0.0
        %v10508 = vadd.f32 %v10506, %v10507
        %v10509 = vsel %vm557, %v9062, 0.0
        %v10510 = vsel %vm557, %v9139, 0.0
        %v10511 = vadd.f32 %v10509, %v10510
        %v10512 = vsel %vm557, %v9216, 0.0
        %v10513 = vadd.f32 %v10511, %v10512
        %v10514 = vsel %vm557, %v9293, 0.0
        %v10515 = vadd.f32 %v10513, %v10514
        %v10516 = vsel %vm557, %v9370, 0.0
        %v10517 = vadd.f32 %v10515, %v10516
        %v10518 = vsel %vm557, %v9447, 0.0
        %v10519 = vadd.f32 %v10517, %v10518
        %v10520 = vsel %vm557, %v9524, 0.0
        %v10521 = vadd.f32 %v10519, %v10520
        %v10522 = vsel %vm557, %v9601, 0.0
        %v10523 = vadd.f32 %v10521, %v10522
        %v10524 = vsel %vm557, %v9065, 0.0
        %v10525 = vsel %vm557, %v9142, 0.0
        %v10526 = vadd.f32 %v10524, %v10525
        %v10527 = vsel %vm557, %v9219, 0.0
        %v10528 = vadd.f32 %v10526, %v10527
        %v10529 = vsel %vm557, %v9296, 0.0
        %v10530 = vadd.f32 %v10528, %v10529
        %v10531 = vsel %vm557, %v9373, 0.0
        %v10532 = vadd.f32 %v10530, %v10531
        %v10533 = vsel %vm557, %v9450, 0.0
        %v10534 = vadd.f32 %v10532, %v10533
        %v10535 = vsel %vm557, %v9527, 0.0
        %v10536 = vadd.f32 %v10534, %v10535
        %v10537 = vsel %vm557, %v9604, 0.0
        %v10538 = vadd.f32 %v10536, %v10537
        %v10539 = vsel %vm557, %v9070, 0.0
        %v10540 = vsel %vm557, %v9147, 0.0
        %v10541 = vadd.f32 %v10539, %v10540
        %v10542 = vsel %vm557, %v9224, 0.0
        %v10543 = vadd.f32 %v10541, %v10542
        %v10544 = vsel %vm557, %v9301, 0.0
        %v10545 = vadd.f32 %v10543, %v10544
        %v10546 = vsel %vm557, %v9378, 0.0
        %v10547 = vadd.f32 %v10545, %v10546
        %v10548 = vsel %vm557, %v9455, 0.0
        %v10549 = vadd.f32 %v10547, %v10548
        %v10550 = vsel %vm557, %v9532, 0.0
        %v10551 = vadd.f32 %v10549, %v10550
        %v10552 = vsel %vm557, %v9609, 0.0
        %v10553 = vadd.f32 %v10551, %v10552
        %v10554 = vsel %vm557, %v9073, 0.0
        %v10555 = vsel %vm557, %v9150, 0.0
        %v10556 = vadd.f32 %v10554, %v10555
        %v10557 = vsel %vm557, %v9227, 0.0
        %v10558 = vadd.f32 %v10556, %v10557
        %v10559 = vsel %vm557, %v9304, 0.0
        %v10560 = vadd.f32 %v10558, %v10559
        %v10561 = vsel %vm557, %v9381, 0.0
        %v10562 = vadd.f32 %v10560, %v10561
        %v10563 = vsel %vm557, %v9458, 0.0
        %v10564 = vadd.f32 %v10562, %v10563
        %v10565 = vsel %vm557, %v9535, 0.0
        %v10566 = vadd.f32 %v10564, %v10565
        %v10567 = vsel %vm557, %v9612, 0.0
        %v10568 = vadd.f32 %v10566, %v10567
        %v10569 = vsel %vm557, %v9078, 0.0
        %v10570 = vsel %vm557, %v9155, 0.0
        %v10571 = vadd.f32 %v10569, %v10570
        %v10572 = vsel %vm557, %v9232, 0.0
        %v10573 = vadd.f32 %v10571, %v10572
        %v10574 = vsel %vm557, %v9309, 0.0
        %v10575 = vadd.f32 %v10573, %v10574
        %v10576 = vsel %vm557, %v9386, 0.0
        %v10577 = vadd.f32 %v10575, %v10576
        %v10578 = vsel %vm557, %v9463, 0.0
        %v10579 = vadd.f32 %v10577, %v10578
        %v10580 = vsel %vm557, %v9540, 0.0
        %v10581 = vadd.f32 %v10579, %v10580
        %v10582 = vsel %vm557, %v9617, 0.0
        %v10583 = vadd.f32 %v10581, %v10582
        %v10584 = vsel %vm557, %v9081, 0.0
        %v10585 = vsel %vm557, %v9158, 0.0
        %v10586 = vadd.f32 %v10584, %v10585
        %v10587 = vsel %vm557, %v9235, 0.0
        %v10588 = vadd.f32 %v10586, %v10587
        %v10589 = vsel %vm557, %v9312, 0.0
        %v10590 = vadd.f32 %v10588, %v10589
        %v10591 = vsel %vm557, %v9389, 0.0
        %v10592 = vadd.f32 %v10590, %v10591
        %v10593 = vsel %vm557, %v9466, 0.0
        %v10594 = vadd.f32 %v10592, %v10593
        %v10595 = vsel %vm557, %v9543, 0.0
        %v10596 = vadd.f32 %v10594, %v10595
        %v10597 = vsel %vm557, %v9620, 0.0
        %v10598 = vadd.f32 %v10596, %v10597
        %v10599 = vsel %vm557, %v9670, 0.0
        %v10600 = vsel %vm557, %v9747, 0.0
        %v10601 = vadd.f32 %v10599, %v10600
        %v10602 = vsel %vm557, %v9824, 0.0
        %v10603 = vadd.f32 %v10601, %v10602
        %v10604 = vsel %vm557, %v9901, 0.0
        %v10605 = vadd.f32 %v10603, %v10604
        %v10606 = vsel %vm557, %v9978, 0.0
        %v10607 = vadd.f32 %v10605, %v10606
        %v10608 = vsel %vm557, %v10055, 0.0
        %v10609 = vadd.f32 %v10607, %v10608
        %v10610 = vsel %vm557, %v10132, 0.0
        %v10611 = vadd.f32 %v10609, %v10610
        %v10612 = vsel %vm557, %v10209, 0.0
        %v10613 = vadd.f32 %v10611, %v10612
        %v10614 = vsel %vm557, %v9673, 0.0
        %v10615 = vsel %vm557, %v9750, 0.0
        %v10616 = vadd.f32 %v10614, %v10615
        %v10617 = vsel %vm557, %v9827, 0.0
        %v10618 = vadd.f32 %v10616, %v10617
        %v10619 = vsel %vm557, %v9904, 0.0
        %v10620 = vadd.f32 %v10618, %v10619
        %v10621 = vsel %vm557, %v9981, 0.0
        %v10622 = vadd.f32 %v10620, %v10621
        %v10623 = vsel %vm557, %v10058, 0.0
        %v10624 = vadd.f32 %v10622, %v10623
        %v10625 = vsel %vm557, %v10135, 0.0
        %v10626 = vadd.f32 %v10624, %v10625
        %v10627 = vsel %vm557, %v10212, 0.0
        %v10628 = vadd.f32 %v10626, %v10627
        %v10629 = vsel %vm557, %v9678, 0.0
        %v10630 = vsel %vm557, %v9755, 0.0
        %v10631 = vadd.f32 %v10629, %v10630
        %v10632 = vsel %vm557, %v9832, 0.0
        %v10633 = vadd.f32 %v10631, %v10632
        %v10634 = vsel %vm557, %v9909, 0.0
        %v10635 = vadd.f32 %v10633, %v10634
        %v10636 = vsel %vm557, %v9986, 0.0
        %v10637 = vadd.f32 %v10635, %v10636
        %v10638 = vsel %vm557, %v10063, 0.0
        %v10639 = vadd.f32 %v10637, %v10638
        %v10640 = vsel %vm557, %v10140, 0.0
        %v10641 = vadd.f32 %v10639, %v10640
        %v10642 = vsel %vm557, %v10217, 0.0
        %v10643 = vadd.f32 %v10641, %v10642
        %v10644 = vsel %vm557, %v9681, 0.0
        %v10645 = vsel %vm557, %v9758, 0.0
        %v10646 = vadd.f32 %v10644, %v10645
        %v10647 = vsel %vm557, %v9835, 0.0
        %v10648 = vadd.f32 %v10646, %v10647
        %v10649 = vsel %vm557, %v9912, 0.0
        %v10650 = vadd.f32 %v10648, %v10649
        %v10651 = vsel %vm557, %v9989, 0.0
        %v10652 = vadd.f32 %v10650, %v10651
        %v10653 = vsel %vm557, %v10066, 0.0
        %v10654 = vadd.f32 %v10652, %v10653
        %v10655 = vsel %vm557, %v10143, 0.0
        %v10656 = vadd.f32 %v10654, %v10655
        %v10657 = vsel %vm557, %v10220, 0.0
        %v10658 = vadd.f32 %v10656, %v10657
        %v10659 = vsel %vm557, %v9686, 0.0
        %v10660 = vsel %vm557, %v9763, 0.0
        %v10661 = vadd.f32 %v10659, %v10660
        %v10662 = vsel %vm557, %v9840, 0.0
        %v10663 = vadd.f32 %v10661, %v10662
        %v10664 = vsel %vm557, %v9917, 0.0
        %v10665 = vadd.f32 %v10663, %v10664
        %v10666 = vsel %vm557, %v9994, 0.0
        %v10667 = vadd.f32 %v10665, %v10666
        %v10668 = vsel %vm557, %v10071, 0.0
        %v10669 = vadd.f32 %v10667, %v10668
        %v10670 = vsel %vm557, %v10148, 0.0
        %v10671 = vadd.f32 %v10669, %v10670
        %v10672 = vsel %vm557, %v10225, 0.0
        %v10673 = vadd.f32 %v10671, %v10672
        %v10674 = vsel %vm557, %v9689, 0.0
        %v10675 = vsel %vm557, %v9766, 0.0
        %v10676 = vadd.f32 %v10674, %v10675
        %v10677 = vsel %vm557, %v9843, 0.0
        %v10678 = vadd.f32 %v10676, %v10677
        %v10679 = vsel %vm557, %v9920, 0.0
        %v10680 = vadd.f32 %v10678, %v10679
        %v10681 = vsel %vm557, %v9997, 0.0
        %v10682 = vadd.f32 %v10680, %v10681
        %v10683 = vsel %vm557, %v10074, 0.0
        %v10684 = vadd.f32 %v10682, %v10683
        %v10685 = vsel %vm557, %v10151, 0.0
        %v10686 = vadd.f32 %v10684, %v10685
        %v10687 = vsel %vm557, %v10228, 0.0
        %v10688 = vadd.f32 %v10686, %v10687
        %v10689 = vsel %vm557, %v9694, 0.0
        %v10690 = vsel %vm557, %v9771, 0.0
        %v10691 = vadd.f32 %v10689, %v10690
        %v10692 = vsel %vm557, %v9848, 0.0
        %v10693 = vadd.f32 %v10691, %v10692
        %v10694 = vsel %vm557, %v9925, 0.0
        %v10695 = vadd.f32 %v10693, %v10694
        %v10696 = vsel %vm557, %v10002, 0.0
        %v10697 = vadd.f32 %v10695, %v10696
        %v10698 = vsel %vm557, %v10079, 0.0
        %v10699 = vadd.f32 %v10697, %v10698
        %v10700 = vsel %vm557, %v10156, 0.0
        %v10701 = vadd.f32 %v10699, %v10700
        %v10702 = vsel %vm557, %v10233, 0.0
        %v10703 = vadd.f32 %v10701, %v10702
        %v10704 = vsel %vm557, %v9697, 0.0
        %v10705 = vsel %vm557, %v9774, 0.0
        %v10706 = vadd.f32 %v10704, %v10705
        %v10707 = vsel %vm557, %v9851, 0.0
        %v10708 = vadd.f32 %v10706, %v10707
        %v10709 = vsel %vm557, %v9928, 0.0
        %v10710 = vadd.f32 %v10708, %v10709
        %v10711 = vsel %vm557, %v10005, 0.0
        %v10712 = vadd.f32 %v10710, %v10711
        %v10713 = vsel %vm557, %v10082, 0.0
        %v10714 = vadd.f32 %v10712, %v10713
        %v10715 = vsel %vm557, %v10159, 0.0
        %v10716 = vadd.f32 %v10714, %v10715
        %v10717 = vsel %vm557, %v10236, 0.0
        %v10718 = vadd.f32 %v10716, %v10717
        %v10719 = vpack.c.bf16 %v10268, %v10253
        %v10720 = vpack.c.bf16 %v10298, %v10283
        %v10721 = vpack.c.bf16 %v10328, %v10313
        %v10722 = vpack.c.bf16 %v10358, %v10343
        %v10723 = vpack.c.bf16 %v10388, %v10373
        %v10724 = vpack.c.bf16 %v10418, %v10403
        %v10725 = vpack.c.bf16 %v10448, %v10433
        %v10726 = vpack.c.bf16 %v10478, %v10463
        %v10727 = vpack.c.bf16 %v10508, %v10493
        %v10728 = vpack.c.bf16 %v10538, %v10523
        %v10729 = vpack.c.bf16 %v10568, %v10553
        %v10730 = vpack.c.bf16 %v10598, %v10583
        %v10731 = vpack.c.bf16 %v10628, %v10613
        %v10732 = vpack.c.bf16 %v10658, %v10643
        %v10733 = vpack.c.bf16 %v10688, %v10673
        %v10734 = vpack.c.bf16 %v10718, %v10703
        %v10735 = vld [vmem:[%s7] sm:$0xf]
        %v10736 = vld [vmem:[%s7 + $0x4] sm:$0xf]
        %v10737 = vld [vmem:[%s7 + $0x8] sm:$0xf]
        %v10738 = vld [vmem:[%s7 + $0xc] sm:$0xf]
        %v10739 = vld [vmem:[%s7 + $0x10] sm:$0xf]
        %v10740 = vld [vmem:[%s7 + $0x14] sm:$0xf]
        %v10741 = vld [vmem:[%s7 + $0x18] sm:$0xf]
        %v10742 = vld [vmem:[%s7 + $0x1c] sm:$0xf]
        %v10743 = vld [vmem:[%s8] sm:$0x1]
        %v10745 = vlaneseq
        %v10746 = vshrl.u32 %v10745, 7
        %v10747 = vsub.s32 0, %v10746
        %v10748 = vrot.slane %v10743, %v10747
        %v10758 = vunpack.c.l.b16 %v10735
        %v10759 = vunpack.c.l.b16 %v10736
        %v10760 = vunpack.c.l.b16 %v10737
        %v10761 = vunpack.c.l.b16 %v10738
        %v10762 = vunpack.c.l.b16 %v10739
        %v10763 = vunpack.c.l.b16 %v10740
        %v10764 = vunpack.c.l.b16 %v10741
        %v10765 = vunpack.c.l.b16 %v10742
        %v10766 = vpack.c.b16 %v10759, %v10758
        %v10767 = vpack.c.b16 %v10761, %v10760
        %v10768 = vpack.c.b16 %v10763, %v10762
        %v10769 = vpack.c.b16 %v10765, %v10764
        %v10775 = vsel %vm557, %v10719, 0
        %v10778 = vsel %vm557, %v10720, 0
        %v10781 = vsel %vm557, %v10721, 0
        %v10784 = vsel %vm557, %v10722, 0
        %v10787 = vsel %vm557, %v10723, 0
        %v10790 = vsel %vm557, %v10724, 0
        %v10793 = vsel %vm557, %v10725, 0
        %v10796 = vsel %vm557, %v10726, 0
        %v10799 = vsel %vm557, %v10727, 0
        %v10802 = vsel %vm557, %v10728, 0
        %v10805 = vsel %vm557, %v10729, 0
        %v10808 = vsel %vm557, %v10730, 0
        %v10811 = vsel %vm557, %v10731, 0
        %v10814 = vsel %vm557, %v10732, 0
        %v10817 = vsel %vm557, %v10733, 0
        %v10820 = vsel %vm557, %v10734, 0
        %10822 = vmatprep.subr.bf16.mxu0 0
        %10823 = vmatpush1.bf16.msra.mxu0 0
        %10824 = vmatprep.subr.bf16.mxu0 0
        %10825 = vmatpush1.bf16.msra.mxu0 0
        %10826 = vmatprep.subr.bf16.mxu0 0
        %10827 = vmatpush1.bf16.msra.mxu0 0
        %10828 = vmatprep.subr.bf16.mxu0 0
        %10829 = vmatpush1.bf16.msra.mxu0 0
        %10830 = vmatprep.subr.bf16.mxu0 0
        %10831 = vmatpush1.bf16.msra.mxu0 %v10769
        %10832 = vmatprep.subr.bf16.mxu0 0
        %10833 = vmatpush1.bf16.msra.mxu0 %v10768
        %10834 = vmatprep.subr.bf16.mxu0 0
        %10835 = vmatpush1.bf16.msra.mxu0 %v10767
        %10836 = vmatprep.subr.bf16.mxu0 0
        %10837 = vmatpush1.bf16.msra.mxu0 %v10766
        %10838 = vmatprep.subr.bf16.mxu0 0
        %10839 = vmatpush2.bf16.msra.mxu0 0
        %10840 = vmatprep.subr.bf16.mxu0 0
        %10841 = vmatpush2.bf16.msra.mxu0 0
        %10842 = vmatprep.subr.bf16.mxu0 0
        %10843 = vmatpush2.bf16.msra.mxu0 0
        %10844 = vmatprep.subr.bf16.mxu0 0
        %10845 = vmatpush2.bf16.msra.mxu0 0
        %10846 = vmatprep.subr.bf16.mxu0 0
        %10847 = vmatpush2.bf16.msra.mxu0 0
        %10848 = vmatprep.subr.bf16.mxu0 0
        %10849 = vmatpush2.bf16.msra.mxu0 0
        %10850 = vmatprep.subr.bf16.mxu0 0
        %10851 = vmatpush2.bf16.msra.mxu0 0
        %10852 = vmatprep.subr.bf16.mxu0 0
        %10853 = vmatpush2.bf16.msra.mxu0 0
        %10854 = vmatprep.mubr.bf16.mxu0 0
        %10855 = vmatmul.mubr.bf16.gmra.mxu0 %v10775
        %v10856 = vpop.f32.mrf.mxu0
        %v10857 = vadd.f32 %v10748, %v10856
        %v10858 = vpop.f32.mrf.mxu0
        %v10859 = vpop.f32.mrf.mxu0
        %v10860 = vadd.f32 %v10748, %v10859
        %v10861 = vpop.f32.mrf.mxu0
        %10862 = vmatprep.mubr.bf16.mxu0 0
        %10863 = vmatmul.mubr.bf16.gmra.mxu0 %v10778
        %v10864 = vpop.f32.mrf.mxu0
        %v10865 = vadd.f32 %v10748, %v10864
        %v10866 = vpop.f32.mrf.mxu0
        %v10867 = vpop.f32.mrf.mxu0
        %v10868 = vadd.f32 %v10748, %v10867
        %v10869 = vpop.f32.mrf.mxu0
        %10870 = vmatprep.mubr.bf16.mxu0 0
        %10871 = vmatmul.mubr.bf16.gmra.mxu0 %v10781
        %v10872 = vpop.f32.mrf.mxu0
        %v10873 = vadd.f32 %v10748, %v10872
        %v10874 = vpop.f32.mrf.mxu0
        %v10875 = vpop.f32.mrf.mxu0
        %v10876 = vadd.f32 %v10748, %v10875
        %v10877 = vpop.f32.mrf.mxu0
        %10878 = vmatprep.mubr.bf16.mxu0 0
        %10879 = vmatmul.mubr.bf16.gmra.mxu0 %v10784
        %v10880 = vpop.f32.mrf.mxu0
        %v10881 = vadd.f32 %v10748, %v10880
        %v10882 = vpop.f32.mrf.mxu0
        %v10883 = vpop.f32.mrf.mxu0
        %v10884 = vadd.f32 %v10748, %v10883
        %v10885 = vpop.f32.mrf.mxu0
        %10886 = vmatprep.mubr.bf16.mxu0 0
        %10887 = vmatmul.mubr.bf16.gmra.mxu0 %v10787
        %v10888 = vpop.f32.mrf.mxu0
        %v10889 = vadd.f32 %v10748, %v10888
        %v10890 = vpop.f32.mrf.mxu0
        %v10891 = vpop.f32.mrf.mxu0
        %v10892 = vadd.f32 %v10748, %v10891
        %v10893 = vpop.f32.mrf.mxu0
        %10894 = vmatprep.mubr.bf16.mxu0 0
        %10895 = vmatmul.mubr.bf16.gmra.mxu0 %v10790
        %v10896 = vpop.f32.mrf.mxu0
        %v10897 = vadd.f32 %v10748, %v10896
        %v10898 = vpop.f32.mrf.mxu0
        %v10899 = vpop.f32.mrf.mxu0
        %v10900 = vadd.f32 %v10748, %v10899
        %v10901 = vpop.f32.mrf.mxu0
        %10902 = vmatprep.mubr.bf16.mxu0 0
        %10903 = vmatmul.mubr.bf16.gmra.mxu0 %v10793
        %v10904 = vpop.f32.mrf.mxu0
        %v10905 = vadd.f32 %v10748, %v10904
        %v10906 = vpop.f32.mrf.mxu0
        %v10907 = vpop.f32.mrf.mxu0
        %v10908 = vadd.f32 %v10748, %v10907
        %v10909 = vpop.f32.mrf.mxu0
        %10910 = vmatprep.mubr.bf16.mxu0 0
        %10911 = vmatmul.mubr.bf16.gmra.mxu0 %v10796
        %v10912 = vpop.f32.mrf.mxu0
        %v10913 = vadd.f32 %v10748, %v10912
        %v10914 = vpop.f32.mrf.mxu0
        %v10915 = vpop.f32.mrf.mxu0
        %v10916 = vadd.f32 %v10748, %v10915
        %v10917 = vpop.f32.mrf.mxu0
        %10918 = vmatprep.mubr.bf16.mxu0 0
        %10919 = vmatmul.mubr.bf16.gmra.mxu0 %v10799
        %v10920 = vpop.f32.mrf.mxu0
        %v10921 = vadd.f32 %v10748, %v10920
        %v10922 = vpop.f32.mrf.mxu0
        %v10923 = vpop.f32.mrf.mxu0
        %v10924 = vadd.f32 %v10748, %v10923
        %v10925 = vpop.f32.mrf.mxu0
        %10926 = vmatprep.mubr.bf16.mxu0 0
        %10927 = vmatmul.mubr.bf16.gmra.mxu0 %v10802
        %v10928 = vpop.f32.mrf.mxu0
        %v10929 = vadd.f32 %v10748, %v10928
        %v10930 = vpop.f32.mrf.mxu0
        %v10931 = vpop.f32.mrf.mxu0
        %v10932 = vadd.f32 %v10748, %v10931
        %v10933 = vpop.f32.mrf.mxu0
        %10934 = vmatprep.mubr.bf16.mxu0 0
        %10935 = vmatmul.mubr.bf16.gmra.mxu0 %v10805
        %v10936 = vpop.f32.mrf.mxu0
        %v10937 = vadd.f32 %v10748, %v10936
        %v10938 = vpop.f32.mrf.mxu0
        %v10939 = vpop.f32.mrf.mxu0
        %v10940 = vadd.f32 %v10748, %v10939
        %v10941 = vpop.f32.mrf.mxu0
        %10942 = vmatprep.mubr.bf16.mxu0 0
        %10943 = vmatmul.mubr.bf16.gmra.mxu0 %v10808
        %v10944 = vpop.f32.mrf.mxu0
        %v10945 = vadd.f32 %v10748, %v10944
        %v10946 = vpop.f32.mrf.mxu0
        %v10947 = vpop.f32.mrf.mxu0
        %v10948 = vadd.f32 %v10748, %v10947
        %v10949 = vpop.f32.mrf.mxu0
        %10950 = vmatprep.mubr.bf16.mxu0 0
        %10951 = vmatmul.mubr.bf16.gmra.mxu0 %v10811
        %v10952 = vpop.f32.mrf.mxu0
        %v10953 = vadd.f32 %v10748, %v10952
        %v10954 = vpop.f32.mrf.mxu0
        %v10955 = vpop.f32.mrf.mxu0
        %v10956 = vadd.f32 %v10748, %v10955
        %v10957 = vpop.f32.mrf.mxu0
        %10958 = vmatprep.mubr.bf16.mxu0 0
        %10959 = vmatmul.mubr.bf16.gmra.mxu0 %v10814
        %v10960 = vpop.f32.mrf.mxu0
        %v10961 = vadd.f32 %v10748, %v10960
        %v10962 = vpop.f32.mrf.mxu0
        %v10963 = vpop.f32.mrf.mxu0
        %v10964 = vadd.f32 %v10748, %v10963
        %v10965 = vpop.f32.mrf.mxu0
        %10966 = vmatprep.mubr.bf16.mxu0 0
        %10967 = vmatmul.mubr.bf16.gmra.mxu0 %v10817
        %v10968 = vpop.f32.mrf.mxu0
        %v10969 = vadd.f32 %v10748, %v10968
        %v10970 = vpop.f32.mrf.mxu0
        %v10971 = vpop.f32.mrf.mxu0
        %v10972 = vadd.f32 %v10748, %v10971
        %v10973 = vpop.f32.mrf.mxu0
        %10974 = vmatprep.mubr.bf16.mxu0 0
        %10975 = vmatmul.mubr.bf16.gmra.mxu0 %v10820
        %v10976 = vpop.f32.mrf.mxu0
        %v10977 = vadd.f32 %v10748, %v10976
        %v10978 = vpop.f32.mrf.mxu0
        %v10979 = vpop.f32.mrf.mxu0
        %v10980 = vadd.f32 %v10748, %v10979
        %v10981 = vpop.f32.mrf.mxu0
        %10982 = vdwg.mxu0
        %10983 = vst.msk [vmem:[%s403] sm:$0xff] %vm557, %v10857
        %10984 = vst.msk [vmem:[%s403 + $0x8] sm:$0xff] %vm557, %v10860
        %10985 = vst.msk [vmem:[%s403 + $0x10] sm:$0xff] %vm557, %v10865
        %10986 = vst.msk [vmem:[%s403 + $0x18] sm:$0xff] %vm557, %v10868
        %10987 = vst.msk [vmem:[%s403 + $0x20] sm:$0xff] %vm557, %v10873
        %10988 = vst.msk [vmem:[%s403 + $0x28] sm:$0xff] %vm557, %v10876
        %10989 = vst.msk [vmem:[%s403 + $0x30] sm:$0xff] %vm557, %v10881
        %10990 = vst.msk [vmem:[%s403 + $0x38] sm:$0xff] %vm557, %v10884
        %10991 = vst.msk [vmem:[%s403 + $0x40] sm:$0xff] %vm557, %v10889
        %10992 = vst.msk [vmem:[%s403 + $0x48] sm:$0xff] %vm557, %v10892
        %10993 = vst.msk [vmem:[%s403 + $0x50] sm:$0xff] %vm557, %v10897
        %10994 = vst.msk [vmem:[%s403 + $0x58] sm:$0xff] %vm557, %v10900
        %10995 = vst.msk [vmem:[%s403 + $0x60] sm:$0xff] %vm557, %v10905
        %10996 = vst.msk [vmem:[%s403 + $0x68] sm:$0xff] %vm557, %v10908
        %10997 = vst.msk [vmem:[%s403 + $0x70] sm:$0xff] %vm557, %v10913
        %10998 = vst.msk [vmem:[%s403 + $0x78] sm:$0xff] %vm557, %v10916
        %10999 = vst.msk [vmem:[%s403 + $0x80] sm:$0xff] %vm557, %v10921
        %11000 = vst.msk [vmem:[%s403 + $0x88] sm:$0xff] %vm557, %v10924
        %11001 = vst.msk [vmem:[%s403 + $0x90] sm:$0xff] %vm557, %v10929
        %11002 = vst.msk [vmem:[%s403 + $0x98] sm:$0xff] %vm557, %v10932
        %11003 = vst.msk [vmem:[%s403 + $0xa0] sm:$0xff] %vm557, %v10937
        %11004 = vst.msk [vmem:[%s403 + $0xa8] sm:$0xff] %vm557, %v10940
        %11005 = vst.msk [vmem:[%s403 + $0xb0] sm:$0xff] %vm557, %v10945
        %11006 = vst.msk [vmem:[%s403 + $0xb8] sm:$0xff] %vm557, %v10948
        %11007 = vst.msk [vmem:[%s403 + $0xc0] sm:$0xff] %vm557, %v10953
        %11008 = vst.msk [vmem:[%s403 + $0xc8] sm:$0xff] %vm557, %v10956
        %11009 = vst.msk [vmem:[%s403 + $0xd0] sm:$0xff] %vm557, %v10961
        %11010 = vst.msk [vmem:[%s403 + $0xd8] sm:$0xff] %vm557, %v10964
        %11011 = vst.msk [vmem:[%s403 + $0xe0] sm:$0xff] %vm557, %v10969
        %11012 = vst.msk [vmem:[%s403 + $0xe8] sm:$0xff] %vm557, %v10972
        %11013 = vst.msk [vmem:[%s403 + $0xf0] sm:$0xff] %vm557, %v10977
        %11014 = vst.msk [vmem:[%s403 + $0xf8] sm:$0xff] %vm557, %v10980
        %s11015 = smul.u32 32, %s23
        %p11016 = scmp.lt.s32.totalorder %s11015, 63
        %s11017 = scalar_select %p11016, %s11015, 63
        %s11018 = smul.addr %s11017, 8
        %s11019 = scalar_lea.vmem %s11, %s11018
        // Predicated region
        $region69: #{tpu_custom_call.1} parent=63 // pred_check
          %p11020 = pneg %p277
        $region70: #{tpu_custom_call.1} parent=63 // pred_check_branch
          %11022 = sbr.rel (%p11020) target = $region72
        $region71: #{tpu_custom_call.1} parent=63 // pred_region
          %s11023 = smul.u32 32, %s23
        $region72: #{tpu_custom_call.1} parent=63 // pred_fallthru
          _
      $region64: #{tpu_custom_call.1} parent=5 // pred_fallthru
        _
      %p11024 = scmp.le.s32.totalorder 2, %s18
      // Predicated region
      $region73: #{tpu_custom_call.1} parent=5 // pred_check
        %p11025 = pneg %p11024
      $region74: #{tpu_custom_call.1} parent=5 // pred_check_branch
        %11027 = sbr.rel (%p11025) target = $region76
      $region75: #{tpu_custom_call.1} parent=5 // pred_region
        %s11028 = ssub.s32 %s18, 2
        // Predicated region
        $region77: #{tpu_custom_call.1} parent=75 // pred_check
          %p11029 = pneg %p283
        $region78: #{tpu_custom_call.1} parent=75 // pred_check_branch
          %11031 = sbr.rel (%p11029) target = $region80
        $region79: #{tpu_custom_call.1} parent=75 // pred_region
          %s11032 = smul.u32 32, %s24
          %p11033 = scmp.lt.s32.totalorder %s11032, 63
          %s11034 = scalar_select %p11033, %s11032, 63
          %s11035 = smul.addr %s11034, 8
          %s11036 = scalar_lea.vmem %s11, %s11035
        $region80: #{tpu_custom_call.1} parent=75 // pred_fallthru
          _
      $region76: #{tpu_custom_call.1} parent=5 // pred_fallthru
        _
    $region6: #{tpu_custom_call.1} parent=1 // loop_footer
      %s22 = sadd.s32 1, %s18
    $region7: #{tpu_custom_call.1} parent=1 // loop_footer_branch
      %17 = sbr.rel target = $region3
    $region8: #{tpu_custom_call.1} parent=1 // loop_exit
      _
    %11037 = vsyncpa [#allocation3], 1
    %s11038 = scalar_lea.sflag [#allocation3], 1
    %11039 = vsyncpa %s11038, 1

</llo_original>
